<compile_context>
chip_gen: v6e
topology: v6e:2x2x1
jax: 0.10.0
libtpu: 0.0.40
codegen_flags: <defaults>
</compile_context>

<pallas_src>
import functools

import jax
import jax.numpy as jnp
from jax.experimental import pallas as pl
from jax.experimental.pallas import tpu as pltpu

C_PAD = 128            # lane-dense channel width used for every stage
K_PACK = 9 * C_PAD     # 3x3 taps folded into the contraction dimension


# -----------------------------------------------------------------------------
# In-kernel helpers (pure value ops: slices, concats, reshapes, MXU dots).
# -----------------------------------------------------------------------------
def _pad_hw(a):
    """Zero-pad H and W by 1 on each side (NHWC value), via concatenations."""
    tb, h, w, c = a.shape
    zw = jnp.zeros((tb, h, 1, c), a.dtype)
    a = jnp.concatenate([zw, a, zw], axis=2)          # pad W (sublane dim)
    zh = jnp.zeros((tb, 1, w + 2, c), a.dtype)
    return jnp.concatenate([zh, a, zh], axis=1)       # pad H (outer dim)


def _conv_bn_relu_pool(a_pad, w_ref, s_ref, b_ref, tb, h, w):
    """a_pad: (tb, h+2, w+2, 128) f32 -> (tb, h//2, w//2, 128) f32."""
    # im2col: fold the 9 taps into the contraction dim -> ONE MXU matmul.
    taps = []
    for dy in range(3):
        for dx in range(3):
            taps.append(a_pad[:, dy:dy + h, dx:dx + w, :])      # (tb,h,w,128)
    patches = jnp.concatenate(taps, axis=-1)                    # (tb,h,w,9*128)
    patches = patches.reshape(tb * h * w, K_PACK).astype(jnp.bfloat16)
    y = jnp.dot(patches, w_ref[...], preferred_element_type=jnp.float32)
    y = y * s_ref[...] + b_ref[...]                             # folded BN+bias
    y = jnp.maximum(y, 0.0)                                     # ReLU
    # 2x2 max-pool, stride 2 (row-major flat layout; h and w are even).
    y = y.reshape(tb, h * w // 2, 2, C_PAD)
    y = jnp.maximum(y[:, :, 0, :], y[:, :, 1, :])               # pool along W
    y = y.reshape(tb, h // 2, 2, w // 2, C_PAD)
    y = jnp.maximum(y[:, :, 0, :, :], y[:, :, 1, :, :])         # pool along H
    return y                                                    # (tb,h/2,w/2,128)


def _cnn_kernel(x_ref,
                w1_ref, s1_ref, b1_ref,
                w2_ref, s2_ref, b2_ref,
                w3_ref, s3_ref, b3_ref,
                fcw_ref, fcb_ref,
                out_ref, *, TB, H, W):
    x = x_ref[...]                                              # (TB,H,W,128) f32

    a = _pad_hw(x)
    p1 = _conv_bn_relu_pool(a, w1_ref, s1_ref, b1_ref, TB, H, W)

    a = _pad_hw(p1)
    p2 = _conv_bn_relu_pool(a, w2_ref, s2_ref, b2_ref, TB, H // 2, W // 2)

    a = _pad_hw(p2)
    p3 = _conv_bn_relu_pool(a, w3_ref, s3_ref, b3_ref, TB, H // 4, W // 4)

    # Global average pool + fully-connected head (num_classes padded to 128).
    hw = (H // 8) * (W // 8)
    feat = jnp.mean(p3.reshape(TB, hw, C_PAD), axis=1)          # (TB, 128)
    logits = jnp.dot(feat.astype(jnp.bfloat16), fcw_ref[...],
                     preferred_element_type=jnp.float32) + fcb_ref[...]
    out_ref[...] = logits.astype(out_ref.dtype)


# -----------------------------------------------------------------------------
# Parameter packing (BN folding, channel padding, tap packing) and the wrapper.
# -----------------------------------------------------------------------------
def _fold_conv_bn(conv_w, conv_b, gamma, beta, mean, var, eps=1e-5):
    """HWIO conv + eval-mode BN -> packed (9*128,128) bf16 weights and
    (1,128) f32 scale/bias, channel-padded to 128 lanes."""
    scale = gamma / jnp.sqrt(var + eps)
    bias = (conv_b - mean) * scale + beta
    cin, cout = conv_w.shape[2], conv_w.shape[3]
    w = jnp.zeros((3, 3, C_PAD, C_PAD), jnp.float32)
    w = w.at[:, :, :cin, :cout].set(conv_w)
    w = w.reshape(K_PACK, C_PAD).astype(jnp.bfloat16)     # row = tap*128 + cin
    s = jnp.zeros((1, C_PAD), jnp.float32).at[0, :cout].set(scale)
    b = jnp.zeros((1, C_PAD), jnp.float32).at[0, :cout].set(bias)
    return w, s, b


@functools.partial(jax.jit, static_argnums=(2,))
def cnn_forward_pallas(x_nchw, params, num_classes):
    B, Cin, H, W = x_nchw.shape
    assert Cin == 3, "CNN expects 3 input channels"
    assert H % 8 == 0 and W % 8 == 0, "spatial dims must be divisible by 8"

    # NCHW -> NHWC and a one-time channel pad to the 128-lane width (fused by
    # XLA with the transpose).  Per-stage halo padding happens inside the kernel.
    x = jnp.transpose(x_nchw, (0, 2, 3, 1))
    x = jnp.pad(x, ((0, 0), (0, 0), (0, 0), (0, C_PAD - Cin)))

    packed = []
    for conv_name, bn_name in (("conv1", "bn1"), ("conv2", "bn2"), ("conv3", "bn3")):
        cw, cb = params[conv_name]
        g, be, m, v = params[bn_name]
        packed.extend(_fold_conv_bn(cw, cb, g, be, m, v))

    fcw = jnp.zeros((C_PAD, C_PAD), jnp.float32)
    fcw = fcw.at[:, :num_classes].set(params["fc_w"]).astype(jnp.bfloat16)
    fcb = jnp.zeros((1, C_PAD), jnp.float32)
    fcb = fcb.at[0, :num_classes].set(params["fc_b"].reshape(-1))

    # Batch tile: several images per grid step (amortizes per-step overhead and
    # raises the matmul M-dim); kept <= 4 so transients stay well under the
    # 32 MiB VMEM budget we request (safe on v5e/v6e/v7x).
    TB = max(t for t in (4, 2, 1) if B % t == 0)

    kernel = functools.partial(_cnn_kernel, TB=TB, H=H, W=W)
    wspec = pl.BlockSpec((K_PACK, C_PAD), lambda b: (0, 0))
    vspec = pl.BlockSpec((1, C_PAD), lambda b: (0, 0))

    out = pl.pallas_call(
        kernel,
        out_shape=jax.ShapeDtypeStruct((B, C_PAD), jnp.float32),
        grid=(B // TB,),
        in_specs=[
            pl.BlockSpec((TB, H, W, C_PAD), lambda b: (b, 0, 0, 0)),
            wspec, vspec, vspec,          # stage 1
            wspec, vspec, vspec,          # stage 2
            wspec, vspec, vspec,          # stage 3
            pl.BlockSpec((C_PAD, C_PAD), lambda b: (0, 0)),     # fc weight
            vspec,                                              # fc bias
        ],
        out_specs=pl.BlockSpec((TB, C_PAD), lambda b: (b, 0)),
        compiler_params=pltpu.CompilerParams(
            dimension_semantics=("parallel",),
            vmem_limit_bytes=32 * 1024 * 1024),
    )(x, *packed, fcw, fcb)

    return out[:, :num_classes]


# -----------------------------------------------------------------------------
# Pure-JAX f32 reference (eval-mode BN) for correctness.
# -----------------------------------------------------------------------------
def cnn_forward_reference(x_nchw, params, eps=1e-5):
    x = jnp.transpose(x_nchw, (0, 2, 3, 1))
    for conv_name, bn_name in (("conv1", "bn1"), ("conv2", "bn2"), ("conv3", "bn3")):
        w, b = params[conv_name]
        g, be, m, v = params[bn_name]
        y = jax.lax.conv_general_dilated(
            x, w, window_strides=(1, 1), padding="SAME",
            dimension_numbers=("NHWC", "HWIO", "NHWC")) + b
        y = (y - m) / jnp.sqrt(v + eps) * g + be
        y = jnp.maximum(y, 0.0)
        B, H, W, C = y.shape
        x = y.reshape(B, H // 2, 2, W // 2, 2, C).max(axis=(2, 4))
    feat = x.mean(axis=(1, 2))                                  # global avg pool
    return feat @ params["fc_w"] + params["fc_b"]


# -----------------------------------------------------------------------------
# Deterministic synthetic parameters.
# -----------------------------------------------------------------------------
def init_params(key, num_classes):
    ks = jax.random.split(key, 16)

    def conv_init(kw, kb, cin, cout):
        w = 0.05 * jax.random.normal(kw, (3, 3, cin, cout), jnp.float32)
        b = 0.05 * jax.random.normal(kb, (cout,), jnp.float32)
        return w, b

    def bn_init(k, c):
        k1, k2, k3, k4 = jax.random.split(k, 4)
        gamma = 1.0 + 0.1 * jax.random.normal(k1, (c,), jnp.float32)
        beta = 0.1 * jax.random.normal(k2, (c,), jnp.float32)
        mean = 0.1 * jax.random.normal(k3, (c,), jnp.float32)
        var = 1.0 + 0.5 * jax.random.uniform(k4, (c,), jnp.float32)
        return gamma, beta, mean, var

    p = {}
    p["conv1"] = conv_init(ks[0], ks[1], 3, 32)
    p["bn1"] = bn_init(ks[2], 32)
    p["conv2"] = conv_init(ks[3], ks[4], 32, 64)
    p["bn2"] = bn_init(ks[5], 64)
    p["conv3"] = conv_init(ks[6], ks[7], 64, 128)
    p["bn3"] = bn_init(ks[8], 128)
    p["fc_w"] = 0.05 * jax.random.normal(ks[9], (128, num_classes), jnp.float32)
    p["fc_b"] = 0.05 * jax.random.normal(ks[10], (1, num_classes), jnp.float32)
    return p


if __name__ == "__main__":
    num_classes = 10
    key = jax.random.PRNGKey(0)
    k_x, k_p = jax.random.split(key)

    # PyTorch-convention input: NCHW, 3 input channels.
    x = jax.random.normal(k_x, (2, 3, 16, 16), jnp.float32)
    params = init_params(k_p, num_classes)

    out = jax.block_until_ready(cnn_forward_pallas(x, params, num_classes))
    ref = jax.block_until_ready(cnn_forward_reference(x, params))

    assert out.shape == (2, num_classes), out.shape
    max_err = jnp.max(jnp.abs(out - ref))
    assert jnp.allclose(out, ref, rtol=1e-2, atol=1e-2), f"max abs diff {max_err}"

    print("KERNEL_OK")
</pallas_src>

<mosaic_0001>
module attributes {stable_mosaic.version = 11 : i64} {
  func.func @_cnn_kernel(%arg0: i32, %arg1: memref<2x16x16x128xf32, #tpu.memory_space<vmem>>, %arg2: memref<1152x128xbf16, #tpu.memory_space<vmem>>, %arg3: memref<1x128xf32, #tpu.memory_space<vmem>>, %arg4: memref<1x128xf32, #tpu.memory_space<vmem>>, %arg5: memref<1152x128xbf16, #tpu.memory_space<vmem>>, %arg6: memref<1x128xf32, #tpu.memory_space<vmem>>, %arg7: memref<1x128xf32, #tpu.memory_space<vmem>>, %arg8: memref<1152x128xbf16, #tpu.memory_space<vmem>>, %arg9: memref<1x128xf32, #tpu.memory_space<vmem>>, %arg10: memref<1x128xf32, #tpu.memory_space<vmem>>, %arg11: memref<128x128xbf16, #tpu.memory_space<vmem>>, %arg12: memref<1x128xf32, #tpu.memory_space<vmem>>, %arg13: memref<2x128xf32, #tpu.memory_space<vmem>>) attributes {dimension_semantics = [#tpu.dimension_semantics<parallel>], iteration_bounds = array<i64: 1>, scalar_prefetch = 0 : i64, scratch_operands = 0 : i64, tpu.core_type = #tpu.core_type<tc>, window_params = [{transform_indices = @transform_0, window_bounds = array<i64: 2, 16, 16, 128>}, {pipeline_mode = #tpu.pipeline_mode<synchronous>, transform_indices = @transform_1, window_bounds = array<i64: 1152, 128>}, {pipeline_mode = #tpu.pipeline_mode<synchronous>, transform_indices = @transform_2, window_bounds = array<i64: 1, 128>}, {pipeline_mode = #tpu.pipeline_mode<synchronous>, transform_indices = @transform_3, window_bounds = array<i64: 1, 128>}, {pipeline_mode = #tpu.pipeline_mode<synchronous>, transform_indices = @transform_4, window_bounds = array<i64: 1152, 128>}, {pipeline_mode = #tpu.pipeline_mode<synchronous>, transform_indices = @transform_5, window_bounds = array<i64: 1, 128>}, {pipeline_mode = #tpu.pipeline_mode<synchronous>, transform_indices = @transform_6, window_bounds = array<i64: 1, 128>}, {pipeline_mode = #tpu.pipeline_mode<synchronous>, transform_indices = @transform_7, window_bounds = array<i64: 1152, 128>}, {pipeline_mode = #tpu.pipeline_mode<synchronous>, transform_indices = @transform_8, window_bounds = array<i64: 1, 128>}, {pipeline_mode = #tpu.pipeline_mode<synchronous>, transform_indices = @transform_9, window_bounds = array<i64: 1, 128>}, {pipeline_mode = #tpu.pipeline_mode<synchronous>, transform_indices = @transform_10, window_bounds = array<i64: 128, 128>}, {pipeline_mode = #tpu.pipeline_mode<synchronous>, transform_indices = @transform_11, window_bounds = array<i64: 1, 128>}, {transform_indices = @transform_12, window_bounds = array<i64: 2, 128>}]} {
    %c0 = arith.constant 0 : index
    %c0_0 = arith.constant 0 : index
    %c0_1 = arith.constant 0 : index
    %c0_2 = arith.constant 0 : index
    %0 = vector.load %arg1[%c0, %c0_0, %c0_1, %c0_2] : memref<2x16x16x128xf32, #tpu.memory_space<vmem>>, vector<2x16x16x128xf32>
    %cst = arith.constant 0.000000e+00 : f32
    %1 = vector.broadcast %cst : f32 to vector<2x16x1x128xf32>
    %2 = tpu.concatenate %1, %0, %1 in 2 : vector<2x16x1x128xf32>, vector<2x16x16x128xf32>, vector<2x16x1x128xf32> -> vector<2x16x18x128xf32>
    %cst_3 = arith.constant 0.000000e+00 : f32
    %3 = vector.broadcast %cst_3 : f32 to vector<2x1x18x128xf32>
    %4 = tpu.concatenate %3, %2, %3 in 1 : vector<2x1x18x128xf32>, vector<2x16x18x128xf32>, vector<2x1x18x128xf32> -> vector<2x18x18x128xf32>
    %5 = vector.extract_strided_slice %4 {offsets = [0, 0, 0, 0], sizes = [2, 16, 16, 128], strides = [1, 1, 1, 1]} : vector<2x18x18x128xf32> to vector<2x16x16x128xf32>
    %6 = vector.extract_strided_slice %4 {offsets = [0, 0, 1, 0], sizes = [2, 16, 16, 128], strides = [1, 1, 1, 1]} : vector<2x18x18x128xf32> to vector<2x16x16x128xf32>
    %7 = vector.extract_strided_slice %4 {offsets = [0, 0, 2, 0], sizes = [2, 16, 16, 128], strides = [1, 1, 1, 1]} : vector<2x18x18x128xf32> to vector<2x16x16x128xf32>
    %8 = vector.extract_strided_slice %4 {offsets = [0, 1, 0, 0], sizes = [2, 16, 16, 128], strides = [1, 1, 1, 1]} : vector<2x18x18x128xf32> to vector<2x16x16x128xf32>
    %9 = vector.extract_strided_slice %4 {offsets = [0, 1, 1, 0], sizes = [2, 16, 16, 128], strides = [1, 1, 1, 1]} : vector<2x18x18x128xf32> to vector<2x16x16x128xf32>
    %10 = vector.extract_strided_slice %4 {offsets = [0, 1, 2, 0], sizes = [2, 16, 16, 128], strides = [1, 1, 1, 1]} : vector<2x18x18x128xf32> to vector<2x16x16x128xf32>
    %11 = vector.extract_strided_slice %4 {offsets = [0, 2, 0, 0], sizes = [2, 16, 16, 128], strides = [1, 1, 1, 1]} : vector<2x18x18x128xf32> to vector<2x16x16x128xf32>
    %12 = vector.extract_strided_slice %4 {offsets = [0, 2, 1, 0], sizes = [2, 16, 16, 128], strides = [1, 1, 1, 1]} : vector<2x18x18x128xf32> to vector<2x16x16x128xf32>
    %13 = vector.extract_strided_slice %4 {offsets = [0, 2, 2, 0], sizes = [2, 16, 16, 128], strides = [1, 1, 1, 1]} : vector<2x18x18x128xf32> to vector<2x16x16x128xf32>
    %14 = tpu.concatenate %5, %6, %7, %8, %9, %10, %11, %12, %13 in 3 : vector<2x16x16x128xf32>, vector<2x16x16x128xf32>, vector<2x16x16x128xf32>, vector<2x16x16x128xf32>, vector<2x16x16x128xf32>, vector<2x16x16x128xf32>, vector<2x16x16x128xf32>, vector<2x16x16x128xf32>, vector<2x16x16x128xf32> -> vector<2x16x16x1152xf32>
    %15 = vector.shape_cast %14 : vector<2x16x16x1152xf32> to vector<512x1152xf32>
    %16 = arith.truncf %15 : vector<512x1152xf32> to vector<512x1152xbf16>
    %c0_4 = arith.constant 0 : index
    %c0_5 = arith.constant 0 : index
    %17 = vector.load %arg2[%c0_4, %c0_5] : memref<1152x128xbf16, #tpu.memory_space<vmem>>, vector<1152x128xbf16>
    %cst_6 = arith.constant dense<0.000000e+00> : vector<512x128xf32>
    %18 = tpu.matmul %16, %17, %cst_6 {dimension_numbers = #tpu.dot_dimension_numbers<[1], [0], [0], [1], [0, 0, 1, 1], [], []>} : vector<512x1152xbf16>, vector<1152x128xbf16>, vector<512x128xf32> -> vector<512x128xf32>
    %c0_7 = arith.constant 0 : index
    %c0_8 = arith.constant 0 : index
    %19 = vector.load %arg3[%c0_7, %c0_8] : memref<1x128xf32, #tpu.memory_space<vmem>>, vector<1x128xf32>
    %20 = vector.broadcast %19 : vector<1x128xf32> to vector<512x128xf32>
    %21 = arith.mulf %18, %20 : vector<512x128xf32>
    %c0_9 = arith.constant 0 : index
    %c0_10 = arith.constant 0 : index
    %22 = vector.load %arg4[%c0_9, %c0_10] : memref<1x128xf32, #tpu.memory_space<vmem>>, vector<1x128xf32>
    %23 = vector.broadcast %22 : vector<1x128xf32> to vector<512x128xf32>
    %24 = arith.addf %21, %23 : vector<512x128xf32>
    %cst_11 = arith.constant 0.000000e+00 : f32
    %25 = vector.broadcast %cst_11 : f32 to vector<512x128xf32>
    %26 = arith.maximumf %24, %25 : vector<512x128xf32>
    %27 = vector.shape_cast %26 : vector<512x128xf32> to vector<2x128x2x128xf32>
    %28 = vector.extract_strided_slice %27 {offsets = [0, 0, 0, 0], sizes = [2, 128, 1, 128], strides = [1, 1, 1, 1]} : vector<2x128x2x128xf32> to vector<2x128x1x128xf32>
    %29 = vector.shape_cast %28 : vector<2x128x1x128xf32> to vector<2x128x128xf32>
    %30 = vector.extract_strided_slice %27 {offsets = [0, 0, 1, 0], sizes = [2, 128, 1, 128], strides = [1, 1, 1, 1]} : vector<2x128x2x128xf32> to vector<2x128x1x128xf32>
    %31 = vector.shape_cast %30 : vector<2x128x1x128xf32> to vector<2x128x128xf32>
    %32 = arith.maximumf %29, %31 : vector<2x128x128xf32>
    %33 = vector.shape_cast %32 : vector<2x128x128xf32> to vector<2x8x2x8x128xf32>
    %34 = vector.extract_strided_slice %33 {offsets = [0, 0, 0, 0, 0], sizes = [2, 8, 1, 8, 128], strides = [1, 1, 1, 1, 1]} : vector<2x8x2x8x128xf32> to vector<2x8x1x8x128xf32>
    %35 = vector.shape_cast %34 : vector<2x8x1x8x128xf32> to vector<2x8x8x128xf32>
    %36 = vector.extract_strided_slice %33 {offsets = [0, 0, 1, 0, 0], sizes = [2, 8, 1, 8, 128], strides = [1, 1, 1, 1, 1]} : vector<2x8x2x8x128xf32> to vector<2x8x1x8x128xf32>
    %37 = vector.shape_cast %36 : vector<2x8x1x8x128xf32> to vector<2x8x8x128xf32>
    %38 = arith.maximumf %35, %37 : vector<2x8x8x128xf32>
    %cst_12 = arith.constant 0.000000e+00 : f32
    %39 = vector.broadcast %cst_12 : f32 to vector<2x8x1x128xf32>
    %40 = tpu.concatenate %39, %38, %39 in 2 : vector<2x8x1x128xf32>, vector<2x8x8x128xf32>, vector<2x8x1x128xf32> -> vector<2x8x10x128xf32>
    %cst_13 = arith.constant 0.000000e+00 : f32
    %41 = vector.broadcast %cst_13 : f32 to vector<2x1x10x128xf32>
    %42 = tpu.concatenate %41, %40, %41 in 1 : vector<2x1x10x128xf32>, vector<2x8x10x128xf32>, vector<2x1x10x128xf32> -> vector<2x10x10x128xf32>
    %43 = vector.extract_strided_slice %42 {offsets = [0, 0, 0, 0], sizes = [2, 8, 8, 128], strides = [1, 1, 1, 1]} : vector<2x10x10x128xf32> to vector<2x8x8x128xf32>
    %44 = vector.extract_strided_slice %42 {offsets = [0, 0, 1, 0], sizes = [2, 8, 8, 128], strides = [1, 1, 1, 1]} : vector<2x10x10x128xf32> to vector<2x8x8x128xf32>
    %45 = vector.extract_strided_slice %42 {offsets = [0, 0, 2, 0], sizes = [2, 8, 8, 128], strides = [1, 1, 1, 1]} : vector<2x10x10x128xf32> to vector<2x8x8x128xf32>
    %46 = vector.extract_strided_slice %42 {offsets = [0, 1, 0, 0], sizes = [2, 8, 8, 128], strides = [1, 1, 1, 1]} : vector<2x10x10x128xf32> to vector<2x8x8x128xf32>
    %47 = vector.extract_strided_slice %42 {offsets = [0, 1, 1, 0], sizes = [2, 8, 8, 128], strides = [1, 1, 1, 1]} : vector<2x10x10x128xf32> to vector<2x8x8x128xf32>
    %48 = vector.extract_strided_slice %42 {offsets = [0, 1, 2, 0], sizes = [2, 8, 8, 128], strides = [1, 1, 1, 1]} : vector<2x10x10x128xf32> to vector<2x8x8x128xf32>
    %49 = vector.extract_strided_slice %42 {offsets = [0, 2, 0, 0], sizes = [2, 8, 8, 128], strides = [1, 1, 1, 1]} : vector<2x10x10x128xf32> to vector<2x8x8x128xf32>
    %50 = vector.extract_strided_slice %42 {offsets = [0, 2, 1, 0], sizes = [2, 8, 8, 128], strides = [1, 1, 1, 1]} : vector<2x10x10x128xf32> to vector<2x8x8x128xf32>
    %51 = vector.extract_strided_slice %42 {offsets = [0, 2, 2, 0], sizes = [2, 8, 8, 128], strides = [1, 1, 1, 1]} : vector<2x10x10x128xf32> to vector<2x8x8x128xf32>
    %52 = tpu.concatenate %43, %44, %45, %46, %47, %48, %49, %50, %51 in 3 : vector<2x8x8x128xf32>, vector<2x8x8x128xf32>, vector<2x8x8x128xf32>, vector<2x8x8x128xf32>, vector<2x8x8x128xf32>, vector<2x8x8x128xf32>, vector<2x8x8x128xf32>, vector<2x8x8x128xf32>, vector<2x8x8x128xf32> -> vector<2x8x8x1152xf32>
    %53 = vector.shape_cast %52 : vector<2x8x8x1152xf32> to vector<128x1152xf32>
    %54 = arith.truncf %53 : vector<128x1152xf32> to vector<128x1152xbf16>
    %c0_14 = arith.constant 0 : index
    %c0_15 = arith.constant 0 : index
    %55 = vector.load %arg5[%c0_14, %c0_15] : memref<1152x128xbf16, #tpu.memory_space<vmem>>, vector<1152x128xbf16>
    %cst_16 = arith.constant dense<0.000000e+00> : vector<128x128xf32>
    %56 = tpu.matmul %54, %55, %cst_16 {dimension_numbers = #tpu.dot_dimension_numbers<[1], [0], [0], [1], [0, 0, 1, 1], [], []>} : vector<128x1152xbf16>, vector<1152x128xbf16>, vector<128x128xf32> -> vector<128x128xf32>
    %c0_17 = arith.constant 0 : index
    %c0_18 = arith.constant 0 : index
    %57 = vector.load %arg6[%c0_17, %c0_18] : memref<1x128xf32, #tpu.memory_space<vmem>>, vector<1x128xf32>
    %58 = vector.broadcast %57 : vector<1x128xf32> to vector<128x128xf32>
    %59 = arith.mulf %56, %58 : vector<128x128xf32>
    %c0_19 = arith.constant 0 : index
    %c0_20 = arith.constant 0 : index
    %60 = vector.load %arg7[%c0_19, %c0_20] : memref<1x128xf32, #tpu.memory_space<vmem>>, vector<1x128xf32>
    %61 = vector.broadcast %60 : vector<1x128xf32> to vector<128x128xf32>
    %62 = arith.addf %59, %61 : vector<128x128xf32>
    %cst_21 = arith.constant 0.000000e+00 : f32
    %63 = vector.broadcast %cst_21 : f32 to vector<128x128xf32>
    %64 = arith.maximumf %62, %63 : vector<128x128xf32>
    %65 = vector.shape_cast %64 : vector<128x128xf32> to vector<2x32x2x128xf32>
    %66 = vector.extract_strided_slice %65 {offsets = [0, 0, 0, 0], sizes = [2, 32, 1, 128], strides = [1, 1, 1, 1]} : vector<2x32x2x128xf32> to vector<2x32x1x128xf32>
    %67 = vector.shape_cast %66 : vector<2x32x1x128xf32> to vector<2x32x128xf32>
    %68 = vector.extract_strided_slice %65 {offsets = [0, 0, 1, 0], sizes = [2, 32, 1, 128], strides = [1, 1, 1, 1]} : vector<2x32x2x128xf32> to vector<2x32x1x128xf32>
    %69 = vector.shape_cast %68 : vector<2x32x1x128xf32> to vector<2x32x128xf32>
    %70 = arith.maximumf %67, %69 : vector<2x32x128xf32>
    %71 = vector.shape_cast %70 : vector<2x32x128xf32> to vector<2x4x2x4x128xf32>
    %72 = vector.extract_strided_slice %71 {offsets = [0, 0, 0, 0, 0], sizes = [2, 4, 1, 4, 128], strides = [1, 1, 1, 1, 1]} : vector<2x4x2x4x128xf32> to vector<2x4x1x4x128xf32>
    %73 = vector.shape_cast %72 : vector<2x4x1x4x128xf32> to vector<2x4x4x128xf32>
    %74 = vector.extract_strided_slice %71 {offsets = [0, 0, 1, 0, 0], sizes = [2, 4, 1, 4, 128], strides = [1, 1, 1, 1, 1]} : vector<2x4x2x4x128xf32> to vector<2x4x1x4x128xf32>
    %75 = vector.shape_cast %74 : vector<2x4x1x4x128xf32> to vector<2x4x4x128xf32>
    %76 = arith.maximumf %73, %75 : vector<2x4x4x128xf32>
    %cst_22 = arith.constant 0.000000e+00 : f32
    %77 = vector.broadcast %cst_22 : f32 to vector<2x4x1x128xf32>
    %78 = tpu.concatenate %77, %76, %77 in 2 : vector<2x4x1x128xf32>, vector<2x4x4x128xf32>, vector<2x4x1x128xf32> -> vector<2x4x6x128xf32>
    %cst_23 = arith.constant 0.000000e+00 : f32
    %79 = vector.broadcast %cst_23 : f32 to vector<2x1x6x128xf32>
    %80 = tpu.concatenate %79, %78, %79 in 1 : vector<2x1x6x128xf32>, vector<2x4x6x128xf32>, vector<2x1x6x128xf32> -> vector<2x6x6x128xf32>
    %81 = vector.extract_strided_slice %80 {offsets = [0, 0, 0, 0], sizes = [2, 4, 4, 128], strides = [1, 1, 1, 1]} : vector<2x6x6x128xf32> to vector<2x4x4x128xf32>
    %82 = vector.extract_strided_slice %80 {offsets = [0, 0, 1, 0], sizes = [2, 4, 4, 128], strides = [1, 1, 1, 1]} : vector<2x6x6x128xf32> to vector<2x4x4x128xf32>
    %83 = vector.extract_strided_slice %80 {offsets = [0, 0, 2, 0], sizes = [2, 4, 4, 128], strides = [1, 1, 1, 1]} : vector<2x6x6x128xf32> to vector<2x4x4x128xf32>
    %84 = vector.extract_strided_slice %80 {offsets = [0, 1, 0, 0], sizes = [2, 4, 4, 128], strides = [1, 1, 1, 1]} : vector<2x6x6x128xf32> to vector<2x4x4x128xf32>
    %85 = vector.extract_strided_slice %80 {offsets = [0, 1, 1, 0], sizes = [2, 4, 4, 128], strides = [1, 1, 1, 1]} : vector<2x6x6x128xf32> to vector<2x4x4x128xf32>
    %86 = vector.extract_strided_slice %80 {offsets = [0, 1, 2, 0], sizes = [2, 4, 4, 128], strides = [1, 1, 1, 1]} : vector<2x6x6x128xf32> to vector<2x4x4x128xf32>
    %87 = vector.extract_strided_slice %80 {offsets = [0, 2, 0, 0], sizes = [2, 4, 4, 128], strides = [1, 1, 1, 1]} : vector<2x6x6x128xf32> to vector<2x4x4x128xf32>
    %88 = vector.extract_strided_slice %80 {offsets = [0, 2, 1, 0], sizes = [2, 4, 4, 128], strides = [1, 1, 1, 1]} : vector<2x6x6x128xf32> to vector<2x4x4x128xf32>
    %89 = vector.extract_strided_slice %80 {offsets = [0, 2, 2, 0], sizes = [2, 4, 4, 128], strides = [1, 1, 1, 1]} : vector<2x6x6x128xf32> to vector<2x4x4x128xf32>
    %90 = tpu.concatenate %81, %82, %83, %84, %85, %86, %87, %88, %89 in 3 : vector<2x4x4x128xf32>, vector<2x4x4x128xf32>, vector<2x4x4x128xf32>, vector<2x4x4x128xf32>, vector<2x4x4x128xf32>, vector<2x4x4x128xf32>, vector<2x4x4x128xf32>, vector<2x4x4x128xf32>, vector<2x4x4x128xf32> -> vector<2x4x4x1152xf32>
    %91 = vector.shape_cast %90 : vector<2x4x4x1152xf32> to vector<32x1152xf32>
    %92 = arith.truncf %91 : vector<32x1152xf32> to vector<32x1152xbf16>
    %c0_24 = arith.constant 0 : index
    %c0_25 = arith.constant 0 : index
    %93 = vector.load %arg8[%c0_24, %c0_25] : memref<1152x128xbf16, #tpu.memory_space<vmem>>, vector<1152x128xbf16>
    %cst_26 = arith.constant dense<0.000000e+00> : vector<32x128xf32>
    %94 = tpu.matmul %92, %93, %cst_26 {dimension_numbers = #tpu.dot_dimension_numbers<[1], [0], [0], [1], [0, 0, 1, 1], [], []>} : vector<32x1152xbf16>, vector<1152x128xbf16>, vector<32x128xf32> -> vector<32x128xf32>
    %c0_27 = arith.constant 0 : index
    %c0_28 = arith.constant 0 : index
    %95 = vector.load %arg9[%c0_27, %c0_28] : memref<1x128xf32, #tpu.memory_space<vmem>>, vector<1x128xf32>
    %96 = vector.broadcast %95 : vector<1x128xf32> to vector<32x128xf32>
    %97 = arith.mulf %94, %96 : vector<32x128xf32>
    %c0_29 = arith.constant 0 : index
    %c0_30 = arith.constant 0 : index
    %98 = vector.load %arg10[%c0_29, %c0_30] : memref<1x128xf32, #tpu.memory_space<vmem>>, vector<1x128xf32>
    %99 = vector.broadcast %98 : vector<1x128xf32> to vector<32x128xf32>
    %100 = arith.addf %97, %99 : vector<32x128xf32>
    %cst_31 = arith.constant 0.000000e+00 : f32
    %101 = vector.broadcast %cst_31 : f32 to vector<32x128xf32>
    %102 = arith.maximumf %100, %101 : vector<32x128xf32>
    %103 = vector.shape_cast %102 : vector<32x128xf32> to vector<2x8x2x128xf32>
    %104 = vector.extract_strided_slice %103 {offsets = [0, 0, 0, 0], sizes = [2, 8, 1, 128], strides = [1, 1, 1, 1]} : vector<2x8x2x128xf32> to vector<2x8x1x128xf32>
    %105 = vector.shape_cast %104 : vector<2x8x1x128xf32> to vector<2x8x128xf32>
    %106 = vector.extract_strided_slice %103 {offsets = [0, 0, 1, 0], sizes = [2, 8, 1, 128], strides = [1, 1, 1, 1]} : vector<2x8x2x128xf32> to vector<2x8x1x128xf32>
    %107 = vector.shape_cast %106 : vector<2x8x1x128xf32> to vector<2x8x128xf32>
    %108 = arith.maximumf %105, %107 : vector<2x8x128xf32>
    %109 = vector.shape_cast %108 : vector<2x8x128xf32> to vector<2x2x2x2x128xf32>
    %110 = vector.extract_strided_slice %109 {offsets = [0, 0, 0, 0, 0], sizes = [2, 2, 1, 2, 128], strides = [1, 1, 1, 1, 1]} : vector<2x2x2x2x128xf32> to vector<2x2x1x2x128xf32>
    %111 = vector.shape_cast %110 : vector<2x2x1x2x128xf32> to vector<2x2x2x128xf32>
    %112 = vector.extract_strided_slice %109 {offsets = [0, 0, 1, 0, 0], sizes = [2, 2, 1, 2, 128], strides = [1, 1, 1, 1, 1]} : vector<2x2x2x2x128xf32> to vector<2x2x1x2x128xf32>
    %113 = vector.shape_cast %112 : vector<2x2x1x2x128xf32> to vector<2x2x2x128xf32>
    %114 = arith.maximumf %111, %113 : vector<2x2x2x128xf32>
    %115 = vector.shape_cast %114 : vector<2x2x2x128xf32> to vector<2x4x128xf32>
    %cst_32 = arith.constant dense<0.000000e+00> : vector<2x128xf32>
    %116 = vector.multi_reduction <add>, %115, %cst_32 [1] : vector<2x4x128xf32> to vector<2x128xf32>
    %cst_33 = arith.constant 4.000000e+00 : f32
    %117 = vector.broadcast %cst_33 : f32 to vector<2x128xf32>
    %118 = arith.divf %116, %117 : vector<2x128xf32>
    %119 = arith.truncf %118 : vector<2x128xf32> to vector<2x128xbf16>
    %c0_34 = arith.constant 0 : index
    %c0_35 = arith.constant 0 : index
    %120 = vector.load %arg11[%c0_34, %c0_35] : memref<128x128xbf16, #tpu.memory_space<vmem>>, vector<128x128xbf16>
    %cst_36 = arith.constant dense<0.000000e+00> : vector<2x128xf32>
    %121 = tpu.matmul %119, %120, %cst_36 {dimension_numbers = #tpu.dot_dimension_numbers<[1], [0], [0], [1], [0, 0, 1, 1], [], []>} : vector<2x128xbf16>, vector<128x128xbf16>, vector<2x128xf32> -> vector<2x128xf32>
    %c0_37 = arith.constant 0 : index
    %c0_38 = arith.constant 0 : index
    %122 = vector.load %arg12[%c0_37, %c0_38] : memref<1x128xf32, #tpu.memory_space<vmem>>, vector<1x128xf32>
    %123 = vector.broadcast %122 : vector<1x128xf32> to vector<2x128xf32>
    %124 = arith.addf %121, %123 : vector<2x128xf32>
    %c0_39 = arith.constant 0 : index
    %c0_40 = arith.constant 0 : index
    %125 = vector.load %arg13[%c0_39, %c0_40] : memref<2x128xf32, #tpu.memory_space<vmem>>, vector<2x128xf32>
    tpu.vector_store %arg13[%c0_39, %c0_40], %124 {strides = array<i32>} : memref<2x128xf32, #tpu.memory_space<vmem>>, vector<2x128xf32>,
    return
  }
  func.func @transform_0(%arg0: i32) -> (i32, i32, i32, i32) {
    %c0_i32 = arith.constant 0 : i32
    %c0_i32_0 = arith.constant 0 : i32
    %c0_i32_1 = arith.constant 0 : i32
    %c0_i32_2 = arith.constant 0 : i32
    return %arg0, %c0_i32, %c0_i32_0, %c0_i32_1 : i32, i32, i32, i32
  }
  func.func @transform_1(%arg0: i32) -> (i32, i32) {
    %c0_i32 = arith.constant 0 : i32
    %c0_i32_0 = arith.constant 0 : i32
    %c0_i32_1 = arith.constant 0 : i32
    return %c0_i32, %c0_i32_0 : i32, i32
  }
  func.func @transform_2(%arg0: i32) -> (i32, i32) {
    %c0_i32 = arith.constant 0 : i32
    %c0_i32_0 = arith.constant 0 : i32
    %c0_i32_1 = arith.constant 0 : i32
    return %c0_i32, %c0_i32_0 : i32, i32
  }
  func.func @transform_3(%arg0: i32) -> (i32, i32) {
    %c0_i32 = arith.constant 0 : i32
    %c0_i32_0 = arith.constant 0 : i32
    %c0_i32_1 = arith.constant 0 : i32
    return %c0_i32, %c0_i32_0 : i32, i32
  }
  func.func @transform_4(%arg0: i32) -> (i32, i32) {
    %c0_i32 = arith.constant 0 : i32
    %c0_i32_0 = arith.constant 0 : i32
    %c0_i32_1 = arith.constant 0 : i32
    return %c0_i32, %c0_i32_0 : i32, i32
  }
  func.func @transform_5(%arg0: i32) -> (i32, i32) {
    %c0_i32 = arith.constant 0 : i32
    %c0_i32_0 = arith.constant 0 : i32
    %c0_i32_1 = arith.constant 0 : i32
    return %c0_i32, %c0_i32_0 : i32, i32
  }
  func.func @transform_6(%arg0: i32) -> (i32, i32) {
    %c0_i32 = arith.constant 0 : i32
    %c0_i32_0 = arith.constant 0 : i32
    %c0_i32_1 = arith.constant 0 : i32
    return %c0_i32, %c0_i32_0 : i32, i32
  }
  func.func @transform_7(%arg0: i32) -> (i32, i32) {
    %c0_i32 = arith.constant 0 : i32
    %c0_i32_0 = arith.constant 0 : i32
    %c0_i32_1 = arith.constant 0 : i32
    return %c0_i32, %c0_i32_0 : i32, i32
  }
  func.func @transform_8(%arg0: i32) -> (i32, i32) {
    %c0_i32 = arith.constant 0 : i32
    %c0_i32_0 = arith.constant 0 : i32
    %c0_i32_1 = arith.constant 0 : i32
    return %c0_i32, %c0_i32_0 : i32, i32
  }
  func.func @transform_9(%arg0: i32) -> (i32, i32) {
    %c0_i32 = arith.constant 0 : i32
    %c0_i32_0 = arith.constant 0 : i32
    %c0_i32_1 = arith.constant 0 : i32
    return %c0_i32, %c0_i32_0 : i32, i32
  }
  func.func @transform_10(%arg0: i32) -> (i32, i32) {
    %c0_i32 = arith.constant 0 : i32
    %c0_i32_0 = arith.constant 0 : i32
    %c0_i32_1 = arith.constant 0 : i32
    return %c0_i32, %c0_i32_0 : i32, i32
  }
  func.func @transform_11(%arg0: i32) -> (i32, i32) {
    %c0_i32 = arith.constant 0 : i32
    %c0_i32_0 = arith.constant 0 : i32
    %c0_i32_1 = arith.constant 0 : i32
    return %c0_i32, %c0_i32_0 : i32, i32
  }
  func.func @transform_12(%arg0: i32) -> (i32, i32) {
    %c0_i32 = arith.constant 0 : i32
    %c0_i32_0 = arith.constant 0 : i32
    return %arg0, %c0_i32 : i32, i32
  }
}

</mosaic_0001>

<llo_original>
// kernel: cnn_forward_pallas.1
$region0: #{cnn_forward_pallas.1}
  #allocation0 [shape = 'u32[]', space=smem, size = 0x4, offset = 0x4, fixed_abs, tag = 'smem constant byte address 0x4 - core index']
  #allocation1 [shape = 'u32[144,128]{1,0:T(1,128)}', space=vmem, size = 0x12000, scoped, tag = 'internal scratch']
  %s0 = inlined_call_operand.vmem [shape: f32[2,16,16,128], index: 0, kind: input, shape index: {}]
  %s1 = inlined_call_operand.vmem [shape: bf16[1152,128], index: 1, kind: input, shape index: {}]
  %s2 = inlined_call_operand.vmem [shape: f32[1,128], index: 2, kind: input, shape index: {}]
  %s3 = inlined_call_operand.vmem [shape: f32[1,128], index: 3, kind: input, shape index: {}]
  %s4 = inlined_call_operand.vmem [shape: bf16[1152,128], index: 4, kind: input, shape index: {}]
  %s5 = inlined_call_operand.vmem [shape: f32[1,128], index: 5, kind: input, shape index: {}]
  %s6 = inlined_call_operand.vmem [shape: f32[1,128], index: 6, kind: input, shape index: {}]
  %s7 = inlined_call_operand.vmem [shape: bf16[1152,128], index: 7, kind: input, shape index: {}]
  %s8 = inlined_call_operand.vmem [shape: f32[1,128], index: 8, kind: input, shape index: {}]
  %s9 = inlined_call_operand.vmem [shape: f32[1,128], index: 9, kind: input, shape index: {}]
  %s10 = inlined_call_operand.vmem [shape: bf16[128,128], index: 10, kind: input, shape index: {}]
  %s11 = inlined_call_operand.vmem [shape: f32[1,128], index: 11, kind: input, shape index: {}]
  %s12 = inlined_call_operand.hbm [shape: f32[2,128], index: 12, kind: output, shape index: {}]
  %s13 = sld [smem:[#allocation0]]
  $region58: #{cnn_forward_pallas.1} parent=0
    _
  %s15 = ssub.s32 1, %s13
  %s16 = scalar_select 0, %s15, %s13
  $region1: #{cnn_forward_pallas.1} parent=0
    #allocation2 [shape = 'u8[1024]{0}', space=vmem, size = 0x400, scoped, tag = 'output window, operand 0, single buffered']
    #allocation3 [shape = 's32[1]{0}', space=sflag, size = 0x4, scoped, tag = 'scoped memory for cnn_forward_pallas.1']
    %17 = vsyncpa [#allocation3], 0
    // Predicated region
    $region2: #{cnn_forward_pallas.1} parent=1 // pred_check
      _
    $region3: #{cnn_forward_pallas.1} parent=1 // pred_check_branch
      %19 = sbr.rel (0) target = $region5
    $region4: #{cnn_forward_pallas.1} parent=1 // pred_region
      _
    $region5: #{cnn_forward_pallas.1} parent=1 // pred_fallthru
      _
    // Predicated region
    $region6: #{cnn_forward_pallas.1} parent=1 // pred_check
      _
    $region7: #{cnn_forward_pallas.1} parent=1 // pred_check_branch
      %21 = sbr.rel (0) target = $region9
    $region8: #{cnn_forward_pallas.1} parent=1 // pred_region
      _
    $region9: #{cnn_forward_pallas.1} parent=1 // pred_fallthru
      _
    // Predicated region
    $region10: #{cnn_forward_pallas.1} parent=1 // pred_check
      _
    $region11: #{cnn_forward_pallas.1} parent=1 // pred_check_branch
      %23 = sbr.rel (0) target = $region13
    $region12: #{cnn_forward_pallas.1} parent=1 // pred_region
      _
    $region13: #{cnn_forward_pallas.1} parent=1 // pred_fallthru
      _
    // Predicated region
    $region14: #{cnn_forward_pallas.1} parent=1 // pred_check
      _
    $region15: #{cnn_forward_pallas.1} parent=1 // pred_check_branch
      %25 = sbr.rel (0) target = $region17
    $region16: #{cnn_forward_pallas.1} parent=1 // pred_region
      _
    $region17: #{cnn_forward_pallas.1} parent=1 // pred_fallthru
      _
    // Predicated region
    $region18: #{cnn_forward_pallas.1} parent=1 // pred_check
      _
    $region19: #{cnn_forward_pallas.1} parent=1 // pred_check_branch
      %27 = sbr.rel (0) target = $region21
    $region20: #{cnn_forward_pallas.1} parent=1 // pred_region
      _
    $region21: #{cnn_forward_pallas.1} parent=1 // pred_fallthru
      _
    // Predicated region
    $region22: #{cnn_forward_pallas.1} parent=1 // pred_check
      _
    $region23: #{cnn_forward_pallas.1} parent=1 // pred_check_branch
      %29 = sbr.rel (0) target = $region25
    $region24: #{cnn_forward_pallas.1} parent=1 // pred_region
      _
    $region25: #{cnn_forward_pallas.1} parent=1 // pred_fallthru
      _
    // Predicated region
    $region26: #{cnn_forward_pallas.1} parent=1 // pred_check
      _
    $region27: #{cnn_forward_pallas.1} parent=1 // pred_check_branch
      %31 = sbr.rel (0) target = $region29
    $region28: #{cnn_forward_pallas.1} parent=1 // pred_region
      _
    $region29: #{cnn_forward_pallas.1} parent=1 // pred_fallthru
      _
    // Predicated region
    $region30: #{cnn_forward_pallas.1} parent=1 // pred_check
      _
    $region31: #{cnn_forward_pallas.1} parent=1 // pred_check_branch
      %33 = sbr.rel (0) target = $region33
    $region32: #{cnn_forward_pallas.1} parent=1 // pred_region
      _
    $region33: #{cnn_forward_pallas.1} parent=1 // pred_fallthru
      _
    // Predicated region
    $region34: #{cnn_forward_pallas.1} parent=1 // pred_check
      _
    $region35: #{cnn_forward_pallas.1} parent=1 // pred_check_branch
      %35 = sbr.rel (0) target = $region37
    $region36: #{cnn_forward_pallas.1} parent=1 // pred_region
      _
    $region37: #{cnn_forward_pallas.1} parent=1 // pred_fallthru
      _
    // Predicated region
    $region38: #{cnn_forward_pallas.1} parent=1 // pred_check
      _
    $region39: #{cnn_forward_pallas.1} parent=1 // pred_check_branch
      %37 = sbr.rel (0) target = $region41
    $region40: #{cnn_forward_pallas.1} parent=1 // pred_region
      _
    $region41: #{cnn_forward_pallas.1} parent=1 // pred_fallthru
      _
    // Predicated region
    $region42: #{cnn_forward_pallas.1} parent=1 // pred_check
      _
    $region43: #{cnn_forward_pallas.1} parent=1 // pred_check_branch
      %39 = sbr.rel (0) target = $region45
    $region44: #{cnn_forward_pallas.1} parent=1 // pred_region
      _
    $region45: #{cnn_forward_pallas.1} parent=1 // pred_fallthru
      _
    // Predicated region
    $region46: #{cnn_forward_pallas.1} parent=1 // pred_check
      _
    $region47: #{cnn_forward_pallas.1} parent=1 // pred_check_branch
      %41 = sbr.rel (0) target = $region49
    $region48: #{cnn_forward_pallas.1} parent=1 // pred_region
      _
    $region49: #{cnn_forward_pallas.1} parent=1 // pred_fallthru
      _
    %v43 = vld [vmem:[%s0] sm:$0xff]
    %v44 = vld [vmem:[%s0 + $0x8] sm:$0xff]
    %v45 = vld [vmem:[%s0 + $0x10] sm:$0xff]
    %v46 = vld [vmem:[%s0 + $0x18] sm:$0xff]
    %v47 = vld [vmem:[%s0 + $0x20] sm:$0xff]
    %v48 = vld [vmem:[%s0 + $0x28] sm:$0xff]
    %v49 = vld [vmem:[%s0 + $0x30] sm:$0xff]
    %v50 = vld [vmem:[%s0 + $0x38] sm:$0xff]
    %v51 = vld [vmem:[%s0 + $0x40] sm:$0xff]
    %v52 = vld [vmem:[%s0 + $0x48] sm:$0xff]
    %v53 = vld [vmem:[%s0 + $0x50] sm:$0xff]
    %v54 = vld [vmem:[%s0 + $0x58] sm:$0xff]
    %v55 = vld [vmem:[%s0 + $0x60] sm:$0xff]
    %v56 = vld [vmem:[%s0 + $0x68] sm:$0xff]
    %v57 = vld [vmem:[%s0 + $0x70] sm:$0xff]
    %v58 = vld [vmem:[%s0 + $0x78] sm:$0xff]
    %v59 = vld [vmem:[%s0 + $0x80] sm:$0xff]
    %v60 = vld [vmem:[%s0 + $0x88] sm:$0xff]
    %v61 = vld [vmem:[%s0 + $0x90] sm:$0xff]
    %v62 = vld [vmem:[%s0 + $0x98] sm:$0xff]
    %v63 = vld [vmem:[%s0 + $0xa0] sm:$0xff]
    %v64 = vld [vmem:[%s0 + $0xa8] sm:$0xff]
    %v65 = vld [vmem:[%s0 + $0xb0] sm:$0xff]
    %v66 = vld [vmem:[%s0 + $0xb8] sm:$0xff]
    %v67 = vld [vmem:[%s0 + $0xc0] sm:$0xff]
    %v68 = vld [vmem:[%s0 + $0xc8] sm:$0xff]
    %v69 = vld [vmem:[%s0 + $0xd0] sm:$0xff]
    %v70 = vld [vmem:[%s0 + $0xd8] sm:$0xff]
    %v71 = vld [vmem:[%s0 + $0xe0] sm:$0xff]
    %v72 = vld [vmem:[%s0 + $0xe8] sm:$0xff]
    %v73 = vld [vmem:[%s0 + $0xf0] sm:$0xff]
    %v74 = vld [vmem:[%s0 + $0xf8] sm:$0xff]
    %v75 = vld [vmem:[%s0 + $0x100] sm:$0xff]
    %v76 = vld [vmem:[%s0 + $0x108] sm:$0xff]
    %v77 = vld [vmem:[%s0 + $0x110] sm:$0xff]
    %v78 = vld [vmem:[%s0 + $0x118] sm:$0xff]
    %v79 = vld [vmem:[%s0 + $0x120] sm:$0xff]
    %v80 = vld [vmem:[%s0 + $0x128] sm:$0xff]
    %v81 = vld [vmem:[%s0 + $0x130] sm:$0xff]
    %v82 = vld [vmem:[%s0 + $0x138] sm:$0xff]
    %v83 = vld [vmem:[%s0 + $0x140] sm:$0xff]
    %v84 = vld [vmem:[%s0 + $0x148] sm:$0xff]
    %v85 = vld [vmem:[%s0 + $0x150] sm:$0xff]
    %v86 = vld [vmem:[%s0 + $0x158] sm:$0xff]
    %v87 = vld [vmem:[%s0 + $0x160] sm:$0xff]
    %v88 = vld [vmem:[%s0 + $0x168] sm:$0xff]
    %v89 = vld [vmem:[%s0 + $0x170] sm:$0xff]
    %v90 = vld [vmem:[%s0 + $0x178] sm:$0xff]
    %v91 = vld [vmem:[%s0 + $0x180] sm:$0xff]
    %v92 = vld [vmem:[%s0 + $0x188] sm:$0xff]
    %v93 = vld [vmem:[%s0 + $0x190] sm:$0xff]
    %v94 = vld [vmem:[%s0 + $0x198] sm:$0xff]
    %v95 = vld [vmem:[%s0 + $0x1a0] sm:$0xff]
    %v96 = vld [vmem:[%s0 + $0x1a8] sm:$0xff]
    %v97 = vld [vmem:[%s0 + $0x1b0] sm:$0xff]
    %v98 = vld [vmem:[%s0 + $0x1b8] sm:$0xff]
    %v99 = vld [vmem:[%s0 + $0x1c0] sm:$0xff]
    %v100 = vld [vmem:[%s0 + $0x1c8] sm:$0xff]
    %v101 = vld [vmem:[%s0 + $0x1d0] sm:$0xff]
    %v102 = vld [vmem:[%s0 + $0x1d8] sm:$0xff]
    %v103 = vld [vmem:[%s0 + $0x1e0] sm:$0xff]
    %v104 = vld [vmem:[%s0 + $0x1e8] sm:$0xff]
    %v105 = vld [vmem:[%s0 + $0x1f0] sm:$0xff]
    %v106 = vld [vmem:[%s0 + $0x1f8] sm:$0xff]
    %vm171 = vcmask 1040384
    %v172 = vrot.slane %v43, 7
    %v173 = vrot.slane %v44, 7
    %v174 = vsel %vm171, %v172, %v173
    %v175 = vrot.slane %v45, 7
    %v176 = vrot.slane %v46, 7
    %v177 = vsel %vm171, %v175, %v176
    %v178 = vrot.slane %v47, 7
    %v179 = vrot.slane %v48, 7
    %v180 = vsel %vm171, %v178, %v179
    %v181 = vrot.slane %v49, 7
    %v182 = vrot.slane %v50, 7
    %v183 = vsel %vm171, %v181, %v182
    %v184 = vrot.slane %v51, 7
    %v185 = vrot.slane %v52, 7
    %v186 = vsel %vm171, %v184, %v185
    %v187 = vrot.slane %v53, 7
    %v188 = vrot.slane %v54, 7
    %v189 = vsel %vm171, %v187, %v188
    %v190 = vrot.slane %v55, 7
    %v191 = vrot.slane %v56, 7
    %v192 = vsel %vm171, %v190, %v191
    %v193 = vrot.slane %v57, 7
    %v194 = vrot.slane %v58, 7
    %v195 = vsel %vm171, %v193, %v194
    %v196 = vrot.slane %v59, 7
    %v197 = vrot.slane %v60, 7
    %v198 = vsel %vm171, %v196, %v197
    %v199 = vrot.slane %v61, 7
    %v200 = vrot.slane %v62, 7
    %v201 = vsel %vm171, %v199, %v200
    %v202 = vrot.slane %v63, 7
    %v203 = vrot.slane %v64, 7
    %v204 = vsel %vm171, %v202, %v203
    %v205 = vrot.slane %v65, 7
    %v206 = vrot.slane %v66, 7
    %v207 = vsel %vm171, %v205, %v206
    %v208 = vrot.slane %v67, 7
    %v209 = vrot.slane %v68, 7
    %v210 = vsel %vm171, %v208, %v209
    %v211 = vrot.slane %v69, 7
    %v212 = vrot.slane %v70, 7
    %v213 = vsel %vm171, %v211, %v212
    %v214 = vrot.slane %v71, 7
    %v215 = vrot.slane %v72, 7
    %v216 = vsel %vm171, %v214, %v215
    %v217 = vrot.slane %v73, 7
    %v218 = vrot.slane %v74, 7
    %v219 = vsel %vm171, %v217, %v218
    %v220 = vrot.slane %v75, 7
    %v221 = vrot.slane %v76, 7
    %v222 = vsel %vm171, %v220, %v221
    %v223 = vrot.slane %v77, 7
    %v224 = vrot.slane %v78, 7
    %v225 = vsel %vm171, %v223, %v224
    %v226 = vrot.slane %v79, 7
    %v227 = vrot.slane %v80, 7
    %v228 = vsel %vm171, %v226, %v227
    %v229 = vrot.slane %v81, 7
    %v230 = vrot.slane %v82, 7
    %v231 = vsel %vm171, %v229, %v230
    %v232 = vrot.slane %v83, 7
    %v233 = vrot.slane %v84, 7
    %v234 = vsel %vm171, %v232, %v233
    %v235 = vrot.slane %v85, 7
    %v236 = vrot.slane %v86, 7
    %v237 = vsel %vm171, %v235, %v236
    %v238 = vrot.slane %v87, 7
    %v239 = vrot.slane %v88, 7
    %v240 = vsel %vm171, %v238, %v239
    %v241 = vrot.slane %v89, 7
    %v242 = vrot.slane %v90, 7
    %v243 = vsel %vm171, %v241, %v242
    %v244 = vrot.slane %v91, 7
    %v245 = vrot.slane %v92, 7
    %v246 = vsel %vm171, %v244, %v245
    %v247 = vrot.slane %v93, 7
    %v248 = vrot.slane %v94, 7
    %v249 = vsel %vm171, %v247, %v248
    %v250 = vrot.slane %v95, 7
    %v251 = vrot.slane %v96, 7
    %v252 = vsel %vm171, %v250, %v251
    %v253 = vrot.slane %v97, 7
    %v254 = vrot.slane %v98, 7
    %v255 = vsel %vm171, %v253, %v254
    %v256 = vrot.slane %v99, 7
    %v257 = vrot.slane %v100, 7
    %v258 = vsel %vm171, %v256, %v257
    %v259 = vrot.slane %v101, 7
    %v260 = vrot.slane %v102, 7
    %v261 = vsel %vm171, %v259, %v260
    %v262 = vrot.slane %v103, 7
    %v263 = vrot.slane %v104, 7
    %v264 = vsel %vm171, %v262, %v263
    %v265 = vrot.slane %v105, 7
    %v266 = vrot.slane %v106, 7
    %v267 = vsel %vm171, %v265, %v266
    %v364 = vsel %vm171, 0.0, %v172
    %v365 = vsel %vm171, 0.0, %v175
    %v366 = vsel %vm171, 0.0, %v178
    %v367 = vsel %vm171, 0.0, %v181
    %v368 = vsel %vm171, 0.0, %v184
    %v369 = vsel %vm171, 0.0, %v187
    %v370 = vsel %vm171, 0.0, %v190
    %v371 = vsel %vm171, 0.0, %v193
    %v372 = vsel %vm171, 0.0, %v196
    %v373 = vsel %vm171, 0.0, %v199
    %v374 = vsel %vm171, 0.0, %v202
    %v375 = vsel %vm171, 0.0, %v205
    %v376 = vsel %vm171, 0.0, %v208
    %v377 = vsel %vm171, 0.0, %v211
    %v378 = vsel %vm171, 0.0, %v214
    %v379 = vsel %vm171, 0.0, %v217
    %v380 = vsel %vm171, 0.0, %v220
    %v381 = vsel %vm171, 0.0, %v223
    %v382 = vsel %vm171, 0.0, %v226
    %v383 = vsel %vm171, 0.0, %v229
    %v384 = vsel %vm171, 0.0, %v232
    %v385 = vsel %vm171, 0.0, %v235
    %v386 = vsel %vm171, 0.0, %v238
    %v387 = vsel %vm171, 0.0, %v241
    %v388 = vsel %vm171, 0.0, %v244
    %v389 = vsel %vm171, 0.0, %v247
    %v390 = vsel %vm171, 0.0, %v250
    %v391 = vsel %vm171, 0.0, %v253
    %v392 = vsel %vm171, 0.0, %v256
    %v393 = vsel %vm171, 0.0, %v259
    %v394 = vsel %vm171, 0.0, %v262
    %v395 = vsel %vm171, 0.0, %v265
    %v396 = vsel %vm171, %v173, 0.0
    %v397 = vsel %vm171, %v176, 0.0
    %v398 = vsel %vm171, %v179, 0.0
    %v399 = vsel %vm171, %v182, 0.0
    %v400 = vsel %vm171, %v185, 0.0
    %v401 = vsel %vm171, %v188, 0.0
    %v402 = vsel %vm171, %v191, 0.0
    %v403 = vsel %vm171, %v194, 0.0
    %v404 = vsel %vm171, %v197, 0.0
    %v405 = vsel %vm171, %v200, 0.0
    %v406 = vsel %vm171, %v203, 0.0
    %v407 = vsel %vm171, %v206, 0.0
    %v408 = vsel %vm171, %v209, 0.0
    %v409 = vsel %vm171, %v212, 0.0
    %v410 = vsel %vm171, %v215, 0.0
    %v411 = vsel %vm171, %v218, 0.0
    %v412 = vsel %vm171, %v221, 0.0
    %v413 = vsel %vm171, %v224, 0.0
    %v414 = vsel %vm171, %v227, 0.0
    %v415 = vsel %vm171, %v230, 0.0
    %v416 = vsel %vm171, %v233, 0.0
    %v417 = vsel %vm171, %v236, 0.0
    %v418 = vsel %vm171, %v239, 0.0
    %v419 = vsel %vm171, %v242, 0.0
    %v420 = vsel %vm171, %v245, 0.0
    %v421 = vsel %vm171, %v248, 0.0
    %v422 = vsel %vm171, %v251, 0.0
    %v423 = vsel %vm171, %v254, 0.0
    %v424 = vsel %vm171, %v257, 0.0
    %v425 = vsel %vm171, %v260, 0.0
    %v426 = vsel %vm171, %v263, 0.0
    %v427 = vsel %vm171, %v266, 0.0
    %vm489 = vcmask 1046528
    %v490 = vrot.slane 0.0, 1
    %v491 = vsel %vm489, %v490, %v490
    %v492 = vrot.slane %v364, 1
    %v493 = vrot.slane %v174, 1
    %v494 = vsel %vm489, %v492, %v493
    %v495 = vrot.slane %v396, 1
    %v496 = vsel %vm489, %v493, %v495
    %v497 = vrot.slane %v365, 1
    %v498 = vrot.slane %v177, 1
    %v499 = vsel %vm489, %v497, %v498
    %v500 = vrot.slane %v397, 1
    %v501 = vsel %vm489, %v498, %v500
    %v502 = vrot.slane %v366, 1
    %v503 = vrot.slane %v180, 1
    %v504 = vsel %vm489, %v502, %v503
    %v505 = vrot.slane %v398, 1
    %v506 = vsel %vm489, %v503, %v505
    %v507 = vrot.slane %v367, 1
    %v508 = vrot.slane %v183, 1
    %v509 = vsel %vm489, %v507, %v508
    %v510 = vrot.slane %v399, 1
    %v511 = vsel %vm489, %v508, %v510
    %v512 = vrot.slane %v368, 1
    %v513 = vrot.slane %v186, 1
    %v514 = vsel %vm489, %v512, %v513
    %v515 = vrot.slane %v400, 1
    %v516 = vsel %vm489, %v513, %v515
    %v517 = vrot.slane %v369, 1
    %v518 = vrot.slane %v189, 1
    %v519 = vsel %vm489, %v517, %v518
    %v520 = vrot.slane %v401, 1
    %v521 = vsel %vm489, %v518, %v520
    %v522 = vrot.slane %v370, 1
    %v523 = vrot.slane %v192, 1
    %v524 = vsel %vm489, %v522, %v523
    %v525 = vrot.slane %v402, 1
    %v526 = vsel %vm489, %v523, %v525
    %v527 = vrot.slane %v371, 1
    %v528 = vrot.slane %v195, 1
    %v529 = vsel %vm489, %v527, %v528
    %v530 = vrot.slane %v403, 1
    %v531 = vsel %vm489, %v528, %v530
    %v532 = vrot.slane %v372, 1
    %v533 = vrot.slane %v198, 1
    %v534 = vsel %vm489, %v532, %v533
    %v535 = vrot.slane %v404, 1
    %v536 = vsel %vm489, %v533, %v535
    %v537 = vrot.slane %v373, 1
    %v538 = vrot.slane %v201, 1
    %v539 = vsel %vm489, %v537, %v538
    %v540 = vrot.slane %v405, 1
    %v541 = vsel %vm489, %v538, %v540
    %v542 = vrot.slane %v374, 1
    %v543 = vrot.slane %v204, 1
    %v544 = vsel %vm489, %v542, %v543
    %v545 = vrot.slane %v406, 1
    %v546 = vsel %vm489, %v543, %v545
    %v547 = vrot.slane %v375, 1
    %v548 = vrot.slane %v207, 1
    %v549 = vsel %vm489, %v547, %v548
    %v550 = vrot.slane %v407, 1
    %v551 = vsel %vm489, %v548, %v550
    %v552 = vrot.slane %v376, 1
    %v553 = vrot.slane %v210, 1
    %v554 = vsel %vm489, %v552, %v553
    %v555 = vrot.slane %v408, 1
    %v556 = vsel %vm489, %v553, %v555
    %v557 = vrot.slane %v377, 1
    %v558 = vrot.slane %v213, 1
    %v559 = vsel %vm489, %v557, %v558
    %v560 = vrot.slane %v409, 1
    %v561 = vsel %vm489, %v558, %v560
    %v562 = vrot.slane %v378, 1
    %v563 = vrot.slane %v216, 1
    %v564 = vsel %vm489, %v562, %v563
    %v565 = vrot.slane %v410, 1
    %v566 = vsel %vm489, %v563, %v565
    %v567 = vrot.slane %v380, 1
    %v568 = vrot.slane %v222, 1
    %v569 = vsel %vm489, %v567, %v568
    %v570 = vrot.slane %v412, 1
    %v571 = vsel %vm489, %v568, %v570
    %v572 = vrot.slane %v381, 1
    %v573 = vrot.slane %v225, 1
    %v574 = vsel %vm489, %v572, %v573
    %v575 = vrot.slane %v413, 1
    %v576 = vsel %vm489, %v573, %v575
    %v577 = vrot.slane %v382, 1
    %v578 = vrot.slane %v228, 1
    %v579 = vsel %vm489, %v577, %v578
    %v580 = vrot.slane %v414, 1
    %v581 = vsel %vm489, %v578, %v580
    %v582 = vrot.slane %v383, 1
    %v583 = vrot.slane %v231, 1
    %v584 = vsel %vm489, %v582, %v583
    %v585 = vrot.slane %v415, 1
    %v586 = vsel %vm489, %v583, %v585
    %v587 = vrot.slane %v384, 1
    %v588 = vrot.slane %v234, 1
    %v589 = vsel %vm489, %v587, %v588
    %v590 = vrot.slane %v416, 1
    %v591 = vsel %vm489, %v588, %v590
    %v592 = vrot.slane %v385, 1
    %v593 = vrot.slane %v237, 1
    %v594 = vsel %vm489, %v592, %v593
    %v595 = vrot.slane %v417, 1
    %v596 = vsel %vm489, %v593, %v595
    %v597 = vrot.slane %v386, 1
    %v598 = vrot.slane %v240, 1
    %v599 = vsel %vm489, %v597, %v598
    %v600 = vrot.slane %v418, 1
    %v601 = vsel %vm489, %v598, %v600
    %v602 = vrot.slane %v387, 1
    %v603 = vrot.slane %v243, 1
    %v604 = vsel %vm489, %v602, %v603
    %v605 = vrot.slane %v419, 1
    %v606 = vsel %vm489, %v603, %v605
    %v607 = vrot.slane %v388, 1
    %v608 = vrot.slane %v246, 1
    %v609 = vsel %vm489, %v607, %v608
    %v610 = vrot.slane %v420, 1
    %v611 = vsel %vm489, %v608, %v610
    %v612 = vrot.slane %v389, 1
    %v613 = vrot.slane %v249, 1
    %v614 = vsel %vm489, %v612, %v613
    %v615 = vrot.slane %v421, 1
    %v616 = vsel %vm489, %v613, %v615
    %v617 = vrot.slane %v390, 1
    %v618 = vrot.slane %v252, 1
    %v619 = vsel %vm489, %v617, %v618
    %v620 = vrot.slane %v422, 1
    %v621 = vsel %vm489, %v618, %v620
    %v622 = vrot.slane %v391, 1
    %v623 = vrot.slane %v255, 1
    %v624 = vsel %vm489, %v622, %v623
    %v625 = vrot.slane %v423, 1
    %v626 = vsel %vm489, %v623, %v625
    %v627 = vrot.slane %v392, 1
    %v628 = vrot.slane %v258, 1
    %v629 = vsel %vm489, %v627, %v628
    %v630 = vrot.slane %v424, 1
    %v631 = vsel %vm489, %v628, %v630
    %v632 = vrot.slane %v393, 1
    %v633 = vrot.slane %v261, 1
    %v634 = vsel %vm489, %v632, %v633
    %v635 = vrot.slane %v425, 1
    %v636 = vsel %vm489, %v633, %v635
    %v637 = vrot.slane %v394, 1
    %v638 = vrot.slane %v264, 1
    %v639 = vsel %vm489, %v637, %v638
    %v640 = vrot.slane %v426, 1
    %v641 = vsel %vm489, %v638, %v640
    %vm703 = vcmask 1045504
    %v704 = vrot.slane 0.0, 2
    %v705 = vsel %vm703, %v704, %v704
    %v706 = vrot.slane %v364, 2
    %v707 = vrot.slane %v174, 2
    %v708 = vsel %vm703, %v706, %v707
    %v709 = vrot.slane %v396, 2
    %v710 = vsel %vm703, %v707, %v709
    %v711 = vrot.slane %v365, 2
    %v712 = vrot.slane %v177, 2
    %v713 = vsel %vm703, %v711, %v712
    %v714 = vrot.slane %v397, 2
    %v715 = vsel %vm703, %v712, %v714
    %v716 = vrot.slane %v366, 2
    %v717 = vrot.slane %v180, 2
    %v718 = vsel %vm703, %v716, %v717
    %v719 = vrot.slane %v398, 2
    %v720 = vsel %vm703, %v717, %v719
    %v721 = vrot.slane %v367, 2
    %v722 = vrot.slane %v183, 2
    %v723 = vsel %vm703, %v721, %v722
    %v724 = vrot.slane %v399, 2
    %v725 = vsel %vm703, %v722, %v724
    %v726 = vrot.slane %v368, 2
    %v727 = vrot.slane %v186, 2
    %v728 = vsel %vm703, %v726, %v727
    %v729 = vrot.slane %v400, 2
    %v730 = vsel %vm703, %v727, %v729
    %v731 = vrot.slane %v369, 2
    %v732 = vrot.slane %v189, 2
    %v733 = vsel %vm703, %v731, %v732
    %v734 = vrot.slane %v401, 2
    %v735 = vsel %vm703, %v732, %v734
    %v736 = vrot.slane %v370, 2
    %v737 = vrot.slane %v192, 2
    %v738 = vsel %vm703, %v736, %v737
    %v739 = vrot.slane %v402, 2
    %v740 = vsel %vm703, %v737, %v739
    %v741 = vrot.slane %v371, 2
    %v742 = vrot.slane %v195, 2
    %v743 = vsel %vm703, %v741, %v742
    %v744 = vrot.slane %v403, 2
    %v745 = vsel %vm703, %v742, %v744
    %v746 = vrot.slane %v372, 2
    %v747 = vrot.slane %v198, 2
    %v748 = vsel %vm703, %v746, %v747
    %v749 = vrot.slane %v404, 2
    %v750 = vsel %vm703, %v747, %v749
    %v751 = vrot.slane %v373, 2
    %v752 = vrot.slane %v201, 2
    %v753 = vsel %vm703, %v751, %v752
    %v754 = vrot.slane %v405, 2
    %v755 = vsel %vm703, %v752, %v754
    %v756 = vrot.slane %v374, 2
    %v757 = vrot.slane %v204, 2
    %v758 = vsel %vm703, %v756, %v757
    %v759 = vrot.slane %v406, 2
    %v760 = vsel %vm703, %v757, %v759
    %v761 = vrot.slane %v375, 2
    %v762 = vrot.slane %v207, 2
    %v763 = vsel %vm703, %v761, %v762
    %v764 = vrot.slane %v407, 2
    %v765 = vsel %vm703, %v762, %v764
    %v766 = vrot.slane %v376, 2
    %v767 = vrot.slane %v210, 2
    %v768 = vsel %vm703, %v766, %v767
    %v769 = vrot.slane %v408, 2
    %v770 = vsel %vm703, %v767, %v769
    %v771 = vrot.slane %v377, 2
    %v772 = vrot.slane %v213, 2
    %v773 = vsel %vm703, %v771, %v772
    %v774 = vrot.slane %v409, 2
    %v775 = vsel %vm703, %v772, %v774
    %v776 = vrot.slane %v378, 2
    %v777 = vrot.slane %v216, 2
    %v778 = vsel %vm703, %v776, %v777
    %v779 = vrot.slane %v410, 2
    %v780 = vsel %vm703, %v777, %v779
    %v781 = vrot.slane %v380, 2
    %v782 = vrot.slane %v222, 2
    %v783 = vsel %vm703, %v781, %v782
    %v784 = vrot.slane %v412, 2
    %v785 = vsel %vm703, %v782, %v784
    %v786 = vrot.slane %v381, 2
    %v787 = vrot.slane %v225, 2
    %v788 = vsel %vm703, %v786, %v787
    %v789 = vrot.slane %v413, 2
    %v790 = vsel %vm703, %v787, %v789
    %v791 = vrot.slane %v382, 2
    %v792 = vrot.slane %v228, 2
    %v793 = vsel %vm703, %v791, %v792
    %v794 = vrot.slane %v414, 2
    %v795 = vsel %vm703, %v792, %v794
    %v796 = vrot.slane %v383, 2
    %v797 = vrot.slane %v231, 2
    %v798 = vsel %vm703, %v796, %v797
    %v799 = vrot.slane %v415, 2
    %v800 = vsel %vm703, %v797, %v799
    %v801 = vrot.slane %v384, 2
    %v802 = vrot.slane %v234, 2
    %v803 = vsel %vm703, %v801, %v802
    %v804 = vrot.slane %v416, 2
    %v805 = vsel %vm703, %v802, %v804
    %v806 = vrot.slane %v385, 2
    %v807 = vrot.slane %v237, 2
    %v808 = vsel %vm703, %v806, %v807
    %v809 = vrot.slane %v417, 2
    %v810 = vsel %vm703, %v807, %v809
    %v811 = vrot.slane %v386, 2
    %v812 = vrot.slane %v240, 2
    %v813 = vsel %vm703, %v811, %v812
    %v814 = vrot.slane %v418, 2
    %v815 = vsel %vm703, %v812, %v814
    %v816 = vrot.slane %v387, 2
    %v817 = vrot.slane %v243, 2
    %v818 = vsel %vm703, %v816, %v817
    %v819 = vrot.slane %v419, 2
    %v820 = vsel %vm703, %v817, %v819
    %v821 = vrot.slane %v388, 2
    %v822 = vrot.slane %v246, 2
    %v823 = vsel %vm703, %v821, %v822
    %v824 = vrot.slane %v420, 2
    %v825 = vsel %vm703, %v822, %v824
    %v826 = vrot.slane %v389, 2
    %v827 = vrot.slane %v249, 2
    %v828 = vsel %vm703, %v826, %v827
    %v829 = vrot.slane %v421, 2
    %v830 = vsel %vm703, %v827, %v829
    %v831 = vrot.slane %v390, 2
    %v832 = vrot.slane %v252, 2
    %v833 = vsel %vm703, %v831, %v832
    %v834 = vrot.slane %v422, 2
    %v835 = vsel %vm703, %v832, %v834
    %v836 = vrot.slane %v391, 2
    %v837 = vrot.slane %v255, 2
    %v838 = vsel %vm703, %v836, %v837
    %v839 = vrot.slane %v423, 2
    %v840 = vsel %vm703, %v837, %v839
    %v841 = vrot.slane %v392, 2
    %v842 = vrot.slane %v258, 2
    %v843 = vsel %vm703, %v841, %v842
    %v844 = vrot.slane %v424, 2
    %v845 = vsel %vm703, %v842, %v844
    %v846 = vrot.slane %v393, 2
    %v847 = vrot.slane %v261, 2
    %v848 = vsel %vm703, %v846, %v847
    %v849 = vrot.slane %v425, 2
    %v850 = vsel %vm703, %v847, %v849
    %v851 = vrot.slane %v394, 2
    %v852 = vrot.slane %v264, 2
    %v853 = vsel %vm703, %v851, %v852
    %v854 = vrot.slane %v426, 2
    %v855 = vsel %vm703, %v852, %v854
    %v921 = vrot.slane %v379, 1
    %v922 = vrot.slane %v219, 1
    %v923 = vsel %vm489, %v921, %v922
    %v924 = vrot.slane %v411, 1
    %v925 = vsel %vm489, %v922, %v924
    %v926 = vrot.slane %v395, 1
    %v927 = vrot.slane %v267, 1
    %v928 = vsel %vm489, %v926, %v927
    %v929 = vrot.slane %v427, 1
    %v930 = vsel %vm489, %v927, %v929
    %v935 = vrot.slane %v379, 2
    %v936 = vrot.slane %v219, 2
    %v937 = vsel %vm703, %v935, %v936
    %v938 = vrot.slane %v411, 2
    %v939 = vsel %vm703, %v936, %v938
    %v940 = vrot.slane %v395, 2
    %v941 = vrot.slane %v267, 2
    %v942 = vsel %vm703, %v940, %v941
    %v943 = vrot.slane %v427, 2
    %v944 = vsel %vm703, %v941, %v943
    %v949 = vpack.c.bf16 0.0, 0.0
    %v950 = vpack.c.bf16 %v491, %v491
    %v951 = vpack.c.bf16 %v705, %v705
    %v952 = vpack.c.bf16 %v174, %v364
    %v953 = vpack.c.bf16 %v496, %v494
    %v954 = vpack.c.bf16 %v710, %v708
    %v955 = vpack.c.bf16 %v177, %v365
    %v956 = vpack.c.bf16 %v501, %v499
    %v957 = vpack.c.bf16 %v715, %v713
    %v958 = vpack.c.bf16 %v180, %v366
    %v959 = vpack.c.bf16 %v506, %v504
    %v960 = vpack.c.bf16 %v720, %v718
    %v961 = vpack.c.bf16 %v183, %v367
    %v962 = vpack.c.bf16 %v511, %v509
    %v963 = vpack.c.bf16 %v725, %v723
    %v964 = vpack.c.bf16 %v186, %v368
    %v965 = vpack.c.bf16 %v516, %v514
    %v966 = vpack.c.bf16 %v730, %v728
    %v967 = vpack.c.bf16 %v189, %v369
    %v968 = vpack.c.bf16 %v521, %v519
    %v969 = vpack.c.bf16 %v735, %v733
    %v970 = vpack.c.bf16 %v192, %v370
    %v971 = vpack.c.bf16 %v526, %v524
    %v972 = vpack.c.bf16 %v740, %v738
    %v973 = vpack.c.bf16 %v195, %v371
    %v974 = vpack.c.bf16 %v531, %v529
    %v975 = vpack.c.bf16 %v745, %v743
    %v976 = vpack.c.bf16 %v198, %v372
    %v977 = vpack.c.bf16 %v536, %v534
    %v978 = vpack.c.bf16 %v750, %v748
    %v979 = vpack.c.bf16 %v201, %v373
    %v980 = vpack.c.bf16 %v541, %v539
    %v981 = vpack.c.bf16 %v755, %v753
    %v982 = vpack.c.bf16 %v204, %v374
    %v983 = vpack.c.bf16 %v546, %v544
    %v984 = vpack.c.bf16 %v760, %v758
    %v985 = vpack.c.bf16 %v207, %v375
    %v986 = vpack.c.bf16 %v551, %v549
    %v987 = vpack.c.bf16 %v765, %v763
    %v988 = vpack.c.bf16 %v210, %v376
    %v989 = vpack.c.bf16 %v556, %v554
    %v990 = vpack.c.bf16 %v770, %v768
    %v991 = vpack.c.bf16 %v213, %v377
    %v992 = vpack.c.bf16 %v561, %v559
    %v993 = vpack.c.bf16 %v775, %v773
    %v994 = vpack.c.bf16 %v216, %v378
    %v995 = vpack.c.bf16 %v566, %v564
    %v996 = vpack.c.bf16 %v780, %v778
    %v997 = vpack.c.bf16 %v219, %v379
    %v998 = vpack.c.bf16 %v925, %v923
    %v999 = vpack.c.bf16 %v939, %v937
    %v1000 = vpack.c.bf16 %v222, %v380
    %v1001 = vpack.c.bf16 %v571, %v569
    %v1002 = vpack.c.bf16 %v785, %v783
    %v1003 = vpack.c.bf16 %v225, %v381
    %v1004 = vpack.c.bf16 %v576, %v574
    %v1005 = vpack.c.bf16 %v790, %v788
    %v1006 = vpack.c.bf16 %v228, %v382
    %v1007 = vpack.c.bf16 %v581, %v579
    %v1008 = vpack.c.bf16 %v795, %v793
    %v1009 = vpack.c.bf16 %v231, %v383
    %v1010 = vpack.c.bf16 %v586, %v584
    %v1011 = vpack.c.bf16 %v800, %v798
    %v1012 = vpack.c.bf16 %v234, %v384
    %v1013 = vpack.c.bf16 %v591, %v589
    %v1014 = vpack.c.bf16 %v805, %v803
    %v1015 = vpack.c.bf16 %v237, %v385
    %v1016 = vpack.c.bf16 %v596, %v594
    %v1017 = vpack.c.bf16 %v810, %v808
    %v1018 = vpack.c.bf16 %v240, %v386
    %v1019 = vpack.c.bf16 %v601, %v599
    %v1020 = vpack.c.bf16 %v815, %v813
    %v1021 = vpack.c.bf16 %v243, %v387
    %v1022 = vpack.c.bf16 %v606, %v604
    %v1023 = vpack.c.bf16 %v820, %v818
    %v1024 = vpack.c.bf16 %v246, %v388
    %v1025 = vpack.c.bf16 %v611, %v609
    %v1026 = vpack.c.bf16 %v825, %v823
    %v1027 = vpack.c.bf16 %v249, %v389
    %v1028 = vpack.c.bf16 %v616, %v614
    %v1029 = vpack.c.bf16 %v830, %v828
    %v1030 = vpack.c.bf16 %v252, %v390
    %v1031 = vpack.c.bf16 %v621, %v619
    %v1032 = vpack.c.bf16 %v835, %v833
    %v1033 = vpack.c.bf16 %v255, %v391
    %v1034 = vpack.c.bf16 %v626, %v624
    %v1035 = vpack.c.bf16 %v840, %v838
    %v1036 = vpack.c.bf16 %v258, %v392
    %v1037 = vpack.c.bf16 %v631, %v629
    %v1038 = vpack.c.bf16 %v845, %v843
    %v1039 = vpack.c.bf16 %v261, %v393
    %v1040 = vpack.c.bf16 %v636, %v634
    %v1041 = vpack.c.bf16 %v850, %v848
    %v1042 = vpack.c.bf16 %v264, %v394
    %v1043 = vpack.c.bf16 %v641, %v639
    %v1044 = vpack.c.bf16 %v855, %v853
    %v1045 = vpack.c.bf16 %v267, %v395
    %v1046 = vpack.c.bf16 %v930, %v928
    %v1047 = vpack.c.bf16 %v944, %v942
    %v1048 = vld [vmem:[%s1] sm:$0xf]
    %v1049 = vld [vmem:[%s1 + $0x4] sm:$0xf]
    %v1050 = vld [vmem:[%s1 + $0x8] sm:$0xf]
    %v1051 = vld [vmem:[%s1 + $0xc] sm:$0xf]
    %v1052 = vld [vmem:[%s1 + $0x10] sm:$0xf]
    %v1053 = vld [vmem:[%s1 + $0x14] sm:$0xf]
    %v1054 = vld [vmem:[%s1 + $0x18] sm:$0xf]
    %v1055 = vld [vmem:[%s1 + $0x1c] sm:$0xf]
    %v1056 = vld [vmem:[%s1 + $0x20] sm:$0xf]
    %v1057 = vld [vmem:[%s1 + $0x24] sm:$0xf]
    %v1058 = vld [vmem:[%s1 + $0x28] sm:$0xf]
    %v1059 = vld [vmem:[%s1 + $0x2c] sm:$0xf]
    %v1060 = vld [vmem:[%s1 + $0x30] sm:$0xf]
    %v1061 = vld [vmem:[%s1 + $0x34] sm:$0xf]
    %v1062 = vld [vmem:[%s1 + $0x38] sm:$0xf]
    %v1063 = vld [vmem:[%s1 + $0x3c] sm:$0xf]
    %v1064 = vld [vmem:[%s1 + $0x40] sm:$0xf]
    %v1065 = vld [vmem:[%s1 + $0x44] sm:$0xf]
    %v1066 = vld [vmem:[%s1 + $0x48] sm:$0xf]
    %v1067 = vld [vmem:[%s1 + $0x4c] sm:$0xf]
    %v1068 = vld [vmem:[%s1 + $0x50] sm:$0xf]
    %v1069 = vld [vmem:[%s1 + $0x54] sm:$0xf]
    %v1070 = vld [vmem:[%s1 + $0x58] sm:$0xf]
    %v1071 = vld [vmem:[%s1 + $0x5c] sm:$0xf]
    %v1072 = vld [vmem:[%s1 + $0x60] sm:$0xf]
    %v1073 = vld [vmem:[%s1 + $0x64] sm:$0xf]
    %v1074 = vld [vmem:[%s1 + $0x68] sm:$0xf]
    %v1075 = vld [vmem:[%s1 + $0x6c] sm:$0xf]
    %v1076 = vld [vmem:[%s1 + $0x70] sm:$0xf]
    %v1077 = vld [vmem:[%s1 + $0x74] sm:$0xf]
    %v1078 = vld [vmem:[%s1 + $0x78] sm:$0xf]
    %v1079 = vld [vmem:[%s1 + $0x7c] sm:$0xf]
    %v1080 = vld [vmem:[%s1 + $0x80] sm:$0xf]
    %v1081 = vld [vmem:[%s1 + $0x84] sm:$0xf]
    %v1082 = vld [vmem:[%s1 + $0x88] sm:$0xf]
    %v1083 = vld [vmem:[%s1 + $0x8c] sm:$0xf]
    %v1084 = vld [vmem:[%s1 + $0x90] sm:$0xf]
    %v1085 = vld [vmem:[%s1 + $0x94] sm:$0xf]
    %v1086 = vld [vmem:[%s1 + $0x98] sm:$0xf]
    %v1087 = vld [vmem:[%s1 + $0x9c] sm:$0xf]
    %v1088 = vld [vmem:[%s1 + $0xa0] sm:$0xf]
    %v1089 = vld [vmem:[%s1 + $0xa4] sm:$0xf]
    %v1090 = vld [vmem:[%s1 + $0xa8] sm:$0xf]
    %v1091 = vld [vmem:[%s1 + $0xac] sm:$0xf]
    %v1092 = vld [vmem:[%s1 + $0xb0] sm:$0xf]
    %v1093 = vld [vmem:[%s1 + $0xb4] sm:$0xf]
    %v1094 = vld [vmem:[%s1 + $0xb8] sm:$0xf]
    %v1095 = vld [vmem:[%s1 + $0xbc] sm:$0xf]
    %v1096 = vld [vmem:[%s1 + $0xc0] sm:$0xf]
    %v1097 = vld [vmem:[%s1 + $0xc4] sm:$0xf]
    %v1098 = vld [vmem:[%s1 + $0xc8] sm:$0xf]
    %v1099 = vld [vmem:[%s1 + $0xcc] sm:$0xf]
    %v1100 = vld [vmem:[%s1 + $0xd0] sm:$0xf]
    %v1101 = vld [vmem:[%s1 + $0xd4] sm:$0xf]
    %v1102 = vld [vmem:[%s1 + $0xd8] sm:$0xf]
    %v1103 = vld [vmem:[%s1 + $0xdc] sm:$0xf]
    %v1104 = vld [vmem:[%s1 + $0xe0] sm:$0xf]
    %v1105 = vld [vmem:[%s1 + $0xe4] sm:$0xf]
    %v1106 = vld [vmem:[%s1 + $0xe8] sm:$0xf]
    %v1107 = vld [vmem:[%s1 + $0xec] sm:$0xf]
    %v1108 = vld [vmem:[%s1 + $0xf0] sm:$0xf]
    %v1109 = vld [vmem:[%s1 + $0xf4] sm:$0xf]
    %v1110 = vld [vmem:[%s1 + $0xf8] sm:$0xf]
    %v1111 = vld [vmem:[%s1 + $0xfc] sm:$0xf]
    %v1112 = vld [vmem:[%s1 + $0x100] sm:$0xf]
    %v1113 = vld [vmem:[%s1 + $0x104] sm:$0xf]
    %v1114 = vld [vmem:[%s1 + $0x108] sm:$0xf]
    %v1115 = vld [vmem:[%s1 + $0x10c] sm:$0xf]
    %v1116 = vld [vmem:[%s1 + $0x110] sm:$0xf]
    %v1117 = vld [vmem:[%s1 + $0x114] sm:$0xf]
    %v1118 = vld [vmem:[%s1 + $0x118] sm:$0xf]
    %v1119 = vld [vmem:[%s1 + $0x11c] sm:$0xf]
    %v1120 = vld [vmem:[%s1 + $0x120] sm:$0xf]
    %v1121 = vld [vmem:[%s1 + $0x124] sm:$0xf]
    %v1122 = vld [vmem:[%s1 + $0x128] sm:$0xf]
    %v1123 = vld [vmem:[%s1 + $0x12c] sm:$0xf]
    %v1124 = vld [vmem:[%s1 + $0x130] sm:$0xf]
    %v1125 = vld [vmem:[%s1 + $0x134] sm:$0xf]
    %v1126 = vld [vmem:[%s1 + $0x138] sm:$0xf]
    %v1127 = vld [vmem:[%s1 + $0x13c] sm:$0xf]
    %v1128 = vld [vmem:[%s1 + $0x140] sm:$0xf]
    %v1129 = vld [vmem:[%s1 + $0x144] sm:$0xf]
    %v1130 = vld [vmem:[%s1 + $0x148] sm:$0xf]
    %v1131 = vld [vmem:[%s1 + $0x14c] sm:$0xf]
    %v1132 = vld [vmem:[%s1 + $0x150] sm:$0xf]
    %v1133 = vld [vmem:[%s1 + $0x154] sm:$0xf]
    %v1134 = vld [vmem:[%s1 + $0x158] sm:$0xf]
    %v1135 = vld [vmem:[%s1 + $0x15c] sm:$0xf]
    %v1136 = vld [vmem:[%s1 + $0x160] sm:$0xf]
    %v1137 = vld [vmem:[%s1 + $0x164] sm:$0xf]
    %v1138 = vld [vmem:[%s1 + $0x168] sm:$0xf]
    %v1139 = vld [vmem:[%s1 + $0x16c] sm:$0xf]
    %v1140 = vld [vmem:[%s1 + $0x170] sm:$0xf]
    %v1141 = vld [vmem:[%s1 + $0x174] sm:$0xf]
    %v1142 = vld [vmem:[%s1 + $0x178] sm:$0xf]
    %v1143 = vld [vmem:[%s1 + $0x17c] sm:$0xf]
    %v1144 = vld [vmem:[%s1 + $0x180] sm:$0xf]
    %v1145 = vld [vmem:[%s1 + $0x184] sm:$0xf]
    %v1146 = vld [vmem:[%s1 + $0x188] sm:$0xf]
    %v1147 = vld [vmem:[%s1 + $0x18c] sm:$0xf]
    %v1148 = vld [vmem:[%s1 + $0x190] sm:$0xf]
    %v1149 = vld [vmem:[%s1 + $0x194] sm:$0xf]
    %v1150 = vld [vmem:[%s1 + $0x198] sm:$0xf]
    %v1151 = vld [vmem:[%s1 + $0x19c] sm:$0xf]
    %v1152 = vld [vmem:[%s1 + $0x1a0] sm:$0xf]
    %v1153 = vld [vmem:[%s1 + $0x1a4] sm:$0xf]
    %v1154 = vld [vmem:[%s1 + $0x1a8] sm:$0xf]
    %v1155 = vld [vmem:[%s1 + $0x1ac] sm:$0xf]
    %v1156 = vld [vmem:[%s1 + $0x1b0] sm:$0xf]
    %v1157 = vld [vmem:[%s1 + $0x1b4] sm:$0xf]
    %v1158 = vld [vmem:[%s1 + $0x1b8] sm:$0xf]
    %v1159 = vld [vmem:[%s1 + $0x1bc] sm:$0xf]
    %v1160 = vld [vmem:[%s1 + $0x1c0] sm:$0xf]
    %v1161 = vld [vmem:[%s1 + $0x1c4] sm:$0xf]
    %v1162 = vld [vmem:[%s1 + $0x1c8] sm:$0xf]
    %v1163 = vld [vmem:[%s1 + $0x1cc] sm:$0xf]
    %v1164 = vld [vmem:[%s1 + $0x1d0] sm:$0xf]
    %v1165 = vld [vmem:[%s1 + $0x1d4] sm:$0xf]
    %v1166 = vld [vmem:[%s1 + $0x1d8] sm:$0xf]
    %v1167 = vld [vmem:[%s1 + $0x1dc] sm:$0xf]
    %v1168 = vld [vmem:[%s1 + $0x1e0] sm:$0xf]
    %v1169 = vld [vmem:[%s1 + $0x1e4] sm:$0xf]
    %v1170 = vld [vmem:[%s1 + $0x1e8] sm:$0xf]
    %v1171 = vld [vmem:[%s1 + $0x1ec] sm:$0xf]
    %v1172 = vld [vmem:[%s1 + $0x1f0] sm:$0xf]
    %v1173 = vld [vmem:[%s1 + $0x1f4] sm:$0xf]
    %v1174 = vld [vmem:[%s1 + $0x1f8] sm:$0xf]
    %v1175 = vld [vmem:[%s1 + $0x1fc] sm:$0xf]
    %v1176 = vld [vmem:[%s1 + $0x200] sm:$0xf]
    %v1177 = vld [vmem:[%s1 + $0x204] sm:$0xf]
    %v1178 = vld [vmem:[%s1 + $0x208] sm:$0xf]
    %v1179 = vld [vmem:[%s1 + $0x20c] sm:$0xf]
    %v1180 = vld [vmem:[%s1 + $0x210] sm:$0xf]
    %v1181 = vld [vmem:[%s1 + $0x214] sm:$0xf]
    %v1182 = vld [vmem:[%s1 + $0x218] sm:$0xf]
    %v1183 = vld [vmem:[%s1 + $0x21c] sm:$0xf]
    %v1184 = vld [vmem:[%s1 + $0x220] sm:$0xf]
    %v1185 = vld [vmem:[%s1 + $0x224] sm:$0xf]
    %v1186 = vld [vmem:[%s1 + $0x228] sm:$0xf]
    %v1187 = vld [vmem:[%s1 + $0x22c] sm:$0xf]
    %v1188 = vld [vmem:[%s1 + $0x230] sm:$0xf]
    %v1189 = vld [vmem:[%s1 + $0x234] sm:$0xf]
    %v1190 = vld [vmem:[%s1 + $0x238] sm:$0xf]
    %v1191 = vld [vmem:[%s1 + $0x23c] sm:$0xf]
    %v1336 = vunpack.c.l.b16 %v1048
    %v1337 = vunpack.c.l.b16 %v1049
    %v1338 = vunpack.c.l.b16 %v1050
    %v1339 = vunpack.c.l.b16 %v1051
    %v1340 = vunpack.c.l.b16 %v1052
    %v1341 = vunpack.c.l.b16 %v1053
    %v1342 = vunpack.c.l.b16 %v1054
    %v1343 = vunpack.c.l.b16 %v1055
    %v1344 = vunpack.c.l.b16 %v1056
    %v1345 = vunpack.c.l.b16 %v1057
    %v1346 = vunpack.c.l.b16 %v1058
    %v1347 = vunpack.c.l.b16 %v1059
    %v1348 = vunpack.c.l.b16 %v1060
    %v1349 = vunpack.c.l.b16 %v1061
    %v1350 = vunpack.c.l.b16 %v1062
    %v1351 = vunpack.c.l.b16 %v1063
    %v1352 = vunpack.c.l.b16 %v1064
    %v1353 = vunpack.c.l.b16 %v1065
    %v1354 = vunpack.c.l.b16 %v1066
    %v1355 = vunpack.c.l.b16 %v1067
    %v1356 = vunpack.c.l.b16 %v1068
    %v1357 = vunpack.c.l.b16 %v1069
    %v1358 = vunpack.c.l.b16 %v1070
    %v1359 = vunpack.c.l.b16 %v1071
    %v1360 = vunpack.c.l.b16 %v1072
    %v1361 = vunpack.c.l.b16 %v1073
    %v1362 = vunpack.c.l.b16 %v1074
    %v1363 = vunpack.c.l.b16 %v1075
    %v1364 = vunpack.c.l.b16 %v1076
    %v1365 = vunpack.c.l.b16 %v1077
    %v1366 = vunpack.c.l.b16 %v1078
    %v1367 = vunpack.c.l.b16 %v1079
    %v1368 = vunpack.c.l.b16 %v1080
    %v1369 = vunpack.c.l.b16 %v1081
    %v1370 = vunpack.c.l.b16 %v1082
    %v1371 = vunpack.c.l.b16 %v1083
    %v1372 = vunpack.c.l.b16 %v1084
    %v1373 = vunpack.c.l.b16 %v1085
    %v1374 = vunpack.c.l.b16 %v1086
    %v1375 = vunpack.c.l.b16 %v1087
    %v1376 = vunpack.c.l.b16 %v1088
    %v1377 = vunpack.c.l.b16 %v1089
    %v1378 = vunpack.c.l.b16 %v1090
    %v1379 = vunpack.c.l.b16 %v1091
    %v1380 = vunpack.c.l.b16 %v1092
    %v1381 = vunpack.c.l.b16 %v1093
    %v1382 = vunpack.c.l.b16 %v1094
    %v1383 = vunpack.c.l.b16 %v1095
    %v1384 = vunpack.c.l.b16 %v1096
    %v1385 = vunpack.c.l.b16 %v1097
    %v1386 = vunpack.c.l.b16 %v1098
    %v1387 = vunpack.c.l.b16 %v1099
    %v1388 = vunpack.c.l.b16 %v1100
    %v1389 = vunpack.c.l.b16 %v1101
    %v1390 = vunpack.c.l.b16 %v1102
    %v1391 = vunpack.c.l.b16 %v1103
    %v1392 = vunpack.c.l.b16 %v1104
    %v1393 = vunpack.c.l.b16 %v1105
    %v1394 = vunpack.c.l.b16 %v1106
    %v1395 = vunpack.c.l.b16 %v1107
    %v1396 = vunpack.c.l.b16 %v1108
    %v1397 = vunpack.c.l.b16 %v1109
    %v1398 = vunpack.c.l.b16 %v1110
    %v1399 = vunpack.c.l.b16 %v1111
    %v1400 = vunpack.c.l.b16 %v1112
    %v1401 = vunpack.c.l.b16 %v1113
    %v1402 = vunpack.c.l.b16 %v1114
    %v1403 = vunpack.c.l.b16 %v1115
    %v1404 = vunpack.c.l.b16 %v1116
    %v1405 = vunpack.c.l.b16 %v1117
    %v1406 = vunpack.c.l.b16 %v1118
    %v1407 = vunpack.c.l.b16 %v1119
    %v1408 = vunpack.c.l.b16 %v1120
    %v1409 = vunpack.c.l.b16 %v1121
    %v1410 = vunpack.c.l.b16 %v1122
    %v1411 = vunpack.c.l.b16 %v1123
    %v1412 = vunpack.c.l.b16 %v1124
    %v1413 = vunpack.c.l.b16 %v1125
    %v1414 = vunpack.c.l.b16 %v1126
    %v1415 = vunpack.c.l.b16 %v1127
    %v1416 = vunpack.c.l.b16 %v1128
    %v1417 = vunpack.c.l.b16 %v1129
    %v1418 = vunpack.c.l.b16 %v1130
    %v1419 = vunpack.c.l.b16 %v1131
    %v1420 = vunpack.c.l.b16 %v1132
    %v1421 = vunpack.c.l.b16 %v1133
    %v1422 = vunpack.c.l.b16 %v1134
    %v1423 = vunpack.c.l.b16 %v1135
    %v1424 = vunpack.c.l.b16 %v1136
    %v1425 = vunpack.c.l.b16 %v1137
    %v1426 = vunpack.c.l.b16 %v1138
    %v1427 = vunpack.c.l.b16 %v1139
    %v1428 = vunpack.c.l.b16 %v1140
    %v1429 = vunpack.c.l.b16 %v1141
    %v1430 = vunpack.c.l.b16 %v1142
    %v1431 = vunpack.c.l.b16 %v1143
    %v1432 = vunpack.c.l.b16 %v1144
    %v1433 = vunpack.c.l.b16 %v1145
    %v1434 = vunpack.c.l.b16 %v1146
    %v1435 = vunpack.c.l.b16 %v1147
    %v1436 = vunpack.c.l.b16 %v1148
    %v1437 = vunpack.c.l.b16 %v1149
    %v1438 = vunpack.c.l.b16 %v1150
    %v1439 = vunpack.c.l.b16 %v1151
    %v1440 = vunpack.c.l.b16 %v1152
    %v1441 = vunpack.c.l.b16 %v1153
    %v1442 = vunpack.c.l.b16 %v1154
    %v1443 = vunpack.c.l.b16 %v1155
    %v1444 = vunpack.c.l.b16 %v1156
    %v1445 = vunpack.c.l.b16 %v1157
    %v1446 = vunpack.c.l.b16 %v1158
    %v1447 = vunpack.c.l.b16 %v1159
    %v1448 = vunpack.c.l.b16 %v1160
    %v1449 = vunpack.c.l.b16 %v1161
    %v1450 = vunpack.c.l.b16 %v1162
    %v1451 = vunpack.c.l.b16 %v1163
    %v1452 = vunpack.c.l.b16 %v1164
    %v1453 = vunpack.c.l.b16 %v1165
    %v1454 = vunpack.c.l.b16 %v1166
    %v1455 = vunpack.c.l.b16 %v1167
    %v1456 = vunpack.c.l.b16 %v1168
    %v1457 = vunpack.c.l.b16 %v1169
    %v1458 = vunpack.c.l.b16 %v1170
    %v1459 = vunpack.c.l.b16 %v1171
    %v1460 = vunpack.c.l.b16 %v1172
    %v1461 = vunpack.c.l.b16 %v1173
    %v1462 = vunpack.c.l.b16 %v1174
    %v1463 = vunpack.c.l.b16 %v1175
    %v1464 = vunpack.c.l.b16 %v1176
    %v1465 = vunpack.c.l.b16 %v1177
    %v1466 = vunpack.c.l.b16 %v1178
    %v1467 = vunpack.c.l.b16 %v1179
    %v1468 = vunpack.c.l.b16 %v1180
    %v1469 = vunpack.c.l.b16 %v1181
    %v1470 = vunpack.c.l.b16 %v1182
    %v1471 = vunpack.c.l.b16 %v1183
    %v1472 = vunpack.c.l.b16 %v1184
    %v1473 = vunpack.c.l.b16 %v1185
    %v1474 = vunpack.c.l.b16 %v1186
    %v1475 = vunpack.c.l.b16 %v1187
    %v1476 = vunpack.c.l.b16 %v1188
    %v1477 = vunpack.c.l.b16 %v1189
    %v1478 = vunpack.c.l.b16 %v1190
    %v1479 = vunpack.c.l.b16 %v1191
    %v1480 = vpack.c.b16 %v1337, %v1336
    %v1481 = vpack.c.b16 %v1339, %v1338
    %v1482 = vpack.c.b16 %v1341, %v1340
    %v1483 = vpack.c.b16 %v1343, %v1342
    %v1484 = vpack.c.b16 %v1345, %v1344
    %v1485 = vpack.c.b16 %v1347, %v1346
    %v1486 = vpack.c.b16 %v1349, %v1348
    %v1487 = vpack.c.b16 %v1351, %v1350
    %v1488 = vpack.c.b16 %v1353, %v1352
    %v1489 = vpack.c.b16 %v1355, %v1354
    %v1490 = vpack.c.b16 %v1357, %v1356
    %v1491 = vpack.c.b16 %v1359, %v1358
    %v1492 = vpack.c.b16 %v1361, %v1360
    %v1493 = vpack.c.b16 %v1363, %v1362
    %v1494 = vpack.c.b16 %v1365, %v1364
    %v1495 = vpack.c.b16 %v1367, %v1366
    %v1496 = vpack.c.b16 %v1369, %v1368
    %v1497 = vpack.c.b16 %v1371, %v1370
    %v1498 = vpack.c.b16 %v1373, %v1372
    %v1499 = vpack.c.b16 %v1375, %v1374
    %v1500 = vpack.c.b16 %v1377, %v1376
    %v1501 = vpack.c.b16 %v1379, %v1378
    %v1502 = vpack.c.b16 %v1381, %v1380
    %v1503 = vpack.c.b16 %v1383, %v1382
    %v1504 = vpack.c.b16 %v1385, %v1384
    %v1505 = vpack.c.b16 %v1387, %v1386
    %v1506 = vpack.c.b16 %v1389, %v1388
    %v1507 = vpack.c.b16 %v1391, %v1390
    %v1508 = vpack.c.b16 %v1393, %v1392
    %v1509 = vpack.c.b16 %v1395, %v1394
    %v1510 = vpack.c.b16 %v1397, %v1396
    %v1511 = vpack.c.b16 %v1399, %v1398
    %v1512 = vpack.c.b16 %v1401, %v1400
    %v1513 = vpack.c.b16 %v1403, %v1402
    %v1514 = vpack.c.b16 %v1405, %v1404
    %v1515 = vpack.c.b16 %v1407, %v1406
    %v1516 = vpack.c.b16 %v1409, %v1408
    %v1517 = vpack.c.b16 %v1411, %v1410
    %v1518 = vpack.c.b16 %v1413, %v1412
    %v1519 = vpack.c.b16 %v1415, %v1414
    %v1520 = vpack.c.b16 %v1417, %v1416
    %v1521 = vpack.c.b16 %v1419, %v1418
    %v1522 = vpack.c.b16 %v1421, %v1420
    %v1523 = vpack.c.b16 %v1423, %v1422
    %v1524 = vpack.c.b16 %v1425, %v1424
    %v1525 = vpack.c.b16 %v1427, %v1426
    %v1526 = vpack.c.b16 %v1429, %v1428
    %v1527 = vpack.c.b16 %v1431, %v1430
    %v1528 = vpack.c.b16 %v1433, %v1432
    %v1529 = vpack.c.b16 %v1435, %v1434
    %v1530 = vpack.c.b16 %v1437, %v1436
    %v1531 = vpack.c.b16 %v1439, %v1438
    %v1532 = vpack.c.b16 %v1441, %v1440
    %v1533 = vpack.c.b16 %v1443, %v1442
    %v1534 = vpack.c.b16 %v1445, %v1444
    %v1535 = vpack.c.b16 %v1447, %v1446
    %v1536 = vpack.c.b16 %v1449, %v1448
    %v1537 = vpack.c.b16 %v1451, %v1450
    %v1538 = vpack.c.b16 %v1453, %v1452
    %v1539 = vpack.c.b16 %v1455, %v1454
    %v1540 = vpack.c.b16 %v1457, %v1456
    %v1541 = vpack.c.b16 %v1459, %v1458
    %v1542 = vpack.c.b16 %v1461, %v1460
    %v1543 = vpack.c.b16 %v1463, %v1462
    %v1544 = vpack.c.b16 %v1465, %v1464
    %v1545 = vpack.c.b16 %v1467, %v1466
    %v1546 = vpack.c.b16 %v1469, %v1468
    %v1547 = vpack.c.b16 %v1471, %v1470
    %v1548 = vpack.c.b16 %v1473, %v1472
    %v1549 = vpack.c.b16 %v1475, %v1474
    %v1550 = vpack.c.b16 %v1477, %v1476
    %v1551 = vpack.c.b16 %v1479, %v1478
    %1624 = vmatprep.subr.bf16.mxu0 0
    %1625 = vmatpush1.bf16.msra.mxu0 %v1487
    %1626 = vmatprep.subr.bf16.mxu0 0
    %1627 = vmatpush1.bf16.msra.mxu0 %v1486
    %1628 = vmatprep.subr.bf16.mxu0 0
    %1629 = vmatpush1.bf16.msra.mxu0 %v1485
    %1630 = vmatprep.subr.bf16.mxu0 0
    %1631 = vmatpush1.bf16.msra.mxu0 %v1484
    %1632 = vmatprep.subr.bf16.mxu0 0
    %1633 = vmatpush1.bf16.msra.mxu0 %v1483
    %1634 = vmatprep.subr.bf16.mxu0 0
    %1635 = vmatpush1.bf16.msra.mxu0 %v1482
    %1636 = vmatprep.subr.bf16.mxu0 0
    %1637 = vmatpush1.bf16.msra.mxu0 %v1481
    %1638 = vmatprep.subr.bf16.mxu0 0
    %1639 = vmatpush1.bf16.msra.mxu0 %v1480
    %1640 = vmatprep.subr.bf16.mxu0 0
    %1641 = vmatpush2.bf16.msra.mxu0 %v1495
    %1642 = vmatprep.subr.bf16.mxu0 0
    %1643 = vmatpush2.bf16.msra.mxu0 %v1494
    %1644 = vmatprep.subr.bf16.mxu0 0
    %1645 = vmatpush2.bf16.msra.mxu0 %v1493
    %1646 = vmatprep.subr.bf16.mxu0 0
    %1647 = vmatpush2.bf16.msra.mxu0 %v1492
    %1648 = vmatprep.subr.bf16.mxu0 0
    %1649 = vmatpush2.bf16.msra.mxu0 %v1491
    %1650 = vmatprep.subr.bf16.mxu0 0
    %1651 = vmatpush2.bf16.msra.mxu0 %v1490
    %1652 = vmatprep.subr.bf16.mxu0 0
    %1653 = vmatpush2.bf16.msra.mxu0 %v1489
    %1654 = vmatprep.subr.bf16.mxu0 0
    %1655 = vmatpush2.bf16.msra.mxu0 %v1488
    %1656 = vmatprep.mubr.bf16.mxu0 %v950
    %1657 = vmatmul.mubr.bf16.gmra.mxu0 %v949
    %v1658 = vpop.f32.mrf.mxu0
    %v1659 = vadd.f32 0.0, %v1658
    %v1660 = vpop.f32.mrf.mxu0
    %v1661 = vpop.f32.mrf.mxu0
    %v1662 = vadd.f32 0.0, %v1661
    %v1663 = vpop.f32.mrf.mxu0
    %1664 = vmatprep.mubr.bf16.mxu0 %v953
    %1665 = vmatmul.mubr.bf16.gmra.mxu0 %v952
    %v1666 = vpop.f32.mrf.mxu0
    %v1667 = vadd.f32 0.0, %v1666
    %v1668 = vpop.f32.mrf.mxu0
    %v1669 = vpop.f32.mrf.mxu0
    %v1670 = vadd.f32 0.0, %v1669
    %v1671 = vpop.f32.mrf.mxu0
    %1672 = vmatprep.mubr.bf16.mxu0 %v956
    %1673 = vmatmul.mubr.bf16.gmra.mxu0 %v955
    %v1674 = vpop.f32.mrf.mxu0
    %v1675 = vadd.f32 0.0, %v1674
    %v1676 = vpop.f32.mrf.mxu0
    %v1677 = vpop.f32.mrf.mxu0
    %v1678 = vadd.f32 0.0, %v1677
    %v1679 = vpop.f32.mrf.mxu0
    %1680 = vmatprep.mubr.bf16.mxu0 %v959
    %1681 = vmatmul.mubr.bf16.gmra.mxu0 %v958
    %v1682 = vpop.f32.mrf.mxu0
    %v1683 = vadd.f32 0.0, %v1682
    %v1684 = vpop.f32.mrf.mxu0
    %v1685 = vpop.f32.mrf.mxu0
    %v1686 = vadd.f32 0.0, %v1685
    %v1687 = vpop.f32.mrf.mxu0
    %1688 = vmatprep.mubr.bf16.mxu0 %v962
    %1689 = vmatmul.mubr.bf16.gmra.mxu0 %v961
    %v1690 = vpop.f32.mrf.mxu0
    %v1691 = vadd.f32 0.0, %v1690
    %v1692 = vpop.f32.mrf.mxu0
    %v1693 = vpop.f32.mrf.mxu0
    %v1694 = vadd.f32 0.0, %v1693
    %v1695 = vpop.f32.mrf.mxu0
    %1696 = vmatprep.mubr.bf16.mxu0 %v965
    %1697 = vmatmul.mubr.bf16.gmra.mxu0 %v964
    %v1698 = vpop.f32.mrf.mxu0
    %v1699 = vadd.f32 0.0, %v1698
    %v1700 = vpop.f32.mrf.mxu0
    %v1701 = vpop.f32.mrf.mxu0
    %v1702 = vadd.f32 0.0, %v1701
    %v1703 = vpop.f32.mrf.mxu0
    %1704 = vmatprep.mubr.bf16.mxu0 %v968
    %1705 = vmatmul.mubr.bf16.gmra.mxu0 %v967
    %v1706 = vpop.f32.mrf.mxu0
    %v1707 = vadd.f32 0.0, %v1706
    %v1708 = vpop.f32.mrf.mxu0
    %v1709 = vpop.f32.mrf.mxu0
    %v1710 = vadd.f32 0.0, %v1709
    %v1711 = vpop.f32.mrf.mxu0
    %1712 = vmatprep.mubr.bf16.mxu0 %v971
    %1713 = vmatmul.mubr.bf16.gmra.mxu0 %v970
    %v1714 = vpop.f32.mrf.mxu0
    %v1715 = vadd.f32 0.0, %v1714
    %v1716 = vpop.f32.mrf.mxu0
    %v1717 = vpop.f32.mrf.mxu0
    %v1718 = vadd.f32 0.0, %v1717
    %v1719 = vpop.f32.mrf.mxu0
    %1720 = vmatprep.mubr.bf16.mxu0 %v974
    %1721 = vmatmul.mubr.bf16.gmra.mxu0 %v973
    %v1722 = vpop.f32.mrf.mxu0
    %v1723 = vadd.f32 0.0, %v1722
    %v1724 = vpop.f32.mrf.mxu0
    %v1725 = vpop.f32.mrf.mxu0
    %v1726 = vadd.f32 0.0, %v1725
    %v1727 = vpop.f32.mrf.mxu0
    %1728 = vmatprep.mubr.bf16.mxu0 %v977
    %1729 = vmatmul.mubr.bf16.gmra.mxu0 %v976
    %v1730 = vpop.f32.mrf.mxu0
    %v1731 = vadd.f32 0.0, %v1730
    %v1732 = vpop.f32.mrf.mxu0
    %v1733 = vpop.f32.mrf.mxu0
    %v1734 = vadd.f32 0.0, %v1733
    %v1735 = vpop.f32.mrf.mxu0
    %1736 = vmatprep.mubr.bf16.mxu0 %v980
    %1737 = vmatmul.mubr.bf16.gmra.mxu0 %v979
    %v1738 = vpop.f32.mrf.mxu0
    %v1739 = vadd.f32 0.0, %v1738
    %v1740 = vpop.f32.mrf.mxu0
    %v1741 = vpop.f32.mrf.mxu0
    %v1742 = vadd.f32 0.0, %v1741
    %v1743 = vpop.f32.mrf.mxu0
    %1744 = vmatprep.mubr.bf16.mxu0 %v983
    %1745 = vmatmul.mubr.bf16.gmra.mxu0 %v982
    %v1746 = vpop.f32.mrf.mxu0
    %v1747 = vadd.f32 0.0, %v1746
    %v1748 = vpop.f32.mrf.mxu0
    %v1749 = vpop.f32.mrf.mxu0
    %v1750 = vadd.f32 0.0, %v1749
    %v1751 = vpop.f32.mrf.mxu0
    %1752 = vmatprep.mubr.bf16.mxu0 %v986
    %1753 = vmatmul.mubr.bf16.gmra.mxu0 %v985
    %v1754 = vpop.f32.mrf.mxu0
    %v1755 = vadd.f32 0.0, %v1754
    %v1756 = vpop.f32.mrf.mxu0
    %v1757 = vpop.f32.mrf.mxu0
    %v1758 = vadd.f32 0.0, %v1757
    %v1759 = vpop.f32.mrf.mxu0
    %1760 = vmatprep.mubr.bf16.mxu0 %v989
    %1761 = vmatmul.mubr.bf16.gmra.mxu0 %v988
    %v1762 = vpop.f32.mrf.mxu0
    %v1763 = vadd.f32 0.0, %v1762
    %v1764 = vpop.f32.mrf.mxu0
    %v1765 = vpop.f32.mrf.mxu0
    %v1766 = vadd.f32 0.0, %v1765
    %v1767 = vpop.f32.mrf.mxu0
    %1768 = vmatprep.mubr.bf16.mxu0 %v992
    %1769 = vmatmul.mubr.bf16.gmra.mxu0 %v991
    %v1770 = vpop.f32.mrf.mxu0
    %v1771 = vadd.f32 0.0, %v1770
    %v1772 = vpop.f32.mrf.mxu0
    %v1773 = vpop.f32.mrf.mxu0
    %v1774 = vadd.f32 0.0, %v1773
    %v1775 = vpop.f32.mrf.mxu0
    %1776 = vmatprep.mubr.bf16.mxu0 %v995
    %1777 = vmatmul.mubr.bf16.gmra.mxu0 %v994
    %v1778 = vpop.f32.mrf.mxu0
    %v1779 = vadd.f32 0.0, %v1778
    %v1780 = vpop.f32.mrf.mxu0
    %v1781 = vpop.f32.mrf.mxu0
    %v1782 = vadd.f32 0.0, %v1781
    %v1783 = vpop.f32.mrf.mxu0
    %1784 = vmatprep.mubr.bf16.mxu0 %v950
    %1785 = vmatmul.mubr.bf16.gmra.mxu0 %v949
    %v1786 = vpop.f32.mrf.mxu0
    %v1787 = vadd.f32 0.0, %v1786
    %v1788 = vpop.f32.mrf.mxu0
    %v1789 = vpop.f32.mrf.mxu0
    %v1790 = vadd.f32 0.0, %v1789
    %v1791 = vpop.f32.mrf.mxu0
    %1792 = vmatprep.mubr.bf16.mxu0 %v1001
    %1793 = vmatmul.mubr.bf16.gmra.mxu0 %v1000
    %v1794 = vpop.f32.mrf.mxu0
    %v1795 = vadd.f32 0.0, %v1794
    %v1796 = vpop.f32.mrf.mxu0
    %v1797 = vpop.f32.mrf.mxu0
    %v1798 = vadd.f32 0.0, %v1797
    %v1799 = vpop.f32.mrf.mxu0
    %1800 = vmatprep.mubr.bf16.mxu0 %v1004
    %1801 = vmatmul.mubr.bf16.gmra.mxu0 %v1003
    %v1802 = vpop.f32.mrf.mxu0
    %v1803 = vadd.f32 0.0, %v1802
    %v1804 = vpop.f32.mrf.mxu0
    %v1805 = vpop.f32.mrf.mxu0
    %v1806 = vadd.f32 0.0, %v1805
    %v1807 = vpop.f32.mrf.mxu0
    %1808 = vmatprep.mubr.bf16.mxu0 %v1007
    %1809 = vmatmul.mubr.bf16.gmra.mxu0 %v1006
    %v1810 = vpop.f32.mrf.mxu0
    %v1811 = vadd.f32 0.0, %v1810
    %v1812 = vpop.f32.mrf.mxu0
    %v1813 = vpop.f32.mrf.mxu0
    %v1814 = vadd.f32 0.0, %v1813
    %v1815 = vpop.f32.mrf.mxu0
    %1816 = vmatprep.mubr.bf16.mxu0 %v1010
    %1817 = vmatmul.mubr.bf16.gmra.mxu0 %v1009
    %v1818 = vpop.f32.mrf.mxu0
    %v1819 = vadd.f32 0.0, %v1818
    %v1820 = vpop.f32.mrf.mxu0
    %v1821 = vpop.f32.mrf.mxu0
    %v1822 = vadd.f32 0.0, %v1821
    %v1823 = vpop.f32.mrf.mxu0
    %1824 = vmatprep.mubr.bf16.mxu0 %v1013
    %1825 = vmatmul.mubr.bf16.gmra.mxu0 %v1012
    %v1826 = vpop.f32.mrf.mxu0
    %v1827 = vadd.f32 0.0, %v1826
    %v1828 = vpop.f32.mrf.mxu0
    %v1829 = vpop.f32.mrf.mxu0
    %v1830 = vadd.f32 0.0, %v1829
    %v1831 = vpop.f32.mrf.mxu0
    %1832 = vmatprep.mubr.bf16.mxu0 %v1016
    %1833 = vmatmul.mubr.bf16.gmra.mxu0 %v1015
    %v1834 = vpop.f32.mrf.mxu0
    %v1835 = vadd.f32 0.0, %v1834
    %v1836 = vpop.f32.mrf.mxu0
    %v1837 = vpop.f32.mrf.mxu0
    %v1838 = vadd.f32 0.0, %v1837
    %v1839 = vpop.f32.mrf.mxu0
    %1840 = vmatprep.mubr.bf16.mxu0 %v1019
    %1841 = vmatmul.mubr.bf16.gmra.mxu0 %v1018
    %v1842 = vpop.f32.mrf.mxu0
    %v1843 = vadd.f32 0.0, %v1842
    %v1844 = vpop.f32.mrf.mxu0
    %v1845 = vpop.f32.mrf.mxu0
    %v1846 = vadd.f32 0.0, %v1845
    %v1847 = vpop.f32.mrf.mxu0
    %1848 = vmatprep.mubr.bf16.mxu0 %v1022
    %1849 = vmatmul.mubr.bf16.gmra.mxu0 %v1021
    %v1850 = vpop.f32.mrf.mxu0
    %v1851 = vadd.f32 0.0, %v1850
    %v1852 = vpop.f32.mrf.mxu0
    %v1853 = vpop.f32.mrf.mxu0
    %v1854 = vadd.f32 0.0, %v1853
    %v1855 = vpop.f32.mrf.mxu0
    %1856 = vmatprep.mubr.bf16.mxu0 %v1025
    %1857 = vmatmul.mubr.bf16.gmra.mxu0 %v1024
    %v1858 = vpop.f32.mrf.mxu0
    %v1859 = vadd.f32 0.0, %v1858
    %v1860 = vpop.f32.mrf.mxu0
    %v1861 = vpop.f32.mrf.mxu0
    %v1862 = vadd.f32 0.0, %v1861
    %v1863 = vpop.f32.mrf.mxu0
    %1864 = vmatprep.mubr.bf16.mxu0 %v1028
    %1865 = vmatmul.mubr.bf16.gmra.mxu0 %v1027
    %v1866 = vpop.f32.mrf.mxu0
    %v1867 = vadd.f32 0.0, %v1866
    %v1868 = vpop.f32.mrf.mxu0
    %v1869 = vpop.f32.mrf.mxu0
    %v1870 = vadd.f32 0.0, %v1869
    %v1871 = vpop.f32.mrf.mxu0
    %1872 = vmatprep.mubr.bf16.mxu0 %v1031
    %1873 = vmatmul.mubr.bf16.gmra.mxu0 %v1030
    %v1874 = vpop.f32.mrf.mxu0
    %v1875 = vadd.f32 0.0, %v1874
    %v1876 = vpop.f32.mrf.mxu0
    %v1877 = vpop.f32.mrf.mxu0
    %v1878 = vadd.f32 0.0, %v1877
    %v1879 = vpop.f32.mrf.mxu0
    %1880 = vmatprep.mubr.bf16.mxu0 %v1034
    %1881 = vmatmul.mubr.bf16.gmra.mxu0 %v1033
    %v1882 = vpop.f32.mrf.mxu0
    %v1883 = vadd.f32 0.0, %v1882
    %v1884 = vpop.f32.mrf.mxu0
    %v1885 = vpop.f32.mrf.mxu0
    %v1886 = vadd.f32 0.0, %v1885
    %v1887 = vpop.f32.mrf.mxu0
    %1888 = vmatprep.mubr.bf16.mxu0 %v1037
    %1889 = vmatmul.mubr.bf16.gmra.mxu0 %v1036
    %v1890 = vpop.f32.mrf.mxu0
    %v1891 = vadd.f32 0.0, %v1890
    %v1892 = vpop.f32.mrf.mxu0
    %v1893 = vpop.f32.mrf.mxu0
    %v1894 = vadd.f32 0.0, %v1893
    %v1895 = vpop.f32.mrf.mxu0
    %1896 = vmatprep.mubr.bf16.mxu0 %v1040
    %1897 = vmatmul.mubr.bf16.gmra.mxu0 %v1039
    %v1898 = vpop.f32.mrf.mxu0
    %v1899 = vadd.f32 0.0, %v1898
    %v1900 = vpop.f32.mrf.mxu0
    %v1901 = vpop.f32.mrf.mxu0
    %v1902 = vadd.f32 0.0, %v1901
    %v1903 = vpop.f32.mrf.mxu0
    %1904 = vmatprep.mubr.bf16.mxu0 %v1043
    %1905 = vmatmul.mubr.bf16.gmra.mxu0 %v1042
    %v1906 = vpop.f32.mrf.mxu0
    %v1907 = vadd.f32 0.0, %v1906
    %v1908 = vpop.f32.mrf.mxu0
    %v1909 = vpop.f32.mrf.mxu0
    %v1910 = vadd.f32 0.0, %v1909
    %v1911 = vpop.f32.mrf.mxu0
    %1912 = vdwg.mxu0
    %1913 = vmatprep.subr.bf16.mxu0 0
    %1914 = vmatpush1.bf16.msra.mxu0 %v1503
    %1915 = vmatprep.subr.bf16.mxu0 0
    %1916 = vmatpush1.bf16.msra.mxu0 %v1502
    %1917 = vmatprep.subr.bf16.mxu0 0
    %1918 = vmatpush1.bf16.msra.mxu0 %v1501
    %1919 = vmatprep.subr.bf16.mxu0 0
    %1920 = vmatpush1.bf16.msra.mxu0 %v1500
    %1921 = vmatprep.subr.bf16.mxu0 0
    %1922 = vmatpush1.bf16.msra.mxu0 %v1499
    %1923 = vmatprep.subr.bf16.mxu0 0
    %1924 = vmatpush1.bf16.msra.mxu0 %v1498
    %1925 = vmatprep.subr.bf16.mxu0 0
    %1926 = vmatpush1.bf16.msra.mxu0 %v1497
    %1927 = vmatprep.subr.bf16.mxu0 0
    %1928 = vmatpush1.bf16.msra.mxu0 %v1496
    %1929 = vmatprep.subr.bf16.mxu0 0
    %1930 = vmatpush2.bf16.msra.mxu0 %v1511
    %1931 = vmatprep.subr.bf16.mxu0 0
    %1932 = vmatpush2.bf16.msra.mxu0 %v1510
    %1933 = vmatprep.subr.bf16.mxu0 0
    %1934 = vmatpush2.bf16.msra.mxu0 %v1509
    %1935 = vmatprep.subr.bf16.mxu0 0
    %1936 = vmatpush2.bf16.msra.mxu0 %v1508
    %1937 = vmatprep.subr.bf16.mxu0 0
    %1938 = vmatpush2.bf16.msra.mxu0 %v1507
    %1939 = vmatprep.subr.bf16.mxu0 0
    %1940 = vmatpush2.bf16.msra.mxu0 %v1506
    %1941 = vmatprep.subr.bf16.mxu0 0
    %1942 = vmatpush2.bf16.msra.mxu0 %v1505
    %1943 = vmatprep.subr.bf16.mxu0 0
    %1944 = vmatpush2.bf16.msra.mxu0 %v1504
    %1945 = vmatprep.mubr.bf16.mxu0 %v952
    %1946 = vmatmul.mubr.bf16.gmra.mxu0 %v951
    %v1947 = vpop.f32.mrf.mxu0
    %v1948 = vadd.f32 %v1659, %v1947
    %v1949 = vpop.f32.mrf.mxu0
    %v1950 = vpop.f32.mrf.mxu0
    %v1951 = vadd.f32 %v1662, %v1950
    %v1952 = vpop.f32.mrf.mxu0
    %1953 = vmatprep.mubr.bf16.mxu0 %v955
    %1954 = vmatmul.mubr.bf16.gmra.mxu0 %v954
    %v1955 = vpop.f32.mrf.mxu0
    %v1956 = vadd.f32 %v1667, %v1955
    %v1957 = vpop.f32.mrf.mxu0
    %v1958 = vpop.f32.mrf.mxu0
    %v1959 = vadd.f32 %v1670, %v1958
    %v1960 = vpop.f32.mrf.mxu0
    %1961 = vmatprep.mubr.bf16.mxu0 %v958
    %1962 = vmatmul.mubr.bf16.gmra.mxu0 %v957
    %v1963 = vpop.f32.mrf.mxu0
    %v1964 = vadd.f32 %v1675, %v1963
    %v1965 = vpop.f32.mrf.mxu0
    %v1966 = vpop.f32.mrf.mxu0
    %v1967 = vadd.f32 %v1678, %v1966
    %v1968 = vpop.f32.mrf.mxu0
    %1969 = vmatprep.mubr.bf16.mxu0 %v961
    %1970 = vmatmul.mubr.bf16.gmra.mxu0 %v960
    %v1971 = vpop.f32.mrf.mxu0
    %v1972 = vadd.f32 %v1683, %v1971
    %v1973 = vpop.f32.mrf.mxu0
    %v1974 = vpop.f32.mrf.mxu0
    %v1975 = vadd.f32 %v1686, %v1974
    %v1976 = vpop.f32.mrf.mxu0
    %1977 = vmatprep.mubr.bf16.mxu0 %v964
    %1978 = vmatmul.mubr.bf16.gmra.mxu0 %v963
    %v1979 = vpop.f32.mrf.mxu0
    %v1980 = vadd.f32 %v1691, %v1979
    %v1981 = vpop.f32.mrf.mxu0
    %v1982 = vpop.f32.mrf.mxu0
    %v1983 = vadd.f32 %v1694, %v1982
    %v1984 = vpop.f32.mrf.mxu0
    %1985 = vmatprep.mubr.bf16.mxu0 %v967
    %1986 = vmatmul.mubr.bf16.gmra.mxu0 %v966
    %v1987 = vpop.f32.mrf.mxu0
    %v1988 = vadd.f32 %v1699, %v1987
    %v1989 = vpop.f32.mrf.mxu0
    %v1990 = vpop.f32.mrf.mxu0
    %v1991 = vadd.f32 %v1702, %v1990
    %v1992 = vpop.f32.mrf.mxu0
    %1993 = vmatprep.mubr.bf16.mxu0 %v970
    %1994 = vmatmul.mubr.bf16.gmra.mxu0 %v969
    %v1995 = vpop.f32.mrf.mxu0
    %v1996 = vadd.f32 %v1707, %v1995
    %v1997 = vpop.f32.mrf.mxu0
    %v1998 = vpop.f32.mrf.mxu0
    %v1999 = vadd.f32 %v1710, %v1998
    %v2000 = vpop.f32.mrf.mxu0
    %2001 = vmatprep.mubr.bf16.mxu0 %v973
    %2002 = vmatmul.mubr.bf16.gmra.mxu0 %v972
    %v2003 = vpop.f32.mrf.mxu0
    %v2004 = vadd.f32 %v1715, %v2003
    %v2005 = vpop.f32.mrf.mxu0
    %v2006 = vpop.f32.mrf.mxu0
    %v2007 = vadd.f32 %v1718, %v2006
    %v2008 = vpop.f32.mrf.mxu0
    %2009 = vmatprep.mubr.bf16.mxu0 %v976
    %2010 = vmatmul.mubr.bf16.gmra.mxu0 %v975
    %v2011 = vpop.f32.mrf.mxu0
    %v2012 = vadd.f32 %v1723, %v2011
    %v2013 = vpop.f32.mrf.mxu0
    %v2014 = vpop.f32.mrf.mxu0
    %v2015 = vadd.f32 %v1726, %v2014
    %v2016 = vpop.f32.mrf.mxu0
    %2017 = vmatprep.mubr.bf16.mxu0 %v979
    %2018 = vmatmul.mubr.bf16.gmra.mxu0 %v978
    %v2019 = vpop.f32.mrf.mxu0
    %v2020 = vadd.f32 %v1731, %v2019
    %v2021 = vpop.f32.mrf.mxu0
    %v2022 = vpop.f32.mrf.mxu0
    %v2023 = vadd.f32 %v1734, %v2022
    %v2024 = vpop.f32.mrf.mxu0
    %2025 = vmatprep.mubr.bf16.mxu0 %v982
    %2026 = vmatmul.mubr.bf16.gmra.mxu0 %v981
    %v2027 = vpop.f32.mrf.mxu0
    %v2028 = vadd.f32 %v1739, %v2027
    %v2029 = vpop.f32.mrf.mxu0
    %v2030 = vpop.f32.mrf.mxu0
    %v2031 = vadd.f32 %v1742, %v2030
    %v2032 = vpop.f32.mrf.mxu0
    %2033 = vmatprep.mubr.bf16.mxu0 %v985
    %2034 = vmatmul.mubr.bf16.gmra.mxu0 %v984
    %v2035 = vpop.f32.mrf.mxu0
    %v2036 = vadd.f32 %v1747, %v2035
    %v2037 = vpop.f32.mrf.mxu0
    %v2038 = vpop.f32.mrf.mxu0
    %v2039 = vadd.f32 %v1750, %v2038
    %v2040 = vpop.f32.mrf.mxu0
    %2041 = vmatprep.mubr.bf16.mxu0 %v988
    %2042 = vmatmul.mubr.bf16.gmra.mxu0 %v987
    %v2043 = vpop.f32.mrf.mxu0
    %v2044 = vadd.f32 %v1755, %v2043
    %v2045 = vpop.f32.mrf.mxu0
    %v2046 = vpop.f32.mrf.mxu0
    %v2047 = vadd.f32 %v1758, %v2046
    %v2048 = vpop.f32.mrf.mxu0
    %2049 = vmatprep.mubr.bf16.mxu0 %v991
    %2050 = vmatmul.mubr.bf16.gmra.mxu0 %v990
    %v2051 = vpop.f32.mrf.mxu0
    %v2052 = vadd.f32 %v1763, %v2051
    %v2053 = vpop.f32.mrf.mxu0
    %v2054 = vpop.f32.mrf.mxu0
    %v2055 = vadd.f32 %v1766, %v2054
    %v2056 = vpop.f32.mrf.mxu0
    %2057 = vmatprep.mubr.bf16.mxu0 %v994
    %2058 = vmatmul.mubr.bf16.gmra.mxu0 %v993
    %v2059 = vpop.f32.mrf.mxu0
    %v2060 = vadd.f32 %v1771, %v2059
    %v2061 = vpop.f32.mrf.mxu0
    %v2062 = vpop.f32.mrf.mxu0
    %v2063 = vadd.f32 %v1774, %v2062
    %v2064 = vpop.f32.mrf.mxu0
    %2065 = vmatprep.mubr.bf16.mxu0 %v997
    %2066 = vmatmul.mubr.bf16.gmra.mxu0 %v996
    %v2067 = vpop.f32.mrf.mxu0
    %v2068 = vadd.f32 %v1779, %v2067
    %v2069 = vpop.f32.mrf.mxu0
    %v2070 = vpop.f32.mrf.mxu0
    %v2071 = vadd.f32 %v1782, %v2070
    %v2072 = vpop.f32.mrf.mxu0
    %2073 = vmatprep.mubr.bf16.mxu0 %v1000
    %2074 = vmatmul.mubr.bf16.gmra.mxu0 %v951
    %v2075 = vpop.f32.mrf.mxu0
    %v2076 = vadd.f32 %v1787, %v2075
    %v2077 = vpop.f32.mrf.mxu0
    %v2078 = vpop.f32.mrf.mxu0
    %v2079 = vadd.f32 %v1790, %v2078
    %v2080 = vpop.f32.mrf.mxu0
    %2081 = vmatprep.mubr.bf16.mxu0 %v1003
    %2082 = vmatmul.mubr.bf16.gmra.mxu0 %v1002
    %v2083 = vpop.f32.mrf.mxu0
    %v2084 = vadd.f32 %v1795, %v2083
    %v2085 = vpop.f32.mrf.mxu0
    %v2086 = vpop.f32.mrf.mxu0
    %v2087 = vadd.f32 %v1798, %v2086
    %v2088 = vpop.f32.mrf.mxu0
    %2089 = vmatprep.mubr.bf16.mxu0 %v1006
    %2090 = vmatmul.mubr.bf16.gmra.mxu0 %v1005
    %v2091 = vpop.f32.mrf.mxu0
    %v2092 = vadd.f32 %v1803, %v2091
    %v2093 = vpop.f32.mrf.mxu0
    %v2094 = vpop.f32.mrf.mxu0
    %v2095 = vadd.f32 %v1806, %v2094
    %v2096 = vpop.f32.mrf.mxu0
    %2097 = vmatprep.mubr.bf16.mxu0 %v1009
    %2098 = vmatmul.mubr.bf16.gmra.mxu0 %v1008
    %v2099 = vpop.f32.mrf.mxu0
    %v2100 = vadd.f32 %v1811, %v2099
    %v2101 = vpop.f32.mrf.mxu0
    %v2102 = vpop.f32.mrf.mxu0
    %v2103 = vadd.f32 %v1814, %v2102
    %v2104 = vpop.f32.mrf.mxu0
    %2105 = vmatprep.mubr.bf16.mxu0 %v1012
    %2106 = vmatmul.mubr.bf16.gmra.mxu0 %v1011
    %v2107 = vpop.f32.mrf.mxu0
    %v2108 = vadd.f32 %v1819, %v2107
    %v2109 = vpop.f32.mrf.mxu0
    %v2110 = vpop.f32.mrf.mxu0
    %v2111 = vadd.f32 %v1822, %v2110
    %v2112 = vpop.f32.mrf.mxu0
    %2113 = vmatprep.mubr.bf16.mxu0 %v1015
    %2114 = vmatmul.mubr.bf16.gmra.mxu0 %v1014
    %v2115 = vpop.f32.mrf.mxu0
    %v2116 = vadd.f32 %v1827, %v2115
    %v2117 = vpop.f32.mrf.mxu0
    %v2118 = vpop.f32.mrf.mxu0
    %v2119 = vadd.f32 %v1830, %v2118
    %v2120 = vpop.f32.mrf.mxu0
    %2121 = vmatprep.mubr.bf16.mxu0 %v1018
    %2122 = vmatmul.mubr.bf16.gmra.mxu0 %v1017
    %v2123 = vpop.f32.mrf.mxu0
    %v2124 = vadd.f32 %v1835, %v2123
    %v2125 = vpop.f32.mrf.mxu0
    %v2126 = vpop.f32.mrf.mxu0
    %v2127 = vadd.f32 %v1838, %v2126
    %v2128 = vpop.f32.mrf.mxu0
    %2129 = vmatprep.mubr.bf16.mxu0 %v1021
    %2130 = vmatmul.mubr.bf16.gmra.mxu0 %v1020
    %v2131 = vpop.f32.mrf.mxu0
    %v2132 = vadd.f32 %v1843, %v2131
    %v2133 = vpop.f32.mrf.mxu0
    %v2134 = vpop.f32.mrf.mxu0
    %v2135 = vadd.f32 %v1846, %v2134
    %v2136 = vpop.f32.mrf.mxu0
    %2137 = vmatprep.mubr.bf16.mxu0 %v1024
    %2138 = vmatmul.mubr.bf16.gmra.mxu0 %v1023
    %v2139 = vpop.f32.mrf.mxu0
    %v2140 = vadd.f32 %v1851, %v2139
    %v2141 = vpop.f32.mrf.mxu0
    %v2142 = vpop.f32.mrf.mxu0
    %v2143 = vadd.f32 %v1854, %v2142
    %v2144 = vpop.f32.mrf.mxu0
    %2145 = vmatprep.mubr.bf16.mxu0 %v1027
    %2146 = vmatmul.mubr.bf16.gmra.mxu0 %v1026
    %v2147 = vpop.f32.mrf.mxu0
    %v2148 = vadd.f32 %v1859, %v2147
    %v2149 = vpop.f32.mrf.mxu0
    %v2150 = vpop.f32.mrf.mxu0
    %v2151 = vadd.f32 %v1862, %v2150
    %v2152 = vpop.f32.mrf.mxu0
    %2153 = vmatprep.mubr.bf16.mxu0 %v1030
    %2154 = vmatmul.mubr.bf16.gmra.mxu0 %v1029
    %v2155 = vpop.f32.mrf.mxu0
    %v2156 = vadd.f32 %v1867, %v2155
    %v2157 = vpop.f32.mrf.mxu0
    %v2158 = vpop.f32.mrf.mxu0
    %v2159 = vadd.f32 %v1870, %v2158
    %v2160 = vpop.f32.mrf.mxu0
    %2161 = vmatprep.mubr.bf16.mxu0 %v1033
    %2162 = vmatmul.mubr.bf16.gmra.mxu0 %v1032
    %v2163 = vpop.f32.mrf.mxu0
    %v2164 = vadd.f32 %v1875, %v2163
    %v2165 = vpop.f32.mrf.mxu0
    %v2166 = vpop.f32.mrf.mxu0
    %v2167 = vadd.f32 %v1878, %v2166
    %v2168 = vpop.f32.mrf.mxu0
    %2169 = vmatprep.mubr.bf16.mxu0 %v1036
    %2170 = vmatmul.mubr.bf16.gmra.mxu0 %v1035
    %v2171 = vpop.f32.mrf.mxu0
    %v2172 = vadd.f32 %v1883, %v2171
    %v2173 = vpop.f32.mrf.mxu0
    %v2174 = vpop.f32.mrf.mxu0
    %v2175 = vadd.f32 %v1886, %v2174
    %v2176 = vpop.f32.mrf.mxu0
    %2177 = vmatprep.mubr.bf16.mxu0 %v1039
    %2178 = vmatmul.mubr.bf16.gmra.mxu0 %v1038
    %v2179 = vpop.f32.mrf.mxu0
    %v2180 = vadd.f32 %v1891, %v2179
    %v2181 = vpop.f32.mrf.mxu0
    %v2182 = vpop.f32.mrf.mxu0
    %v2183 = vadd.f32 %v1894, %v2182
    %v2184 = vpop.f32.mrf.mxu0
    %2185 = vmatprep.mubr.bf16.mxu0 %v1042
    %2186 = vmatmul.mubr.bf16.gmra.mxu0 %v1041
    %v2187 = vpop.f32.mrf.mxu0
    %v2188 = vadd.f32 %v1899, %v2187
    %v2189 = vpop.f32.mrf.mxu0
    %v2190 = vpop.f32.mrf.mxu0
    %v2191 = vadd.f32 %v1902, %v2190
    %v2192 = vpop.f32.mrf.mxu0
    %2193 = vmatprep.mubr.bf16.mxu0 %v1045
    %2194 = vmatmul.mubr.bf16.gmra.mxu0 %v1044
    %v2195 = vpop.f32.mrf.mxu0
    %v2196 = vadd.f32 %v1907, %v2195
    %v2197 = vpop.f32.mrf.mxu0
    %v2198 = vpop.f32.mrf.mxu0
    %v2199 = vadd.f32 %v1910, %v2198
    %v2200 = vpop.f32.mrf.mxu0
    %2201 = vdwg.mxu0
    %2202 = vmatprep.subr.bf16.mxu0 0
    %2203 = vmatpush1.bf16.msra.mxu0 %v1519
    %2204 = vmatprep.subr.bf16.mxu0 0
    %2205 = vmatpush1.bf16.msra.mxu0 %v1518
    %2206 = vmatprep.subr.bf16.mxu0 0
    %2207 = vmatpush1.bf16.msra.mxu0 %v1517
    %2208 = vmatprep.subr.bf16.mxu0 0
    %2209 = vmatpush1.bf16.msra.mxu0 %v1516
    %2210 = vmatprep.subr.bf16.mxu0 0
    %2211 = vmatpush1.bf16.msra.mxu0 %v1515
    %2212 = vmatprep.subr.bf16.mxu0 0
    %2213 = vmatpush1.bf16.msra.mxu0 %v1514
    %2214 = vmatprep.subr.bf16.mxu0 0
    %2215 = vmatpush1.bf16.msra.mxu0 %v1513
    %2216 = vmatprep.subr.bf16.mxu0 0
    %2217 = vmatpush1.bf16.msra.mxu0 %v1512
    %2218 = vmatprep.subr.bf16.mxu0 0
    %2219 = vmatpush2.bf16.msra.mxu0 %v1527
    %2220 = vmatprep.subr.bf16.mxu0 0
    %2221 = vmatpush2.bf16.msra.mxu0 %v1526
    %2222 = vmatprep.subr.bf16.mxu0 0
    %2223 = vmatpush2.bf16.msra.mxu0 %v1525
    %2224 = vmatprep.subr.bf16.mxu0 0
    %2225 = vmatpush2.bf16.msra.mxu0 %v1524
    %2226 = vmatprep.subr.bf16.mxu0 0
    %2227 = vmatpush2.bf16.msra.mxu0 %v1523
    %2228 = vmatprep.subr.bf16.mxu0 0
    %2229 = vmatpush2.bf16.msra.mxu0 %v1522
    %2230 = vmatprep.subr.bf16.mxu0 0
    %2231 = vmatpush2.bf16.msra.mxu0 %v1521
    %2232 = vmatprep.subr.bf16.mxu0 0
    %2233 = vmatpush2.bf16.msra.mxu0 %v1520
    %2234 = vmatprep.mubr.bf16.mxu0 %v954
    %2235 = vmatmul.mubr.bf16.gmra.mxu0 %v953
    %v2236 = vpop.f32.mrf.mxu0
    %v2237 = vadd.f32 %v1948, %v2236
    %v2238 = vpop.f32.mrf.mxu0
    %v2239 = vpop.f32.mrf.mxu0
    %v2240 = vadd.f32 %v1951, %v2239
    %v2241 = vpop.f32.mrf.mxu0
    %2242 = vmatprep.mubr.bf16.mxu0 %v957
    %2243 = vmatmul.mubr.bf16.gmra.mxu0 %v956
    %v2244 = vpop.f32.mrf.mxu0
    %v2245 = vadd.f32 %v1956, %v2244
    %v2246 = vpop.f32.mrf.mxu0
    %v2247 = vpop.f32.mrf.mxu0
    %v2248 = vadd.f32 %v1959, %v2247
    %v2249 = vpop.f32.mrf.mxu0
    %2250 = vmatprep.mubr.bf16.mxu0 %v960
    %2251 = vmatmul.mubr.bf16.gmra.mxu0 %v959
    %v2252 = vpop.f32.mrf.mxu0
    %v2253 = vadd.f32 %v1964, %v2252
    %v2254 = vpop.f32.mrf.mxu0
    %v2255 = vpop.f32.mrf.mxu0
    %v2256 = vadd.f32 %v1967, %v2255
    %v2257 = vpop.f32.mrf.mxu0
    %2258 = vmatprep.mubr.bf16.mxu0 %v963
    %2259 = vmatmul.mubr.bf16.gmra.mxu0 %v962
    %v2260 = vpop.f32.mrf.mxu0
    %v2261 = vadd.f32 %v1972, %v2260
    %v2262 = vpop.f32.mrf.mxu0
    %v2263 = vpop.f32.mrf.mxu0
    %v2264 = vadd.f32 %v1975, %v2263
    %v2265 = vpop.f32.mrf.mxu0
    %2266 = vmatprep.mubr.bf16.mxu0 %v966
    %2267 = vmatmul.mubr.bf16.gmra.mxu0 %v965
    %v2268 = vpop.f32.mrf.mxu0
    %v2269 = vadd.f32 %v1980, %v2268
    %v2270 = vpop.f32.mrf.mxu0
    %v2271 = vpop.f32.mrf.mxu0
    %v2272 = vadd.f32 %v1983, %v2271
    %v2273 = vpop.f32.mrf.mxu0
    %2274 = vmatprep.mubr.bf16.mxu0 %v969
    %2275 = vmatmul.mubr.bf16.gmra.mxu0 %v968
    %v2276 = vpop.f32.mrf.mxu0
    %v2277 = vadd.f32 %v1988, %v2276
    %v2278 = vpop.f32.mrf.mxu0
    %v2279 = vpop.f32.mrf.mxu0
    %v2280 = vadd.f32 %v1991, %v2279
    %v2281 = vpop.f32.mrf.mxu0
    %2282 = vmatprep.mubr.bf16.mxu0 %v972
    %2283 = vmatmul.mubr.bf16.gmra.mxu0 %v971
    %v2284 = vpop.f32.mrf.mxu0
    %v2285 = vadd.f32 %v1996, %v2284
    %v2286 = vpop.f32.mrf.mxu0
    %v2287 = vpop.f32.mrf.mxu0
    %v2288 = vadd.f32 %v1999, %v2287
    %v2289 = vpop.f32.mrf.mxu0
    %2290 = vmatprep.mubr.bf16.mxu0 %v975
    %2291 = vmatmul.mubr.bf16.gmra.mxu0 %v974
    %v2292 = vpop.f32.mrf.mxu0
    %v2293 = vadd.f32 %v2004, %v2292
    %v2294 = vpop.f32.mrf.mxu0
    %v2295 = vpop.f32.mrf.mxu0
    %v2296 = vadd.f32 %v2007, %v2295
    %v2297 = vpop.f32.mrf.mxu0
    %2298 = vmatprep.mubr.bf16.mxu0 %v978
    %2299 = vmatmul.mubr.bf16.gmra.mxu0 %v977
    %v2300 = vpop.f32.mrf.mxu0
    %v2301 = vadd.f32 %v2012, %v2300
    %v2302 = vpop.f32.mrf.mxu0
    %v2303 = vpop.f32.mrf.mxu0
    %v2304 = vadd.f32 %v2015, %v2303
    %v2305 = vpop.f32.mrf.mxu0
    %2306 = vmatprep.mubr.bf16.mxu0 %v981
    %2307 = vmatmul.mubr.bf16.gmra.mxu0 %v980
    %v2308 = vpop.f32.mrf.mxu0
    %v2309 = vadd.f32 %v2020, %v2308
    %v2310 = vpop.f32.mrf.mxu0
    %v2311 = vpop.f32.mrf.mxu0
    %v2312 = vadd.f32 %v2023, %v2311
    %v2313 = vpop.f32.mrf.mxu0
    %2314 = vmatprep.mubr.bf16.mxu0 %v984
    %2315 = vmatmul.mubr.bf16.gmra.mxu0 %v983
    %v2316 = vpop.f32.mrf.mxu0
    %v2317 = vadd.f32 %v2028, %v2316
    %v2318 = vpop.f32.mrf.mxu0
    %v2319 = vpop.f32.mrf.mxu0
    %v2320 = vadd.f32 %v2031, %v2319
    %v2321 = vpop.f32.mrf.mxu0
    %2322 = vmatprep.mubr.bf16.mxu0 %v987
    %2323 = vmatmul.mubr.bf16.gmra.mxu0 %v986
    %v2324 = vpop.f32.mrf.mxu0
    %v2325 = vadd.f32 %v2036, %v2324
    %v2326 = vpop.f32.mrf.mxu0
    %v2327 = vpop.f32.mrf.mxu0
    %v2328 = vadd.f32 %v2039, %v2327
    %v2329 = vpop.f32.mrf.mxu0
    %2330 = vmatprep.mubr.bf16.mxu0 %v990
    %2331 = vmatmul.mubr.bf16.gmra.mxu0 %v989
    %v2332 = vpop.f32.mrf.mxu0
    %v2333 = vadd.f32 %v2044, %v2332
    %v2334 = vpop.f32.mrf.mxu0
    %v2335 = vpop.f32.mrf.mxu0
    %v2336 = vadd.f32 %v2047, %v2335
    %v2337 = vpop.f32.mrf.mxu0
    %2338 = vmatprep.mubr.bf16.mxu0 %v993
    %2339 = vmatmul.mubr.bf16.gmra.mxu0 %v992
    %v2340 = vpop.f32.mrf.mxu0
    %v2341 = vadd.f32 %v2052, %v2340
    %v2342 = vpop.f32.mrf.mxu0
    %v2343 = vpop.f32.mrf.mxu0
    %v2344 = vadd.f32 %v2055, %v2343
    %v2345 = vpop.f32.mrf.mxu0
    %2346 = vmatprep.mubr.bf16.mxu0 %v996
    %2347 = vmatmul.mubr.bf16.gmra.mxu0 %v995
    %v2348 = vpop.f32.mrf.mxu0
    %v2349 = vadd.f32 %v2060, %v2348
    %v2350 = vpop.f32.mrf.mxu0
    %v2351 = vpop.f32.mrf.mxu0
    %v2352 = vadd.f32 %v2063, %v2351
    %v2353 = vpop.f32.mrf.mxu0
    %2354 = vmatprep.mubr.bf16.mxu0 %v999
    %2355 = vmatmul.mubr.bf16.gmra.mxu0 %v998
    %v2356 = vpop.f32.mrf.mxu0
    %v2357 = vadd.f32 %v2068, %v2356
    %v2358 = vpop.f32.mrf.mxu0
    %v2359 = vpop.f32.mrf.mxu0
    %v2360 = vadd.f32 %v2071, %v2359
    %v2361 = vpop.f32.mrf.mxu0
    %2362 = vmatprep.mubr.bf16.mxu0 %v1002
    %2363 = vmatmul.mubr.bf16.gmra.mxu0 %v1001
    %v2364 = vpop.f32.mrf.mxu0
    %v2365 = vadd.f32 %v2076, %v2364
    %v2366 = vpop.f32.mrf.mxu0
    %v2367 = vpop.f32.mrf.mxu0
    %v2368 = vadd.f32 %v2079, %v2367
    %v2369 = vpop.f32.mrf.mxu0
    %2370 = vmatprep.mubr.bf16.mxu0 %v1005
    %2371 = vmatmul.mubr.bf16.gmra.mxu0 %v1004
    %v2372 = vpop.f32.mrf.mxu0
    %v2373 = vadd.f32 %v2084, %v2372
    %v2374 = vpop.f32.mrf.mxu0
    %v2375 = vpop.f32.mrf.mxu0
    %v2376 = vadd.f32 %v2087, %v2375
    %v2377 = vpop.f32.mrf.mxu0
    %2378 = vmatprep.mubr.bf16.mxu0 %v1008
    %2379 = vmatmul.mubr.bf16.gmra.mxu0 %v1007
    %v2380 = vpop.f32.mrf.mxu0
    %v2381 = vadd.f32 %v2092, %v2380
    %v2382 = vpop.f32.mrf.mxu0
    %v2383 = vpop.f32.mrf.mxu0
    %v2384 = vadd.f32 %v2095, %v2383
    %v2385 = vpop.f32.mrf.mxu0
    %2386 = vmatprep.mubr.bf16.mxu0 %v1011
    %2387 = vmatmul.mubr.bf16.gmra.mxu0 %v1010
    %v2388 = vpop.f32.mrf.mxu0
    %v2389 = vadd.f32 %v2100, %v2388
    %v2390 = vpop.f32.mrf.mxu0
    %v2391 = vpop.f32.mrf.mxu0
    %v2392 = vadd.f32 %v2103, %v2391
    %v2393 = vpop.f32.mrf.mxu0
    %2394 = vmatprep.mubr.bf16.mxu0 %v1014
    %2395 = vmatmul.mubr.bf16.gmra.mxu0 %v1013
    %v2396 = vpop.f32.mrf.mxu0
    %v2397 = vadd.f32 %v2108, %v2396
    %v2398 = vpop.f32.mrf.mxu0
    %v2399 = vpop.f32.mrf.mxu0
    %v2400 = vadd.f32 %v2111, %v2399
    %v2401 = vpop.f32.mrf.mxu0
    %2402 = vmatprep.mubr.bf16.mxu0 %v1017
    %2403 = vmatmul.mubr.bf16.gmra.mxu0 %v1016
    %v2404 = vpop.f32.mrf.mxu0
    %v2405 = vadd.f32 %v2116, %v2404
    %v2406 = vpop.f32.mrf.mxu0
    %v2407 = vpop.f32.mrf.mxu0
    %v2408 = vadd.f32 %v2119, %v2407
    %v2409 = vpop.f32.mrf.mxu0
    %2410 = vmatprep.mubr.bf16.mxu0 %v1020
    %2411 = vmatmul.mubr.bf16.gmra.mxu0 %v1019
    %v2412 = vpop.f32.mrf.mxu0
    %v2413 = vadd.f32 %v2124, %v2412
    %v2414 = vpop.f32.mrf.mxu0
    %v2415 = vpop.f32.mrf.mxu0
    %v2416 = vadd.f32 %v2127, %v2415
    %v2417 = vpop.f32.mrf.mxu0
    %2418 = vmatprep.mubr.bf16.mxu0 %v1023
    %2419 = vmatmul.mubr.bf16.gmra.mxu0 %v1022
    %v2420 = vpop.f32.mrf.mxu0
    %v2421 = vadd.f32 %v2132, %v2420
    %v2422 = vpop.f32.mrf.mxu0
    %v2423 = vpop.f32.mrf.mxu0
    %v2424 = vadd.f32 %v2135, %v2423
    %v2425 = vpop.f32.mrf.mxu0
    %2426 = vmatprep.mubr.bf16.mxu0 %v1026
    %2427 = vmatmul.mubr.bf16.gmra.mxu0 %v1025
    %v2428 = vpop.f32.mrf.mxu0
    %v2429 = vadd.f32 %v2140, %v2428
    %v2430 = vpop.f32.mrf.mxu0
    %v2431 = vpop.f32.mrf.mxu0
    %v2432 = vadd.f32 %v2143, %v2431
    %v2433 = vpop.f32.mrf.mxu0
    %2434 = vmatprep.mubr.bf16.mxu0 %v1029
    %2435 = vmatmul.mubr.bf16.gmra.mxu0 %v1028
    %v2436 = vpop.f32.mrf.mxu0
    %v2437 = vadd.f32 %v2148, %v2436
    %v2438 = vpop.f32.mrf.mxu0
    %v2439 = vpop.f32.mrf.mxu0
    %v2440 = vadd.f32 %v2151, %v2439
    %v2441 = vpop.f32.mrf.mxu0
    %2442 = vmatprep.mubr.bf16.mxu0 %v1032
    %2443 = vmatmul.mubr.bf16.gmra.mxu0 %v1031
    %v2444 = vpop.f32.mrf.mxu0
    %v2445 = vadd.f32 %v2156, %v2444
    %v2446 = vpop.f32.mrf.mxu0
    %v2447 = vpop.f32.mrf.mxu0
    %v2448 = vadd.f32 %v2159, %v2447
    %v2449 = vpop.f32.mrf.mxu0
    %2450 = vmatprep.mubr.bf16.mxu0 %v1035
    %2451 = vmatmul.mubr.bf16.gmra.mxu0 %v1034
    %v2452 = vpop.f32.mrf.mxu0
    %v2453 = vadd.f32 %v2164, %v2452
    %v2454 = vpop.f32.mrf.mxu0
    %v2455 = vpop.f32.mrf.mxu0
    %v2456 = vadd.f32 %v2167, %v2455
    %v2457 = vpop.f32.mrf.mxu0
    %2458 = vmatprep.mubr.bf16.mxu0 %v1038
    %2459 = vmatmul.mubr.bf16.gmra.mxu0 %v1037
    %v2460 = vpop.f32.mrf.mxu0
    %v2461 = vadd.f32 %v2172, %v2460
    %v2462 = vpop.f32.mrf.mxu0
    %v2463 = vpop.f32.mrf.mxu0
    %v2464 = vadd.f32 %v2175, %v2463
    %v2465 = vpop.f32.mrf.mxu0
    %2466 = vmatprep.mubr.bf16.mxu0 %v1041
    %2467 = vmatmul.mubr.bf16.gmra.mxu0 %v1040
    %v2468 = vpop.f32.mrf.mxu0
    %v2469 = vadd.f32 %v2180, %v2468
    %v2470 = vpop.f32.mrf.mxu0
    %v2471 = vpop.f32.mrf.mxu0
    %v2472 = vadd.f32 %v2183, %v2471
    %v2473 = vpop.f32.mrf.mxu0
    %2474 = vmatprep.mubr.bf16.mxu0 %v1044
    %2475 = vmatmul.mubr.bf16.gmra.mxu0 %v1043
    %v2476 = vpop.f32.mrf.mxu0
    %v2477 = vadd.f32 %v2188, %v2476
    %v2478 = vpop.f32.mrf.mxu0
    %v2479 = vpop.f32.mrf.mxu0
    %v2480 = vadd.f32 %v2191, %v2479
    %v2481 = vpop.f32.mrf.mxu0
    %2482 = vmatprep.mubr.bf16.mxu0 %v1047
    %2483 = vmatmul.mubr.bf16.gmra.mxu0 %v1046
    %v2484 = vpop.f32.mrf.mxu0
    %v2485 = vadd.f32 %v2196, %v2484
    %v2486 = vpop.f32.mrf.mxu0
    %v2487 = vpop.f32.mrf.mxu0
    %v2488 = vadd.f32 %v2199, %v2487
    %v2489 = vpop.f32.mrf.mxu0
    %2490 = vdwg.mxu0
    %2491 = vmatprep.subr.bf16.mxu0 0
    %2492 = vmatpush1.bf16.msra.mxu0 %v1535
    %2493 = vmatprep.subr.bf16.mxu0 0
    %2494 = vmatpush1.bf16.msra.mxu0 %v1534
    %2495 = vmatprep.subr.bf16.mxu0 0
    %2496 = vmatpush1.bf16.msra.mxu0 %v1533
    %2497 = vmatprep.subr.bf16.mxu0 0
    %2498 = vmatpush1.bf16.msra.mxu0 %v1532
    %2499 = vmatprep.subr.bf16.mxu0 0
    %2500 = vmatpush1.bf16.msra.mxu0 %v1531
    %2501 = vmatprep.subr.bf16.mxu0 0
    %2502 = vmatpush1.bf16.msra.mxu0 %v1530
    %2503 = vmatprep.subr.bf16.mxu0 0
    %2504 = vmatpush1.bf16.msra.mxu0 %v1529
    %2505 = vmatprep.subr.bf16.mxu0 0
    %2506 = vmatpush1.bf16.msra.mxu0 %v1528
    %2507 = vmatprep.subr.bf16.mxu0 0
    %2508 = vmatpush2.bf16.msra.mxu0 %v1543
    %2509 = vmatprep.subr.bf16.mxu0 0
    %2510 = vmatpush2.bf16.msra.mxu0 %v1542
    %2511 = vmatprep.subr.bf16.mxu0 0
    %2512 = vmatpush2.bf16.msra.mxu0 %v1541
    %2513 = vmatprep.subr.bf16.mxu0 0
    %2514 = vmatpush2.bf16.msra.mxu0 %v1540
    %2515 = vmatprep.subr.bf16.mxu0 0
    %2516 = vmatpush2.bf16.msra.mxu0 %v1539
    %2517 = vmatprep.subr.bf16.mxu0 0
    %2518 = vmatpush2.bf16.msra.mxu0 %v1538
    %2519 = vmatprep.subr.bf16.mxu0 0
    %2520 = vmatpush2.bf16.msra.mxu0 %v1537
    %2521 = vmatprep.subr.bf16.mxu0 0
    %2522 = vmatpush2.bf16.msra.mxu0 %v1536
    %2523 = vmatprep.mubr.bf16.mxu0 %v956
    %2524 = vmatmul.mubr.bf16.gmra.mxu0 %v955
    %v2525 = vpop.f32.mrf.mxu0
    %v2526 = vadd.f32 %v2237, %v2525
    %v2527 = vpop.f32.mrf.mxu0
    %v2528 = vpop.f32.mrf.mxu0
    %v2529 = vadd.f32 %v2240, %v2528
    %v2530 = vpop.f32.mrf.mxu0
    %2531 = vmatprep.mubr.bf16.mxu0 %v959
    %2532 = vmatmul.mubr.bf16.gmra.mxu0 %v958
    %v2533 = vpop.f32.mrf.mxu0
    %v2534 = vadd.f32 %v2245, %v2533
    %v2535 = vpop.f32.mrf.mxu0
    %v2536 = vpop.f32.mrf.mxu0
    %v2537 = vadd.f32 %v2248, %v2536
    %v2538 = vpop.f32.mrf.mxu0
    %2539 = vmatprep.mubr.bf16.mxu0 %v962
    %2540 = vmatmul.mubr.bf16.gmra.mxu0 %v961
    %v2541 = vpop.f32.mrf.mxu0
    %v2542 = vadd.f32 %v2253, %v2541
    %v2543 = vpop.f32.mrf.mxu0
    %v2544 = vpop.f32.mrf.mxu0
    %v2545 = vadd.f32 %v2256, %v2544
    %v2546 = vpop.f32.mrf.mxu0
    %2547 = vmatprep.mubr.bf16.mxu0 %v965
    %2548 = vmatmul.mubr.bf16.gmra.mxu0 %v964
    %v2549 = vpop.f32.mrf.mxu0
    %v2550 = vadd.f32 %v2261, %v2549
    %v2551 = vpop.f32.mrf.mxu0
    %v2552 = vpop.f32.mrf.mxu0
    %v2553 = vadd.f32 %v2264, %v2552
    %v2554 = vpop.f32.mrf.mxu0
    %2555 = vmatprep.mubr.bf16.mxu0 %v968
    %2556 = vmatmul.mubr.bf16.gmra.mxu0 %v967
    %v2557 = vpop.f32.mrf.mxu0
    %v2558 = vadd.f32 %v2269, %v2557
    %v2559 = vpop.f32.mrf.mxu0
    %v2560 = vpop.f32.mrf.mxu0
    %v2561 = vadd.f32 %v2272, %v2560
    %v2562 = vpop.f32.mrf.mxu0
    %2563 = vmatprep.mubr.bf16.mxu0 %v971
    %2564 = vmatmul.mubr.bf16.gmra.mxu0 %v970
    %v2565 = vpop.f32.mrf.mxu0
    %v2566 = vadd.f32 %v2277, %v2565
    %v2567 = vpop.f32.mrf.mxu0
    %v2568 = vpop.f32.mrf.mxu0
    %v2569 = vadd.f32 %v2280, %v2568
    %v2570 = vpop.f32.mrf.mxu0
    %2571 = vmatprep.mubr.bf16.mxu0 %v974
    %2572 = vmatmul.mubr.bf16.gmra.mxu0 %v973
    %v2573 = vpop.f32.mrf.mxu0
    %v2574 = vadd.f32 %v2285, %v2573
    %v2575 = vpop.f32.mrf.mxu0
    %v2576 = vpop.f32.mrf.mxu0
    %v2577 = vadd.f32 %v2288, %v2576
    %v2578 = vpop.f32.mrf.mxu0
    %2579 = vmatprep.mubr.bf16.mxu0 %v977
    %2580 = vmatmul.mubr.bf16.gmra.mxu0 %v976
    %v2581 = vpop.f32.mrf.mxu0
    %v2582 = vadd.f32 %v2293, %v2581
    %v2583 = vpop.f32.mrf.mxu0
    %v2584 = vpop.f32.mrf.mxu0
    %v2585 = vadd.f32 %v2296, %v2584
    %v2586 = vpop.f32.mrf.mxu0
    %2587 = vmatprep.mubr.bf16.mxu0 %v980
    %2588 = vmatmul.mubr.bf16.gmra.mxu0 %v979
    %v2589 = vpop.f32.mrf.mxu0
    %v2590 = vadd.f32 %v2301, %v2589
    %v2591 = vpop.f32.mrf.mxu0
    %v2592 = vpop.f32.mrf.mxu0
    %v2593 = vadd.f32 %v2304, %v2592
    %v2594 = vpop.f32.mrf.mxu0
    %2595 = vmatprep.mubr.bf16.mxu0 %v983
    %2596 = vmatmul.mubr.bf16.gmra.mxu0 %v982
    %v2597 = vpop.f32.mrf.mxu0
    %v2598 = vadd.f32 %v2309, %v2597
    %v2599 = vpop.f32.mrf.mxu0
    %v2600 = vpop.f32.mrf.mxu0
    %v2601 = vadd.f32 %v2312, %v2600
    %v2602 = vpop.f32.mrf.mxu0
    %2603 = vmatprep.mubr.bf16.mxu0 %v986
    %2604 = vmatmul.mubr.bf16.gmra.mxu0 %v985
    %v2605 = vpop.f32.mrf.mxu0
    %v2606 = vadd.f32 %v2317, %v2605
    %v2607 = vpop.f32.mrf.mxu0
    %v2608 = vpop.f32.mrf.mxu0
    %v2609 = vadd.f32 %v2320, %v2608
    %v2610 = vpop.f32.mrf.mxu0
    %2611 = vmatprep.mubr.bf16.mxu0 %v989
    %2612 = vmatmul.mubr.bf16.gmra.mxu0 %v988
    %v2613 = vpop.f32.mrf.mxu0
    %v2614 = vadd.f32 %v2325, %v2613
    %v2615 = vpop.f32.mrf.mxu0
    %v2616 = vpop.f32.mrf.mxu0
    %v2617 = vadd.f32 %v2328, %v2616
    %v2618 = vpop.f32.mrf.mxu0
    %2619 = vmatprep.mubr.bf16.mxu0 %v992
    %2620 = vmatmul.mubr.bf16.gmra.mxu0 %v991
    %v2621 = vpop.f32.mrf.mxu0
    %v2622 = vadd.f32 %v2333, %v2621
    %v2623 = vpop.f32.mrf.mxu0
    %v2624 = vpop.f32.mrf.mxu0
    %v2625 = vadd.f32 %v2336, %v2624
    %v2626 = vpop.f32.mrf.mxu0
    %2627 = vmatprep.mubr.bf16.mxu0 %v995
    %2628 = vmatmul.mubr.bf16.gmra.mxu0 %v994
    %v2629 = vpop.f32.mrf.mxu0
    %v2630 = vadd.f32 %v2341, %v2629
    %v2631 = vpop.f32.mrf.mxu0
    %v2632 = vpop.f32.mrf.mxu0
    %v2633 = vadd.f32 %v2344, %v2632
    %v2634 = vpop.f32.mrf.mxu0
    %2635 = vmatprep.mubr.bf16.mxu0 %v998
    %2636 = vmatmul.mubr.bf16.gmra.mxu0 %v997
    %v2637 = vpop.f32.mrf.mxu0
    %v2638 = vadd.f32 %v2349, %v2637
    %v2639 = vpop.f32.mrf.mxu0
    %v2640 = vpop.f32.mrf.mxu0
    %v2641 = vadd.f32 %v2352, %v2640
    %v2642 = vpop.f32.mrf.mxu0
    %2643 = vmatprep.mubr.bf16.mxu0 %v950
    %2644 = vmatmul.mubr.bf16.gmra.mxu0 %v949
    %v2645 = vpop.f32.mrf.mxu0
    %v2646 = vadd.f32 %v2357, %v2645
    %v2647 = vpop.f32.mrf.mxu0
    %v2648 = vpop.f32.mrf.mxu0
    %v2649 = vadd.f32 %v2360, %v2648
    %v2650 = vpop.f32.mrf.mxu0
    %2651 = vmatprep.mubr.bf16.mxu0 %v1004
    %2652 = vmatmul.mubr.bf16.gmra.mxu0 %v1003
    %v2653 = vpop.f32.mrf.mxu0
    %v2654 = vadd.f32 %v2365, %v2653
    %v2655 = vpop.f32.mrf.mxu0
    %v2656 = vpop.f32.mrf.mxu0
    %v2657 = vadd.f32 %v2368, %v2656
    %v2658 = vpop.f32.mrf.mxu0
    %2659 = vmatprep.mubr.bf16.mxu0 %v1007
    %2660 = vmatmul.mubr.bf16.gmra.mxu0 %v1006
    %v2661 = vpop.f32.mrf.mxu0
    %v2662 = vadd.f32 %v2373, %v2661
    %v2663 = vpop.f32.mrf.mxu0
    %v2664 = vpop.f32.mrf.mxu0
    %v2665 = vadd.f32 %v2376, %v2664
    %v2666 = vpop.f32.mrf.mxu0
    %2667 = vmatprep.mubr.bf16.mxu0 %v1010
    %2668 = vmatmul.mubr.bf16.gmra.mxu0 %v1009
    %v2669 = vpop.f32.mrf.mxu0
    %v2670 = vadd.f32 %v2381, %v2669
    %v2671 = vpop.f32.mrf.mxu0
    %v2672 = vpop.f32.mrf.mxu0
    %v2673 = vadd.f32 %v2384, %v2672
    %v2674 = vpop.f32.mrf.mxu0
    %2675 = vmatprep.mubr.bf16.mxu0 %v1013
    %2676 = vmatmul.mubr.bf16.gmra.mxu0 %v1012
    %v2677 = vpop.f32.mrf.mxu0
    %v2678 = vadd.f32 %v2389, %v2677
    %v2679 = vpop.f32.mrf.mxu0
    %v2680 = vpop.f32.mrf.mxu0
    %v2681 = vadd.f32 %v2392, %v2680
    %v2682 = vpop.f32.mrf.mxu0
    %2683 = vmatprep.mubr.bf16.mxu0 %v1016
    %2684 = vmatmul.mubr.bf16.gmra.mxu0 %v1015
    %v2685 = vpop.f32.mrf.mxu0
    %v2686 = vadd.f32 %v2397, %v2685
    %v2687 = vpop.f32.mrf.mxu0
    %v2688 = vpop.f32.mrf.mxu0
    %v2689 = vadd.f32 %v2400, %v2688
    %v2690 = vpop.f32.mrf.mxu0
    %2691 = vmatprep.mubr.bf16.mxu0 %v1019
    %2692 = vmatmul.mubr.bf16.gmra.mxu0 %v1018
    %v2693 = vpop.f32.mrf.mxu0
    %v2694 = vadd.f32 %v2405, %v2693
    %v2695 = vpop.f32.mrf.mxu0
    %v2696 = vpop.f32.mrf.mxu0
    %v2697 = vadd.f32 %v2408, %v2696
    %v2698 = vpop.f32.mrf.mxu0
    %2699 = vmatprep.mubr.bf16.mxu0 %v1022
    %2700 = vmatmul.mubr.bf16.gmra.mxu0 %v1021
    %v2701 = vpop.f32.mrf.mxu0
    %v2702 = vadd.f32 %v2413, %v2701
    %v2703 = vpop.f32.mrf.mxu0
    %v2704 = vpop.f32.mrf.mxu0
    %v2705 = vadd.f32 %v2416, %v2704
    %v2706 = vpop.f32.mrf.mxu0
    %2707 = vmatprep.mubr.bf16.mxu0 %v1025
    %2708 = vmatmul.mubr.bf16.gmra.mxu0 %v1024
    %v2709 = vpop.f32.mrf.mxu0
    %v2710 = vadd.f32 %v2421, %v2709
    %v2711 = vpop.f32.mrf.mxu0
    %v2712 = vpop.f32.mrf.mxu0
    %v2713 = vadd.f32 %v2424, %v2712
    %v2714 = vpop.f32.mrf.mxu0
    %2715 = vmatprep.mubr.bf16.mxu0 %v1028
    %2716 = vmatmul.mubr.bf16.gmra.mxu0 %v1027
    %v2717 = vpop.f32.mrf.mxu0
    %v2718 = vadd.f32 %v2429, %v2717
    %v2719 = vpop.f32.mrf.mxu0
    %v2720 = vpop.f32.mrf.mxu0
    %v2721 = vadd.f32 %v2432, %v2720
    %v2722 = vpop.f32.mrf.mxu0
    %2723 = vmatprep.mubr.bf16.mxu0 %v1031
    %2724 = vmatmul.mubr.bf16.gmra.mxu0 %v1030
    %v2725 = vpop.f32.mrf.mxu0
    %v2726 = vadd.f32 %v2437, %v2725
    %v2727 = vpop.f32.mrf.mxu0
    %v2728 = vpop.f32.mrf.mxu0
    %v2729 = vadd.f32 %v2440, %v2728
    %v2730 = vpop.f32.mrf.mxu0
    %2731 = vmatprep.mubr.bf16.mxu0 %v1034
    %2732 = vmatmul.mubr.bf16.gmra.mxu0 %v1033
    %v2733 = vpop.f32.mrf.mxu0
    %v2734 = vadd.f32 %v2445, %v2733
    %v2735 = vpop.f32.mrf.mxu0
    %v2736 = vpop.f32.mrf.mxu0
    %v2737 = vadd.f32 %v2448, %v2736
    %v2738 = vpop.f32.mrf.mxu0
    %2739 = vmatprep.mubr.bf16.mxu0 %v1037
    %2740 = vmatmul.mubr.bf16.gmra.mxu0 %v1036
    %v2741 = vpop.f32.mrf.mxu0
    %v2742 = vadd.f32 %v2453, %v2741
    %v2743 = vpop.f32.mrf.mxu0
    %v2744 = vpop.f32.mrf.mxu0
    %v2745 = vadd.f32 %v2456, %v2744
    %v2746 = vpop.f32.mrf.mxu0
    %2747 = vmatprep.mubr.bf16.mxu0 %v1040
    %2748 = vmatmul.mubr.bf16.gmra.mxu0 %v1039
    %v2749 = vpop.f32.mrf.mxu0
    %v2750 = vadd.f32 %v2461, %v2749
    %v2751 = vpop.f32.mrf.mxu0
    %v2752 = vpop.f32.mrf.mxu0
    %v2753 = vadd.f32 %v2464, %v2752
    %v2754 = vpop.f32.mrf.mxu0
    %2755 = vmatprep.mubr.bf16.mxu0 %v1043
    %2756 = vmatmul.mubr.bf16.gmra.mxu0 %v1042
    %v2757 = vpop.f32.mrf.mxu0
    %v2758 = vadd.f32 %v2469, %v2757
    %v2759 = vpop.f32.mrf.mxu0
    %v2760 = vpop.f32.mrf.mxu0
    %v2761 = vadd.f32 %v2472, %v2760
    %v2762 = vpop.f32.mrf.mxu0
    %2763 = vmatprep.mubr.bf16.mxu0 %v1046
    %2764 = vmatmul.mubr.bf16.gmra.mxu0 %v1045
    %v2765 = vpop.f32.mrf.mxu0
    %v2766 = vadd.f32 %v2477, %v2765
    %v2767 = vpop.f32.mrf.mxu0
    %v2768 = vpop.f32.mrf.mxu0
    %v2769 = vadd.f32 %v2480, %v2768
    %v2770 = vpop.f32.mrf.mxu0
    %2771 = vmatprep.mubr.bf16.mxu0 %v950
    %2772 = vmatmul.mubr.bf16.gmra.mxu0 %v949
    %v2773 = vpop.f32.mrf.mxu0
    %v2774 = vadd.f32 %v2485, %v2773
    %v2775 = vpop.f32.mrf.mxu0
    %v2776 = vpop.f32.mrf.mxu0
    %v2777 = vadd.f32 %v2488, %v2776
    %v2778 = vpop.f32.mrf.mxu0
    %2779 = vdwg.mxu0
    %2780 = vmatprep.subr.bf16.mxu0 0
    %2781 = vmatpush1.bf16.msra.mxu0 %v1551
    %2782 = vmatprep.subr.bf16.mxu0 0
    %2783 = vmatpush1.bf16.msra.mxu0 %v1550
    %2784 = vmatprep.subr.bf16.mxu0 0
    %2785 = vmatpush1.bf16.msra.mxu0 %v1549
    %2786 = vmatprep.subr.bf16.mxu0 0
    %2787 = vmatpush1.bf16.msra.mxu0 %v1548
    %2788 = vmatprep.subr.bf16.mxu0 0
    %2789 = vmatpush1.bf16.msra.mxu0 %v1547
    %2790 = vmatprep.subr.bf16.mxu0 0
    %2791 = vmatpush1.bf16.msra.mxu0 %v1546
    %2792 = vmatprep.subr.bf16.mxu0 0
    %2793 = vmatpush1.bf16.msra.mxu0 %v1545
    %2794 = vmatprep.subr.bf16.mxu0 0
    %2795 = vmatpush1.bf16.msra.mxu0 %v1544
    %2796 = vmatprep.subr.bf16.mxu0 0
    %2797 = vmatpush2.bf16.msra.mxu0 0
    %2798 = vmatprep.subr.bf16.mxu0 0
    %2799 = vmatpush2.bf16.msra.mxu0 0
    %2800 = vmatprep.subr.bf16.mxu0 0
    %2801 = vmatpush2.bf16.msra.mxu0 0
    %2802 = vmatprep.subr.bf16.mxu0 0
    %2803 = vmatpush2.bf16.msra.mxu0 0
    %2804 = vmatprep.subr.bf16.mxu0 0
    %2805 = vmatpush2.bf16.msra.mxu0 0
    %2806 = vmatprep.subr.bf16.mxu0 0
    %2807 = vmatpush2.bf16.msra.mxu0 0
    %2808 = vmatprep.subr.bf16.mxu0 0
    %2809 = vmatpush2.bf16.msra.mxu0 0
    %2810 = vmatprep.subr.bf16.mxu0 0
    %2811 = vmatpush2.bf16.msra.mxu0 0
    %2812 = vmatprep.mubr.bf16.mxu0 0
    %2813 = vmatmul.mubr.bf16.gmra.mxu0 %v957
    %v2814 = vpop.f32.mrf.mxu0
    %v2815 = vadd.f32 %v2526, %v2814
    %v2816 = vpop.f32.mrf.mxu0
    %v2817 = vpop.f32.mrf.mxu0
    %v2818 = vadd.f32 %v2529, %v2817
    %v2819 = vpop.f32.mrf.mxu0
    %2820 = vmatprep.mubr.bf16.mxu0 0
    %2821 = vmatmul.mubr.bf16.gmra.mxu0 %v960
    %v2822 = vpop.f32.mrf.mxu0
    %v2823 = vadd.f32 %v2534, %v2822
    %v2824 = vpop.f32.mrf.mxu0
    %v2825 = vpop.f32.mrf.mxu0
    %v2826 = vadd.f32 %v2537, %v2825
    %v2827 = vpop.f32.mrf.mxu0
    %2828 = vmatprep.mubr.bf16.mxu0 0
    %2829 = vmatmul.mubr.bf16.gmra.mxu0 %v963
    %v2830 = vpop.f32.mrf.mxu0
    %v2831 = vadd.f32 %v2542, %v2830
    %v2832 = vpop.f32.mrf.mxu0
    %v2833 = vpop.f32.mrf.mxu0
    %v2834 = vadd.f32 %v2545, %v2833
    %v2835 = vpop.f32.mrf.mxu0
    %2836 = vmatprep.mubr.bf16.mxu0 0
    %2837 = vmatmul.mubr.bf16.gmra.mxu0 %v966
    %v2838 = vpop.f32.mrf.mxu0
    %v2839 = vadd.f32 %v2550, %v2838
    %v2840 = vpop.f32.mrf.mxu0
    %v2841 = vpop.f32.mrf.mxu0
    %v2842 = vadd.f32 %v2553, %v2841
    %v2843 = vpop.f32.mrf.mxu0
    %2844 = vmatprep.mubr.bf16.mxu0 0
    %2845 = vmatmul.mubr.bf16.gmra.mxu0 %v969
    %v2846 = vpop.f32.mrf.mxu0
    %v2847 = vadd.f32 %v2558, %v2846
    %v2848 = vpop.f32.mrf.mxu0
    %v2849 = vpop.f32.mrf.mxu0
    %v2850 = vadd.f32 %v2561, %v2849
    %v2851 = vpop.f32.mrf.mxu0
    %2852 = vmatprep.mubr.bf16.mxu0 0
    %2853 = vmatmul.mubr.bf16.gmra.mxu0 %v972
    %v2854 = vpop.f32.mrf.mxu0
    %v2855 = vadd.f32 %v2566, %v2854
    %v2856 = vpop.f32.mrf.mxu0
    %v2857 = vpop.f32.mrf.mxu0
    %v2858 = vadd.f32 %v2569, %v2857
    %v2859 = vpop.f32.mrf.mxu0
    %2860 = vmatprep.mubr.bf16.mxu0 0
    %2861 = vmatmul.mubr.bf16.gmra.mxu0 %v975
    %v2862 = vpop.f32.mrf.mxu0
    %v2863 = vadd.f32 %v2574, %v2862
    %v2864 = vpop.f32.mrf.mxu0
    %v2865 = vpop.f32.mrf.mxu0
    %v2866 = vadd.f32 %v2577, %v2865
    %v2867 = vpop.f32.mrf.mxu0
    %2868 = vmatprep.mubr.bf16.mxu0 0
    %2869 = vmatmul.mubr.bf16.gmra.mxu0 %v978
    %v2870 = vpop.f32.mrf.mxu0
    %v2871 = vadd.f32 %v2582, %v2870
    %v2872 = vpop.f32.mrf.mxu0
    %v2873 = vpop.f32.mrf.mxu0
    %v2874 = vadd.f32 %v2585, %v2873
    %v2875 = vpop.f32.mrf.mxu0
    %2876 = vmatprep.mubr.bf16.mxu0 0
    %2877 = vmatmul.mubr.bf16.gmra.mxu0 %v981
    %v2878 = vpop.f32.mrf.mxu0
    %v2879 = vadd.f32 %v2590, %v2878
    %v2880 = vpop.f32.mrf.mxu0
    %v2881 = vpop.f32.mrf.mxu0
    %v2882 = vadd.f32 %v2593, %v2881
    %v2883 = vpop.f32.mrf.mxu0
    %2884 = vmatprep.mubr.bf16.mxu0 0
    %2885 = vmatmul.mubr.bf16.gmra.mxu0 %v984
    %v2886 = vpop.f32.mrf.mxu0
    %v2887 = vadd.f32 %v2598, %v2886
    %v2888 = vpop.f32.mrf.mxu0
    %v2889 = vpop.f32.mrf.mxu0
    %v2890 = vadd.f32 %v2601, %v2889
    %v2891 = vpop.f32.mrf.mxu0
    %2892 = vmatprep.mubr.bf16.mxu0 0
    %2893 = vmatmul.mubr.bf16.gmra.mxu0 %v987
    %v2894 = vpop.f32.mrf.mxu0
    %v2895 = vadd.f32 %v2606, %v2894
    %v2896 = vpop.f32.mrf.mxu0
    %v2897 = vpop.f32.mrf.mxu0
    %v2898 = vadd.f32 %v2609, %v2897
    %v2899 = vpop.f32.mrf.mxu0
    %2900 = vmatprep.mubr.bf16.mxu0 0
    %2901 = vmatmul.mubr.bf16.gmra.mxu0 %v990
    %v2902 = vpop.f32.mrf.mxu0
    %v2903 = vadd.f32 %v2614, %v2902
    %v2904 = vpop.f32.mrf.mxu0
    %v2905 = vpop.f32.mrf.mxu0
    %v2906 = vadd.f32 %v2617, %v2905
    %v2907 = vpop.f32.mrf.mxu0
    %2908 = vmatprep.mubr.bf16.mxu0 0
    %2909 = vmatmul.mubr.bf16.gmra.mxu0 %v993
    %v2910 = vpop.f32.mrf.mxu0
    %v2911 = vadd.f32 %v2622, %v2910
    %v2912 = vpop.f32.mrf.mxu0
    %v2913 = vpop.f32.mrf.mxu0
    %v2914 = vadd.f32 %v2625, %v2913
    %v2915 = vpop.f32.mrf.mxu0
    %2916 = vmatprep.mubr.bf16.mxu0 0
    %2917 = vmatmul.mubr.bf16.gmra.mxu0 %v996
    %v2918 = vpop.f32.mrf.mxu0
    %v2919 = vadd.f32 %v2630, %v2918
    %v2920 = vpop.f32.mrf.mxu0
    %v2921 = vpop.f32.mrf.mxu0
    %v2922 = vadd.f32 %v2633, %v2921
    %v2923 = vpop.f32.mrf.mxu0
    %2924 = vmatprep.mubr.bf16.mxu0 0
    %2925 = vmatmul.mubr.bf16.gmra.mxu0 %v999
    %v2926 = vpop.f32.mrf.mxu0
    %v2927 = vadd.f32 %v2638, %v2926
    %v2928 = vpop.f32.mrf.mxu0
    %v2929 = vpop.f32.mrf.mxu0
    %v2930 = vadd.f32 %v2641, %v2929
    %v2931 = vpop.f32.mrf.mxu0
    %2932 = vmatprep.mubr.bf16.mxu0 0
    %2933 = vmatmul.mubr.bf16.gmra.mxu0 %v951
    %v2934 = vpop.f32.mrf.mxu0
    %v2935 = vadd.f32 %v2646, %v2934
    %v2936 = vpop.f32.mrf.mxu0
    %v2937 = vpop.f32.mrf.mxu0
    %v2938 = vadd.f32 %v2649, %v2937
    %v2939 = vpop.f32.mrf.mxu0
    %2940 = vmatprep.mubr.bf16.mxu0 0
    %2941 = vmatmul.mubr.bf16.gmra.mxu0 %v1005
    %v2942 = vpop.f32.mrf.mxu0
    %v2943 = vadd.f32 %v2654, %v2942
    %v2944 = vpop.f32.mrf.mxu0
    %v2945 = vpop.f32.mrf.mxu0
    %v2946 = vadd.f32 %v2657, %v2945
    %v2947 = vpop.f32.mrf.mxu0
    %2948 = vmatprep.mubr.bf16.mxu0 0
    %2949 = vmatmul.mubr.bf16.gmra.mxu0 %v1008
    %v2950 = vpop.f32.mrf.mxu0
    %v2951 = vadd.f32 %v2662, %v2950
    %v2952 = vpop.f32.mrf.mxu0
    %v2953 = vpop.f32.mrf.mxu0
    %v2954 = vadd.f32 %v2665, %v2953
    %v2955 = vpop.f32.mrf.mxu0
    %2956 = vmatprep.mubr.bf16.mxu0 0
    %2957 = vmatmul.mubr.bf16.gmra.mxu0 %v1011
    %v2958 = vpop.f32.mrf.mxu0
    %v2959 = vadd.f32 %v2670, %v2958
    %v2960 = vpop.f32.mrf.mxu0
    %v2961 = vpop.f32.mrf.mxu0
    %v2962 = vadd.f32 %v2673, %v2961
    %v2963 = vpop.f32.mrf.mxu0
    %2964 = vmatprep.mubr.bf16.mxu0 0
    %2965 = vmatmul.mubr.bf16.gmra.mxu0 %v1014
    %v2966 = vpop.f32.mrf.mxu0
    %v2967 = vadd.f32 %v2678, %v2966
    %v2968 = vpop.f32.mrf.mxu0
    %v2969 = vpop.f32.mrf.mxu0
    %v2970 = vadd.f32 %v2681, %v2969
    %v2971 = vpop.f32.mrf.mxu0
    %2972 = vmatprep.mubr.bf16.mxu0 0
    %2973 = vmatmul.mubr.bf16.gmra.mxu0 %v1017
    %v2974 = vpop.f32.mrf.mxu0
    %v2975 = vadd.f32 %v2686, %v2974
    %v2976 = vpop.f32.mrf.mxu0
    %v2977 = vpop.f32.mrf.mxu0
    %v2978 = vadd.f32 %v2689, %v2977
    %v2979 = vpop.f32.mrf.mxu0
    %2980 = vmatprep.mubr.bf16.mxu0 0
    %2981 = vmatmul.mubr.bf16.gmra.mxu0 %v1020
    %v2982 = vpop.f32.mrf.mxu0
    %v2983 = vadd.f32 %v2694, %v2982
    %v2984 = vpop.f32.mrf.mxu0
    %v2985 = vpop.f32.mrf.mxu0
    %v2986 = vadd.f32 %v2697, %v2985
    %v2987 = vpop.f32.mrf.mxu0
    %2988 = vmatprep.mubr.bf16.mxu0 0
    %2989 = vmatmul.mubr.bf16.gmra.mxu0 %v1023
    %v2990 = vpop.f32.mrf.mxu0
    %v2991 = vadd.f32 %v2702, %v2990
    %v2992 = vpop.f32.mrf.mxu0
    %v2993 = vpop.f32.mrf.mxu0
    %v2994 = vadd.f32 %v2705, %v2993
    %v2995 = vpop.f32.mrf.mxu0
    %2996 = vmatprep.mubr.bf16.mxu0 0
    %2997 = vmatmul.mubr.bf16.gmra.mxu0 %v1026
    %v2998 = vpop.f32.mrf.mxu0
    %v2999 = vadd.f32 %v2710, %v2998
    %v3000 = vpop.f32.mrf.mxu0
    %v3001 = vpop.f32.mrf.mxu0
    %v3002 = vadd.f32 %v2713, %v3001
    %v3003 = vpop.f32.mrf.mxu0
    %3004 = vmatprep.mubr.bf16.mxu0 0
    %3005 = vmatmul.mubr.bf16.gmra.mxu0 %v1029
    %v3006 = vpop.f32.mrf.mxu0
    %v3007 = vadd.f32 %v2718, %v3006
    %v3008 = vpop.f32.mrf.mxu0
    %v3009 = vpop.f32.mrf.mxu0
    %v3010 = vadd.f32 %v2721, %v3009
    %v3011 = vpop.f32.mrf.mxu0
    %3012 = vmatprep.mubr.bf16.mxu0 0
    %3013 = vmatmul.mubr.bf16.gmra.mxu0 %v1032
    %v3014 = vpop.f32.mrf.mxu0
    %v3015 = vadd.f32 %v2726, %v3014
    %v3016 = vpop.f32.mrf.mxu0
    %v3017 = vpop.f32.mrf.mxu0
    %v3018 = vadd.f32 %v2729, %v3017
    %v3019 = vpop.f32.mrf.mxu0
    %3020 = vmatprep.mubr.bf16.mxu0 0
    %3021 = vmatmul.mubr.bf16.gmra.mxu0 %v1035
    %v3022 = vpop.f32.mrf.mxu0
    %v3023 = vadd.f32 %v2734, %v3022
    %v3024 = vpop.f32.mrf.mxu0
    %v3025 = vpop.f32.mrf.mxu0
    %v3026 = vadd.f32 %v2737, %v3025
    %v3027 = vpop.f32.mrf.mxu0
    %3028 = vmatprep.mubr.bf16.mxu0 0
    %3029 = vmatmul.mubr.bf16.gmra.mxu0 %v1038
    %v3030 = vpop.f32.mrf.mxu0
    %v3031 = vadd.f32 %v2742, %v3030
    %v3032 = vpop.f32.mrf.mxu0
    %v3033 = vpop.f32.mrf.mxu0
    %v3034 = vadd.f32 %v2745, %v3033
    %v3035 = vpop.f32.mrf.mxu0
    %3036 = vmatprep.mubr.bf16.mxu0 0
    %3037 = vmatmul.mubr.bf16.gmra.mxu0 %v1041
    %v3038 = vpop.f32.mrf.mxu0
    %v3039 = vadd.f32 %v2750, %v3038
    %v3040 = vpop.f32.mrf.mxu0
    %v3041 = vpop.f32.mrf.mxu0
    %v3042 = vadd.f32 %v2753, %v3041
    %v3043 = vpop.f32.mrf.mxu0
    %3044 = vmatprep.mubr.bf16.mxu0 0
    %3045 = vmatmul.mubr.bf16.gmra.mxu0 %v1044
    %v3046 = vpop.f32.mrf.mxu0
    %v3047 = vadd.f32 %v2758, %v3046
    %v3048 = vpop.f32.mrf.mxu0
    %v3049 = vpop.f32.mrf.mxu0
    %v3050 = vadd.f32 %v2761, %v3049
    %v3051 = vpop.f32.mrf.mxu0
    %3052 = vmatprep.mubr.bf16.mxu0 0
    %3053 = vmatmul.mubr.bf16.gmra.mxu0 %v1047
    %v3054 = vpop.f32.mrf.mxu0
    %v3055 = vadd.f32 %v2766, %v3054
    %v3056 = vpop.f32.mrf.mxu0
    %v3057 = vpop.f32.mrf.mxu0
    %v3058 = vadd.f32 %v2769, %v3057
    %v3059 = vpop.f32.mrf.mxu0
    %3060 = vmatprep.mubr.bf16.mxu0 0
    %3061 = vmatmul.mubr.bf16.gmra.mxu0 %v951
    %v3062 = vpop.f32.mrf.mxu0
    %v3063 = vadd.f32 %v2774, %v3062
    %v3064 = vpop.f32.mrf.mxu0
    %v3065 = vpop.f32.mrf.mxu0
    %v3066 = vadd.f32 %v2777, %v3065
    %v3067 = vpop.f32.mrf.mxu0
    %3068 = vdwg.mxu0
    %v3069 = vld [vmem:[%s2] sm:$0x1]
    %v3071 = vlaneseq
    %v3072 = vshrl.u32 %v3071, 7
    %v3073 = vsub.s32 0, %v3072
    %v3074 = vrot.slane %v3069, %v3073
    %v3076 = vmul.f32 %v2815, %v3074
    %v3077 = vmul.f32 %v2818, %v3074
    %v3078 = vmul.f32 %v2823, %v3074
    %v3079 = vmul.f32 %v2826, %v3074
    %v3080 = vmul.f32 %v2831, %v3074
    %v3081 = vmul.f32 %v2834, %v3074
    %v3082 = vmul.f32 %v2839, %v3074
    %v3083 = vmul.f32 %v2842, %v3074
    %v3084 = vmul.f32 %v2847, %v3074
    %v3085 = vmul.f32 %v2850, %v3074
    %v3086 = vmul.f32 %v2855, %v3074
    %v3087 = vmul.f32 %v2858, %v3074
    %v3088 = vmul.f32 %v2863, %v3074
    %v3089 = vmul.f32 %v2866, %v3074
    %v3090 = vmul.f32 %v2871, %v3074
    %v3091 = vmul.f32 %v2874, %v3074
    %v3092 = vmul.f32 %v2879, %v3074
    %v3093 = vmul.f32 %v2882, %v3074
    %v3094 = vmul.f32 %v2887, %v3074
    %v3095 = vmul.f32 %v2890, %v3074
    %v3096 = vmul.f32 %v2895, %v3074
    %v3097 = vmul.f32 %v2898, %v3074
    %v3098 = vmul.f32 %v2903, %v3074
    %v3099 = vmul.f32 %v2906, %v3074
    %v3100 = vmul.f32 %v2911, %v3074
    %v3101 = vmul.f32 %v2914, %v3074
    %v3102 = vmul.f32 %v2919, %v3074
    %v3103 = vmul.f32 %v2922, %v3074
    %v3104 = vmul.f32 %v2927, %v3074
    %v3105 = vmul.f32 %v2930, %v3074
    %v3106 = vmul.f32 %v2935, %v3074
    %v3107 = vmul.f32 %v2938, %v3074
    %v3108 = vmul.f32 %v2943, %v3074
    %v3109 = vmul.f32 %v2946, %v3074
    %v3110 = vmul.f32 %v2951, %v3074
    %v3111 = vmul.f32 %v2954, %v3074
    %v3112 = vmul.f32 %v2959, %v3074
    %v3113 = vmul.f32 %v2962, %v3074
    %v3114 = vmul.f32 %v2967, %v3074
    %v3115 = vmul.f32 %v2970, %v3074
    %v3116 = vmul.f32 %v2975, %v3074
    %v3117 = vmul.f32 %v2978, %v3074
    %v3118 = vmul.f32 %v2983, %v3074
    %v3119 = vmul.f32 %v2986, %v3074
    %v3120 = vmul.f32 %v2991, %v3074
    %v3121 = vmul.f32 %v2994, %v3074
    %v3122 = vmul.f32 %v2999, %v3074
    %v3123 = vmul.f32 %v3002, %v3074
    %v3124 = vmul.f32 %v3007, %v3074
    %v3125 = vmul.f32 %v3010, %v3074
    %v3126 = vmul.f32 %v3015, %v3074
    %v3127 = vmul.f32 %v3018, %v3074
    %v3128 = vmul.f32 %v3023, %v3074
    %v3129 = vmul.f32 %v3026, %v3074
    %v3130 = vmul.f32 %v3031, %v3074
    %v3131 = vmul.f32 %v3034, %v3074
    %v3132 = vmul.f32 %v3039, %v3074
    %v3133 = vmul.f32 %v3042, %v3074
    %v3134 = vmul.f32 %v3047, %v3074
    %v3135 = vmul.f32 %v3050, %v3074
    %v3136 = vmul.f32 %v3055, %v3074
    %v3137 = vmul.f32 %v3058, %v3074
    %v3138 = vmul.f32 %v3063, %v3074
    %v3139 = vmul.f32 %v3066, %v3074
    %v3140 = vld [vmem:[%s3] sm:$0x1]
    %v3142 = vlaneseq
    %v3143 = vshrl.u32 %v3142, 7
    %v3144 = vsub.s32 0, %v3143
    %v3145 = vrot.slane %v3140, %v3144
    %v3147 = vadd.f32 %v3076, %v3145
    %v3148 = vadd.f32 %v3077, %v3145
    %v3149 = vadd.f32 %v3078, %v3145
    %v3150 = vadd.f32 %v3079, %v3145
    %v3151 = vadd.f32 %v3080, %v3145
    %v3152 = vadd.f32 %v3081, %v3145
    %v3153 = vadd.f32 %v3082, %v3145
    %v3154 = vadd.f32 %v3083, %v3145
    %v3155 = vadd.f32 %v3084, %v3145
    %v3156 = vadd.f32 %v3085, %v3145
    %v3157 = vadd.f32 %v3086, %v3145
    %v3158 = vadd.f32 %v3087, %v3145
    %v3159 = vadd.f32 %v3088, %v3145
    %v3160 = vadd.f32 %v3089, %v3145
    %v3161 = vadd.f32 %v3090, %v3145
    %v3162 = vadd.f32 %v3091, %v3145
    %v3163 = vadd.f32 %v3092, %v3145
    %v3164 = vadd.f32 %v3093, %v3145
    %v3165 = vadd.f32 %v3094, %v3145
    %v3166 = vadd.f32 %v3095, %v3145
    %v3167 = vadd.f32 %v3096, %v3145
    %v3168 = vadd.f32 %v3097, %v3145
    %v3169 = vadd.f32 %v3098, %v3145
    %v3170 = vadd.f32 %v3099, %v3145
    %v3171 = vadd.f32 %v3100, %v3145
    %v3172 = vadd.f32 %v3101, %v3145
    %v3173 = vadd.f32 %v3102, %v3145
    %v3174 = vadd.f32 %v3103, %v3145
    %v3175 = vadd.f32 %v3104, %v3145
    %v3176 = vadd.f32 %v3105, %v3145
    %v3177 = vadd.f32 %v3106, %v3145
    %v3178 = vadd.f32 %v3107, %v3145
    %v3179 = vadd.f32 %v3108, %v3145
    %v3180 = vadd.f32 %v3109, %v3145
    %v3181 = vadd.f32 %v3110, %v3145
    %v3182 = vadd.f32 %v3111, %v3145
    %v3183 = vadd.f32 %v3112, %v3145
    %v3184 = vadd.f32 %v3113, %v3145
    %v3185 = vadd.f32 %v3114, %v3145
    %v3186 = vadd.f32 %v3115, %v3145
    %v3187 = vadd.f32 %v3116, %v3145
    %v3188 = vadd.f32 %v3117, %v3145
    %v3189 = vadd.f32 %v3118, %v3145
    %v3190 = vadd.f32 %v3119, %v3145
    %v3191 = vadd.f32 %v3120, %v3145
    %v3192 = vadd.f32 %v3121, %v3145
    %v3193 = vadd.f32 %v3122, %v3145
    %v3194 = vadd.f32 %v3123, %v3145
    %v3195 = vadd.f32 %v3124, %v3145
    %v3196 = vadd.f32 %v3125, %v3145
    %v3197 = vadd.f32 %v3126, %v3145
    %v3198 = vadd.f32 %v3127, %v3145
    %v3199 = vadd.f32 %v3128, %v3145
    %v3200 = vadd.f32 %v3129, %v3145
    %v3201 = vadd.f32 %v3130, %v3145
    %v3202 = vadd.f32 %v3131, %v3145
    %v3203 = vadd.f32 %v3132, %v3145
    %v3204 = vadd.f32 %v3133, %v3145
    %v3205 = vadd.f32 %v3134, %v3145
    %v3206 = vadd.f32 %v3135, %v3145
    %v3207 = vadd.f32 %v3136, %v3145
    %v3208 = vadd.f32 %v3137, %v3145
    %v3209 = vadd.f32 %v3138, %v3145
    %v3210 = vadd.f32 %v3139, %v3145
    %v3211 = vmax.f32 %v3147, 0.0
    %v3212 = vmax.f32 %v3148, 0.0
    %v3213 = vmax.f32 %v3149, 0.0
    %v3214 = vmax.f32 %v3150, 0.0
    %v3215 = vmax.f32 %v3151, 0.0
    %v3216 = vmax.f32 %v3152, 0.0
    %v3217 = vmax.f32 %v3153, 0.0
    %v3218 = vmax.f32 %v3154, 0.0
    %v3219 = vmax.f32 %v3155, 0.0
    %v3220 = vmax.f32 %v3156, 0.0
    %v3221 = vmax.f32 %v3157, 0.0
    %v3222 = vmax.f32 %v3158, 0.0
    %v3223 = vmax.f32 %v3159, 0.0
    %v3224 = vmax.f32 %v3160, 0.0
    %v3225 = vmax.f32 %v3161, 0.0
    %v3226 = vmax.f32 %v3162, 0.0
    %v3227 = vmax.f32 %v3163, 0.0
    %v3228 = vmax.f32 %v3164, 0.0
    %v3229 = vmax.f32 %v3165, 0.0
    %v3230 = vmax.f32 %v3166, 0.0
    %v3231 = vmax.f32 %v3167, 0.0
    %v3232 = vmax.f32 %v3168, 0.0
    %v3233 = vmax.f32 %v3169, 0.0
    %v3234 = vmax.f32 %v3170, 0.0
    %v3235 = vmax.f32 %v3171, 0.0
    %v3236 = vmax.f32 %v3172, 0.0
    %v3237 = vmax.f32 %v3173, 0.0
    %v3238 = vmax.f32 %v3174, 0.0
    %v3239 = vmax.f32 %v3175, 0.0
    %v3240 = vmax.f32 %v3176, 0.0
    %v3241 = vmax.f32 %v3177, 0.0
    %v3242 = vmax.f32 %v3178, 0.0
    %v3243 = vmax.f32 %v3179, 0.0
    %v3244 = vmax.f32 %v3180, 0.0
    %v3245 = vmax.f32 %v3181, 0.0
    %v3246 = vmax.f32 %v3182, 0.0
    %v3247 = vmax.f32 %v3183, 0.0
    %v3248 = vmax.f32 %v3184, 0.0
    %v3249 = vmax.f32 %v3185, 0.0
    %v3250 = vmax.f32 %v3186, 0.0
    %v3251 = vmax.f32 %v3187, 0.0
    %v3252 = vmax.f32 %v3188, 0.0
    %v3253 = vmax.f32 %v3189, 0.0
    %v3254 = vmax.f32 %v3190, 0.0
    %v3255 = vmax.f32 %v3191, 0.0
    %v3256 = vmax.f32 %v3192, 0.0
    %v3257 = vmax.f32 %v3193, 0.0
    %v3258 = vmax.f32 %v3194, 0.0
    %v3259 = vmax.f32 %v3195, 0.0
    %v3260 = vmax.f32 %v3196, 0.0
    %v3261 = vmax.f32 %v3197, 0.0
    %v3262 = vmax.f32 %v3198, 0.0
    %v3263 = vmax.f32 %v3199, 0.0
    %v3264 = vmax.f32 %v3200, 0.0
    %v3265 = vmax.f32 %v3201, 0.0
    %v3266 = vmax.f32 %v3202, 0.0
    %v3267 = vmax.f32 %v3203, 0.0
    %v3268 = vmax.f32 %v3204, 0.0
    %v3269 = vmax.f32 %v3205, 0.0
    %v3270 = vmax.f32 %v3206, 0.0
    %v3271 = vmax.f32 %v3207, 0.0
    %v3272 = vmax.f32 %v3208, 0.0
    %v3273 = vmax.f32 %v3209, 0.0
    %v3274 = vmax.f32 %v3210, 0.0
    %v3339 = vcombine.high %v3211, %v3211
    %v3341 = vunpack.c.l.s4 1983009808
    %v3342 = vunpack.c.0.s8 %v3341
    %v3343 = vlaneseq
    %v3344 = vshrl.u32 %v3343, 7
    %v3345 = vsub.s32 %v3342, %v3344
    %v3346 = vrot.slane %v3211, %v3345
    %v3348 = vunpack.c.l.s4 1983009808
    %v3349 = vunpack.c.0.s8 %v3348
    %v3350 = vlaneseq
    %v3351 = vshrl.u32 %v3350, 7
    %v3352 = vsub.s32 %v3349, %v3351
    %v3353 = vrot.slane %v3339, %v3352
    %v3354 = vcombine.high %v3346, %v3346
    %v3355 = vcombine.high %v3353, %v3353
    %v3356 = vcombine.high %v3212, %v3212
    %v3358 = vunpack.c.l.s4 1983009808
    %v3359 = vunpack.c.0.s8 %v3358
    %v3360 = vlaneseq
    %v3361 = vshrl.u32 %v3360, 7
    %v3362 = vsub.s32 %v3359, %v3361
    %v3363 = vrot.slane %v3212, %v3362
    %v3365 = vunpack.c.l.s4 1983009808
    %v3366 = vunpack.c.0.s8 %v3365
    %v3367 = vlaneseq
    %v3368 = vshrl.u32 %v3367, 7
    %v3369 = vsub.s32 %v3366, %v3368
    %v3370 = vrot.slane %v3356, %v3369
    %v3371 = vcombine.high %v3363, %v3363
    %v3372 = vcombine.high %v3370, %v3370
    %v3373 = vcombine.high %v3213, %v3213
    %v3375 = vunpack.c.l.s4 1983009808
    %v3376 = vunpack.c.0.s8 %v3375
    %v3377 = vlaneseq
    %v3378 = vshrl.u32 %v3377, 7
    %v3379 = vsub.s32 %v3376, %v3378
    %v3380 = vrot.slane %v3213, %v3379
    %v3382 = vunpack.c.l.s4 1983009808
    %v3383 = vunpack.c.0.s8 %v3382
    %v3384 = vlaneseq
    %v3385 = vshrl.u32 %v3384, 7
    %v3386 = vsub.s32 %v3383, %v3385
    %v3387 = vrot.slane %v3373, %v3386
    %v3388 = vcombine.high %v3380, %v3380
    %v3389 = vcombine.high %v3387, %v3387
    %v3390 = vcombine.high %v3214, %v3214
    %v3392 = vunpack.c.l.s4 1983009808
    %v3393 = vunpack.c.0.s8 %v3392
    %v3394 = vlaneseq
    %v3395 = vshrl.u32 %v3394, 7
    %v3396 = vsub.s32 %v3393, %v3395
    %v3397 = vrot.slane %v3214, %v3396
    %v3399 = vunpack.c.l.s4 1983009808
    %v3400 = vunpack.c.0.s8 %v3399
    %v3401 = vlaneseq
    %v3402 = vshrl.u32 %v3401, 7
    %v3403 = vsub.s32 %v3400, %v3402
    %v3404 = vrot.slane %v3390, %v3403
    %v3405 = vcombine.high %v3397, %v3397
    %v3406 = vcombine.high %v3404, %v3404
    %v3407 = vcombine.high %v3215, %v3215
    %v3409 = vunpack.c.l.s4 1983009808
    %v3410 = vunpack.c.0.s8 %v3409
    %v3411 = vlaneseq
    %v3412 = vshrl.u32 %v3411, 7
    %v3413 = vsub.s32 %v3410, %v3412
    %v3414 = vrot.slane %v3215, %v3413
    %v3416 = vunpack.c.l.s4 1983009808
    %v3417 = vunpack.c.0.s8 %v3416
    %v3418 = vlaneseq
    %v3419 = vshrl.u32 %v3418, 7
    %v3420 = vsub.s32 %v3417, %v3419
    %v3421 = vrot.slane %v3407, %v3420
    %v3422 = vcombine.high %v3414, %v3414
    %v3423 = vcombine.high %v3421, %v3421
    %v3424 = vcombine.high %v3216, %v3216
    %v3426 = vunpack.c.l.s4 1983009808
    %v3427 = vunpack.c.0.s8 %v3426
    %v3428 = vlaneseq
    %v3429 = vshrl.u32 %v3428, 7
    %v3430 = vsub.s32 %v3427, %v3429
    %v3431 = vrot.slane %v3216, %v3430
    %v3433 = vunpack.c.l.s4 1983009808
    %v3434 = vunpack.c.0.s8 %v3433
    %v3435 = vlaneseq
    %v3436 = vshrl.u32 %v3435, 7
    %v3437 = vsub.s32 %v3434, %v3436
    %v3438 = vrot.slane %v3424, %v3437
    %v3439 = vcombine.high %v3431, %v3431
    %v3440 = vcombine.high %v3438, %v3438
    %v3441 = vcombine.high %v3217, %v3217
    %v3443 = vunpack.c.l.s4 1983009808
    %v3444 = vunpack.c.0.s8 %v3443
    %v3445 = vlaneseq
    %v3446 = vshrl.u32 %v3445, 7
    %v3447 = vsub.s32 %v3444, %v3446
    %v3448 = vrot.slane %v3217, %v3447
    %v3450 = vunpack.c.l.s4 1983009808
    %v3451 = vunpack.c.0.s8 %v3450
    %v3452 = vlaneseq
    %v3453 = vshrl.u32 %v3452, 7
    %v3454 = vsub.s32 %v3451, %v3453
    %v3455 = vrot.slane %v3441, %v3454
    %v3456 = vcombine.high %v3448, %v3448
    %v3457 = vcombine.high %v3455, %v3455
    %v3458 = vcombine.high %v3218, %v3218
    %v3460 = vunpack.c.l.s4 1983009808
    %v3461 = vunpack.c.0.s8 %v3460
    %v3462 = vlaneseq
    %v3463 = vshrl.u32 %v3462, 7
    %v3464 = vsub.s32 %v3461, %v3463
    %v3465 = vrot.slane %v3218, %v3464
    %v3467 = vunpack.c.l.s4 1983009808
    %v3468 = vunpack.c.0.s8 %v3467
    %v3469 = vlaneseq
    %v3470 = vshrl.u32 %v3469, 7
    %v3471 = vsub.s32 %v3468, %v3470
    %v3472 = vrot.slane %v3458, %v3471
    %v3473 = vcombine.high %v3465, %v3465
    %v3474 = vcombine.high %v3472, %v3472
    %v3475 = vcombine.high %v3219, %v3219
    %v3477 = vunpack.c.l.s4 1983009808
    %v3478 = vunpack.c.0.s8 %v3477
    %v3479 = vlaneseq
    %v3480 = vshrl.u32 %v3479, 7
    %v3481 = vsub.s32 %v3478, %v3480
    %v3482 = vrot.slane %v3219, %v3481
    %v3484 = vunpack.c.l.s4 1983009808
    %v3485 = vunpack.c.0.s8 %v3484
    %v3486 = vlaneseq
    %v3487 = vshrl.u32 %v3486, 7
    %v3488 = vsub.s32 %v3485, %v3487
    %v3489 = vrot.slane %v3475, %v3488
    %v3490 = vcombine.high %v3482, %v3482
    %v3491 = vcombine.high %v3489, %v3489
    %v3492 = vcombine.high %v3220, %v3220
    %v3494 = vunpack.c.l.s4 1983009808
    %v3495 = vunpack.c.0.s8 %v3494
    %v3496 = vlaneseq
    %v3497 = vshrl.u32 %v3496, 7
    %v3498 = vsub.s32 %v3495, %v3497
    %v3499 = vrot.slane %v3220, %v3498
    %v3501 = vunpack.c.l.s4 1983009808
    %v3502 = vunpack.c.0.s8 %v3501
    %v3503 = vlaneseq
    %v3504 = vshrl.u32 %v3503, 7
    %v3505 = vsub.s32 %v3502, %v3504
    %v3506 = vrot.slane %v3492, %v3505
    %v3507 = vcombine.high %v3499, %v3499
    %v3508 = vcombine.high %v3506, %v3506
    %v3509 = vcombine.high %v3221, %v3221
    %v3511 = vunpack.c.l.s4 1983009808
    %v3512 = vunpack.c.0.s8 %v3511
    %v3513 = vlaneseq
    %v3514 = vshrl.u32 %v3513, 7
    %v3515 = vsub.s32 %v3512, %v3514
    %v3516 = vrot.slane %v3221, %v3515
    %v3518 = vunpack.c.l.s4 1983009808
    %v3519 = vunpack.c.0.s8 %v3518
    %v3520 = vlaneseq
    %v3521 = vshrl.u32 %v3520, 7
    %v3522 = vsub.s32 %v3519, %v3521
    %v3523 = vrot.slane %v3509, %v3522
    %v3524 = vcombine.high %v3516, %v3516
    %v3525 = vcombine.high %v3523, %v3523
    %v3526 = vcombine.high %v3222, %v3222
    %v3528 = vunpack.c.l.s4 1983009808
    %v3529 = vunpack.c.0.s8 %v3528
    %v3530 = vlaneseq
    %v3531 = vshrl.u32 %v3530, 7
    %v3532 = vsub.s32 %v3529, %v3531
    %v3533 = vrot.slane %v3222, %v3532
    %v3535 = vunpack.c.l.s4 1983009808
    %v3536 = vunpack.c.0.s8 %v3535
    %v3537 = vlaneseq
    %v3538 = vshrl.u32 %v3537, 7
    %v3539 = vsub.s32 %v3536, %v3538
    %v3540 = vrot.slane %v3526, %v3539
    %v3541 = vcombine.high %v3533, %v3533
    %v3542 = vcombine.high %v3540, %v3540
    %v3543 = vcombine.high %v3223, %v3223
    %v3545 = vunpack.c.l.s4 1983009808
    %v3546 = vunpack.c.0.s8 %v3545
    %v3547 = vlaneseq
    %v3548 = vshrl.u32 %v3547, 7
    %v3549 = vsub.s32 %v3546, %v3548
    %v3550 = vrot.slane %v3223, %v3549
    %v3552 = vunpack.c.l.s4 1983009808
    %v3553 = vunpack.c.0.s8 %v3552
    %v3554 = vlaneseq
    %v3555 = vshrl.u32 %v3554, 7
    %v3556 = vsub.s32 %v3553, %v3555
    %v3557 = vrot.slane %v3543, %v3556
    %v3558 = vcombine.high %v3550, %v3550
    %v3559 = vcombine.high %v3557, %v3557
    %v3560 = vcombine.high %v3224, %v3224
    %v3562 = vunpack.c.l.s4 1983009808
    %v3563 = vunpack.c.0.s8 %v3562
    %v3564 = vlaneseq
    %v3565 = vshrl.u32 %v3564, 7
    %v3566 = vsub.s32 %v3563, %v3565
    %v3567 = vrot.slane %v3224, %v3566
    %v3569 = vunpack.c.l.s4 1983009808
    %v3570 = vunpack.c.0.s8 %v3569
    %v3571 = vlaneseq
    %v3572 = vshrl.u32 %v3571, 7
    %v3573 = vsub.s32 %v3570, %v3572
    %v3574 = vrot.slane %v3560, %v3573
    %v3575 = vcombine.high %v3567, %v3567
    %v3576 = vcombine.high %v3574, %v3574
    %v3577 = vcombine.high %v3225, %v3225
    %v3579 = vunpack.c.l.s4 1983009808
    %v3580 = vunpack.c.0.s8 %v3579
    %v3581 = vlaneseq
    %v3582 = vshrl.u32 %v3581, 7
    %v3583 = vsub.s32 %v3580, %v3582
    %v3584 = vrot.slane %v3225, %v3583
    %v3586 = vunpack.c.l.s4 1983009808
    %v3587 = vunpack.c.0.s8 %v3586
    %v3588 = vlaneseq
    %v3589 = vshrl.u32 %v3588, 7
    %v3590 = vsub.s32 %v3587, %v3589
    %v3591 = vrot.slane %v3577, %v3590
    %v3592 = vcombine.high %v3584, %v3584
    %v3593 = vcombine.high %v3591, %v3591
    %v3594 = vcombine.high %v3226, %v3226
    %v3596 = vunpack.c.l.s4 1983009808
    %v3597 = vunpack.c.0.s8 %v3596
    %v3598 = vlaneseq
    %v3599 = vshrl.u32 %v3598, 7
    %v3600 = vsub.s32 %v3597, %v3599
    %v3601 = vrot.slane %v3226, %v3600
    %v3603 = vunpack.c.l.s4 1983009808
    %v3604 = vunpack.c.0.s8 %v3603
    %v3605 = vlaneseq
    %v3606 = vshrl.u32 %v3605, 7
    %v3607 = vsub.s32 %v3604, %v3606
    %v3608 = vrot.slane %v3594, %v3607
    %v3609 = vcombine.high %v3601, %v3601
    %v3610 = vcombine.high %v3608, %v3608
    %v3611 = vcombine.high %v3227, %v3227
    %v3613 = vunpack.c.l.s4 1983009808
    %v3614 = vunpack.c.0.s8 %v3613
    %v3615 = vlaneseq
    %v3616 = vshrl.u32 %v3615, 7
    %v3617 = vsub.s32 %v3614, %v3616
    %v3618 = vrot.slane %v3227, %v3617
    %v3620 = vunpack.c.l.s4 1983009808
    %v3621 = vunpack.c.0.s8 %v3620
    %v3622 = vlaneseq
    %v3623 = vshrl.u32 %v3622, 7
    %v3624 = vsub.s32 %v3621, %v3623
    %v3625 = vrot.slane %v3611, %v3624
    %v3626 = vcombine.high %v3618, %v3618
    %v3627 = vcombine.high %v3625, %v3625
    %v3628 = vcombine.high %v3228, %v3228
    %v3630 = vunpack.c.l.s4 1983009808
    %v3631 = vunpack.c.0.s8 %v3630
    %v3632 = vlaneseq
    %v3633 = vshrl.u32 %v3632, 7
    %v3634 = vsub.s32 %v3631, %v3633
    %v3635 = vrot.slane %v3228, %v3634
    %v3637 = vunpack.c.l.s4 1983009808
    %v3638 = vunpack.c.0.s8 %v3637
    %v3639 = vlaneseq
    %v3640 = vshrl.u32 %v3639, 7
    %v3641 = vsub.s32 %v3638, %v3640
    %v3642 = vrot.slane %v3628, %v3641
    %v3643 = vcombine.high %v3635, %v3635
    %v3644 = vcombine.high %v3642, %v3642
    %v3645 = vcombine.high %v3229, %v3229
    %v3647 = vunpack.c.l.s4 1983009808
    %v3648 = vunpack.c.0.s8 %v3647
    %v3649 = vlaneseq
    %v3650 = vshrl.u32 %v3649, 7
    %v3651 = vsub.s32 %v3648, %v3650
    %v3652 = vrot.slane %v3229, %v3651
    %v3654 = vunpack.c.l.s4 1983009808
    %v3655 = vunpack.c.0.s8 %v3654
    %v3656 = vlaneseq
    %v3657 = vshrl.u32 %v3656, 7
    %v3658 = vsub.s32 %v3655, %v3657
    %v3659 = vrot.slane %v3645, %v3658
    %v3660 = vcombine.high %v3652, %v3652
    %v3661 = vcombine.high %v3659, %v3659
    %v3662 = vcombine.high %v3230, %v3230
    %v3664 = vunpack.c.l.s4 1983009808
    %v3665 = vunpack.c.0.s8 %v3664
    %v3666 = vlaneseq
    %v3667 = vshrl.u32 %v3666, 7
    %v3668 = vsub.s32 %v3665, %v3667
    %v3669 = vrot.slane %v3230, %v3668
    %v3671 = vunpack.c.l.s4 1983009808
    %v3672 = vunpack.c.0.s8 %v3671
    %v3673 = vlaneseq
    %v3674 = vshrl.u32 %v3673, 7
    %v3675 = vsub.s32 %v3672, %v3674
    %v3676 = vrot.slane %v3662, %v3675
    %v3677 = vcombine.high %v3669, %v3669
    %v3678 = vcombine.high %v3676, %v3676
    %v3679 = vcombine.high %v3231, %v3231
    %v3681 = vunpack.c.l.s4 1983009808
    %v3682 = vunpack.c.0.s8 %v3681
    %v3683 = vlaneseq
    %v3684 = vshrl.u32 %v3683, 7
    %v3685 = vsub.s32 %v3682, %v3684
    %v3686 = vrot.slane %v3231, %v3685
    %v3688 = vunpack.c.l.s4 1983009808
    %v3689 = vunpack.c.0.s8 %v3688
    %v3690 = vlaneseq
    %v3691 = vshrl.u32 %v3690, 7
    %v3692 = vsub.s32 %v3689, %v3691
    %v3693 = vrot.slane %v3679, %v3692
    %v3694 = vcombine.high %v3686, %v3686
    %v3695 = vcombine.high %v3693, %v3693
    %v3696 = vcombine.high %v3232, %v3232
    %v3698 = vunpack.c.l.s4 1983009808
    %v3699 = vunpack.c.0.s8 %v3698
    %v3700 = vlaneseq
    %v3701 = vshrl.u32 %v3700, 7
    %v3702 = vsub.s32 %v3699, %v3701
    %v3703 = vrot.slane %v3232, %v3702
    %v3705 = vunpack.c.l.s4 1983009808
    %v3706 = vunpack.c.0.s8 %v3705
    %v3707 = vlaneseq
    %v3708 = vshrl.u32 %v3707, 7
    %v3709 = vsub.s32 %v3706, %v3708
    %v3710 = vrot.slane %v3696, %v3709
    %v3711 = vcombine.high %v3703, %v3703
    %v3712 = vcombine.high %v3710, %v3710
    %v3713 = vcombine.high %v3233, %v3233
    %v3715 = vunpack.c.l.s4 1983009808
    %v3716 = vunpack.c.0.s8 %v3715
    %v3717 = vlaneseq
    %v3718 = vshrl.u32 %v3717, 7
    %v3719 = vsub.s32 %v3716, %v3718
    %v3720 = vrot.slane %v3233, %v3719
    %v3722 = vunpack.c.l.s4 1983009808
    %v3723 = vunpack.c.0.s8 %v3722
    %v3724 = vlaneseq
    %v3725 = vshrl.u32 %v3724, 7
    %v3726 = vsub.s32 %v3723, %v3725
    %v3727 = vrot.slane %v3713, %v3726
    %v3728 = vcombine.high %v3720, %v3720
    %v3729 = vcombine.high %v3727, %v3727
    %v3730 = vcombine.high %v3234, %v3234
    %v3732 = vunpack.c.l.s4 1983009808
    %v3733 = vunpack.c.0.s8 %v3732
    %v3734 = vlaneseq
    %v3735 = vshrl.u32 %v3734, 7
    %v3736 = vsub.s32 %v3733, %v3735
    %v3737 = vrot.slane %v3234, %v3736
    %v3739 = vunpack.c.l.s4 1983009808
    %v3740 = vunpack.c.0.s8 %v3739
    %v3741 = vlaneseq
    %v3742 = vshrl.u32 %v3741, 7
    %v3743 = vsub.s32 %v3740, %v3742
    %v3744 = vrot.slane %v3730, %v3743
    %v3745 = vcombine.high %v3737, %v3737
    %v3746 = vcombine.high %v3744, %v3744
    %v3747 = vcombine.high %v3235, %v3235
    %v3749 = vunpack.c.l.s4 1983009808
    %v3750 = vunpack.c.0.s8 %v3749
    %v3751 = vlaneseq
    %v3752 = vshrl.u32 %v3751, 7
    %v3753 = vsub.s32 %v3750, %v3752
    %v3754 = vrot.slane %v3235, %v3753
    %v3756 = vunpack.c.l.s4 1983009808
    %v3757 = vunpack.c.0.s8 %v3756
    %v3758 = vlaneseq
    %v3759 = vshrl.u32 %v3758, 7
    %v3760 = vsub.s32 %v3757, %v3759
    %v3761 = vrot.slane %v3747, %v3760
    %v3762 = vcombine.high %v3754, %v3754
    %v3763 = vcombine.high %v3761, %v3761
    %v3764 = vcombine.high %v3236, %v3236
    %v3766 = vunpack.c.l.s4 1983009808
    %v3767 = vunpack.c.0.s8 %v3766
    %v3768 = vlaneseq
    %v3769 = vshrl.u32 %v3768, 7
    %v3770 = vsub.s32 %v3767, %v3769
    %v3771 = vrot.slane %v3236, %v3770
    %v3773 = vunpack.c.l.s4 1983009808
    %v3774 = vunpack.c.0.s8 %v3773
    %v3775 = vlaneseq
    %v3776 = vshrl.u32 %v3775, 7
    %v3777 = vsub.s32 %v3774, %v3776
    %v3778 = vrot.slane %v3764, %v3777
    %v3779 = vcombine.high %v3771, %v3771
    %v3780 = vcombine.high %v3778, %v3778
    %v3781 = vcombine.high %v3237, %v3237
    %v3783 = vunpack.c.l.s4 1983009808
    %v3784 = vunpack.c.0.s8 %v3783
    %v3785 = vlaneseq
    %v3786 = vshrl.u32 %v3785, 7
    %v3787 = vsub.s32 %v3784, %v3786
    %v3788 = vrot.slane %v3237, %v3787
    %v3790 = vunpack.c.l.s4 1983009808
    %v3791 = vunpack.c.0.s8 %v3790
    %v3792 = vlaneseq
    %v3793 = vshrl.u32 %v3792, 7
    %v3794 = vsub.s32 %v3791, %v3793
    %v3795 = vrot.slane %v3781, %v3794
    %v3796 = vcombine.high %v3788, %v3788
    %v3797 = vcombine.high %v3795, %v3795
    %v3798 = vcombine.high %v3238, %v3238
    %v3800 = vunpack.c.l.s4 1983009808
    %v3801 = vunpack.c.0.s8 %v3800
    %v3802 = vlaneseq
    %v3803 = vshrl.u32 %v3802, 7
    %v3804 = vsub.s32 %v3801, %v3803
    %v3805 = vrot.slane %v3238, %v3804
    %v3807 = vunpack.c.l.s4 1983009808
    %v3808 = vunpack.c.0.s8 %v3807
    %v3809 = vlaneseq
    %v3810 = vshrl.u32 %v3809, 7
    %v3811 = vsub.s32 %v3808, %v3810
    %v3812 = vrot.slane %v3798, %v3811
    %v3813 = vcombine.high %v3805, %v3805
    %v3814 = vcombine.high %v3812, %v3812
    %v3815 = vcombine.high %v3239, %v3239
    %v3817 = vunpack.c.l.s4 1983009808
    %v3818 = vunpack.c.0.s8 %v3817
    %v3819 = vlaneseq
    %v3820 = vshrl.u32 %v3819, 7
    %v3821 = vsub.s32 %v3818, %v3820
    %v3822 = vrot.slane %v3239, %v3821
    %v3824 = vunpack.c.l.s4 1983009808
    %v3825 = vunpack.c.0.s8 %v3824
    %v3826 = vlaneseq
    %v3827 = vshrl.u32 %v3826, 7
    %v3828 = vsub.s32 %v3825, %v3827
    %v3829 = vrot.slane %v3815, %v3828
    %v3830 = vcombine.high %v3822, %v3822
    %v3831 = vcombine.high %v3829, %v3829
    %v3832 = vcombine.high %v3240, %v3240
    %v3834 = vunpack.c.l.s4 1983009808
    %v3835 = vunpack.c.0.s8 %v3834
    %v3836 = vlaneseq
    %v3837 = vshrl.u32 %v3836, 7
    %v3838 = vsub.s32 %v3835, %v3837
    %v3839 = vrot.slane %v3240, %v3838
    %v3841 = vunpack.c.l.s4 1983009808
    %v3842 = vunpack.c.0.s8 %v3841
    %v3843 = vlaneseq
    %v3844 = vshrl.u32 %v3843, 7
    %v3845 = vsub.s32 %v3842, %v3844
    %v3846 = vrot.slane %v3832, %v3845
    %v3847 = vcombine.high %v3839, %v3839
    %v3848 = vcombine.high %v3846, %v3846
    %v3849 = vcombine.high %v3241, %v3241
    %v3851 = vunpack.c.l.s4 1983009808
    %v3852 = vunpack.c.0.s8 %v3851
    %v3853 = vlaneseq
    %v3854 = vshrl.u32 %v3853, 7
    %v3855 = vsub.s32 %v3852, %v3854
    %v3856 = vrot.slane %v3241, %v3855
    %v3858 = vunpack.c.l.s4 1983009808
    %v3859 = vunpack.c.0.s8 %v3858
    %v3860 = vlaneseq
    %v3861 = vshrl.u32 %v3860, 7
    %v3862 = vsub.s32 %v3859, %v3861
    %v3863 = vrot.slane %v3849, %v3862
    %v3864 = vcombine.high %v3856, %v3856
    %v3865 = vcombine.high %v3863, %v3863
    %v3866 = vcombine.high %v3242, %v3242
    %v3868 = vunpack.c.l.s4 1983009808
    %v3869 = vunpack.c.0.s8 %v3868
    %v3870 = vlaneseq
    %v3871 = vshrl.u32 %v3870, 7
    %v3872 = vsub.s32 %v3869, %v3871
    %v3873 = vrot.slane %v3242, %v3872
    %v3875 = vunpack.c.l.s4 1983009808
    %v3876 = vunpack.c.0.s8 %v3875
    %v3877 = vlaneseq
    %v3878 = vshrl.u32 %v3877, 7
    %v3879 = vsub.s32 %v3876, %v3878
    %v3880 = vrot.slane %v3866, %v3879
    %v3881 = vcombine.high %v3873, %v3873
    %v3882 = vcombine.high %v3880, %v3880
    %v3883 = vcombine.high %v3243, %v3243
    %v3885 = vunpack.c.l.s4 1983009808
    %v3886 = vunpack.c.0.s8 %v3885
    %v3887 = vlaneseq
    %v3888 = vshrl.u32 %v3887, 7
    %v3889 = vsub.s32 %v3886, %v3888
    %v3890 = vrot.slane %v3243, %v3889
    %v3892 = vunpack.c.l.s4 1983009808
    %v3893 = vunpack.c.0.s8 %v3892
    %v3894 = vlaneseq
    %v3895 = vshrl.u32 %v3894, 7
    %v3896 = vsub.s32 %v3893, %v3895
    %v3897 = vrot.slane %v3883, %v3896
    %v3898 = vcombine.high %v3890, %v3890
    %v3899 = vcombine.high %v3897, %v3897
    %v3900 = vcombine.high %v3244, %v3244
    %v3902 = vunpack.c.l.s4 1983009808
    %v3903 = vunpack.c.0.s8 %v3902
    %v3904 = vlaneseq
    %v3905 = vshrl.u32 %v3904, 7
    %v3906 = vsub.s32 %v3903, %v3905
    %v3907 = vrot.slane %v3244, %v3906
    %v3909 = vunpack.c.l.s4 1983009808
    %v3910 = vunpack.c.0.s8 %v3909
    %v3911 = vlaneseq
    %v3912 = vshrl.u32 %v3911, 7
    %v3913 = vsub.s32 %v3910, %v3912
    %v3914 = vrot.slane %v3900, %v3913
    %v3915 = vcombine.high %v3907, %v3907
    %v3916 = vcombine.high %v3914, %v3914
    %v3917 = vcombine.high %v3245, %v3245
    %v3919 = vunpack.c.l.s4 1983009808
    %v3920 = vunpack.c.0.s8 %v3919
    %v3921 = vlaneseq
    %v3922 = vshrl.u32 %v3921, 7
    %v3923 = vsub.s32 %v3920, %v3922
    %v3924 = vrot.slane %v3245, %v3923
    %v3926 = vunpack.c.l.s4 1983009808
    %v3927 = vunpack.c.0.s8 %v3926
    %v3928 = vlaneseq
    %v3929 = vshrl.u32 %v3928, 7
    %v3930 = vsub.s32 %v3927, %v3929
    %v3931 = vrot.slane %v3917, %v3930
    %v3932 = vcombine.high %v3924, %v3924
    %v3933 = vcombine.high %v3931, %v3931
    %v3934 = vcombine.high %v3246, %v3246
    %v3936 = vunpack.c.l.s4 1983009808
    %v3937 = vunpack.c.0.s8 %v3936
    %v3938 = vlaneseq
    %v3939 = vshrl.u32 %v3938, 7
    %v3940 = vsub.s32 %v3937, %v3939
    %v3941 = vrot.slane %v3246, %v3940
    %v3943 = vunpack.c.l.s4 1983009808
    %v3944 = vunpack.c.0.s8 %v3943
    %v3945 = vlaneseq
    %v3946 = vshrl.u32 %v3945, 7
    %v3947 = vsub.s32 %v3944, %v3946
    %v3948 = vrot.slane %v3934, %v3947
    %v3949 = vcombine.high %v3941, %v3941
    %v3950 = vcombine.high %v3948, %v3948
    %v3951 = vcombine.high %v3247, %v3247
    %v3953 = vunpack.c.l.s4 1983009808
    %v3954 = vunpack.c.0.s8 %v3953
    %v3955 = vlaneseq
    %v3956 = vshrl.u32 %v3955, 7
    %v3957 = vsub.s32 %v3954, %v3956
    %v3958 = vrot.slane %v3247, %v3957
    %v3960 = vunpack.c.l.s4 1983009808
    %v3961 = vunpack.c.0.s8 %v3960
    %v3962 = vlaneseq
    %v3963 = vshrl.u32 %v3962, 7
    %v3964 = vsub.s32 %v3961, %v3963
    %v3965 = vrot.slane %v3951, %v3964
    %v3966 = vcombine.high %v3958, %v3958
    %v3967 = vcombine.high %v3965, %v3965
    %v3968 = vcombine.high %v3248, %v3248
    %v3970 = vunpack.c.l.s4 1983009808
    %v3971 = vunpack.c.0.s8 %v3970
    %v3972 = vlaneseq
    %v3973 = vshrl.u32 %v3972, 7
    %v3974 = vsub.s32 %v3971, %v3973
    %v3975 = vrot.slane %v3248, %v3974
    %v3977 = vunpack.c.l.s4 1983009808
    %v3978 = vunpack.c.0.s8 %v3977
    %v3979 = vlaneseq
    %v3980 = vshrl.u32 %v3979, 7
    %v3981 = vsub.s32 %v3978, %v3980
    %v3982 = vrot.slane %v3968, %v3981
    %v3983 = vcombine.high %v3975, %v3975
    %v3984 = vcombine.high %v3982, %v3982
    %v3985 = vcombine.high %v3249, %v3249
    %v3987 = vunpack.c.l.s4 1983009808
    %v3988 = vunpack.c.0.s8 %v3987
    %v3989 = vlaneseq
    %v3990 = vshrl.u32 %v3989, 7
    %v3991 = vsub.s32 %v3988, %v3990
    %v3992 = vrot.slane %v3249, %v3991
    %v3994 = vunpack.c.l.s4 1983009808
    %v3995 = vunpack.c.0.s8 %v3994
    %v3996 = vlaneseq
    %v3997 = vshrl.u32 %v3996, 7
    %v3998 = vsub.s32 %v3995, %v3997
    %v3999 = vrot.slane %v3985, %v3998
    %v4000 = vcombine.high %v3992, %v3992
    %v4001 = vcombine.high %v3999, %v3999
    %v4002 = vcombine.high %v3250, %v3250
    %v4004 = vunpack.c.l.s4 1983009808
    %v4005 = vunpack.c.0.s8 %v4004
    %v4006 = vlaneseq
    %v4007 = vshrl.u32 %v4006, 7
    %v4008 = vsub.s32 %v4005, %v4007
    %v4009 = vrot.slane %v3250, %v4008
    %v4011 = vunpack.c.l.s4 1983009808
    %v4012 = vunpack.c.0.s8 %v4011
    %v4013 = vlaneseq
    %v4014 = vshrl.u32 %v4013, 7
    %v4015 = vsub.s32 %v4012, %v4014
    %v4016 = vrot.slane %v4002, %v4015
    %v4017 = vcombine.high %v4009, %v4009
    %v4018 = vcombine.high %v4016, %v4016
    %v4019 = vcombine.high %v3251, %v3251
    %v4021 = vunpack.c.l.s4 1983009808
    %v4022 = vunpack.c.0.s8 %v4021
    %v4023 = vlaneseq
    %v4024 = vshrl.u32 %v4023, 7
    %v4025 = vsub.s32 %v4022, %v4024
    %v4026 = vrot.slane %v3251, %v4025
    %v4028 = vunpack.c.l.s4 1983009808
    %v4029 = vunpack.c.0.s8 %v4028
    %v4030 = vlaneseq
    %v4031 = vshrl.u32 %v4030, 7
    %v4032 = vsub.s32 %v4029, %v4031
    %v4033 = vrot.slane %v4019, %v4032
    %v4034 = vcombine.high %v4026, %v4026
    %v4035 = vcombine.high %v4033, %v4033
    %v4036 = vcombine.high %v3252, %v3252
    %v4038 = vunpack.c.l.s4 1983009808
    %v4039 = vunpack.c.0.s8 %v4038
    %v4040 = vlaneseq
    %v4041 = vshrl.u32 %v4040, 7
    %v4042 = vsub.s32 %v4039, %v4041
    %v4043 = vrot.slane %v3252, %v4042
    %v4045 = vunpack.c.l.s4 1983009808
    %v4046 = vunpack.c.0.s8 %v4045
    %v4047 = vlaneseq
    %v4048 = vshrl.u32 %v4047, 7
    %v4049 = vsub.s32 %v4046, %v4048
    %v4050 = vrot.slane %v4036, %v4049
    %v4051 = vcombine.high %v4043, %v4043
    %v4052 = vcombine.high %v4050, %v4050
    %v4053 = vcombine.high %v3253, %v3253
    %v4055 = vunpack.c.l.s4 1983009808
    %v4056 = vunpack.c.0.s8 %v4055
    %v4057 = vlaneseq
    %v4058 = vshrl.u32 %v4057, 7
    %v4059 = vsub.s32 %v4056, %v4058
    %v4060 = vrot.slane %v3253, %v4059
    %v4062 = vunpack.c.l.s4 1983009808
    %v4063 = vunpack.c.0.s8 %v4062
    %v4064 = vlaneseq
    %v4065 = vshrl.u32 %v4064, 7
    %v4066 = vsub.s32 %v4063, %v4065
    %v4067 = vrot.slane %v4053, %v4066
    %v4068 = vcombine.high %v4060, %v4060
    %v4069 = vcombine.high %v4067, %v4067
    %v4070 = vcombine.high %v3254, %v3254
    %v4072 = vunpack.c.l.s4 1983009808
    %v4073 = vunpack.c.0.s8 %v4072
    %v4074 = vlaneseq
    %v4075 = vshrl.u32 %v4074, 7
    %v4076 = vsub.s32 %v4073, %v4075
    %v4077 = vrot.slane %v3254, %v4076
    %v4079 = vunpack.c.l.s4 1983009808
    %v4080 = vunpack.c.0.s8 %v4079
    %v4081 = vlaneseq
    %v4082 = vshrl.u32 %v4081, 7
    %v4083 = vsub.s32 %v4080, %v4082
    %v4084 = vrot.slane %v4070, %v4083
    %v4085 = vcombine.high %v4077, %v4077
    %v4086 = vcombine.high %v4084, %v4084
    %v4087 = vcombine.high %v3255, %v3255
    %v4089 = vunpack.c.l.s4 1983009808
    %v4090 = vunpack.c.0.s8 %v4089
    %v4091 = vlaneseq
    %v4092 = vshrl.u32 %v4091, 7
    %v4093 = vsub.s32 %v4090, %v4092
    %v4094 = vrot.slane %v3255, %v4093
    %v4096 = vunpack.c.l.s4 1983009808
    %v4097 = vunpack.c.0.s8 %v4096
    %v4098 = vlaneseq
    %v4099 = vshrl.u32 %v4098, 7
    %v4100 = vsub.s32 %v4097, %v4099
    %v4101 = vrot.slane %v4087, %v4100
    %v4102 = vcombine.high %v4094, %v4094
    %v4103 = vcombine.high %v4101, %v4101
    %v4104 = vcombine.high %v3256, %v3256
    %v4106 = vunpack.c.l.s4 1983009808
    %v4107 = vunpack.c.0.s8 %v4106
    %v4108 = vlaneseq
    %v4109 = vshrl.u32 %v4108, 7
    %v4110 = vsub.s32 %v4107, %v4109
    %v4111 = vrot.slane %v3256, %v4110
    %v4113 = vunpack.c.l.s4 1983009808
    %v4114 = vunpack.c.0.s8 %v4113
    %v4115 = vlaneseq
    %v4116 = vshrl.u32 %v4115, 7
    %v4117 = vsub.s32 %v4114, %v4116
    %v4118 = vrot.slane %v4104, %v4117
    %v4119 = vcombine.high %v4111, %v4111
    %v4120 = vcombine.high %v4118, %v4118
    %v4121 = vcombine.high %v3257, %v3257
    %v4123 = vunpack.c.l.s4 1983009808
    %v4124 = vunpack.c.0.s8 %v4123
    %v4125 = vlaneseq
    %v4126 = vshrl.u32 %v4125, 7
    %v4127 = vsub.s32 %v4124, %v4126
    %v4128 = vrot.slane %v3257, %v4127
    %v4130 = vunpack.c.l.s4 1983009808
    %v4131 = vunpack.c.0.s8 %v4130
    %v4132 = vlaneseq
    %v4133 = vshrl.u32 %v4132, 7
    %v4134 = vsub.s32 %v4131, %v4133
    %v4135 = vrot.slane %v4121, %v4134
    %v4136 = vcombine.high %v4128, %v4128
    %v4137 = vcombine.high %v4135, %v4135
    %v4138 = vcombine.high %v3258, %v3258
    %v4140 = vunpack.c.l.s4 1983009808
    %v4141 = vunpack.c.0.s8 %v4140
    %v4142 = vlaneseq
    %v4143 = vshrl.u32 %v4142, 7
    %v4144 = vsub.s32 %v4141, %v4143
    %v4145 = vrot.slane %v3258, %v4144
    %v4147 = vunpack.c.l.s4 1983009808
    %v4148 = vunpack.c.0.s8 %v4147
    %v4149 = vlaneseq
    %v4150 = vshrl.u32 %v4149, 7
    %v4151 = vsub.s32 %v4148, %v4150
    %v4152 = vrot.slane %v4138, %v4151
    %v4153 = vcombine.high %v4145, %v4145
    %v4154 = vcombine.high %v4152, %v4152
    %v4155 = vcombine.high %v3259, %v3259
    %v4157 = vunpack.c.l.s4 1983009808
    %v4158 = vunpack.c.0.s8 %v4157
    %v4159 = vlaneseq
    %v4160 = vshrl.u32 %v4159, 7
    %v4161 = vsub.s32 %v4158, %v4160
    %v4162 = vrot.slane %v3259, %v4161
    %v4164 = vunpack.c.l.s4 1983009808
    %v4165 = vunpack.c.0.s8 %v4164
    %v4166 = vlaneseq
    %v4167 = vshrl.u32 %v4166, 7
    %v4168 = vsub.s32 %v4165, %v4167
    %v4169 = vrot.slane %v4155, %v4168
    %v4170 = vcombine.high %v4162, %v4162
    %v4171 = vcombine.high %v4169, %v4169
    %v4172 = vcombine.high %v3260, %v3260
    %v4174 = vunpack.c.l.s4 1983009808
    %v4175 = vunpack.c.0.s8 %v4174
    %v4176 = vlaneseq
    %v4177 = vshrl.u32 %v4176, 7
    %v4178 = vsub.s32 %v4175, %v4177
    %v4179 = vrot.slane %v3260, %v4178
    %v4181 = vunpack.c.l.s4 1983009808
    %v4182 = vunpack.c.0.s8 %v4181
    %v4183 = vlaneseq
    %v4184 = vshrl.u32 %v4183, 7
    %v4185 = vsub.s32 %v4182, %v4184
    %v4186 = vrot.slane %v4172, %v4185
    %v4187 = vcombine.high %v4179, %v4179
    %v4188 = vcombine.high %v4186, %v4186
    %v4189 = vcombine.high %v3261, %v3261
    %v4191 = vunpack.c.l.s4 1983009808
    %v4192 = vunpack.c.0.s8 %v4191
    %v4193 = vlaneseq
    %v4194 = vshrl.u32 %v4193, 7
    %v4195 = vsub.s32 %v4192, %v4194
    %v4196 = vrot.slane %v3261, %v4195
    %v4198 = vunpack.c.l.s4 1983009808
    %v4199 = vunpack.c.0.s8 %v4198
    %v4200 = vlaneseq
    %v4201 = vshrl.u32 %v4200, 7
    %v4202 = vsub.s32 %v4199, %v4201
    %v4203 = vrot.slane %v4189, %v4202
    %v4204 = vcombine.high %v4196, %v4196
    %v4205 = vcombine.high %v4203, %v4203
    %v4206 = vcombine.high %v3262, %v3262
    %v4208 = vunpack.c.l.s4 1983009808
    %v4209 = vunpack.c.0.s8 %v4208
    %v4210 = vlaneseq
    %v4211 = vshrl.u32 %v4210, 7
    %v4212 = vsub.s32 %v4209, %v4211
    %v4213 = vrot.slane %v3262, %v4212
    %v4215 = vunpack.c.l.s4 1983009808
    %v4216 = vunpack.c.0.s8 %v4215
    %v4217 = vlaneseq
    %v4218 = vshrl.u32 %v4217, 7
    %v4219 = vsub.s32 %v4216, %v4218
    %v4220 = vrot.slane %v4206, %v4219
    %v4221 = vcombine.high %v4213, %v4213
    %v4222 = vcombine.high %v4220, %v4220
    %v4223 = vcombine.high %v3263, %v3263
    %v4225 = vunpack.c.l.s4 1983009808
    %v4226 = vunpack.c.0.s8 %v4225
    %v4227 = vlaneseq
    %v4228 = vshrl.u32 %v4227, 7
    %v4229 = vsub.s32 %v4226, %v4228
    %v4230 = vrot.slane %v3263, %v4229
    %v4232 = vunpack.c.l.s4 1983009808
    %v4233 = vunpack.c.0.s8 %v4232
    %v4234 = vlaneseq
    %v4235 = vshrl.u32 %v4234, 7
    %v4236 = vsub.s32 %v4233, %v4235
    %v4237 = vrot.slane %v4223, %v4236
    %v4238 = vcombine.high %v4230, %v4230
    %v4239 = vcombine.high %v4237, %v4237
    %v4240 = vcombine.high %v3264, %v3264
    %v4242 = vunpack.c.l.s4 1983009808
    %v4243 = vunpack.c.0.s8 %v4242
    %v4244 = vlaneseq
    %v4245 = vshrl.u32 %v4244, 7
    %v4246 = vsub.s32 %v4243, %v4245
    %v4247 = vrot.slane %v3264, %v4246
    %v4249 = vunpack.c.l.s4 1983009808
    %v4250 = vunpack.c.0.s8 %v4249
    %v4251 = vlaneseq
    %v4252 = vshrl.u32 %v4251, 7
    %v4253 = vsub.s32 %v4250, %v4252
    %v4254 = vrot.slane %v4240, %v4253
    %v4255 = vcombine.high %v4247, %v4247
    %v4256 = vcombine.high %v4254, %v4254
    %v4257 = vcombine.high %v3265, %v3265
    %v4259 = vunpack.c.l.s4 1983009808
    %v4260 = vunpack.c.0.s8 %v4259
    %v4261 = vlaneseq
    %v4262 = vshrl.u32 %v4261, 7
    %v4263 = vsub.s32 %v4260, %v4262
    %v4264 = vrot.slane %v3265, %v4263
    %v4266 = vunpack.c.l.s4 1983009808
    %v4267 = vunpack.c.0.s8 %v4266
    %v4268 = vlaneseq
    %v4269 = vshrl.u32 %v4268, 7
    %v4270 = vsub.s32 %v4267, %v4269
    %v4271 = vrot.slane %v4257, %v4270
    %v4272 = vcombine.high %v4264, %v4264
    %v4273 = vcombine.high %v4271, %v4271
    %v4274 = vcombine.high %v3266, %v3266
    %v4276 = vunpack.c.l.s4 1983009808
    %v4277 = vunpack.c.0.s8 %v4276
    %v4278 = vlaneseq
    %v4279 = vshrl.u32 %v4278, 7
    %v4280 = vsub.s32 %v4277, %v4279
    %v4281 = vrot.slane %v3266, %v4280
    %v4283 = vunpack.c.l.s4 1983009808
    %v4284 = vunpack.c.0.s8 %v4283
    %v4285 = vlaneseq
    %v4286 = vshrl.u32 %v4285, 7
    %v4287 = vsub.s32 %v4284, %v4286
    %v4288 = vrot.slane %v4274, %v4287
    %v4289 = vcombine.high %v4281, %v4281
    %v4290 = vcombine.high %v4288, %v4288
    %v4291 = vcombine.high %v3267, %v3267
    %v4293 = vunpack.c.l.s4 1983009808
    %v4294 = vunpack.c.0.s8 %v4293
    %v4295 = vlaneseq
    %v4296 = vshrl.u32 %v4295, 7
    %v4297 = vsub.s32 %v4294, %v4296
    %v4298 = vrot.slane %v3267, %v4297
    %v4300 = vunpack.c.l.s4 1983009808
    %v4301 = vunpack.c.0.s8 %v4300
    %v4302 = vlaneseq
    %v4303 = vshrl.u32 %v4302, 7
    %v4304 = vsub.s32 %v4301, %v4303
    %v4305 = vrot.slane %v4291, %v4304
    %v4306 = vcombine.high %v4298, %v4298
    %v4307 = vcombine.high %v4305, %v4305
    %v4308 = vcombine.high %v3268, %v3268
    %v4310 = vunpack.c.l.s4 1983009808
    %v4311 = vunpack.c.0.s8 %v4310
    %v4312 = vlaneseq
    %v4313 = vshrl.u32 %v4312, 7
    %v4314 = vsub.s32 %v4311, %v4313
    %v4315 = vrot.slane %v3268, %v4314
    %v4317 = vunpack.c.l.s4 1983009808
    %v4318 = vunpack.c.0.s8 %v4317
    %v4319 = vlaneseq
    %v4320 = vshrl.u32 %v4319, 7
    %v4321 = vsub.s32 %v4318, %v4320
    %v4322 = vrot.slane %v4308, %v4321
    %v4323 = vcombine.high %v4315, %v4315
    %v4324 = vcombine.high %v4322, %v4322
    %v4325 = vcombine.high %v3269, %v3269
    %v4327 = vunpack.c.l.s4 1983009808
    %v4328 = vunpack.c.0.s8 %v4327
    %v4329 = vlaneseq
    %v4330 = vshrl.u32 %v4329, 7
    %v4331 = vsub.s32 %v4328, %v4330
    %v4332 = vrot.slane %v3269, %v4331
    %v4334 = vunpack.c.l.s4 1983009808
    %v4335 = vunpack.c.0.s8 %v4334
    %v4336 = vlaneseq
    %v4337 = vshrl.u32 %v4336, 7
    %v4338 = vsub.s32 %v4335, %v4337
    %v4339 = vrot.slane %v4325, %v4338
    %v4340 = vcombine.high %v4332, %v4332
    %v4341 = vcombine.high %v4339, %v4339
    %v4342 = vcombine.high %v3270, %v3270
    %v4344 = vunpack.c.l.s4 1983009808
    %v4345 = vunpack.c.0.s8 %v4344
    %v4346 = vlaneseq
    %v4347 = vshrl.u32 %v4346, 7
    %v4348 = vsub.s32 %v4345, %v4347
    %v4349 = vrot.slane %v3270, %v4348
    %v4351 = vunpack.c.l.s4 1983009808
    %v4352 = vunpack.c.0.s8 %v4351
    %v4353 = vlaneseq
    %v4354 = vshrl.u32 %v4353, 7
    %v4355 = vsub.s32 %v4352, %v4354
    %v4356 = vrot.slane %v4342, %v4355
    %v4357 = vcombine.high %v4349, %v4349
    %v4358 = vcombine.high %v4356, %v4356
    %v4359 = vcombine.high %v3271, %v3271
    %v4361 = vunpack.c.l.s4 1983009808
    %v4362 = vunpack.c.0.s8 %v4361
    %v4363 = vlaneseq
    %v4364 = vshrl.u32 %v4363, 7
    %v4365 = vsub.s32 %v4362, %v4364
    %v4366 = vrot.slane %v3271, %v4365
    %v4368 = vunpack.c.l.s4 1983009808
    %v4369 = vunpack.c.0.s8 %v4368
    %v4370 = vlaneseq
    %v4371 = vshrl.u32 %v4370, 7
    %v4372 = vsub.s32 %v4369, %v4371
    %v4373 = vrot.slane %v4359, %v4372
    %v4374 = vcombine.high %v4366, %v4366
    %v4375 = vcombine.high %v4373, %v4373
    %v4376 = vcombine.high %v3272, %v3272
    %v4378 = vunpack.c.l.s4 1983009808
    %v4379 = vunpack.c.0.s8 %v4378
    %v4380 = vlaneseq
    %v4381 = vshrl.u32 %v4380, 7
    %v4382 = vsub.s32 %v4379, %v4381
    %v4383 = vrot.slane %v3272, %v4382
    %v4385 = vunpack.c.l.s4 1983009808
    %v4386 = vunpack.c.0.s8 %v4385
    %v4387 = vlaneseq
    %v4388 = vshrl.u32 %v4387, 7
    %v4389 = vsub.s32 %v4386, %v4388
    %v4390 = vrot.slane %v4376, %v4389
    %v4391 = vcombine.high %v4383, %v4383
    %v4392 = vcombine.high %v4390, %v4390
    %v4393 = vcombine.high %v3273, %v3273
    %v4395 = vunpack.c.l.s4 1983009808
    %v4396 = vunpack.c.0.s8 %v4395
    %v4397 = vlaneseq
    %v4398 = vshrl.u32 %v4397, 7
    %v4399 = vsub.s32 %v4396, %v4398
    %v4400 = vrot.slane %v3273, %v4399
    %v4402 = vunpack.c.l.s4 1983009808
    %v4403 = vunpack.c.0.s8 %v4402
    %v4404 = vlaneseq
    %v4405 = vshrl.u32 %v4404, 7
    %v4406 = vsub.s32 %v4403, %v4405
    %v4407 = vrot.slane %v4393, %v4406
    %v4408 = vcombine.high %v4400, %v4400
    %v4409 = vcombine.high %v4407, %v4407
    %v4410 = vcombine.high %v3274, %v3274
    %v4412 = vunpack.c.l.s4 1983009808
    %v4413 = vunpack.c.0.s8 %v4412
    %v4414 = vlaneseq
    %v4415 = vshrl.u32 %v4414, 7
    %v4416 = vsub.s32 %v4413, %v4415
    %v4417 = vrot.slane %v3274, %v4416
    %v4419 = vunpack.c.l.s4 1983009808
    %v4420 = vunpack.c.0.s8 %v4419
    %v4421 = vlaneseq
    %v4422 = vshrl.u32 %v4421, 7
    %v4423 = vsub.s32 %v4420, %v4422
    %v4424 = vrot.slane %v4410, %v4423
    %v4425 = vcombine.high %v4417, %v4417
    %v4426 = vcombine.high %v4424, %v4424
    %v4683 = vrot.slane %v3346, 7
    %v4684 = vrot.slane %v4683, 2
    %v4685 = vrot.slane %v3354, 7
    %v4686 = vrot.slane %v4685, 2
    %v4687 = vrot.slane %v3353, 7
    %v4688 = vrot.slane %v4687, 2
    %v4689 = vrot.slane %v3355, 7
    %v4690 = vrot.slane %v4689, 2
    %v4691 = vrot.slane %v3363, 7
    %v4692 = vrot.slane %v4691, 2
    %v4693 = vrot.slane %v3371, 7
    %v4694 = vrot.slane %v4693, 2
    %v4695 = vrot.slane %v3370, 7
    %v4696 = vrot.slane %v4695, 2
    %v4697 = vrot.slane %v3372, 7
    %v4698 = vrot.slane %v4697, 2
    %v4699 = vrot.slane %v3380, 7
    %v4700 = vrot.slane %v4699, 2
    %v4701 = vrot.slane %v3388, 7
    %v4702 = vrot.slane %v4701, 2
    %v4703 = vrot.slane %v3387, 7
    %v4704 = vrot.slane %v4703, 2
    %v4705 = vrot.slane %v3389, 7
    %v4706 = vrot.slane %v4705, 2
    %v4707 = vrot.slane %v3397, 7
    %v4708 = vrot.slane %v4707, 2
    %v4709 = vrot.slane %v3405, 7
    %v4710 = vrot.slane %v4709, 2
    %v4711 = vrot.slane %v3404, 7
    %v4712 = vrot.slane %v4711, 2
    %v4713 = vrot.slane %v3406, 7
    %v4714 = vrot.slane %v4713, 2
    %v4715 = vrot.slane %v3414, 7
    %v4716 = vrot.slane %v4715, 2
    %v4717 = vrot.slane %v3422, 7
    %v4718 = vrot.slane %v4717, 2
    %v4719 = vrot.slane %v3421, 7
    %v4720 = vrot.slane %v4719, 2
    %v4721 = vrot.slane %v3423, 7
    %v4722 = vrot.slane %v4721, 2
    %v4723 = vrot.slane %v3431, 7
    %v4724 = vrot.slane %v4723, 2
    %v4725 = vrot.slane %v3439, 7
    %v4726 = vrot.slane %v4725, 2
    %v4727 = vrot.slane %v3438, 7
    %v4728 = vrot.slane %v4727, 2
    %v4729 = vrot.slane %v3440, 7
    %v4730 = vrot.slane %v4729, 2
    %v4731 = vrot.slane %v3448, 7
    %v4732 = vrot.slane %v4731, 2
    %v4733 = vrot.slane %v3456, 7
    %v4734 = vrot.slane %v4733, 2
    %v4735 = vrot.slane %v3455, 7
    %v4736 = vrot.slane %v4735, 2
    %v4737 = vrot.slane %v3457, 7
    %v4738 = vrot.slane %v4737, 2
    %v4739 = vrot.slane %v3465, 7
    %v4740 = vrot.slane %v4739, 2
    %v4741 = vrot.slane %v3473, 7
    %v4742 = vrot.slane %v4741, 2
    %v4743 = vrot.slane %v3472, 7
    %v4744 = vrot.slane %v4743, 2
    %v4745 = vrot.slane %v3474, 7
    %v4746 = vrot.slane %v4745, 2
    %v4747 = vrot.slane %v3482, 7
    %v4748 = vrot.slane %v4747, 2
    %v4749 = vrot.slane %v3490, 7
    %v4750 = vrot.slane %v4749, 2
    %v4751 = vrot.slane %v3489, 7
    %v4752 = vrot.slane %v4751, 2
    %v4753 = vrot.slane %v3491, 7
    %v4754 = vrot.slane %v4753, 2
    %v4755 = vrot.slane %v3499, 7
    %v4756 = vrot.slane %v4755, 2
    %v4757 = vrot.slane %v3507, 7
    %v4758 = vrot.slane %v4757, 2
    %v4759 = vrot.slane %v3506, 7
    %v4760 = vrot.slane %v4759, 2
    %v4761 = vrot.slane %v3508, 7
    %v4762 = vrot.slane %v4761, 2
    %v4763 = vrot.slane %v3516, 7
    %v4764 = vrot.slane %v4763, 2
    %v4765 = vrot.slane %v3524, 7
    %v4766 = vrot.slane %v4765, 2
    %v4767 = vrot.slane %v3523, 7
    %v4768 = vrot.slane %v4767, 2
    %v4769 = vrot.slane %v3525, 7
    %v4770 = vrot.slane %v4769, 2
    %v4771 = vrot.slane %v3533, 7
    %v4772 = vrot.slane %v4771, 2
    %v4773 = vrot.slane %v3541, 7
    %v4774 = vrot.slane %v4773, 2
    %v4775 = vrot.slane %v3540, 7
    %v4776 = vrot.slane %v4775, 2
    %v4777 = vrot.slane %v3542, 7
    %v4778 = vrot.slane %v4777, 2
    %v4779 = vrot.slane %v3550, 7
    %v4780 = vrot.slane %v4779, 2
    %v4781 = vrot.slane %v3558, 7
    %v4782 = vrot.slane %v4781, 2
    %v4783 = vrot.slane %v3557, 7
    %v4784 = vrot.slane %v4783, 2
    %v4785 = vrot.slane %v3559, 7
    %v4786 = vrot.slane %v4785, 2
    %v4787 = vrot.slane %v3567, 7
    %v4788 = vrot.slane %v4787, 2
    %v4789 = vrot.slane %v3575, 7
    %v4790 = vrot.slane %v4789, 2
    %v4791 = vrot.slane %v3574, 7
    %v4792 = vrot.slane %v4791, 2
    %v4793 = vrot.slane %v3576, 7
    %v4794 = vrot.slane %v4793, 2
    %v4795 = vrot.slane %v3584, 7
    %v4796 = vrot.slane %v4795, 2
    %v4797 = vrot.slane %v3592, 7
    %v4798 = vrot.slane %v4797, 2
    %v4799 = vrot.slane %v3591, 7
    %v4800 = vrot.slane %v4799, 2
    %v4801 = vrot.slane %v3593, 7
    %v4802 = vrot.slane %v4801, 2
    %v4803 = vrot.slane %v3601, 7
    %v4804 = vrot.slane %v4803, 2
    %v4805 = vrot.slane %v3609, 7
    %v4806 = vrot.slane %v4805, 2
    %v4807 = vrot.slane %v3608, 7
    %v4808 = vrot.slane %v4807, 2
    %v4809 = vrot.slane %v3610, 7
    %v4810 = vrot.slane %v4809, 2
    %v4811 = vrot.slane %v3618, 7
    %v4812 = vrot.slane %v4811, 2
    %v4813 = vrot.slane %v3626, 7
    %v4814 = vrot.slane %v4813, 2
    %v4815 = vrot.slane %v3625, 7
    %v4816 = vrot.slane %v4815, 2
    %v4817 = vrot.slane %v3627, 7
    %v4818 = vrot.slane %v4817, 2
    %v4819 = vrot.slane %v3635, 7
    %v4820 = vrot.slane %v4819, 2
    %v4821 = vrot.slane %v3643, 7
    %v4822 = vrot.slane %v4821, 2
    %v4823 = vrot.slane %v3642, 7
    %v4824 = vrot.slane %v4823, 2
    %v4825 = vrot.slane %v3644, 7
    %v4826 = vrot.slane %v4825, 2
    %v4827 = vrot.slane %v3652, 7
    %v4828 = vrot.slane %v4827, 2
    %v4829 = vrot.slane %v3660, 7
    %v4830 = vrot.slane %v4829, 2
    %v4831 = vrot.slane %v3659, 7
    %v4832 = vrot.slane %v4831, 2
    %v4833 = vrot.slane %v3661, 7
    %v4834 = vrot.slane %v4833, 2
    %v4835 = vrot.slane %v3669, 7
    %v4836 = vrot.slane %v4835, 2
    %v4837 = vrot.slane %v3677, 7
    %v4838 = vrot.slane %v4837, 2
    %v4839 = vrot.slane %v3676, 7
    %v4840 = vrot.slane %v4839, 2
    %v4841 = vrot.slane %v3678, 7
    %v4842 = vrot.slane %v4841, 2
    %v4843 = vrot.slane %v3686, 7
    %v4844 = vrot.slane %v4843, 2
    %v4845 = vrot.slane %v3694, 7
    %v4846 = vrot.slane %v4845, 2
    %v4847 = vrot.slane %v3693, 7
    %v4848 = vrot.slane %v4847, 2
    %v4849 = vrot.slane %v3695, 7
    %v4850 = vrot.slane %v4849, 2
    %v4851 = vrot.slane %v3703, 7
    %v4852 = vrot.slane %v4851, 2
    %v4853 = vrot.slane %v3711, 7
    %v4854 = vrot.slane %v4853, 2
    %v4855 = vrot.slane %v3710, 7
    %v4856 = vrot.slane %v4855, 2
    %v4857 = vrot.slane %v3712, 7
    %v4858 = vrot.slane %v4857, 2
    %v4859 = vrot.slane %v3720, 7
    %v4860 = vrot.slane %v4859, 2
    %v4861 = vrot.slane %v3728, 7
    %v4862 = vrot.slane %v4861, 2
    %v4863 = vrot.slane %v3727, 7
    %v4864 = vrot.slane %v4863, 2
    %v4865 = vrot.slane %v3729, 7
    %v4866 = vrot.slane %v4865, 2
    %v4867 = vrot.slane %v3737, 7
    %v4868 = vrot.slane %v4867, 2
    %v4869 = vrot.slane %v3745, 7
    %v4870 = vrot.slane %v4869, 2
    %v4871 = vrot.slane %v3744, 7
    %v4872 = vrot.slane %v4871, 2
    %v4873 = vrot.slane %v3746, 7
    %v4874 = vrot.slane %v4873, 2
    %v4875 = vrot.slane %v3754, 7
    %v4876 = vrot.slane %v4875, 2
    %v4877 = vrot.slane %v3762, 7
    %v4878 = vrot.slane %v4877, 2
    %v4879 = vrot.slane %v3761, 7
    %v4880 = vrot.slane %v4879, 2
    %v4881 = vrot.slane %v3763, 7
    %v4882 = vrot.slane %v4881, 2
    %v4883 = vrot.slane %v3771, 7
    %v4884 = vrot.slane %v4883, 2
    %v4885 = vrot.slane %v3779, 7
    %v4886 = vrot.slane %v4885, 2
    %v4887 = vrot.slane %v3778, 7
    %v4888 = vrot.slane %v4887, 2
    %v4889 = vrot.slane %v3780, 7
    %v4890 = vrot.slane %v4889, 2
    %v4891 = vrot.slane %v3788, 7
    %v4892 = vrot.slane %v4891, 2
    %v4893 = vrot.slane %v3796, 7
    %v4894 = vrot.slane %v4893, 2
    %v4895 = vrot.slane %v3795, 7
    %v4896 = vrot.slane %v4895, 2
    %v4897 = vrot.slane %v3797, 7
    %v4898 = vrot.slane %v4897, 2
    %v4899 = vrot.slane %v3805, 7
    %v4900 = vrot.slane %v4899, 2
    %v4901 = vrot.slane %v3813, 7
    %v4902 = vrot.slane %v4901, 2
    %v4903 = vrot.slane %v3812, 7
    %v4904 = vrot.slane %v4903, 2
    %v4905 = vrot.slane %v3814, 7
    %v4906 = vrot.slane %v4905, 2
    %v4907 = vrot.slane %v3822, 7
    %v4908 = vrot.slane %v4907, 2
    %v4909 = vrot.slane %v3830, 7
    %v4910 = vrot.slane %v4909, 2
    %v4911 = vrot.slane %v3829, 7
    %v4912 = vrot.slane %v4911, 2
    %v4913 = vrot.slane %v3831, 7
    %v4914 = vrot.slane %v4913, 2
    %v4915 = vrot.slane %v3839, 7
    %v4916 = vrot.slane %v4915, 2
    %v4917 = vrot.slane %v3847, 7
    %v4918 = vrot.slane %v4917, 2
    %v4919 = vrot.slane %v3846, 7
    %v4920 = vrot.slane %v4919, 2
    %v4921 = vrot.slane %v3848, 7
    %v4922 = vrot.slane %v4921, 2
    %v4923 = vrot.slane %v3856, 7
    %v4924 = vrot.slane %v4923, 2
    %v4925 = vrot.slane %v3864, 7
    %v4926 = vrot.slane %v4925, 2
    %v4927 = vrot.slane %v3863, 7
    %v4928 = vrot.slane %v4927, 2
    %v4929 = vrot.slane %v3865, 7
    %v4930 = vrot.slane %v4929, 2
    %v4931 = vrot.slane %v3873, 7
    %v4932 = vrot.slane %v4931, 2
    %v4933 = vrot.slane %v3881, 7
    %v4934 = vrot.slane %v4933, 2
    %v4935 = vrot.slane %v3880, 7
    %v4936 = vrot.slane %v4935, 2
    %v4937 = vrot.slane %v3882, 7
    %v4938 = vrot.slane %v4937, 2
    %v4939 = vrot.slane %v3890, 7
    %v4940 = vrot.slane %v4939, 2
    %v4941 = vrot.slane %v3898, 7
    %v4942 = vrot.slane %v4941, 2
    %v4943 = vrot.slane %v3897, 7
    %v4944 = vrot.slane %v4943, 2
    %v4945 = vrot.slane %v3899, 7
    %v4946 = vrot.slane %v4945, 2
    %v4947 = vrot.slane %v3907, 7
    %v4948 = vrot.slane %v4947, 2
    %v4949 = vrot.slane %v3915, 7
    %v4950 = vrot.slane %v4949, 2
    %v4951 = vrot.slane %v3914, 7
    %v4952 = vrot.slane %v4951, 2
    %v4953 = vrot.slane %v3916, 7
    %v4954 = vrot.slane %v4953, 2
    %v4955 = vrot.slane %v3924, 7
    %v4956 = vrot.slane %v4955, 2
    %v4957 = vrot.slane %v3932, 7
    %v4958 = vrot.slane %v4957, 2
    %v4959 = vrot.slane %v3931, 7
    %v4960 = vrot.slane %v4959, 2
    %v4961 = vrot.slane %v3933, 7
    %v4962 = vrot.slane %v4961, 2
    %v4963 = vrot.slane %v3941, 7
    %v4964 = vrot.slane %v4963, 2
    %v4965 = vrot.slane %v3949, 7
    %v4966 = vrot.slane %v4965, 2
    %v4967 = vrot.slane %v3948, 7
    %v4968 = vrot.slane %v4967, 2
    %v4969 = vrot.slane %v3950, 7
    %v4970 = vrot.slane %v4969, 2
    %v4971 = vrot.slane %v3958, 7
    %v4972 = vrot.slane %v4971, 2
    %v4973 = vrot.slane %v3966, 7
    %v4974 = vrot.slane %v4973, 2
    %v4975 = vrot.slane %v3965, 7
    %v4976 = vrot.slane %v4975, 2
    %v4977 = vrot.slane %v3967, 7
    %v4978 = vrot.slane %v4977, 2
    %v4979 = vrot.slane %v3975, 7
    %v4980 = vrot.slane %v4979, 2
    %v4981 = vrot.slane %v3983, 7
    %v4982 = vrot.slane %v4981, 2
    %v4983 = vrot.slane %v3982, 7
    %v4984 = vrot.slane %v4983, 2
    %v4985 = vrot.slane %v3984, 7
    %v4986 = vrot.slane %v4985, 2
    %v4987 = vrot.slane %v3992, 7
    %v4988 = vrot.slane %v4987, 2
    %v4989 = vrot.slane %v4000, 7
    %v4990 = vrot.slane %v4989, 2
    %v4991 = vrot.slane %v3999, 7
    %v4992 = vrot.slane %v4991, 2
    %v4993 = vrot.slane %v4001, 7
    %v4994 = vrot.slane %v4993, 2
    %v4995 = vrot.slane %v4009, 7
    %v4996 = vrot.slane %v4995, 2
    %v4997 = vrot.slane %v4017, 7
    %v4998 = vrot.slane %v4997, 2
    %v4999 = vrot.slane %v4016, 7
    %v5000 = vrot.slane %v4999, 2
    %v5001 = vrot.slane %v4018, 7
    %v5002 = vrot.slane %v5001, 2
    %v5003 = vrot.slane %v4026, 7
    %v5004 = vrot.slane %v5003, 2
    %v5005 = vrot.slane %v4034, 7
    %v5006 = vrot.slane %v5005, 2
    %v5007 = vrot.slane %v4033, 7
    %v5008 = vrot.slane %v5007, 2
    %v5009 = vrot.slane %v4035, 7
    %v5010 = vrot.slane %v5009, 2
    %v5011 = vrot.slane %v4043, 7
    %v5012 = vrot.slane %v5011, 2
    %v5013 = vrot.slane %v4051, 7
    %v5014 = vrot.slane %v5013, 2
    %v5015 = vrot.slane %v4050, 7
    %v5016 = vrot.slane %v5015, 2
    %v5017 = vrot.slane %v4052, 7
    %v5018 = vrot.slane %v5017, 2
    %v5019 = vrot.slane %v4060, 7
    %v5020 = vrot.slane %v5019, 2
    %v5021 = vrot.slane %v4068, 7
    %v5022 = vrot.slane %v5021, 2
    %v5023 = vrot.slane %v4067, 7
    %v5024 = vrot.slane %v5023, 2
    %v5025 = vrot.slane %v4069, 7
    %v5026 = vrot.slane %v5025, 2
    %v5027 = vrot.slane %v4077, 7
    %v5028 = vrot.slane %v5027, 2
    %v5029 = vrot.slane %v4085, 7
    %v5030 = vrot.slane %v5029, 2
    %v5031 = vrot.slane %v4084, 7
    %v5032 = vrot.slane %v5031, 2
    %v5033 = vrot.slane %v4086, 7
    %v5034 = vrot.slane %v5033, 2
    %v5035 = vrot.slane %v4094, 7
    %v5036 = vrot.slane %v5035, 2
    %v5037 = vrot.slane %v4102, 7
    %v5038 = vrot.slane %v5037, 2
    %v5039 = vrot.slane %v4101, 7
    %v5040 = vrot.slane %v5039, 2
    %v5041 = vrot.slane %v4103, 7
    %v5042 = vrot.slane %v5041, 2
    %v5043 = vrot.slane %v4111, 7
    %v5044 = vrot.slane %v5043, 2
    %v5045 = vrot.slane %v4119, 7
    %v5046 = vrot.slane %v5045, 2
    %v5047 = vrot.slane %v4118, 7
    %v5048 = vrot.slane %v5047, 2
    %v5049 = vrot.slane %v4120, 7
    %v5050 = vrot.slane %v5049, 2
    %v5051 = vrot.slane %v4128, 7
    %v5052 = vrot.slane %v5051, 2
    %v5053 = vrot.slane %v4136, 7
    %v5054 = vrot.slane %v5053, 2
    %v5055 = vrot.slane %v4135, 7
    %v5056 = vrot.slane %v5055, 2
    %v5057 = vrot.slane %v4137, 7
    %v5058 = vrot.slane %v5057, 2
    %v5059 = vrot.slane %v4145, 7
    %v5060 = vrot.slane %v5059, 2
    %v5061 = vrot.slane %v4153, 7
    %v5062 = vrot.slane %v5061, 2
    %v5063 = vrot.slane %v4152, 7
    %v5064 = vrot.slane %v5063, 2
    %v5065 = vrot.slane %v4154, 7
    %v5066 = vrot.slane %v5065, 2
    %v5067 = vrot.slane %v4162, 7
    %v5068 = vrot.slane %v5067, 2
    %v5069 = vrot.slane %v4170, 7
    %v5070 = vrot.slane %v5069, 2
    %v5071 = vrot.slane %v4169, 7
    %v5072 = vrot.slane %v5071, 2
    %v5073 = vrot.slane %v4171, 7
    %v5074 = vrot.slane %v5073, 2
    %v5075 = vrot.slane %v4179, 7
    %v5076 = vrot.slane %v5075, 2
    %v5077 = vrot.slane %v4187, 7
    %v5078 = vrot.slane %v5077, 2
    %v5079 = vrot.slane %v4186, 7
    %v5080 = vrot.slane %v5079, 2
    %v5081 = vrot.slane %v4188, 7
    %v5082 = vrot.slane %v5081, 2
    %v5083 = vrot.slane %v4196, 7
    %v5084 = vrot.slane %v5083, 2
    %v5085 = vrot.slane %v4204, 7
    %v5086 = vrot.slane %v5085, 2
    %v5087 = vrot.slane %v4203, 7
    %v5088 = vrot.slane %v5087, 2
    %v5089 = vrot.slane %v4205, 7
    %v5090 = vrot.slane %v5089, 2
    %v5091 = vrot.slane %v4213, 7
    %v5092 = vrot.slane %v5091, 2
    %v5093 = vrot.slane %v4221, 7
    %v5094 = vrot.slane %v5093, 2
    %v5095 = vrot.slane %v4220, 7
    %v5096 = vrot.slane %v5095, 2
    %v5097 = vrot.slane %v4222, 7
    %v5098 = vrot.slane %v5097, 2
    %v5099 = vrot.slane %v4230, 7
    %v5100 = vrot.slane %v5099, 2
    %v5101 = vrot.slane %v4238, 7
    %v5102 = vrot.slane %v5101, 2
    %v5103 = vrot.slane %v4237, 7
    %v5104 = vrot.slane %v5103, 2
    %v5105 = vrot.slane %v4239, 7
    %v5106 = vrot.slane %v5105, 2
    %v5107 = vrot.slane %v4247, 7
    %v5108 = vrot.slane %v5107, 2
    %v5109 = vrot.slane %v4255, 7
    %v5110 = vrot.slane %v5109, 2
    %v5111 = vrot.slane %v4254, 7
    %v5112 = vrot.slane %v5111, 2
    %v5113 = vrot.slane %v4256, 7
    %v5114 = vrot.slane %v5113, 2
    %v5115 = vrot.slane %v4264, 7
    %v5116 = vrot.slane %v5115, 2
    %v5117 = vrot.slane %v4272, 7
    %v5118 = vrot.slane %v5117, 2
    %v5119 = vrot.slane %v4271, 7
    %v5120 = vrot.slane %v5119, 2
    %v5121 = vrot.slane %v4273, 7
    %v5122 = vrot.slane %v5121, 2
    %v5123 = vrot.slane %v4281, 7
    %v5124 = vrot.slane %v5123, 2
    %v5125 = vrot.slane %v4289, 7
    %v5126 = vrot.slane %v5125, 2
    %v5127 = vrot.slane %v4288, 7
    %v5128 = vrot.slane %v5127, 2
    %v5129 = vrot.slane %v4290, 7
    %v5130 = vrot.slane %v5129, 2
    %v5131 = vrot.slane %v4298, 7
    %v5132 = vrot.slane %v5131, 2
    %v5133 = vrot.slane %v4306, 7
    %v5134 = vrot.slane %v5133, 2
    %v5135 = vrot.slane %v4305, 7
    %v5136 = vrot.slane %v5135, 2
    %v5137 = vrot.slane %v4307, 7
    %v5138 = vrot.slane %v5137, 2
    %v5139 = vrot.slane %v4315, 7
    %v5140 = vrot.slane %v5139, 2
    %v5141 = vrot.slane %v4323, 7
    %v5142 = vrot.slane %v5141, 2
    %v5143 = vrot.slane %v4322, 7
    %v5144 = vrot.slane %v5143, 2
    %v5145 = vrot.slane %v4324, 7
    %v5146 = vrot.slane %v5145, 2
    %v5147 = vrot.slane %v4332, 7
    %v5148 = vrot.slane %v5147, 2
    %v5149 = vrot.slane %v4340, 7
    %v5150 = vrot.slane %v5149, 2
    %v5151 = vrot.slane %v4339, 7
    %v5152 = vrot.slane %v5151, 2
    %v5153 = vrot.slane %v4341, 7
    %v5154 = vrot.slane %v5153, 2
    %v5155 = vrot.slane %v4349, 7
    %v5156 = vrot.slane %v5155, 2
    %v5157 = vrot.slane %v4357, 7
    %v5158 = vrot.slane %v5157, 2
    %v5159 = vrot.slane %v4356, 7
    %v5160 = vrot.slane %v5159, 2
    %v5161 = vrot.slane %v4358, 7
    %v5162 = vrot.slane %v5161, 2
    %v5163 = vrot.slane %v4366, 7
    %v5164 = vrot.slane %v5163, 2
    %v5165 = vrot.slane %v4374, 7
    %v5166 = vrot.slane %v5165, 2
    %v5167 = vrot.slane %v4373, 7
    %v5168 = vrot.slane %v5167, 2
    %v5169 = vrot.slane %v4375, 7
    %v5170 = vrot.slane %v5169, 2
    %v5171 = vrot.slane %v4383, 7
    %v5172 = vrot.slane %v5171, 2
    %v5173 = vrot.slane %v4391, 7
    %v5174 = vrot.slane %v5173, 2
    %v5175 = vrot.slane %v4390, 7
    %v5176 = vrot.slane %v5175, 2
    %v5177 = vrot.slane %v4392, 7
    %v5178 = vrot.slane %v5177, 2
    %v5179 = vrot.slane %v4400, 7
    %v5180 = vrot.slane %v5179, 2
    %v5181 = vrot.slane %v4408, 7
    %v5182 = vrot.slane %v5181, 2
    %v5183 = vrot.slane %v4407, 7
    %v5184 = vrot.slane %v5183, 2
    %v5185 = vrot.slane %v4409, 7
    %v5186 = vrot.slane %v5185, 2
    %v5187 = vrot.slane %v4417, 7
    %v5188 = vrot.slane %v5187, 2
    %v5189 = vrot.slane %v4425, 7
    %v5190 = vrot.slane %v5189, 2
    %v5191 = vrot.slane %v4424, 7
    %v5192 = vrot.slane %v5191, 2
    %v5193 = vrot.slane %v4426, 7
    %v5194 = vrot.slane %v5193, 2
    %v5451 = vmax.f32 %v3346, %v4684
    %v5452 = vmax.f32 %v3354, %v4686
    %v5453 = vmax.f32 %v3353, %v4688
    %v5454 = vmax.f32 %v3355, %v4690
    %v5455 = vmax.f32 %v3363, %v4692
    %v5456 = vmax.f32 %v3371, %v4694
    %v5457 = vmax.f32 %v3370, %v4696
    %v5458 = vmax.f32 %v3372, %v4698
    %v5459 = vmax.f32 %v3380, %v4700
    %v5460 = vmax.f32 %v3388, %v4702
    %v5461 = vmax.f32 %v3387, %v4704
    %v5462 = vmax.f32 %v3389, %v4706
    %v5463 = vmax.f32 %v3397, %v4708
    %v5464 = vmax.f32 %v3405, %v4710
    %v5465 = vmax.f32 %v3404, %v4712
    %v5466 = vmax.f32 %v3406, %v4714
    %v5467 = vmax.f32 %v3414, %v4716
    %v5468 = vmax.f32 %v3422, %v4718
    %v5469 = vmax.f32 %v3421, %v4720
    %v5470 = vmax.f32 %v3423, %v4722
    %v5471 = vmax.f32 %v3431, %v4724
    %v5472 = vmax.f32 %v3439, %v4726
    %v5473 = vmax.f32 %v3438, %v4728
    %v5474 = vmax.f32 %v3440, %v4730
    %v5475 = vmax.f32 %v3448, %v4732
    %v5476 = vmax.f32 %v3456, %v4734
    %v5477 = vmax.f32 %v3455, %v4736
    %v5478 = vmax.f32 %v3457, %v4738
    %v5479 = vmax.f32 %v3465, %v4740
    %v5480 = vmax.f32 %v3473, %v4742
    %v5481 = vmax.f32 %v3472, %v4744
    %v5482 = vmax.f32 %v3474, %v4746
    %v5483 = vmax.f32 %v3482, %v4748
    %v5484 = vmax.f32 %v3490, %v4750
    %v5485 = vmax.f32 %v3489, %v4752
    %v5486 = vmax.f32 %v3491, %v4754
    %v5487 = vmax.f32 %v3499, %v4756
    %v5488 = vmax.f32 %v3507, %v4758
    %v5489 = vmax.f32 %v3506, %v4760
    %v5490 = vmax.f32 %v3508, %v4762
    %v5491 = vmax.f32 %v3516, %v4764
    %v5492 = vmax.f32 %v3524, %v4766
    %v5493 = vmax.f32 %v3523, %v4768
    %v5494 = vmax.f32 %v3525, %v4770
    %v5495 = vmax.f32 %v3533, %v4772
    %v5496 = vmax.f32 %v3541, %v4774
    %v5497 = vmax.f32 %v3540, %v4776
    %v5498 = vmax.f32 %v3542, %v4778
    %v5499 = vmax.f32 %v3550, %v4780
    %v5500 = vmax.f32 %v3558, %v4782
    %v5501 = vmax.f32 %v3557, %v4784
    %v5502 = vmax.f32 %v3559, %v4786
    %v5503 = vmax.f32 %v3567, %v4788
    %v5504 = vmax.f32 %v3575, %v4790
    %v5505 = vmax.f32 %v3574, %v4792
    %v5506 = vmax.f32 %v3576, %v4794
    %v5507 = vmax.f32 %v3584, %v4796
    %v5508 = vmax.f32 %v3592, %v4798
    %v5509 = vmax.f32 %v3591, %v4800
    %v5510 = vmax.f32 %v3593, %v4802
    %v5511 = vmax.f32 %v3601, %v4804
    %v5512 = vmax.f32 %v3609, %v4806
    %v5513 = vmax.f32 %v3608, %v4808
    %v5514 = vmax.f32 %v3610, %v4810
    %v5515 = vmax.f32 %v3618, %v4812
    %v5516 = vmax.f32 %v3626, %v4814
    %v5517 = vmax.f32 %v3625, %v4816
    %v5518 = vmax.f32 %v3627, %v4818
    %v5519 = vmax.f32 %v3635, %v4820
    %v5520 = vmax.f32 %v3643, %v4822
    %v5521 = vmax.f32 %v3642, %v4824
    %v5522 = vmax.f32 %v3644, %v4826
    %v5523 = vmax.f32 %v3652, %v4828
    %v5524 = vmax.f32 %v3660, %v4830
    %v5525 = vmax.f32 %v3659, %v4832
    %v5526 = vmax.f32 %v3661, %v4834
    %v5527 = vmax.f32 %v3669, %v4836
    %v5528 = vmax.f32 %v3677, %v4838
    %v5529 = vmax.f32 %v3676, %v4840
    %v5530 = vmax.f32 %v3678, %v4842
    %v5531 = vmax.f32 %v3686, %v4844
    %v5532 = vmax.f32 %v3694, %v4846
    %v5533 = vmax.f32 %v3693, %v4848
    %v5534 = vmax.f32 %v3695, %v4850
    %v5535 = vmax.f32 %v3703, %v4852
    %v5536 = vmax.f32 %v3711, %v4854
    %v5537 = vmax.f32 %v3710, %v4856
    %v5538 = vmax.f32 %v3712, %v4858
    %v5539 = vmax.f32 %v3720, %v4860
    %v5540 = vmax.f32 %v3728, %v4862
    %v5541 = vmax.f32 %v3727, %v4864
    %v5542 = vmax.f32 %v3729, %v4866
    %v5543 = vmax.f32 %v3737, %v4868
    %v5544 = vmax.f32 %v3745, %v4870
    %v5545 = vmax.f32 %v3744, %v4872
    %v5546 = vmax.f32 %v3746, %v4874
    %v5547 = vmax.f32 %v3754, %v4876
    %v5548 = vmax.f32 %v3762, %v4878
    %v5549 = vmax.f32 %v3761, %v4880
    %v5550 = vmax.f32 %v3763, %v4882
    %v5551 = vmax.f32 %v3771, %v4884
    %v5552 = vmax.f32 %v3779, %v4886
    %v5553 = vmax.f32 %v3778, %v4888
    %v5554 = vmax.f32 %v3780, %v4890
    %v5555 = vmax.f32 %v3788, %v4892
    %v5556 = vmax.f32 %v3796, %v4894
    %v5557 = vmax.f32 %v3795, %v4896
    %v5558 = vmax.f32 %v3797, %v4898
    %v5559 = vmax.f32 %v3805, %v4900
    %v5560 = vmax.f32 %v3813, %v4902
    %v5561 = vmax.f32 %v3812, %v4904
    %v5562 = vmax.f32 %v3814, %v4906
    %v5563 = vmax.f32 %v3822, %v4908
    %v5564 = vmax.f32 %v3830, %v4910
    %v5565 = vmax.f32 %v3829, %v4912
    %v5566 = vmax.f32 %v3831, %v4914
    %v5567 = vmax.f32 %v3839, %v4916
    %v5568 = vmax.f32 %v3847, %v4918
    %v5569 = vmax.f32 %v3846, %v4920
    %v5570 = vmax.f32 %v3848, %v4922
    %v5571 = vmax.f32 %v3856, %v4924
    %v5572 = vmax.f32 %v3864, %v4926
    %v5573 = vmax.f32 %v3863, %v4928
    %v5574 = vmax.f32 %v3865, %v4930
    %v5575 = vmax.f32 %v3873, %v4932
    %v5576 = vmax.f32 %v3881, %v4934
    %v5577 = vmax.f32 %v3880, %v4936
    %v5578 = vmax.f32 %v3882, %v4938
    %v5579 = vmax.f32 %v3890, %v4940
    %v5580 = vmax.f32 %v3898, %v4942
    %v5581 = vmax.f32 %v3897, %v4944
    %v5582 = vmax.f32 %v3899, %v4946
    %v5583 = vmax.f32 %v3907, %v4948
    %v5584 = vmax.f32 %v3915, %v4950
    %v5585 = vmax.f32 %v3914, %v4952
    %v5586 = vmax.f32 %v3916, %v4954
    %v5587 = vmax.f32 %v3924, %v4956
    %v5588 = vmax.f32 %v3932, %v4958
    %v5589 = vmax.f32 %v3931, %v4960
    %v5590 = vmax.f32 %v3933, %v4962
    %v5591 = vmax.f32 %v3941, %v4964
    %v5592 = vmax.f32 %v3949, %v4966
    %v5593 = vmax.f32 %v3948, %v4968
    %v5594 = vmax.f32 %v3950, %v4970
    %v5595 = vmax.f32 %v3958, %v4972
    %v5596 = vmax.f32 %v3966, %v4974
    %v5597 = vmax.f32 %v3965, %v4976
    %v5598 = vmax.f32 %v3967, %v4978
    %v5599 = vmax.f32 %v3975, %v4980
    %v5600 = vmax.f32 %v3983, %v4982
    %v5601 = vmax.f32 %v3982, %v4984
    %v5602 = vmax.f32 %v3984, %v4986
    %v5603 = vmax.f32 %v3992, %v4988
    %v5604 = vmax.f32 %v4000, %v4990
    %v5605 = vmax.f32 %v3999, %v4992
    %v5606 = vmax.f32 %v4001, %v4994
    %v5607 = vmax.f32 %v4009, %v4996
    %v5608 = vmax.f32 %v4017, %v4998
    %v5609 = vmax.f32 %v4016, %v5000
    %v5610 = vmax.f32 %v4018, %v5002
    %v5611 = vmax.f32 %v4026, %v5004
    %v5612 = vmax.f32 %v4034, %v5006
    %v5613 = vmax.f32 %v4033, %v5008
    %v5614 = vmax.f32 %v4035, %v5010
    %v5615 = vmax.f32 %v4043, %v5012
    %v5616 = vmax.f32 %v4051, %v5014
    %v5617 = vmax.f32 %v4050, %v5016
    %v5618 = vmax.f32 %v4052, %v5018
    %v5619 = vmax.f32 %v4060, %v5020
    %v5620 = vmax.f32 %v4068, %v5022
    %v5621 = vmax.f32 %v4067, %v5024
    %v5622 = vmax.f32 %v4069, %v5026
    %v5623 = vmax.f32 %v4077, %v5028
    %v5624 = vmax.f32 %v4085, %v5030
    %v5625 = vmax.f32 %v4084, %v5032
    %v5626 = vmax.f32 %v4086, %v5034
    %v5627 = vmax.f32 %v4094, %v5036
    %v5628 = vmax.f32 %v4102, %v5038
    %v5629 = vmax.f32 %v4101, %v5040
    %v5630 = vmax.f32 %v4103, %v5042
    %v5631 = vmax.f32 %v4111, %v5044
    %v5632 = vmax.f32 %v4119, %v5046
    %v5633 = vmax.f32 %v4118, %v5048
    %v5634 = vmax.f32 %v4120, %v5050
    %v5635 = vmax.f32 %v4128, %v5052
    %v5636 = vmax.f32 %v4136, %v5054
    %v5637 = vmax.f32 %v4135, %v5056
    %v5638 = vmax.f32 %v4137, %v5058
    %v5639 = vmax.f32 %v4145, %v5060
    %v5640 = vmax.f32 %v4153, %v5062
    %v5641 = vmax.f32 %v4152, %v5064
    %v5642 = vmax.f32 %v4154, %v5066
    %v5643 = vmax.f32 %v4162, %v5068
    %v5644 = vmax.f32 %v4170, %v5070
    %v5645 = vmax.f32 %v4169, %v5072
    %v5646 = vmax.f32 %v4171, %v5074
    %v5647 = vmax.f32 %v4179, %v5076
    %v5648 = vmax.f32 %v4187, %v5078
    %v5649 = vmax.f32 %v4186, %v5080
    %v5650 = vmax.f32 %v4188, %v5082
    %v5651 = vmax.f32 %v4196, %v5084
    %v5652 = vmax.f32 %v4204, %v5086
    %v5653 = vmax.f32 %v4203, %v5088
    %v5654 = vmax.f32 %v4205, %v5090
    %v5655 = vmax.f32 %v4213, %v5092
    %v5656 = vmax.f32 %v4221, %v5094
    %v5657 = vmax.f32 %v4220, %v5096
    %v5658 = vmax.f32 %v4222, %v5098
    %v5659 = vmax.f32 %v4230, %v5100
    %v5660 = vmax.f32 %v4238, %v5102
    %v5661 = vmax.f32 %v4237, %v5104
    %v5662 = vmax.f32 %v4239, %v5106
    %v5663 = vmax.f32 %v4247, %v5108
    %v5664 = vmax.f32 %v4255, %v5110
    %v5665 = vmax.f32 %v4254, %v5112
    %v5666 = vmax.f32 %v4256, %v5114
    %v5667 = vmax.f32 %v4264, %v5116
    %v5668 = vmax.f32 %v4272, %v5118
    %v5669 = vmax.f32 %v4271, %v5120
    %v5670 = vmax.f32 %v4273, %v5122
    %v5671 = vmax.f32 %v4281, %v5124
    %v5672 = vmax.f32 %v4289, %v5126
    %v5673 = vmax.f32 %v4288, %v5128
    %v5674 = vmax.f32 %v4290, %v5130
    %v5675 = vmax.f32 %v4298, %v5132
    %v5676 = vmax.f32 %v4306, %v5134
    %v5677 = vmax.f32 %v4305, %v5136
    %v5678 = vmax.f32 %v4307, %v5138
    %v5679 = vmax.f32 %v4315, %v5140
    %v5680 = vmax.f32 %v4323, %v5142
    %v5681 = vmax.f32 %v4322, %v5144
    %v5682 = vmax.f32 %v4324, %v5146
    %v5683 = vmax.f32 %v4332, %v5148
    %v5684 = vmax.f32 %v4340, %v5150
    %v5685 = vmax.f32 %v4339, %v5152
    %v5686 = vmax.f32 %v4341, %v5154
    %v5687 = vmax.f32 %v4349, %v5156
    %v5688 = vmax.f32 %v4357, %v5158
    %v5689 = vmax.f32 %v4356, %v5160
    %v5690 = vmax.f32 %v4358, %v5162
    %v5691 = vmax.f32 %v4366, %v5164
    %v5692 = vmax.f32 %v4374, %v5166
    %v5693 = vmax.f32 %v4373, %v5168
    %v5694 = vmax.f32 %v4375, %v5170
    %v5695 = vmax.f32 %v4383, %v5172
    %v5696 = vmax.f32 %v4391, %v5174
    %v5697 = vmax.f32 %v4390, %v5176
    %v5698 = vmax.f32 %v4392, %v5178
    %v5699 = vmax.f32 %v4400, %v5180
    %v5700 = vmax.f32 %v4408, %v5182
    %v5701 = vmax.f32 %v4407, %v5184
    %v5702 = vmax.f32 %v4409, %v5186
    %v5703 = vmax.f32 %v4417, %v5188
    %v5704 = vmax.f32 %v4425, %v5190
    %v5705 = vmax.f32 %v4424, %v5192
    %v5706 = vmax.f32 %v4426, %v5194
    %v5707 = vmax.f32 %v5451, %v5459
    %v5708 = vmax.f32 %v5452, %v5460
    %v5709 = vmax.f32 %v5453, %v5461
    %v5710 = vmax.f32 %v5454, %v5462
    %v5711 = vmax.f32 %v5455, %v5463
    %v5712 = vmax.f32 %v5456, %v5464
    %v5713 = vmax.f32 %v5457, %v5465
    %v5714 = vmax.f32 %v5458, %v5466
    %v5715 = vmax.f32 %v5467, %v5475
    %v5716 = vmax.f32 %v5468, %v5476
    %v5717 = vmax.f32 %v5469, %v5477
    %v5718 = vmax.f32 %v5470, %v5478
    %v5719 = vmax.f32 %v5471, %v5479
    %v5720 = vmax.f32 %v5472, %v5480
    %v5721 = vmax.f32 %v5473, %v5481
    %v5722 = vmax.f32 %v5474, %v5482
    %v5723 = vmax.f32 %v5483, %v5491
    %v5724 = vmax.f32 %v5484, %v5492
    %v5725 = vmax.f32 %v5485, %v5493
    %v5726 = vmax.f32 %v5486, %v5494
    %v5727 = vmax.f32 %v5487, %v5495
    %v5728 = vmax.f32 %v5488, %v5496
    %v5729 = vmax.f32 %v5489, %v5497
    %v5730 = vmax.f32 %v5490, %v5498
    %v5731 = vmax.f32 %v5499, %v5507
    %v5732 = vmax.f32 %v5500, %v5508
    %v5733 = vmax.f32 %v5501, %v5509
    %v5734 = vmax.f32 %v5502, %v5510
    %v5735 = vmax.f32 %v5503, %v5511
    %v5736 = vmax.f32 %v5504, %v5512
    %v5737 = vmax.f32 %v5505, %v5513
    %v5738 = vmax.f32 %v5506, %v5514
    %v5739 = vmax.f32 %v5515, %v5523
    %v5740 = vmax.f32 %v5516, %v5524
    %v5741 = vmax.f32 %v5517, %v5525
    %v5742 = vmax.f32 %v5518, %v5526
    %v5743 = vmax.f32 %v5519, %v5527
    %v5744 = vmax.f32 %v5520, %v5528
    %v5745 = vmax.f32 %v5521, %v5529
    %v5746 = vmax.f32 %v5522, %v5530
    %v5747 = vmax.f32 %v5531, %v5539
    %v5748 = vmax.f32 %v5532, %v5540
    %v5749 = vmax.f32 %v5533, %v5541
    %v5750 = vmax.f32 %v5534, %v5542
    %v5751 = vmax.f32 %v5535, %v5543
    %v5752 = vmax.f32 %v5536, %v5544
    %v5753 = vmax.f32 %v5537, %v5545
    %v5754 = vmax.f32 %v5538, %v5546
    %v5755 = vmax.f32 %v5547, %v5555
    %v5756 = vmax.f32 %v5548, %v5556
    %v5757 = vmax.f32 %v5549, %v5557
    %v5758 = vmax.f32 %v5550, %v5558
    %v5759 = vmax.f32 %v5551, %v5559
    %v5760 = vmax.f32 %v5552, %v5560
    %v5761 = vmax.f32 %v5553, %v5561
    %v5762 = vmax.f32 %v5554, %v5562
    %v5763 = vmax.f32 %v5563, %v5571
    %v5764 = vmax.f32 %v5564, %v5572
    %v5765 = vmax.f32 %v5565, %v5573
    %v5766 = vmax.f32 %v5566, %v5574
    %v5767 = vmax.f32 %v5567, %v5575
    %v5768 = vmax.f32 %v5568, %v5576
    %v5769 = vmax.f32 %v5569, %v5577
    %v5770 = vmax.f32 %v5570, %v5578
    %v5771 = vmax.f32 %v5579, %v5587
    %v5772 = vmax.f32 %v5580, %v5588
    %v5773 = vmax.f32 %v5581, %v5589
    %v5774 = vmax.f32 %v5582, %v5590
    %v5775 = vmax.f32 %v5583, %v5591
    %v5776 = vmax.f32 %v5584, %v5592
    %v5777 = vmax.f32 %v5585, %v5593
    %v5778 = vmax.f32 %v5586, %v5594
    %v5779 = vmax.f32 %v5595, %v5603
    %v5780 = vmax.f32 %v5596, %v5604
    %v5781 = vmax.f32 %v5597, %v5605
    %v5782 = vmax.f32 %v5598, %v5606
    %v5783 = vmax.f32 %v5599, %v5607
    %v5784 = vmax.f32 %v5600, %v5608
    %v5785 = vmax.f32 %v5601, %v5609
    %v5786 = vmax.f32 %v5602, %v5610
    %v5787 = vmax.f32 %v5611, %v5619
    %v5788 = vmax.f32 %v5612, %v5620
    %v5789 = vmax.f32 %v5613, %v5621
    %v5790 = vmax.f32 %v5614, %v5622
    %v5791 = vmax.f32 %v5615, %v5623
    %v5792 = vmax.f32 %v5616, %v5624
    %v5793 = vmax.f32 %v5617, %v5625
    %v5794 = vmax.f32 %v5618, %v5626
    %v5795 = vmax.f32 %v5627, %v5635
    %v5796 = vmax.f32 %v5628, %v5636
    %v5797 = vmax.f32 %v5629, %v5637
    %v5798 = vmax.f32 %v5630, %v5638
    %v5799 = vmax.f32 %v5631, %v5639
    %v5800 = vmax.f32 %v5632, %v5640
    %v5801 = vmax.f32 %v5633, %v5641
    %v5802 = vmax.f32 %v5634, %v5642
    %v5803 = vmax.f32 %v5643, %v5651
    %v5804 = vmax.f32 %v5644, %v5652
    %v5805 = vmax.f32 %v5645, %v5653
    %v5806 = vmax.f32 %v5646, %v5654
    %v5807 = vmax.f32 %v5647, %v5655
    %v5808 = vmax.f32 %v5648, %v5656
    %v5809 = vmax.f32 %v5649, %v5657
    %v5810 = vmax.f32 %v5650, %v5658
    %v5811 = vmax.f32 %v5659, %v5667
    %v5812 = vmax.f32 %v5660, %v5668
    %v5813 = vmax.f32 %v5661, %v5669
    %v5814 = vmax.f32 %v5662, %v5670
    %v5815 = vmax.f32 %v5663, %v5671
    %v5816 = vmax.f32 %v5664, %v5672
    %v5817 = vmax.f32 %v5665, %v5673
    %v5818 = vmax.f32 %v5666, %v5674
    %v5819 = vmax.f32 %v5675, %v5683
    %v5820 = vmax.f32 %v5676, %v5684
    %v5821 = vmax.f32 %v5677, %v5685
    %v5822 = vmax.f32 %v5678, %v5686
    %v5823 = vmax.f32 %v5679, %v5687
    %v5824 = vmax.f32 %v5680, %v5688
    %v5825 = vmax.f32 %v5681, %v5689
    %v5826 = vmax.f32 %v5682, %v5690
    %v5827 = vmax.f32 %v5691, %v5699
    %v5828 = vmax.f32 %v5692, %v5700
    %v5829 = vmax.f32 %v5693, %v5701
    %v5830 = vmax.f32 %v5694, %v5702
    %v5831 = vmax.f32 %v5695, %v5703
    %v5832 = vmax.f32 %v5696, %v5704
    %v5833 = vmax.f32 %v5697, %v5705
    %v5834 = vmax.f32 %v5698, %v5706
    %v5963 = vlaneseq
    %v5964 = vshrl.u32 %v5963, 7
    %v5965 = vsub.s32 0, %v5964
    %v5966 = vrot.slane %v5707, %v5965
    %v5967 = vlaneseq
    %v5968 = vshrl.u32 %v5967, 7
    %v5969 = vsub.s32 0, %v5968
    %v5970 = vrot.slane %v5708, %v5969
    %v5971 = vlaneseq
    %v5972 = vshrl.u32 %v5971, 7
    %v5973 = vsub.s32 0, %v5972
    %v5974 = vrot.slane %v5709, %v5973
    %v5975 = vlaneseq
    %v5976 = vshrl.u32 %v5975, 7
    %v5977 = vsub.s32 0, %v5976
    %v5978 = vrot.slane %v5710, %v5977
    %v5979 = vlaneseq
    %v5980 = vshrl.u32 %v5979, 7
    %v5981 = vsub.s32 0, %v5980
    %v5982 = vrot.slane %v5711, %v5981
    %v5983 = vlaneseq
    %v5984 = vshrl.u32 %v5983, 7
    %v5985 = vsub.s32 0, %v5984
    %v5986 = vrot.slane %v5712, %v5985
    %v5987 = vlaneseq
    %v5988 = vshrl.u32 %v5987, 7
    %v5989 = vsub.s32 0, %v5988
    %v5990 = vrot.slane %v5713, %v5989
    %v5991 = vlaneseq
    %v5992 = vshrl.u32 %v5991, 7
    %v5993 = vsub.s32 0, %v5992
    %v5994 = vrot.slane %v5714, %v5993
    %v5995 = vlaneseq
    %v5996 = vshrl.u32 %v5995, 7
    %v5997 = vsub.s32 0, %v5996
    %v5998 = vrot.slane %v5715, %v5997
    %v5999 = vlaneseq
    %v6000 = vshrl.u32 %v5999, 7
    %v6001 = vsub.s32 0, %v6000
    %v6002 = vrot.slane %v5716, %v6001
    %v6003 = vlaneseq
    %v6004 = vshrl.u32 %v6003, 7
    %v6005 = vsub.s32 0, %v6004
    %v6006 = vrot.slane %v5717, %v6005
    %v6007 = vlaneseq
    %v6008 = vshrl.u32 %v6007, 7
    %v6009 = vsub.s32 0, %v6008
    %v6010 = vrot.slane %v5718, %v6009
    %v6011 = vlaneseq
    %v6012 = vshrl.u32 %v6011, 7
    %v6013 = vsub.s32 0, %v6012
    %v6014 = vrot.slane %v5719, %v6013
    %v6015 = vlaneseq
    %v6016 = vshrl.u32 %v6015, 7
    %v6017 = vsub.s32 0, %v6016
    %v6018 = vrot.slane %v5720, %v6017
    %v6019 = vlaneseq
    %v6020 = vshrl.u32 %v6019, 7
    %v6021 = vsub.s32 0, %v6020
    %v6022 = vrot.slane %v5721, %v6021
    %v6023 = vlaneseq
    %v6024 = vshrl.u32 %v6023, 7
    %v6025 = vsub.s32 0, %v6024
    %v6026 = vrot.slane %v5722, %v6025
    %v6027 = vlaneseq
    %v6028 = vshrl.u32 %v6027, 7
    %v6029 = vsub.s32 0, %v6028
    %v6030 = vrot.slane %v5723, %v6029
    %v6031 = vlaneseq
    %v6032 = vshrl.u32 %v6031, 7
    %v6033 = vsub.s32 0, %v6032
    %v6034 = vrot.slane %v5724, %v6033
    %v6035 = vlaneseq
    %v6036 = vshrl.u32 %v6035, 7
    %v6037 = vsub.s32 0, %v6036
    %v6038 = vrot.slane %v5725, %v6037
    %v6039 = vlaneseq
    %v6040 = vshrl.u32 %v6039, 7
    %v6041 = vsub.s32 0, %v6040
    %v6042 = vrot.slane %v5726, %v6041
    %v6043 = vlaneseq
    %v6044 = vshrl.u32 %v6043, 7
    %v6045 = vsub.s32 0, %v6044
    %v6046 = vrot.slane %v5727, %v6045
    %v6047 = vlaneseq
    %v6048 = vshrl.u32 %v6047, 7
    %v6049 = vsub.s32 0, %v6048
    %v6050 = vrot.slane %v5728, %v6049
    %v6051 = vlaneseq
    %v6052 = vshrl.u32 %v6051, 7
    %v6053 = vsub.s32 0, %v6052
    %v6054 = vrot.slane %v5729, %v6053
    %v6055 = vlaneseq
    %v6056 = vshrl.u32 %v6055, 7
    %v6057 = vsub.s32 0, %v6056
    %v6058 = vrot.slane %v5730, %v6057
    %v6059 = vlaneseq
    %v6060 = vshrl.u32 %v6059, 7
    %v6061 = vsub.s32 0, %v6060
    %v6062 = vrot.slane %v5731, %v6061
    %v6063 = vlaneseq
    %v6064 = vshrl.u32 %v6063, 7
    %v6065 = vsub.s32 0, %v6064
    %v6066 = vrot.slane %v5732, %v6065
    %v6067 = vlaneseq
    %v6068 = vshrl.u32 %v6067, 7
    %v6069 = vsub.s32 0, %v6068
    %v6070 = vrot.slane %v5733, %v6069
    %v6071 = vlaneseq
    %v6072 = vshrl.u32 %v6071, 7
    %v6073 = vsub.s32 0, %v6072
    %v6074 = vrot.slane %v5734, %v6073
    %v6075 = vlaneseq
    %v6076 = vshrl.u32 %v6075, 7
    %v6077 = vsub.s32 0, %v6076
    %v6078 = vrot.slane %v5735, %v6077
    %v6079 = vlaneseq
    %v6080 = vshrl.u32 %v6079, 7
    %v6081 = vsub.s32 0, %v6080
    %v6082 = vrot.slane %v5736, %v6081
    %v6083 = vlaneseq
    %v6084 = vshrl.u32 %v6083, 7
    %v6085 = vsub.s32 0, %v6084
    %v6086 = vrot.slane %v5737, %v6085
    %v6087 = vlaneseq
    %v6088 = vshrl.u32 %v6087, 7
    %v6089 = vsub.s32 0, %v6088
    %v6090 = vrot.slane %v5738, %v6089
    %v6091 = vlaneseq
    %v6092 = vshrl.u32 %v6091, 7
    %v6093 = vsub.s32 0, %v6092
    %v6094 = vrot.slane %v5739, %v6093
    %v6095 = vlaneseq
    %v6096 = vshrl.u32 %v6095, 7
    %v6097 = vsub.s32 0, %v6096
    %v6098 = vrot.slane %v5740, %v6097
    %v6099 = vlaneseq
    %v6100 = vshrl.u32 %v6099, 7
    %v6101 = vsub.s32 0, %v6100
    %v6102 = vrot.slane %v5741, %v6101
    %v6103 = vlaneseq
    %v6104 = vshrl.u32 %v6103, 7
    %v6105 = vsub.s32 0, %v6104
    %v6106 = vrot.slane %v5742, %v6105
    %v6107 = vlaneseq
    %v6108 = vshrl.u32 %v6107, 7
    %v6109 = vsub.s32 0, %v6108
    %v6110 = vrot.slane %v5743, %v6109
    %v6111 = vlaneseq
    %v6112 = vshrl.u32 %v6111, 7
    %v6113 = vsub.s32 0, %v6112
    %v6114 = vrot.slane %v5744, %v6113
    %v6115 = vlaneseq
    %v6116 = vshrl.u32 %v6115, 7
    %v6117 = vsub.s32 0, %v6116
    %v6118 = vrot.slane %v5745, %v6117
    %v6119 = vlaneseq
    %v6120 = vshrl.u32 %v6119, 7
    %v6121 = vsub.s32 0, %v6120
    %v6122 = vrot.slane %v5746, %v6121
    %v6123 = vlaneseq
    %v6124 = vshrl.u32 %v6123, 7
    %v6125 = vsub.s32 0, %v6124
    %v6126 = vrot.slane %v5747, %v6125
    %v6127 = vlaneseq
    %v6128 = vshrl.u32 %v6127, 7
    %v6129 = vsub.s32 0, %v6128
    %v6130 = vrot.slane %v5748, %v6129
    %v6131 = vlaneseq
    %v6132 = vshrl.u32 %v6131, 7
    %v6133 = vsub.s32 0, %v6132
    %v6134 = vrot.slane %v5749, %v6133
    %v6135 = vlaneseq
    %v6136 = vshrl.u32 %v6135, 7
    %v6137 = vsub.s32 0, %v6136
    %v6138 = vrot.slane %v5750, %v6137
    %v6139 = vlaneseq
    %v6140 = vshrl.u32 %v6139, 7
    %v6141 = vsub.s32 0, %v6140
    %v6142 = vrot.slane %v5751, %v6141
    %v6143 = vlaneseq
    %v6144 = vshrl.u32 %v6143, 7
    %v6145 = vsub.s32 0, %v6144
    %v6146 = vrot.slane %v5752, %v6145
    %v6147 = vlaneseq
    %v6148 = vshrl.u32 %v6147, 7
    %v6149 = vsub.s32 0, %v6148
    %v6150 = vrot.slane %v5753, %v6149
    %v6151 = vlaneseq
    %v6152 = vshrl.u32 %v6151, 7
    %v6153 = vsub.s32 0, %v6152
    %v6154 = vrot.slane %v5754, %v6153
    %v6155 = vlaneseq
    %v6156 = vshrl.u32 %v6155, 7
    %v6157 = vsub.s32 0, %v6156
    %v6158 = vrot.slane %v5755, %v6157
    %v6159 = vlaneseq
    %v6160 = vshrl.u32 %v6159, 7
    %v6161 = vsub.s32 0, %v6160
    %v6162 = vrot.slane %v5756, %v6161
    %v6163 = vlaneseq
    %v6164 = vshrl.u32 %v6163, 7
    %v6165 = vsub.s32 0, %v6164
    %v6166 = vrot.slane %v5757, %v6165
    %v6167 = vlaneseq
    %v6168 = vshrl.u32 %v6167, 7
    %v6169 = vsub.s32 0, %v6168
    %v6170 = vrot.slane %v5758, %v6169
    %v6171 = vlaneseq
    %v6172 = vshrl.u32 %v6171, 7
    %v6173 = vsub.s32 0, %v6172
    %v6174 = vrot.slane %v5759, %v6173
    %v6175 = vlaneseq
    %v6176 = vshrl.u32 %v6175, 7
    %v6177 = vsub.s32 0, %v6176
    %v6178 = vrot.slane %v5760, %v6177
    %v6179 = vlaneseq
    %v6180 = vshrl.u32 %v6179, 7
    %v6181 = vsub.s32 0, %v6180
    %v6182 = vrot.slane %v5761, %v6181
    %v6183 = vlaneseq
    %v6184 = vshrl.u32 %v6183, 7
    %v6185 = vsub.s32 0, %v6184
    %v6186 = vrot.slane %v5762, %v6185
    %v6187 = vlaneseq
    %v6188 = vshrl.u32 %v6187, 7
    %v6189 = vsub.s32 0, %v6188
    %v6190 = vrot.slane %v5763, %v6189
    %v6191 = vlaneseq
    %v6192 = vshrl.u32 %v6191, 7
    %v6193 = vsub.s32 0, %v6192
    %v6194 = vrot.slane %v5764, %v6193
    %v6195 = vlaneseq
    %v6196 = vshrl.u32 %v6195, 7
    %v6197 = vsub.s32 0, %v6196
    %v6198 = vrot.slane %v5765, %v6197
    %v6199 = vlaneseq
    %v6200 = vshrl.u32 %v6199, 7
    %v6201 = vsub.s32 0, %v6200
    %v6202 = vrot.slane %v5766, %v6201
    %v6203 = vlaneseq
    %v6204 = vshrl.u32 %v6203, 7
    %v6205 = vsub.s32 0, %v6204
    %v6206 = vrot.slane %v5767, %v6205
    %v6207 = vlaneseq
    %v6208 = vshrl.u32 %v6207, 7
    %v6209 = vsub.s32 0, %v6208
    %v6210 = vrot.slane %v5768, %v6209
    %v6211 = vlaneseq
    %v6212 = vshrl.u32 %v6211, 7
    %v6213 = vsub.s32 0, %v6212
    %v6214 = vrot.slane %v5769, %v6213
    %v6215 = vlaneseq
    %v6216 = vshrl.u32 %v6215, 7
    %v6217 = vsub.s32 0, %v6216
    %v6218 = vrot.slane %v5770, %v6217
    %v6219 = vlaneseq
    %v6220 = vshrl.u32 %v6219, 7
    %v6221 = vsub.s32 0, %v6220
    %v6222 = vrot.slane %v5771, %v6221
    %v6223 = vlaneseq
    %v6224 = vshrl.u32 %v6223, 7
    %v6225 = vsub.s32 0, %v6224
    %v6226 = vrot.slane %v5772, %v6225
    %v6227 = vlaneseq
    %v6228 = vshrl.u32 %v6227, 7
    %v6229 = vsub.s32 0, %v6228
    %v6230 = vrot.slane %v5773, %v6229
    %v6231 = vlaneseq
    %v6232 = vshrl.u32 %v6231, 7
    %v6233 = vsub.s32 0, %v6232
    %v6234 = vrot.slane %v5774, %v6233
    %v6235 = vlaneseq
    %v6236 = vshrl.u32 %v6235, 7
    %v6237 = vsub.s32 0, %v6236
    %v6238 = vrot.slane %v5775, %v6237
    %v6239 = vlaneseq
    %v6240 = vshrl.u32 %v6239, 7
    %v6241 = vsub.s32 0, %v6240
    %v6242 = vrot.slane %v5776, %v6241
    %v6243 = vlaneseq
    %v6244 = vshrl.u32 %v6243, 7
    %v6245 = vsub.s32 0, %v6244
    %v6246 = vrot.slane %v5777, %v6245
    %v6247 = vlaneseq
    %v6248 = vshrl.u32 %v6247, 7
    %v6249 = vsub.s32 0, %v6248
    %v6250 = vrot.slane %v5778, %v6249
    %v6251 = vlaneseq
    %v6252 = vshrl.u32 %v6251, 7
    %v6253 = vsub.s32 0, %v6252
    %v6254 = vrot.slane %v5779, %v6253
    %v6255 = vlaneseq
    %v6256 = vshrl.u32 %v6255, 7
    %v6257 = vsub.s32 0, %v6256
    %v6258 = vrot.slane %v5780, %v6257
    %v6259 = vlaneseq
    %v6260 = vshrl.u32 %v6259, 7
    %v6261 = vsub.s32 0, %v6260
    %v6262 = vrot.slane %v5781, %v6261
    %v6263 = vlaneseq
    %v6264 = vshrl.u32 %v6263, 7
    %v6265 = vsub.s32 0, %v6264
    %v6266 = vrot.slane %v5782, %v6265
    %v6267 = vlaneseq
    %v6268 = vshrl.u32 %v6267, 7
    %v6269 = vsub.s32 0, %v6268
    %v6270 = vrot.slane %v5783, %v6269
    %v6271 = vlaneseq
    %v6272 = vshrl.u32 %v6271, 7
    %v6273 = vsub.s32 0, %v6272
    %v6274 = vrot.slane %v5784, %v6273
    %v6275 = vlaneseq
    %v6276 = vshrl.u32 %v6275, 7
    %v6277 = vsub.s32 0, %v6276
    %v6278 = vrot.slane %v5785, %v6277
    %v6279 = vlaneseq
    %v6280 = vshrl.u32 %v6279, 7
    %v6281 = vsub.s32 0, %v6280
    %v6282 = vrot.slane %v5786, %v6281
    %v6283 = vlaneseq
    %v6284 = vshrl.u32 %v6283, 7
    %v6285 = vsub.s32 0, %v6284
    %v6286 = vrot.slane %v5787, %v6285
    %v6287 = vlaneseq
    %v6288 = vshrl.u32 %v6287, 7
    %v6289 = vsub.s32 0, %v6288
    %v6290 = vrot.slane %v5788, %v6289
    %v6291 = vlaneseq
    %v6292 = vshrl.u32 %v6291, 7
    %v6293 = vsub.s32 0, %v6292
    %v6294 = vrot.slane %v5789, %v6293
    %v6295 = vlaneseq
    %v6296 = vshrl.u32 %v6295, 7
    %v6297 = vsub.s32 0, %v6296
    %v6298 = vrot.slane %v5790, %v6297
    %v6299 = vlaneseq
    %v6300 = vshrl.u32 %v6299, 7
    %v6301 = vsub.s32 0, %v6300
    %v6302 = vrot.slane %v5791, %v6301
    %v6303 = vlaneseq
    %v6304 = vshrl.u32 %v6303, 7
    %v6305 = vsub.s32 0, %v6304
    %v6306 = vrot.slane %v5792, %v6305
    %v6307 = vlaneseq
    %v6308 = vshrl.u32 %v6307, 7
    %v6309 = vsub.s32 0, %v6308
    %v6310 = vrot.slane %v5793, %v6309
    %v6311 = vlaneseq
    %v6312 = vshrl.u32 %v6311, 7
    %v6313 = vsub.s32 0, %v6312
    %v6314 = vrot.slane %v5794, %v6313
    %v6315 = vlaneseq
    %v6316 = vshrl.u32 %v6315, 7
    %v6317 = vsub.s32 0, %v6316
    %v6318 = vrot.slane %v5795, %v6317
    %v6319 = vlaneseq
    %v6320 = vshrl.u32 %v6319, 7
    %v6321 = vsub.s32 0, %v6320
    %v6322 = vrot.slane %v5796, %v6321
    %v6323 = vlaneseq
    %v6324 = vshrl.u32 %v6323, 7
    %v6325 = vsub.s32 0, %v6324
    %v6326 = vrot.slane %v5797, %v6325
    %v6327 = vlaneseq
    %v6328 = vshrl.u32 %v6327, 7
    %v6329 = vsub.s32 0, %v6328
    %v6330 = vrot.slane %v5798, %v6329
    %v6331 = vlaneseq
    %v6332 = vshrl.u32 %v6331, 7
    %v6333 = vsub.s32 0, %v6332
    %v6334 = vrot.slane %v5799, %v6333
    %v6335 = vlaneseq
    %v6336 = vshrl.u32 %v6335, 7
    %v6337 = vsub.s32 0, %v6336
    %v6338 = vrot.slane %v5800, %v6337
    %v6339 = vlaneseq
    %v6340 = vshrl.u32 %v6339, 7
    %v6341 = vsub.s32 0, %v6340
    %v6342 = vrot.slane %v5801, %v6341
    %v6343 = vlaneseq
    %v6344 = vshrl.u32 %v6343, 7
    %v6345 = vsub.s32 0, %v6344
    %v6346 = vrot.slane %v5802, %v6345
    %v6347 = vlaneseq
    %v6348 = vshrl.u32 %v6347, 7
    %v6349 = vsub.s32 0, %v6348
    %v6350 = vrot.slane %v5803, %v6349
    %v6351 = vlaneseq
    %v6352 = vshrl.u32 %v6351, 7
    %v6353 = vsub.s32 0, %v6352
    %v6354 = vrot.slane %v5804, %v6353
    %v6355 = vlaneseq
    %v6356 = vshrl.u32 %v6355, 7
    %v6357 = vsub.s32 0, %v6356
    %v6358 = vrot.slane %v5805, %v6357
    %v6359 = vlaneseq
    %v6360 = vshrl.u32 %v6359, 7
    %v6361 = vsub.s32 0, %v6360
    %v6362 = vrot.slane %v5806, %v6361
    %v6363 = vlaneseq
    %v6364 = vshrl.u32 %v6363, 7
    %v6365 = vsub.s32 0, %v6364
    %v6366 = vrot.slane %v5807, %v6365
    %v6367 = vlaneseq
    %v6368 = vshrl.u32 %v6367, 7
    %v6369 = vsub.s32 0, %v6368
    %v6370 = vrot.slane %v5808, %v6369
    %v6371 = vlaneseq
    %v6372 = vshrl.u32 %v6371, 7
    %v6373 = vsub.s32 0, %v6372
    %v6374 = vrot.slane %v5809, %v6373
    %v6375 = vlaneseq
    %v6376 = vshrl.u32 %v6375, 7
    %v6377 = vsub.s32 0, %v6376
    %v6378 = vrot.slane %v5810, %v6377
    %v6379 = vlaneseq
    %v6380 = vshrl.u32 %v6379, 7
    %v6381 = vsub.s32 0, %v6380
    %v6382 = vrot.slane %v5811, %v6381
    %v6383 = vlaneseq
    %v6384 = vshrl.u32 %v6383, 7
    %v6385 = vsub.s32 0, %v6384
    %v6386 = vrot.slane %v5812, %v6385
    %v6387 = vlaneseq
    %v6388 = vshrl.u32 %v6387, 7
    %v6389 = vsub.s32 0, %v6388
    %v6390 = vrot.slane %v5813, %v6389
    %v6391 = vlaneseq
    %v6392 = vshrl.u32 %v6391, 7
    %v6393 = vsub.s32 0, %v6392
    %v6394 = vrot.slane %v5814, %v6393
    %v6395 = vlaneseq
    %v6396 = vshrl.u32 %v6395, 7
    %v6397 = vsub.s32 0, %v6396
    %v6398 = vrot.slane %v5815, %v6397
    %v6399 = vlaneseq
    %v6400 = vshrl.u32 %v6399, 7
    %v6401 = vsub.s32 0, %v6400
    %v6402 = vrot.slane %v5816, %v6401
    %v6403 = vlaneseq
    %v6404 = vshrl.u32 %v6403, 7
    %v6405 = vsub.s32 0, %v6404
    %v6406 = vrot.slane %v5817, %v6405
    %v6407 = vlaneseq
    %v6408 = vshrl.u32 %v6407, 7
    %v6409 = vsub.s32 0, %v6408
    %v6410 = vrot.slane %v5818, %v6409
    %v6411 = vlaneseq
    %v6412 = vshrl.u32 %v6411, 7
    %v6413 = vsub.s32 0, %v6412
    %v6414 = vrot.slane %v5819, %v6413
    %v6415 = vlaneseq
    %v6416 = vshrl.u32 %v6415, 7
    %v6417 = vsub.s32 0, %v6416
    %v6418 = vrot.slane %v5820, %v6417
    %v6419 = vlaneseq
    %v6420 = vshrl.u32 %v6419, 7
    %v6421 = vsub.s32 0, %v6420
    %v6422 = vrot.slane %v5821, %v6421
    %v6423 = vlaneseq
    %v6424 = vshrl.u32 %v6423, 7
    %v6425 = vsub.s32 0, %v6424
    %v6426 = vrot.slane %v5822, %v6425
    %v6427 = vlaneseq
    %v6428 = vshrl.u32 %v6427, 7
    %v6429 = vsub.s32 0, %v6428
    %v6430 = vrot.slane %v5823, %v6429
    %v6431 = vlaneseq
    %v6432 = vshrl.u32 %v6431, 7
    %v6433 = vsub.s32 0, %v6432
    %v6434 = vrot.slane %v5824, %v6433
    %v6435 = vlaneseq
    %v6436 = vshrl.u32 %v6435, 7
    %v6437 = vsub.s32 0, %v6436
    %v6438 = vrot.slane %v5825, %v6437
    %v6439 = vlaneseq
    %v6440 = vshrl.u32 %v6439, 7
    %v6441 = vsub.s32 0, %v6440
    %v6442 = vrot.slane %v5826, %v6441
    %v6443 = vlaneseq
    %v6444 = vshrl.u32 %v6443, 7
    %v6445 = vsub.s32 0, %v6444
    %v6446 = vrot.slane %v5827, %v6445
    %v6447 = vlaneseq
    %v6448 = vshrl.u32 %v6447, 7
    %v6449 = vsub.s32 0, %v6448
    %v6450 = vrot.slane %v5828, %v6449
    %v6451 = vlaneseq
    %v6452 = vshrl.u32 %v6451, 7
    %v6453 = vsub.s32 0, %v6452
    %v6454 = vrot.slane %v5829, %v6453
    %v6455 = vlaneseq
    %v6456 = vshrl.u32 %v6455, 7
    %v6457 = vsub.s32 0, %v6456
    %v6458 = vrot.slane %v5830, %v6457
    %v6459 = vlaneseq
    %v6460 = vshrl.u32 %v6459, 7
    %v6461 = vsub.s32 0, %v6460
    %v6462 = vrot.slane %v5831, %v6461
    %v6463 = vlaneseq
    %v6464 = vshrl.u32 %v6463, 7
    %v6465 = vsub.s32 0, %v6464
    %v6466 = vrot.slane %v5832, %v6465
    %v6467 = vlaneseq
    %v6468 = vshrl.u32 %v6467, 7
    %v6469 = vsub.s32 0, %v6468
    %v6470 = vrot.slane %v5833, %v6469
    %v6471 = vlaneseq
    %v6472 = vshrl.u32 %v6471, 7
    %v6473 = vsub.s32 0, %v6472
    %v6474 = vrot.slane %v5834, %v6473
    %vm6475 = vcmask 1042434
    %v6476 = vsel %vm6475, %v5970, %v5966
    %vm6477 = vcmask 1043459
    %v6478 = vsel %vm6477, %v5974, %v6476
    %vm6479 = vcmask 1044484
    %v6480 = vsel %vm6479, %v5978, %v6478
    %vm6481 = vcmask 1045509
    %v6482 = vsel %vm6481, %v5982, %v6480
    %vm6483 = vcmask 1046534
    %v6484 = vsel %vm6483, %v5986, %v6482
    %vm6485 = vcmask 1047559
    %v6486 = vsel %vm6485, %v5990, %v6484
    %v6487 = vsel %vm6475, %v6002, %v5998
    %v6488 = vsel %vm6477, %v6006, %v6487
    %v6489 = vsel %vm6479, %v6010, %v6488
    %v6490 = vsel %vm6481, %v6014, %v6489
    %v6491 = vsel %vm6483, %v6018, %v6490
    %v6492 = vsel %vm6485, %v6022, %v6491
    %v6493 = vsel %vm6475, %v6034, %v6030
    %v6494 = vsel %vm6477, %v6038, %v6493
    %v6495 = vsel %vm6479, %v6042, %v6494
    %v6496 = vsel %vm6481, %v6046, %v6495
    %v6497 = vsel %vm6483, %v6050, %v6496
    %v6498 = vsel %vm6485, %v6054, %v6497
    %v6499 = vsel %vm6475, %v6066, %v6062
    %v6500 = vsel %vm6477, %v6070, %v6499
    %v6501 = vsel %vm6479, %v6074, %v6500
    %v6502 = vsel %vm6481, %v6078, %v6501
    %v6503 = vsel %vm6483, %v6082, %v6502
    %v6504 = vsel %vm6485, %v6086, %v6503
    %v6505 = vsel %vm6475, %v6098, %v6094
    %v6506 = vsel %vm6477, %v6102, %v6505
    %v6507 = vsel %vm6479, %v6106, %v6506
    %v6508 = vsel %vm6481, %v6110, %v6507
    %v6509 = vsel %vm6483, %v6114, %v6508
    %v6510 = vsel %vm6485, %v6118, %v6509
    %v6511 = vsel %vm6475, %v6130, %v6126
    %v6512 = vsel %vm6477, %v6134, %v6511
    %v6513 = vsel %vm6479, %v6138, %v6512
    %v6514 = vsel %vm6481, %v6142, %v6513
    %v6515 = vsel %vm6483, %v6146, %v6514
    %v6516 = vsel %vm6485, %v6150, %v6515
    %v6517 = vsel %vm6475, %v6162, %v6158
    %v6518 = vsel %vm6477, %v6166, %v6517
    %v6519 = vsel %vm6479, %v6170, %v6518
    %v6520 = vsel %vm6481, %v6174, %v6519
    %v6521 = vsel %vm6483, %v6178, %v6520
    %v6522 = vsel %vm6485, %v6182, %v6521
    %v6523 = vsel %vm6475, %v6194, %v6190
    %v6524 = vsel %vm6477, %v6198, %v6523
    %v6525 = vsel %vm6479, %v6202, %v6524
    %v6526 = vsel %vm6481, %v6206, %v6525
    %v6527 = vsel %vm6483, %v6210, %v6526
    %v6528 = vsel %vm6485, %v6214, %v6527
    %v6529 = vsel %vm6475, %v6226, %v6222
    %v6530 = vsel %vm6477, %v6230, %v6529
    %v6531 = vsel %vm6479, %v6234, %v6530
    %v6532 = vsel %vm6481, %v6238, %v6531
    %v6533 = vsel %vm6483, %v6242, %v6532
    %v6534 = vsel %vm6485, %v6246, %v6533
    %v6535 = vsel %vm6475, %v6258, %v6254
    %v6536 = vsel %vm6477, %v6262, %v6535
    %v6537 = vsel %vm6479, %v6266, %v6536
    %v6538 = vsel %vm6481, %v6270, %v6537
    %v6539 = vsel %vm6483, %v6274, %v6538
    %v6540 = vsel %vm6485, %v6278, %v6539
    %v6541 = vsel %vm6475, %v6290, %v6286
    %v6542 = vsel %vm6477, %v6294, %v6541
    %v6543 = vsel %vm6479, %v6298, %v6542
    %v6544 = vsel %vm6481, %v6302, %v6543
    %v6545 = vsel %vm6483, %v6306, %v6544
    %v6546 = vsel %vm6485, %v6310, %v6545
    %v6547 = vsel %vm6475, %v6322, %v6318
    %v6548 = vsel %vm6477, %v6326, %v6547
    %v6549 = vsel %vm6479, %v6330, %v6548
    %v6550 = vsel %vm6481, %v6334, %v6549
    %v6551 = vsel %vm6483, %v6338, %v6550
    %v6552 = vsel %vm6485, %v6342, %v6551
    %v6553 = vsel %vm6475, %v6354, %v6350
    %v6554 = vsel %vm6477, %v6358, %v6553
    %v6555 = vsel %vm6479, %v6362, %v6554
    %v6556 = vsel %vm6481, %v6366, %v6555
    %v6557 = vsel %vm6483, %v6370, %v6556
    %v6558 = vsel %vm6485, %v6374, %v6557
    %v6559 = vsel %vm6475, %v6386, %v6382
    %v6560 = vsel %vm6477, %v6390, %v6559
    %v6561 = vsel %vm6479, %v6394, %v6560
    %v6562 = vsel %vm6481, %v6398, %v6561
    %v6563 = vsel %vm6483, %v6402, %v6562
    %v6564 = vsel %vm6485, %v6406, %v6563
    %v6565 = vsel %vm6475, %v6418, %v6414
    %v6566 = vsel %vm6477, %v6422, %v6565
    %v6567 = vsel %vm6479, %v6426, %v6566
    %v6568 = vsel %vm6481, %v6430, %v6567
    %v6569 = vsel %vm6483, %v6434, %v6568
    %v6570 = vsel %vm6485, %v6438, %v6569
    %v6571 = vsel %vm6475, %v6450, %v6446
    %v6572 = vsel %vm6477, %v6454, %v6571
    %v6573 = vsel %vm6479, %v6458, %v6572
    %v6574 = vsel %vm6481, %v6462, %v6573
    %v6575 = vsel %vm6483, %v6466, %v6574
    %v6576 = vsel %vm6485, %v6470, %v6575
    %v6609 = vsel %vm171, 0.0, %v6486
    %v6610 = vsel %vm171, 0.0, %v6492
    %v6611 = vsel %vm171, 0.0, %v6498
    %v6612 = vsel %vm171, 0.0, %v6504
    %v6613 = vsel %vm171, 0.0, %v6510
    %v6614 = vsel %vm171, 0.0, %v6516
    %v6615 = vsel %vm171, 0.0, %v6522
    %v6616 = vsel %vm171, 0.0, %v6528
    %v6617 = vsel %vm171, 0.0, %v6534
    %v6618 = vsel %vm171, 0.0, %v6540
    %v6619 = vsel %vm171, 0.0, %v6546
    %v6620 = vsel %vm171, 0.0, %v6552
    %v6621 = vsel %vm171, 0.0, %v6558
    %v6622 = vsel %vm171, 0.0, %v6564
    %v6623 = vsel %vm171, 0.0, %v6570
    %v6624 = vsel %vm171, 0.0, %v6576
    %v6625 = vsel %vm171, %v5994, 0.0
    %v6626 = vsel %vm171, %v6026, 0.0
    %v6627 = vsel %vm171, %v6058, 0.0
    %v6628 = vsel %vm171, %v6090, 0.0
    %v6629 = vsel %vm171, %v6122, 0.0
    %v6630 = vsel %vm171, %v6154, 0.0
    %v6631 = vsel %vm171, %v6186, 0.0
    %v6632 = vsel %vm171, %v6218, 0.0
    %v6633 = vsel %vm171, %v6250, 0.0
    %v6634 = vsel %vm171, %v6282, 0.0
    %v6635 = vsel %vm171, %v6314, 0.0
    %v6636 = vsel %vm171, %v6346, 0.0
    %v6637 = vsel %vm171, %v6378, 0.0
    %v6638 = vsel %vm171, %v6410, 0.0
    %v6639 = vsel %vm171, %v6442, 0.0
    %v6640 = vsel %vm171, %v6474, 0.0
    %v6669 = vrot.slane %v6609, 1
    %v6670 = vrot.slane %v6625, 1
    %v6671 = vsel %vm489, %v6669, %v6670
    %v6672 = vrot.slane %v6610, 1
    %v6673 = vrot.slane %v6626, 1
    %v6674 = vsel %vm489, %v6672, %v6673
    %v6675 = vrot.slane %v6611, 1
    %v6676 = vrot.slane %v6627, 1
    %v6677 = vsel %vm489, %v6675, %v6676
    %v6678 = vrot.slane %v6612, 1
    %v6679 = vrot.slane %v6628, 1
    %v6680 = vsel %vm489, %v6678, %v6679
    %v6681 = vrot.slane %v6613, 1
    %v6682 = vrot.slane %v6629, 1
    %v6683 = vsel %vm489, %v6681, %v6682
    %v6684 = vrot.slane %v6614, 1
    %v6685 = vrot.slane %v6630, 1
    %v6686 = vsel %vm489, %v6684, %v6685
    %v6687 = vrot.slane %v6615, 1
    %v6688 = vrot.slane %v6631, 1
    %v6689 = vsel %vm489, %v6687, %v6688
    %v6690 = vrot.slane %v6617, 1
    %v6691 = vrot.slane %v6633, 1
    %v6692 = vsel %vm489, %v6690, %v6691
    %v6693 = vrot.slane %v6618, 1
    %v6694 = vrot.slane %v6634, 1
    %v6695 = vsel %vm489, %v6693, %v6694
    %v6696 = vrot.slane %v6619, 1
    %v6697 = vrot.slane %v6635, 1
    %v6698 = vsel %vm489, %v6696, %v6697
    %v6699 = vrot.slane %v6620, 1
    %v6700 = vrot.slane %v6636, 1
    %v6701 = vsel %vm489, %v6699, %v6700
    %v6702 = vrot.slane %v6621, 1
    %v6703 = vrot.slane %v6637, 1
    %v6704 = vsel %vm489, %v6702, %v6703
    %v6705 = vrot.slane %v6622, 1
    %v6706 = vrot.slane %v6638, 1
    %v6707 = vsel %vm489, %v6705, %v6706
    %v6708 = vrot.slane %v6623, 1
    %v6709 = vrot.slane %v6639, 1
    %v6710 = vsel %vm489, %v6708, %v6709
    %v6725 = vrot.slane %v6609, 2
    %v6726 = vrot.slane %v6625, 2
    %v6727 = vsel %vm703, %v6725, %v6726
    %v6728 = vrot.slane %v6610, 2
    %v6729 = vrot.slane %v6626, 2
    %v6730 = vsel %vm703, %v6728, %v6729
    %v6731 = vrot.slane %v6611, 2
    %v6732 = vrot.slane %v6627, 2
    %v6733 = vsel %vm703, %v6731, %v6732
    %v6734 = vrot.slane %v6612, 2
    %v6735 = vrot.slane %v6628, 2
    %v6736 = vsel %vm703, %v6734, %v6735
    %v6737 = vrot.slane %v6613, 2
    %v6738 = vrot.slane %v6629, 2
    %v6739 = vsel %vm703, %v6737, %v6738
    %v6740 = vrot.slane %v6614, 2
    %v6741 = vrot.slane %v6630, 2
    %v6742 = vsel %vm703, %v6740, %v6741
    %v6743 = vrot.slane %v6615, 2
    %v6744 = vrot.slane %v6631, 2
    %v6745 = vsel %vm703, %v6743, %v6744
    %v6746 = vrot.slane %v6617, 2
    %v6747 = vrot.slane %v6633, 2
    %v6748 = vsel %vm703, %v6746, %v6747
    %v6749 = vrot.slane %v6618, 2
    %v6750 = vrot.slane %v6634, 2
    %v6751 = vsel %vm703, %v6749, %v6750
    %v6752 = vrot.slane %v6619, 2
    %v6753 = vrot.slane %v6635, 2
    %v6754 = vsel %vm703, %v6752, %v6753
    %v6755 = vrot.slane %v6620, 2
    %v6756 = vrot.slane %v6636, 2
    %v6757 = vsel %vm703, %v6755, %v6756
    %v6758 = vrot.slane %v6621, 2
    %v6759 = vrot.slane %v6637, 2
    %v6760 = vsel %vm703, %v6758, %v6759
    %v6761 = vrot.slane %v6622, 2
    %v6762 = vrot.slane %v6638, 2
    %v6763 = vsel %vm703, %v6761, %v6762
    %v6764 = vrot.slane %v6623, 2
    %v6765 = vrot.slane %v6639, 2
    %v6766 = vsel %vm703, %v6764, %v6765
    %v6785 = vrot.slane %v6616, 1
    %v6786 = vrot.slane %v6632, 1
    %v6787 = vsel %vm489, %v6785, %v6786
    %v6788 = vrot.slane %v6624, 1
    %v6789 = vrot.slane %v6640, 1
    %v6790 = vsel %vm489, %v6788, %v6789
    %v6793 = vrot.slane %v6616, 2
    %v6794 = vrot.slane %v6632, 2
    %v6795 = vsel %vm703, %v6793, %v6794
    %v6796 = vrot.slane %v6624, 2
    %v6797 = vrot.slane %v6640, 2
    %v6798 = vsel %vm703, %v6796, %v6797
    %v6801 = vpack.c.bf16 %v6609, 0.0
    %v6802 = vpack.c.bf16 %v6671, %v491
    %v6803 = vpack.c.bf16 %v6727, %v705
    %v6804 = vpack.c.bf16 %v6610, %v6609
    %v6805 = vpack.c.bf16 %v6674, %v6671
    %v6806 = vpack.c.bf16 %v6730, %v6727
    %v6807 = vpack.c.bf16 %v6611, %v6610
    %v6808 = vpack.c.bf16 %v6677, %v6674
    %v6809 = vpack.c.bf16 %v6733, %v6730
    %v6810 = vpack.c.bf16 %v6612, %v6611
    %v6811 = vpack.c.bf16 %v6680, %v6677
    %v6812 = vpack.c.bf16 %v6736, %v6733
    %v6813 = vpack.c.bf16 %v6613, %v6612
    %v6814 = vpack.c.bf16 %v6683, %v6680
    %v6815 = vpack.c.bf16 %v6739, %v6736
    %v6816 = vpack.c.bf16 %v6614, %v6613
    %v6817 = vpack.c.bf16 %v6686, %v6683
    %v6818 = vpack.c.bf16 %v6742, %v6739
    %v6819 = vpack.c.bf16 %v6615, %v6614
    %v6820 = vpack.c.bf16 %v6689, %v6686
    %v6821 = vpack.c.bf16 %v6745, %v6742
    %v6822 = vpack.c.bf16 %v6616, %v6615
    %v6823 = vpack.c.bf16 %v6787, %v6689
    %v6824 = vpack.c.bf16 %v6795, %v6745
    %v6825 = vpack.c.bf16 0.0, %v6616
    %v6826 = vpack.c.bf16 %v491, %v6787
    %v6827 = vpack.c.bf16 %v705, %v6795
    %v6828 = vpack.c.bf16 %v6617, 0.0
    %v6829 = vpack.c.bf16 %v6692, %v491
    %v6830 = vpack.c.bf16 %v6748, %v705
    %v6831 = vpack.c.bf16 %v6618, %v6617
    %v6832 = vpack.c.bf16 %v6695, %v6692
    %v6833 = vpack.c.bf16 %v6751, %v6748
    %v6834 = vpack.c.bf16 %v6619, %v6618
    %v6835 = vpack.c.bf16 %v6698, %v6695
    %v6836 = vpack.c.bf16 %v6754, %v6751
    %v6837 = vpack.c.bf16 %v6620, %v6619
    %v6838 = vpack.c.bf16 %v6701, %v6698
    %v6839 = vpack.c.bf16 %v6757, %v6754
    %v6840 = vpack.c.bf16 %v6621, %v6620
    %v6841 = vpack.c.bf16 %v6704, %v6701
    %v6842 = vpack.c.bf16 %v6760, %v6757
    %v6843 = vpack.c.bf16 %v6622, %v6621
    %v6844 = vpack.c.bf16 %v6707, %v6704
    %v6845 = vpack.c.bf16 %v6763, %v6760
    %v6846 = vpack.c.bf16 %v6623, %v6622
    %v6847 = vpack.c.bf16 %v6710, %v6707
    %v6848 = vpack.c.bf16 %v6766, %v6763
    %v6849 = vpack.c.bf16 %v6624, %v6623
    %v6850 = vpack.c.bf16 %v6790, %v6710
    %v6851 = vpack.c.bf16 %v6798, %v6766
    %v6852 = vpack.c.bf16 0.0, %v6624
    %v6853 = vpack.c.bf16 %v491, %v6790
    %v6854 = vpack.c.bf16 %v705, %v6798
    %v6855 = vld [vmem:[%s4] sm:$0xf]
    %v6856 = vld [vmem:[%s4 + $0x4] sm:$0xf]
    %v6857 = vld [vmem:[%s4 + $0x8] sm:$0xf]
    %v6858 = vld [vmem:[%s4 + $0xc] sm:$0xf]
    %v6859 = vld [vmem:[%s4 + $0x10] sm:$0xf]
    %v6860 = vld [vmem:[%s4 + $0x14] sm:$0xf]
    %v6861 = vld [vmem:[%s4 + $0x18] sm:$0xf]
    %v6862 = vld [vmem:[%s4 + $0x1c] sm:$0xf]
    %v6863 = vld [vmem:[%s4 + $0x20] sm:$0xf]
    %v6864 = vld [vmem:[%s4 + $0x24] sm:$0xf]
    %v6865 = vld [vmem:[%s4 + $0x28] sm:$0xf]
    %v6866 = vld [vmem:[%s4 + $0x2c] sm:$0xf]
    %v6867 = vld [vmem:[%s4 + $0x30] sm:$0xf]
    %v6868 = vld [vmem:[%s4 + $0x34] sm:$0xf]
    %v6869 = vld [vmem:[%s4 + $0x38] sm:$0xf]
    %v6870 = vld [vmem:[%s4 + $0x3c] sm:$0xf]
    %v6871 = vld [vmem:[%s4 + $0x40] sm:$0xf]
    %v6872 = vld [vmem:[%s4 + $0x44] sm:$0xf]
    %v6873 = vld [vmem:[%s4 + $0x48] sm:$0xf]
    %v6874 = vld [vmem:[%s4 + $0x4c] sm:$0xf]
    %v6875 = vld [vmem:[%s4 + $0x50] sm:$0xf]
    %v6876 = vld [vmem:[%s4 + $0x54] sm:$0xf]
    %v6877 = vld [vmem:[%s4 + $0x58] sm:$0xf]
    %v6878 = vld [vmem:[%s4 + $0x5c] sm:$0xf]
    %v6879 = vld [vmem:[%s4 + $0x60] sm:$0xf]
    %v6880 = vld [vmem:[%s4 + $0x64] sm:$0xf]
    %v6881 = vld [vmem:[%s4 + $0x68] sm:$0xf]
    %v6882 = vld [vmem:[%s4 + $0x6c] sm:$0xf]
    %v6883 = vld [vmem:[%s4 + $0x70] sm:$0xf]
    %v6884 = vld [vmem:[%s4 + $0x74] sm:$0xf]
    %v6885 = vld [vmem:[%s4 + $0x78] sm:$0xf]
    %v6886 = vld [vmem:[%s4 + $0x7c] sm:$0xf]
    %v6887 = vld [vmem:[%s4 + $0x80] sm:$0xf]
    %v6888 = vld [vmem:[%s4 + $0x84] sm:$0xf]
    %v6889 = vld [vmem:[%s4 + $0x88] sm:$0xf]
    %v6890 = vld [vmem:[%s4 + $0x8c] sm:$0xf]
    %v6891 = vld [vmem:[%s4 + $0x90] sm:$0xf]
    %v6892 = vld [vmem:[%s4 + $0x94] sm:$0xf]
    %v6893 = vld [vmem:[%s4 + $0x98] sm:$0xf]
    %v6894 = vld [vmem:[%s4 + $0x9c] sm:$0xf]
    %v6895 = vld [vmem:[%s4 + $0xa0] sm:$0xf]
    %v6896 = vld [vmem:[%s4 + $0xa4] sm:$0xf]
    %v6897 = vld [vmem:[%s4 + $0xa8] sm:$0xf]
    %v6898 = vld [vmem:[%s4 + $0xac] sm:$0xf]
    %v6899 = vld [vmem:[%s4 + $0xb0] sm:$0xf]
    %v6900 = vld [vmem:[%s4 + $0xb4] sm:$0xf]
    %v6901 = vld [vmem:[%s4 + $0xb8] sm:$0xf]
    %v6902 = vld [vmem:[%s4 + $0xbc] sm:$0xf]
    %v6903 = vld [vmem:[%s4 + $0xc0] sm:$0xf]
    %v6904 = vld [vmem:[%s4 + $0xc4] sm:$0xf]
    %v6905 = vld [vmem:[%s4 + $0xc8] sm:$0xf]
    %v6906 = vld [vmem:[%s4 + $0xcc] sm:$0xf]
    %v6907 = vld [vmem:[%s4 + $0xd0] sm:$0xf]
    %v6908 = vld [vmem:[%s4 + $0xd4] sm:$0xf]
    %v6909 = vld [vmem:[%s4 + $0xd8] sm:$0xf]
    %v6910 = vld [vmem:[%s4 + $0xdc] sm:$0xf]
    %v6911 = vld [vmem:[%s4 + $0xe0] sm:$0xf]
    %v6912 = vld [vmem:[%s4 + $0xe4] sm:$0xf]
    %v6913 = vld [vmem:[%s4 + $0xe8] sm:$0xf]
    %v6914 = vld [vmem:[%s4 + $0xec] sm:$0xf]
    %v6915 = vld [vmem:[%s4 + $0xf0] sm:$0xf]
    %v6916 = vld [vmem:[%s4 + $0xf4] sm:$0xf]
    %v6917 = vld [vmem:[%s4 + $0xf8] sm:$0xf]
    %v6918 = vld [vmem:[%s4 + $0xfc] sm:$0xf]
    %v6919 = vld [vmem:[%s4 + $0x100] sm:$0xf]
    %v6920 = vld [vmem:[%s4 + $0x104] sm:$0xf]
    %v6921 = vld [vmem:[%s4 + $0x108] sm:$0xf]
    %v6922 = vld [vmem:[%s4 + $0x10c] sm:$0xf]
    %v6923 = vld [vmem:[%s4 + $0x110] sm:$0xf]
    %v6924 = vld [vmem:[%s4 + $0x114] sm:$0xf]
    %v6925 = vld [vmem:[%s4 + $0x118] sm:$0xf]
    %v6926 = vld [vmem:[%s4 + $0x11c] sm:$0xf]
    %v6927 = vld [vmem:[%s4 + $0x120] sm:$0xf]
    %v6928 = vld [vmem:[%s4 + $0x124] sm:$0xf]
    %v6929 = vld [vmem:[%s4 + $0x128] sm:$0xf]
    %v6930 = vld [vmem:[%s4 + $0x12c] sm:$0xf]
    %v6931 = vld [vmem:[%s4 + $0x130] sm:$0xf]
    %v6932 = vld [vmem:[%s4 + $0x134] sm:$0xf]
    %v6933 = vld [vmem:[%s4 + $0x138] sm:$0xf]
    %v6934 = vld [vmem:[%s4 + $0x13c] sm:$0xf]
    %v6935 = vld [vmem:[%s4 + $0x140] sm:$0xf]
    %v6936 = vld [vmem:[%s4 + $0x144] sm:$0xf]
    %v6937 = vld [vmem:[%s4 + $0x148] sm:$0xf]
    %v6938 = vld [vmem:[%s4 + $0x14c] sm:$0xf]
    %v6939 = vld [vmem:[%s4 + $0x150] sm:$0xf]
    %v6940 = vld [vmem:[%s4 + $0x154] sm:$0xf]
    %v6941 = vld [vmem:[%s4 + $0x158] sm:$0xf]
    %v6942 = vld [vmem:[%s4 + $0x15c] sm:$0xf]
    %v6943 = vld [vmem:[%s4 + $0x160] sm:$0xf]
    %v6944 = vld [vmem:[%s4 + $0x164] sm:$0xf]
    %v6945 = vld [vmem:[%s4 + $0x168] sm:$0xf]
    %v6946 = vld [vmem:[%s4 + $0x16c] sm:$0xf]
    %v6947 = vld [vmem:[%s4 + $0x170] sm:$0xf]
    %v6948 = vld [vmem:[%s4 + $0x174] sm:$0xf]
    %v6949 = vld [vmem:[%s4 + $0x178] sm:$0xf]
    %v6950 = vld [vmem:[%s4 + $0x17c] sm:$0xf]
    %v6951 = vld [vmem:[%s4 + $0x180] sm:$0xf]
    %v6952 = vld [vmem:[%s4 + $0x184] sm:$0xf]
    %v6953 = vld [vmem:[%s4 + $0x188] sm:$0xf]
    %v6954 = vld [vmem:[%s4 + $0x18c] sm:$0xf]
    %v6955 = vld [vmem:[%s4 + $0x190] sm:$0xf]
    %v6956 = vld [vmem:[%s4 + $0x194] sm:$0xf]
    %v6957 = vld [vmem:[%s4 + $0x198] sm:$0xf]
    %v6958 = vld [vmem:[%s4 + $0x19c] sm:$0xf]
    %v6959 = vld [vmem:[%s4 + $0x1a0] sm:$0xf]
    %v6960 = vld [vmem:[%s4 + $0x1a4] sm:$0xf]
    %v6961 = vld [vmem:[%s4 + $0x1a8] sm:$0xf]
    %v6962 = vld [vmem:[%s4 + $0x1ac] sm:$0xf]
    %v6963 = vld [vmem:[%s4 + $0x1b0] sm:$0xf]
    %v6964 = vld [vmem:[%s4 + $0x1b4] sm:$0xf]
    %v6965 = vld [vmem:[%s4 + $0x1b8] sm:$0xf]
    %v6966 = vld [vmem:[%s4 + $0x1bc] sm:$0xf]
    %v6967 = vld [vmem:[%s4 + $0x1c0] sm:$0xf]
    %v6968 = vld [vmem:[%s4 + $0x1c4] sm:$0xf]
    %v6969 = vld [vmem:[%s4 + $0x1c8] sm:$0xf]
    %v6970 = vld [vmem:[%s4 + $0x1cc] sm:$0xf]
    %v6971 = vld [vmem:[%s4 + $0x1d0] sm:$0xf]
    %v6972 = vld [vmem:[%s4 + $0x1d4] sm:$0xf]
    %v6973 = vld [vmem:[%s4 + $0x1d8] sm:$0xf]
    %v6974 = vld [vmem:[%s4 + $0x1dc] sm:$0xf]
    %v6975 = vld [vmem:[%s4 + $0x1e0] sm:$0xf]
    %v6976 = vld [vmem:[%s4 + $0x1e4] sm:$0xf]
    %v6977 = vld [vmem:[%s4 + $0x1e8] sm:$0xf]
    %v6978 = vld [vmem:[%s4 + $0x1ec] sm:$0xf]
    %v6979 = vld [vmem:[%s4 + $0x1f0] sm:$0xf]
    %v6980 = vld [vmem:[%s4 + $0x1f4] sm:$0xf]
    %v6981 = vld [vmem:[%s4 + $0x1f8] sm:$0xf]
    %v6982 = vld [vmem:[%s4 + $0x1fc] sm:$0xf]
    %v6983 = vld [vmem:[%s4 + $0x200] sm:$0xf]
    %v6984 = vld [vmem:[%s4 + $0x204] sm:$0xf]
    %v6985 = vld [vmem:[%s4 + $0x208] sm:$0xf]
    %v6986 = vld [vmem:[%s4 + $0x20c] sm:$0xf]
    %v6987 = vld [vmem:[%s4 + $0x210] sm:$0xf]
    %v6988 = vld [vmem:[%s4 + $0x214] sm:$0xf]
    %v6989 = vld [vmem:[%s4 + $0x218] sm:$0xf]
    %v6990 = vld [vmem:[%s4 + $0x21c] sm:$0xf]
    %v6991 = vld [vmem:[%s4 + $0x220] sm:$0xf]
    %v6992 = vld [vmem:[%s4 + $0x224] sm:$0xf]
    %v6993 = vld [vmem:[%s4 + $0x228] sm:$0xf]
    %v6994 = vld [vmem:[%s4 + $0x22c] sm:$0xf]
    %v6995 = vld [vmem:[%s4 + $0x230] sm:$0xf]
    %v6996 = vld [vmem:[%s4 + $0x234] sm:$0xf]
    %v6997 = vld [vmem:[%s4 + $0x238] sm:$0xf]
    %v6998 = vld [vmem:[%s4 + $0x23c] sm:$0xf]
    %v7143 = vunpack.c.l.b16 %v6855
    %v7144 = vunpack.c.l.b16 %v6856
    %v7145 = vunpack.c.l.b16 %v6857
    %v7146 = vunpack.c.l.b16 %v6858
    %v7147 = vunpack.c.l.b16 %v6859
    %v7148 = vunpack.c.l.b16 %v6860
    %v7149 = vunpack.c.l.b16 %v6861
    %v7150 = vunpack.c.l.b16 %v6862
    %v7151 = vunpack.c.l.b16 %v6863
    %v7152 = vunpack.c.l.b16 %v6864
    %v7153 = vunpack.c.l.b16 %v6865
    %v7154 = vunpack.c.l.b16 %v6866
    %v7155 = vunpack.c.l.b16 %v6867
    %v7156 = vunpack.c.l.b16 %v6868
    %v7157 = vunpack.c.l.b16 %v6869
    %v7158 = vunpack.c.l.b16 %v6870
    %v7159 = vunpack.c.l.b16 %v6871
    %v7160 = vunpack.c.l.b16 %v6872
    %v7161 = vunpack.c.l.b16 %v6873
    %v7162 = vunpack.c.l.b16 %v6874
    %v7163 = vunpack.c.l.b16 %v6875
    %v7164 = vunpack.c.l.b16 %v6876
    %v7165 = vunpack.c.l.b16 %v6877
    %v7166 = vunpack.c.l.b16 %v6878
    %v7167 = vunpack.c.l.b16 %v6879
    %v7168 = vunpack.c.l.b16 %v6880
    %v7169 = vunpack.c.l.b16 %v6881
    %v7170 = vunpack.c.l.b16 %v6882
    %v7171 = vunpack.c.l.b16 %v6883
    %v7172 = vunpack.c.l.b16 %v6884
    %v7173 = vunpack.c.l.b16 %v6885
    %v7174 = vunpack.c.l.b16 %v6886
    %v7175 = vunpack.c.l.b16 %v6887
    %v7176 = vunpack.c.l.b16 %v6888
    %v7177 = vunpack.c.l.b16 %v6889
    %v7178 = vunpack.c.l.b16 %v6890
    %v7179 = vunpack.c.l.b16 %v6891
    %v7180 = vunpack.c.l.b16 %v6892
    %v7181 = vunpack.c.l.b16 %v6893
    %v7182 = vunpack.c.l.b16 %v6894
    %v7183 = vunpack.c.l.b16 %v6895
    %v7184 = vunpack.c.l.b16 %v6896
    %v7185 = vunpack.c.l.b16 %v6897
    %v7186 = vunpack.c.l.b16 %v6898
    %v7187 = vunpack.c.l.b16 %v6899
    %v7188 = vunpack.c.l.b16 %v6900
    %v7189 = vunpack.c.l.b16 %v6901
    %v7190 = vunpack.c.l.b16 %v6902
    %v7191 = vunpack.c.l.b16 %v6903
    %v7192 = vunpack.c.l.b16 %v6904
    %v7193 = vunpack.c.l.b16 %v6905
    %v7194 = vunpack.c.l.b16 %v6906
    %v7195 = vunpack.c.l.b16 %v6907
    %v7196 = vunpack.c.l.b16 %v6908
    %v7197 = vunpack.c.l.b16 %v6909
    %v7198 = vunpack.c.l.b16 %v6910
    %v7199 = vunpack.c.l.b16 %v6911
    %v7200 = vunpack.c.l.b16 %v6912
    %v7201 = vunpack.c.l.b16 %v6913
    %v7202 = vunpack.c.l.b16 %v6914
    %v7203 = vunpack.c.l.b16 %v6915
    %v7204 = vunpack.c.l.b16 %v6916
    %v7205 = vunpack.c.l.b16 %v6917
    %v7206 = vunpack.c.l.b16 %v6918
    %v7207 = vunpack.c.l.b16 %v6919
    %v7208 = vunpack.c.l.b16 %v6920
    %v7209 = vunpack.c.l.b16 %v6921
    %v7210 = vunpack.c.l.b16 %v6922
    %v7211 = vunpack.c.l.b16 %v6923
    %v7212 = vunpack.c.l.b16 %v6924
    %v7213 = vunpack.c.l.b16 %v6925
    %v7214 = vunpack.c.l.b16 %v6926
    %v7215 = vunpack.c.l.b16 %v6927
    %v7216 = vunpack.c.l.b16 %v6928
    %v7217 = vunpack.c.l.b16 %v6929
    %v7218 = vunpack.c.l.b16 %v6930
    %v7219 = vunpack.c.l.b16 %v6931
    %v7220 = vunpack.c.l.b16 %v6932
    %v7221 = vunpack.c.l.b16 %v6933
    %v7222 = vunpack.c.l.b16 %v6934
    %v7223 = vunpack.c.l.b16 %v6935
    %v7224 = vunpack.c.l.b16 %v6936
    %v7225 = vunpack.c.l.b16 %v6937
    %v7226 = vunpack.c.l.b16 %v6938
    %v7227 = vunpack.c.l.b16 %v6939
    %v7228 = vunpack.c.l.b16 %v6940
    %v7229 = vunpack.c.l.b16 %v6941
    %v7230 = vunpack.c.l.b16 %v6942
    %v7231 = vunpack.c.l.b16 %v6943
    %v7232 = vunpack.c.l.b16 %v6944
    %v7233 = vunpack.c.l.b16 %v6945
    %v7234 = vunpack.c.l.b16 %v6946
    %v7235 = vunpack.c.l.b16 %v6947
    %v7236 = vunpack.c.l.b16 %v6948
    %v7237 = vunpack.c.l.b16 %v6949
    %v7238 = vunpack.c.l.b16 %v6950
    %v7239 = vunpack.c.l.b16 %v6951
    %v7240 = vunpack.c.l.b16 %v6952
    %v7241 = vunpack.c.l.b16 %v6953
    %v7242 = vunpack.c.l.b16 %v6954
    %v7243 = vunpack.c.l.b16 %v6955
    %v7244 = vunpack.c.l.b16 %v6956
    %v7245 = vunpack.c.l.b16 %v6957
    %v7246 = vunpack.c.l.b16 %v6958
    %v7247 = vunpack.c.l.b16 %v6959
    %v7248 = vunpack.c.l.b16 %v6960
    %v7249 = vunpack.c.l.b16 %v6961
    %v7250 = vunpack.c.l.b16 %v6962
    %v7251 = vunpack.c.l.b16 %v6963
    %v7252 = vunpack.c.l.b16 %v6964
    %v7253 = vunpack.c.l.b16 %v6965
    %v7254 = vunpack.c.l.b16 %v6966
    %v7255 = vunpack.c.l.b16 %v6967
    %v7256 = vunpack.c.l.b16 %v6968
    %v7257 = vunpack.c.l.b16 %v6969
    %v7258 = vunpack.c.l.b16 %v6970
    %v7259 = vunpack.c.l.b16 %v6971
    %v7260 = vunpack.c.l.b16 %v6972
    %v7261 = vunpack.c.l.b16 %v6973
    %v7262 = vunpack.c.l.b16 %v6974
    %v7263 = vunpack.c.l.b16 %v6975
    %v7264 = vunpack.c.l.b16 %v6976
    %v7265 = vunpack.c.l.b16 %v6977
    %v7266 = vunpack.c.l.b16 %v6978
    %v7267 = vunpack.c.l.b16 %v6979
    %v7268 = vunpack.c.l.b16 %v6980
    %v7269 = vunpack.c.l.b16 %v6981
    %v7270 = vunpack.c.l.b16 %v6982
    %v7271 = vunpack.c.l.b16 %v6983
    %v7272 = vunpack.c.l.b16 %v6984
    %v7273 = vunpack.c.l.b16 %v6985
    %v7274 = vunpack.c.l.b16 %v6986
    %v7275 = vunpack.c.l.b16 %v6987
    %v7276 = vunpack.c.l.b16 %v6988
    %v7277 = vunpack.c.l.b16 %v6989
    %v7278 = vunpack.c.l.b16 %v6990
    %v7279 = vunpack.c.l.b16 %v6991
    %v7280 = vunpack.c.l.b16 %v6992
    %v7281 = vunpack.c.l.b16 %v6993
    %v7282 = vunpack.c.l.b16 %v6994
    %v7283 = vunpack.c.l.b16 %v6995
    %v7284 = vunpack.c.l.b16 %v6996
    %v7285 = vunpack.c.l.b16 %v6997
    %v7286 = vunpack.c.l.b16 %v6998
    %v7287 = vpack.c.b16 %v7144, %v7143
    %v7288 = vpack.c.b16 %v7146, %v7145
    %v7289 = vpack.c.b16 %v7148, %v7147
    %v7290 = vpack.c.b16 %v7150, %v7149
    %v7291 = vpack.c.b16 %v7152, %v7151
    %v7292 = vpack.c.b16 %v7154, %v7153
    %v7293 = vpack.c.b16 %v7156, %v7155
    %v7294 = vpack.c.b16 %v7158, %v7157
    %v7295 = vpack.c.b16 %v7160, %v7159
    %v7296 = vpack.c.b16 %v7162, %v7161
    %v7297 = vpack.c.b16 %v7164, %v7163
    %v7298 = vpack.c.b16 %v7166, %v7165
    %v7299 = vpack.c.b16 %v7168, %v7167
    %v7300 = vpack.c.b16 %v7170, %v7169
    %v7301 = vpack.c.b16 %v7172, %v7171
    %v7302 = vpack.c.b16 %v7174, %v7173
    %v7303 = vpack.c.b16 %v7176, %v7175
    %v7304 = vpack.c.b16 %v7178, %v7177
    %v7305 = vpack.c.b16 %v7180, %v7179
    %v7306 = vpack.c.b16 %v7182, %v7181
    %v7307 = vpack.c.b16 %v7184, %v7183
    %v7308 = vpack.c.b16 %v7186, %v7185
    %v7309 = vpack.c.b16 %v7188, %v7187
    %v7310 = vpack.c.b16 %v7190, %v7189
    %v7311 = vpack.c.b16 %v7192, %v7191
    %v7312 = vpack.c.b16 %v7194, %v7193
    %v7313 = vpack.c.b16 %v7196, %v7195
    %v7314 = vpack.c.b16 %v7198, %v7197
    %v7315 = vpack.c.b16 %v7200, %v7199
    %v7316 = vpack.c.b16 %v7202, %v7201
    %v7317 = vpack.c.b16 %v7204, %v7203
    %v7318 = vpack.c.b16 %v7206, %v7205
    %v7319 = vpack.c.b16 %v7208, %v7207
    %v7320 = vpack.c.b16 %v7210, %v7209
    %v7321 = vpack.c.b16 %v7212, %v7211
    %v7322 = vpack.c.b16 %v7214, %v7213
    %v7323 = vpack.c.b16 %v7216, %v7215
    %v7324 = vpack.c.b16 %v7218, %v7217
    %v7325 = vpack.c.b16 %v7220, %v7219
    %v7326 = vpack.c.b16 %v7222, %v7221
    %v7327 = vpack.c.b16 %v7224, %v7223
    %v7328 = vpack.c.b16 %v7226, %v7225
    %v7329 = vpack.c.b16 %v7228, %v7227
    %v7330 = vpack.c.b16 %v7230, %v7229
    %v7331 = vpack.c.b16 %v7232, %v7231
    %v7332 = vpack.c.b16 %v7234, %v7233
    %v7333 = vpack.c.b16 %v7236, %v7235
    %v7334 = vpack.c.b16 %v7238, %v7237
    %v7335 = vpack.c.b16 %v7240, %v7239
    %v7336 = vpack.c.b16 %v7242, %v7241
    %v7337 = vpack.c.b16 %v7244, %v7243
    %v7338 = vpack.c.b16 %v7246, %v7245
    %v7339 = vpack.c.b16 %v7248, %v7247
    %v7340 = vpack.c.b16 %v7250, %v7249
    %v7341 = vpack.c.b16 %v7252, %v7251
    %v7342 = vpack.c.b16 %v7254, %v7253
    %v7343 = vpack.c.b16 %v7256, %v7255
    %v7344 = vpack.c.b16 %v7258, %v7257
    %v7345 = vpack.c.b16 %v7260, %v7259
    %v7346 = vpack.c.b16 %v7262, %v7261
    %v7347 = vpack.c.b16 %v7264, %v7263
    %v7348 = vpack.c.b16 %v7266, %v7265
    %v7349 = vpack.c.b16 %v7268, %v7267
    %v7350 = vpack.c.b16 %v7270, %v7269
    %v7351 = vpack.c.b16 %v7272, %v7271
    %v7352 = vpack.c.b16 %v7274, %v7273
    %v7353 = vpack.c.b16 %v7276, %v7275
    %v7354 = vpack.c.b16 %v7278, %v7277
    %v7355 = vpack.c.b16 %v7280, %v7279
    %v7356 = vpack.c.b16 %v7282, %v7281
    %v7357 = vpack.c.b16 %v7284, %v7283
    %v7358 = vpack.c.b16 %v7286, %v7285
    %7431 = vmatprep.subr.bf16.mxu0 0
    %7432 = vmatpush1.bf16.msra.mxu0 %v7294
    %7433 = vmatprep.subr.bf16.mxu0 0
    %7434 = vmatpush1.bf16.msra.mxu0 %v7293
    %7435 = vmatprep.subr.bf16.mxu0 0
    %7436 = vmatpush1.bf16.msra.mxu0 %v7292
    %7437 = vmatprep.subr.bf16.mxu0 0
    %7438 = vmatpush1.bf16.msra.mxu0 %v7291
    %7439 = vmatprep.subr.bf16.mxu0 0
    %7440 = vmatpush1.bf16.msra.mxu0 %v7290
    %7441 = vmatprep.subr.bf16.mxu0 0
    %7442 = vmatpush1.bf16.msra.mxu0 %v7289
    %7443 = vmatprep.subr.bf16.mxu0 0
    %7444 = vmatpush1.bf16.msra.mxu0 %v7288
    %7445 = vmatprep.subr.bf16.mxu0 0
    %7446 = vmatpush1.bf16.msra.mxu0 %v7287
    %7447 = vmatprep.subr.bf16.mxu0 0
    %7448 = vmatpush2.bf16.msra.mxu0 %v7302
    %7449 = vmatprep.subr.bf16.mxu0 0
    %7450 = vmatpush2.bf16.msra.mxu0 %v7301
    %7451 = vmatprep.subr.bf16.mxu0 0
    %7452 = vmatpush2.bf16.msra.mxu0 %v7300
    %7453 = vmatprep.subr.bf16.mxu0 0
    %7454 = vmatpush2.bf16.msra.mxu0 %v7299
    %7455 = vmatprep.subr.bf16.mxu0 0
    %7456 = vmatpush2.bf16.msra.mxu0 %v7298
    %7457 = vmatprep.subr.bf16.mxu0 0
    %7458 = vmatpush2.bf16.msra.mxu0 %v7297
    %7459 = vmatprep.subr.bf16.mxu0 0
    %7460 = vmatpush2.bf16.msra.mxu0 %v7296
    %7461 = vmatprep.subr.bf16.mxu0 0
    %7462 = vmatpush2.bf16.msra.mxu0 %v7295
    %7463 = vmatprep.mubr.bf16.mxu0 %v6802
    %7464 = vmatmul.mubr.bf16.gmra.mxu0 %v6801
    %v7465 = vpop.f32.mrf.mxu0
    %v7466 = vadd.f32 0.0, %v7465
    %v7467 = vpop.f32.mrf.mxu0
    %v7468 = vpop.f32.mrf.mxu0
    %v7469 = vadd.f32 0.0, %v7468
    %v7470 = vpop.f32.mrf.mxu0
    %7471 = vmatprep.mubr.bf16.mxu0 %v6808
    %7472 = vmatmul.mubr.bf16.gmra.mxu0 %v6807
    %v7473 = vpop.f32.mrf.mxu0
    %v7474 = vadd.f32 0.0, %v7473
    %v7475 = vpop.f32.mrf.mxu0
    %v7476 = vpop.f32.mrf.mxu0
    %v7477 = vadd.f32 0.0, %v7476
    %v7478 = vpop.f32.mrf.mxu0
    %7479 = vmatprep.mubr.bf16.mxu0 %v6814
    %7480 = vmatmul.mubr.bf16.gmra.mxu0 %v6813
    %v7481 = vpop.f32.mrf.mxu0
    %v7482 = vadd.f32 0.0, %v7481
    %v7483 = vpop.f32.mrf.mxu0
    %v7484 = vpop.f32.mrf.mxu0
    %v7485 = vadd.f32 0.0, %v7484
    %v7486 = vpop.f32.mrf.mxu0
    %7487 = vmatprep.mubr.bf16.mxu0 %v6820
    %7488 = vmatmul.mubr.bf16.gmra.mxu0 %v6819
    %v7489 = vpop.f32.mrf.mxu0
    %v7490 = vadd.f32 0.0, %v7489
    %v7491 = vpop.f32.mrf.mxu0
    %v7492 = vpop.f32.mrf.mxu0
    %v7493 = vadd.f32 0.0, %v7492
    %v7494 = vpop.f32.mrf.mxu0
    %7495 = vmatprep.mubr.bf16.mxu0 %v6829
    %7496 = vmatmul.mubr.bf16.gmra.mxu0 %v6828
    %v7497 = vpop.f32.mrf.mxu0
    %v7498 = vadd.f32 0.0, %v7497
    %v7499 = vpop.f32.mrf.mxu0
    %v7500 = vpop.f32.mrf.mxu0
    %v7501 = vadd.f32 0.0, %v7500
    %v7502 = vpop.f32.mrf.mxu0
    %7503 = vmatprep.mubr.bf16.mxu0 %v6835
    %7504 = vmatmul.mubr.bf16.gmra.mxu0 %v6834
    %v7505 = vpop.f32.mrf.mxu0
    %v7506 = vadd.f32 0.0, %v7505
    %v7507 = vpop.f32.mrf.mxu0
    %v7508 = vpop.f32.mrf.mxu0
    %v7509 = vadd.f32 0.0, %v7508
    %v7510 = vpop.f32.mrf.mxu0
    %7511 = vmatprep.mubr.bf16.mxu0 %v6841
    %7512 = vmatmul.mubr.bf16.gmra.mxu0 %v6840
    %v7513 = vpop.f32.mrf.mxu0
    %v7514 = vadd.f32 0.0, %v7513
    %v7515 = vpop.f32.mrf.mxu0
    %v7516 = vpop.f32.mrf.mxu0
    %v7517 = vadd.f32 0.0, %v7516
    %v7518 = vpop.f32.mrf.mxu0
    %7519 = vmatprep.mubr.bf16.mxu0 %v6847
    %7520 = vmatmul.mubr.bf16.gmra.mxu0 %v6846
    %v7521 = vpop.f32.mrf.mxu0
    %v7522 = vadd.f32 0.0, %v7521
    %v7523 = vpop.f32.mrf.mxu0
    %v7524 = vpop.f32.mrf.mxu0
    %v7525 = vadd.f32 0.0, %v7524
    %v7526 = vpop.f32.mrf.mxu0
    %7527 = vdwg.mxu0
    %7528 = vmatprep.subr.bf16.mxu0 0
    %7529 = vmatpush1.bf16.msra.mxu0 %v7310
    %7530 = vmatprep.subr.bf16.mxu0 0
    %7531 = vmatpush1.bf16.msra.mxu0 %v7309
    %7532 = vmatprep.subr.bf16.mxu0 0
    %7533 = vmatpush1.bf16.msra.mxu0 %v7308
    %7534 = vmatprep.subr.bf16.mxu0 0
    %7535 = vmatpush1.bf16.msra.mxu0 %v7307
    %7536 = vmatprep.subr.bf16.mxu0 0
    %7537 = vmatpush1.bf16.msra.mxu0 %v7306
    %7538 = vmatprep.subr.bf16.mxu0 0
    %7539 = vmatpush1.bf16.msra.mxu0 %v7305
    %7540 = vmatprep.subr.bf16.mxu0 0
    %7541 = vmatpush1.bf16.msra.mxu0 %v7304
    %7542 = vmatprep.subr.bf16.mxu0 0
    %7543 = vmatpush1.bf16.msra.mxu0 %v7303
    %7544 = vmatprep.subr.bf16.mxu0 0
    %7545 = vmatpush2.bf16.msra.mxu0 %v7318
    %7546 = vmatprep.subr.bf16.mxu0 0
    %7547 = vmatpush2.bf16.msra.mxu0 %v7317
    %7548 = vmatprep.subr.bf16.mxu0 0
    %7549 = vmatpush2.bf16.msra.mxu0 %v7316
    %7550 = vmatprep.subr.bf16.mxu0 0
    %7551 = vmatpush2.bf16.msra.mxu0 %v7315
    %7552 = vmatprep.subr.bf16.mxu0 0
    %7553 = vmatpush2.bf16.msra.mxu0 %v7314
    %7554 = vmatprep.subr.bf16.mxu0 0
    %7555 = vmatpush2.bf16.msra.mxu0 %v7313
    %7556 = vmatprep.subr.bf16.mxu0 0
    %7557 = vmatpush2.bf16.msra.mxu0 %v7312
    %7558 = vmatprep.subr.bf16.mxu0 0
    %7559 = vmatpush2.bf16.msra.mxu0 %v7311
    %7560 = vmatprep.mubr.bf16.mxu0 %v6804
    %7561 = vmatmul.mubr.bf16.gmra.mxu0 %v6803
    %v7562 = vpop.f32.mrf.mxu0
    %v7563 = vadd.f32 %v7466, %v7562
    %v7564 = vpop.f32.mrf.mxu0
    %v7565 = vpop.f32.mrf.mxu0
    %v7566 = vadd.f32 %v7469, %v7565
    %v7567 = vpop.f32.mrf.mxu0
    %7568 = vmatprep.mubr.bf16.mxu0 %v6810
    %7569 = vmatmul.mubr.bf16.gmra.mxu0 %v6809
    %v7570 = vpop.f32.mrf.mxu0
    %v7571 = vadd.f32 %v7474, %v7570
    %v7572 = vpop.f32.mrf.mxu0
    %v7573 = vpop.f32.mrf.mxu0
    %v7574 = vadd.f32 %v7477, %v7573
    %v7575 = vpop.f32.mrf.mxu0
    %7576 = vmatprep.mubr.bf16.mxu0 %v6816
    %7577 = vmatmul.mubr.bf16.gmra.mxu0 %v6815
    %v7578 = vpop.f32.mrf.mxu0
    %v7579 = vadd.f32 %v7482, %v7578
    %v7580 = vpop.f32.mrf.mxu0
    %v7581 = vpop.f32.mrf.mxu0
    %v7582 = vadd.f32 %v7485, %v7581
    %v7583 = vpop.f32.mrf.mxu0
    %7584 = vmatprep.mubr.bf16.mxu0 %v6822
    %7585 = vmatmul.mubr.bf16.gmra.mxu0 %v6821
    %v7586 = vpop.f32.mrf.mxu0
    %v7587 = vadd.f32 %v7490, %v7586
    %v7588 = vpop.f32.mrf.mxu0
    %v7589 = vpop.f32.mrf.mxu0
    %v7590 = vadd.f32 %v7493, %v7589
    %v7591 = vpop.f32.mrf.mxu0
    %7592 = vmatprep.mubr.bf16.mxu0 %v6831
    %7593 = vmatmul.mubr.bf16.gmra.mxu0 %v6830
    %v7594 = vpop.f32.mrf.mxu0
    %v7595 = vadd.f32 %v7498, %v7594
    %v7596 = vpop.f32.mrf.mxu0
    %v7597 = vpop.f32.mrf.mxu0
    %v7598 = vadd.f32 %v7501, %v7597
    %v7599 = vpop.f32.mrf.mxu0
    %7600 = vmatprep.mubr.bf16.mxu0 %v6837
    %7601 = vmatmul.mubr.bf16.gmra.mxu0 %v6836
    %v7602 = vpop.f32.mrf.mxu0
    %v7603 = vadd.f32 %v7506, %v7602
    %v7604 = vpop.f32.mrf.mxu0
    %v7605 = vpop.f32.mrf.mxu0
    %v7606 = vadd.f32 %v7509, %v7605
    %v7607 = vpop.f32.mrf.mxu0
    %7608 = vmatprep.mubr.bf16.mxu0 %v6843
    %7609 = vmatmul.mubr.bf16.gmra.mxu0 %v6842
    %v7610 = vpop.f32.mrf.mxu0
    %v7611 = vadd.f32 %v7514, %v7610
    %v7612 = vpop.f32.mrf.mxu0
    %v7613 = vpop.f32.mrf.mxu0
    %v7614 = vadd.f32 %v7517, %v7613
    %v7615 = vpop.f32.mrf.mxu0
    %7616 = vmatprep.mubr.bf16.mxu0 %v6849
    %7617 = vmatmul.mubr.bf16.gmra.mxu0 %v6848
    %v7618 = vpop.f32.mrf.mxu0
    %v7619 = vadd.f32 %v7522, %v7618
    %v7620 = vpop.f32.mrf.mxu0
    %v7621 = vpop.f32.mrf.mxu0
    %v7622 = vadd.f32 %v7525, %v7621
    %v7623 = vpop.f32.mrf.mxu0
    %7624 = vdwg.mxu0
    %7625 = vmatprep.subr.bf16.mxu0 0
    %7626 = vmatpush1.bf16.msra.mxu0 %v7326
    %7627 = vmatprep.subr.bf16.mxu0 0
    %7628 = vmatpush1.bf16.msra.mxu0 %v7325
    %7629 = vmatprep.subr.bf16.mxu0 0
    %7630 = vmatpush1.bf16.msra.mxu0 %v7324
    %7631 = vmatprep.subr.bf16.mxu0 0
    %7632 = vmatpush1.bf16.msra.mxu0 %v7323
    %7633 = vmatprep.subr.bf16.mxu0 0
    %7634 = vmatpush1.bf16.msra.mxu0 %v7322
    %7635 = vmatprep.subr.bf16.mxu0 0
    %7636 = vmatpush1.bf16.msra.mxu0 %v7321
    %7637 = vmatprep.subr.bf16.mxu0 0
    %7638 = vmatpush1.bf16.msra.mxu0 %v7320
    %7639 = vmatprep.subr.bf16.mxu0 0
    %7640 = vmatpush1.bf16.msra.mxu0 %v7319
    %7641 = vmatprep.subr.bf16.mxu0 0
    %7642 = vmatpush2.bf16.msra.mxu0 %v7334
    %7643 = vmatprep.subr.bf16.mxu0 0
    %7644 = vmatpush2.bf16.msra.mxu0 %v7333
    %7645 = vmatprep.subr.bf16.mxu0 0
    %7646 = vmatpush2.bf16.msra.mxu0 %v7332
    %7647 = vmatprep.subr.bf16.mxu0 0
    %7648 = vmatpush2.bf16.msra.mxu0 %v7331
    %7649 = vmatprep.subr.bf16.mxu0 0
    %7650 = vmatpush2.bf16.msra.mxu0 %v7330
    %7651 = vmatprep.subr.bf16.mxu0 0
    %7652 = vmatpush2.bf16.msra.mxu0 %v7329
    %7653 = vmatprep.subr.bf16.mxu0 0
    %7654 = vmatpush2.bf16.msra.mxu0 %v7328
    %7655 = vmatprep.subr.bf16.mxu0 0
    %7656 = vmatpush2.bf16.msra.mxu0 %v7327
    %7657 = vmatprep.mubr.bf16.mxu0 %v6806
    %7658 = vmatmul.mubr.bf16.gmra.mxu0 %v6805
    %v7659 = vpop.f32.mrf.mxu0
    %v7660 = vadd.f32 %v7563, %v7659
    %v7661 = vpop.f32.mrf.mxu0
    %v7662 = vpop.f32.mrf.mxu0
    %v7663 = vadd.f32 %v7566, %v7662
    %v7664 = vpop.f32.mrf.mxu0
    %7665 = vmatprep.mubr.bf16.mxu0 %v6812
    %7666 = vmatmul.mubr.bf16.gmra.mxu0 %v6811
    %v7667 = vpop.f32.mrf.mxu0
    %v7668 = vadd.f32 %v7571, %v7667
    %v7669 = vpop.f32.mrf.mxu0
    %v7670 = vpop.f32.mrf.mxu0
    %v7671 = vadd.f32 %v7574, %v7670
    %v7672 = vpop.f32.mrf.mxu0
    %7673 = vmatprep.mubr.bf16.mxu0 %v6818
    %7674 = vmatmul.mubr.bf16.gmra.mxu0 %v6817
    %v7675 = vpop.f32.mrf.mxu0
    %v7676 = vadd.f32 %v7579, %v7675
    %v7677 = vpop.f32.mrf.mxu0
    %v7678 = vpop.f32.mrf.mxu0
    %v7679 = vadd.f32 %v7582, %v7678
    %v7680 = vpop.f32.mrf.mxu0
    %7681 = vmatprep.mubr.bf16.mxu0 %v6824
    %7682 = vmatmul.mubr.bf16.gmra.mxu0 %v6823
    %v7683 = vpop.f32.mrf.mxu0
    %v7684 = vadd.f32 %v7587, %v7683
    %v7685 = vpop.f32.mrf.mxu0
    %v7686 = vpop.f32.mrf.mxu0
    %v7687 = vadd.f32 %v7590, %v7686
    %v7688 = vpop.f32.mrf.mxu0
    %7689 = vmatprep.mubr.bf16.mxu0 %v6833
    %7690 = vmatmul.mubr.bf16.gmra.mxu0 %v6832
    %v7691 = vpop.f32.mrf.mxu0
    %v7692 = vadd.f32 %v7595, %v7691
    %v7693 = vpop.f32.mrf.mxu0
    %v7694 = vpop.f32.mrf.mxu0
    %v7695 = vadd.f32 %v7598, %v7694
    %v7696 = vpop.f32.mrf.mxu0
    %7697 = vmatprep.mubr.bf16.mxu0 %v6839
    %7698 = vmatmul.mubr.bf16.gmra.mxu0 %v6838
    %v7699 = vpop.f32.mrf.mxu0
    %v7700 = vadd.f32 %v7603, %v7699
    %v7701 = vpop.f32.mrf.mxu0
    %v7702 = vpop.f32.mrf.mxu0
    %v7703 = vadd.f32 %v7606, %v7702
    %v7704 = vpop.f32.mrf.mxu0
    %7705 = vmatprep.mubr.bf16.mxu0 %v6845
    %7706 = vmatmul.mubr.bf16.gmra.mxu0 %v6844
    %v7707 = vpop.f32.mrf.mxu0
    %v7708 = vadd.f32 %v7611, %v7707
    %v7709 = vpop.f32.mrf.mxu0
    %v7710 = vpop.f32.mrf.mxu0
    %v7711 = vadd.f32 %v7614, %v7710
    %v7712 = vpop.f32.mrf.mxu0
    %7713 = vmatprep.mubr.bf16.mxu0 %v6851
    %7714 = vmatmul.mubr.bf16.gmra.mxu0 %v6850
    %v7715 = vpop.f32.mrf.mxu0
    %v7716 = vadd.f32 %v7619, %v7715
    %v7717 = vpop.f32.mrf.mxu0
    %v7718 = vpop.f32.mrf.mxu0
    %v7719 = vadd.f32 %v7622, %v7718
    %v7720 = vpop.f32.mrf.mxu0
    %7721 = vdwg.mxu0
    %7722 = vmatprep.subr.bf16.mxu0 0
    %7723 = vmatpush1.bf16.msra.mxu0 %v7342
    %7724 = vmatprep.subr.bf16.mxu0 0
    %7725 = vmatpush1.bf16.msra.mxu0 %v7341
    %7726 = vmatprep.subr.bf16.mxu0 0
    %7727 = vmatpush1.bf16.msra.mxu0 %v7340
    %7728 = vmatprep.subr.bf16.mxu0 0
    %7729 = vmatpush1.bf16.msra.mxu0 %v7339
    %7730 = vmatprep.subr.bf16.mxu0 0
    %7731 = vmatpush1.bf16.msra.mxu0 %v7338
    %7732 = vmatprep.subr.bf16.mxu0 0
    %7733 = vmatpush1.bf16.msra.mxu0 %v7337
    %7734 = vmatprep.subr.bf16.mxu0 0
    %7735 = vmatpush1.bf16.msra.mxu0 %v7336
    %7736 = vmatprep.subr.bf16.mxu0 0
    %7737 = vmatpush1.bf16.msra.mxu0 %v7335
    %7738 = vmatprep.subr.bf16.mxu0 0
    %7739 = vmatpush2.bf16.msra.mxu0 %v7350
    %7740 = vmatprep.subr.bf16.mxu0 0
    %7741 = vmatpush2.bf16.msra.mxu0 %v7349
    %7742 = vmatprep.subr.bf16.mxu0 0
    %7743 = vmatpush2.bf16.msra.mxu0 %v7348
    %7744 = vmatprep.subr.bf16.mxu0 0
    %7745 = vmatpush2.bf16.msra.mxu0 %v7347
    %7746 = vmatprep.subr.bf16.mxu0 0
    %7747 = vmatpush2.bf16.msra.mxu0 %v7346
    %7748 = vmatprep.subr.bf16.mxu0 0
    %7749 = vmatpush2.bf16.msra.mxu0 %v7345
    %7750 = vmatprep.subr.bf16.mxu0 0
    %7751 = vmatpush2.bf16.msra.mxu0 %v7344
    %7752 = vmatprep.subr.bf16.mxu0 0
    %7753 = vmatpush2.bf16.msra.mxu0 %v7343
    %7754 = vmatprep.mubr.bf16.mxu0 %v6808
    %7755 = vmatmul.mubr.bf16.gmra.mxu0 %v6807
    %v7756 = vpop.f32.mrf.mxu0
    %v7757 = vadd.f32 %v7660, %v7756
    %v7758 = vpop.f32.mrf.mxu0
    %v7759 = vpop.f32.mrf.mxu0
    %v7760 = vadd.f32 %v7663, %v7759
    %v7761 = vpop.f32.mrf.mxu0
    %7762 = vmatprep.mubr.bf16.mxu0 %v6814
    %7763 = vmatmul.mubr.bf16.gmra.mxu0 %v6813
    %v7764 = vpop.f32.mrf.mxu0
    %v7765 = vadd.f32 %v7668, %v7764
    %v7766 = vpop.f32.mrf.mxu0
    %v7767 = vpop.f32.mrf.mxu0
    %v7768 = vadd.f32 %v7671, %v7767
    %v7769 = vpop.f32.mrf.mxu0
    %7770 = vmatprep.mubr.bf16.mxu0 %v6820
    %7771 = vmatmul.mubr.bf16.gmra.mxu0 %v6819
    %v7772 = vpop.f32.mrf.mxu0
    %v7773 = vadd.f32 %v7676, %v7772
    %v7774 = vpop.f32.mrf.mxu0
    %v7775 = vpop.f32.mrf.mxu0
    %v7776 = vadd.f32 %v7679, %v7775
    %v7777 = vpop.f32.mrf.mxu0
    %7778 = vmatprep.mubr.bf16.mxu0 %v6826
    %7779 = vmatmul.mubr.bf16.gmra.mxu0 %v6825
    %v7780 = vpop.f32.mrf.mxu0
    %v7781 = vadd.f32 %v7684, %v7780
    %v7782 = vpop.f32.mrf.mxu0
    %v7783 = vpop.f32.mrf.mxu0
    %v7784 = vadd.f32 %v7687, %v7783
    %v7785 = vpop.f32.mrf.mxu0
    %7786 = vmatprep.mubr.bf16.mxu0 %v6835
    %7787 = vmatmul.mubr.bf16.gmra.mxu0 %v6834
    %v7788 = vpop.f32.mrf.mxu0
    %v7789 = vadd.f32 %v7692, %v7788
    %v7790 = vpop.f32.mrf.mxu0
    %v7791 = vpop.f32.mrf.mxu0
    %v7792 = vadd.f32 %v7695, %v7791
    %v7793 = vpop.f32.mrf.mxu0
    %7794 = vmatprep.mubr.bf16.mxu0 %v6841
    %7795 = vmatmul.mubr.bf16.gmra.mxu0 %v6840
    %v7796 = vpop.f32.mrf.mxu0
    %v7797 = vadd.f32 %v7700, %v7796
    %v7798 = vpop.f32.mrf.mxu0
    %v7799 = vpop.f32.mrf.mxu0
    %v7800 = vadd.f32 %v7703, %v7799
    %v7801 = vpop.f32.mrf.mxu0
    %7802 = vmatprep.mubr.bf16.mxu0 %v6847
    %7803 = vmatmul.mubr.bf16.gmra.mxu0 %v6846
    %v7804 = vpop.f32.mrf.mxu0
    %v7805 = vadd.f32 %v7708, %v7804
    %v7806 = vpop.f32.mrf.mxu0
    %v7807 = vpop.f32.mrf.mxu0
    %v7808 = vadd.f32 %v7711, %v7807
    %v7809 = vpop.f32.mrf.mxu0
    %7810 = vmatprep.mubr.bf16.mxu0 %v6853
    %7811 = vmatmul.mubr.bf16.gmra.mxu0 %v6852
    %v7812 = vpop.f32.mrf.mxu0
    %v7813 = vadd.f32 %v7716, %v7812
    %v7814 = vpop.f32.mrf.mxu0
    %v7815 = vpop.f32.mrf.mxu0
    %v7816 = vadd.f32 %v7719, %v7815
    %v7817 = vpop.f32.mrf.mxu0
    %7818 = vdwg.mxu0
    %7819 = vmatprep.subr.bf16.mxu0 0
    %7820 = vmatpush1.bf16.msra.mxu0 %v7358
    %7821 = vmatprep.subr.bf16.mxu0 0
    %7822 = vmatpush1.bf16.msra.mxu0 %v7357
    %7823 = vmatprep.subr.bf16.mxu0 0
    %7824 = vmatpush1.bf16.msra.mxu0 %v7356
    %7825 = vmatprep.subr.bf16.mxu0 0
    %7826 = vmatpush1.bf16.msra.mxu0 %v7355
    %7827 = vmatprep.subr.bf16.mxu0 0
    %7828 = vmatpush1.bf16.msra.mxu0 %v7354
    %7829 = vmatprep.subr.bf16.mxu0 0
    %7830 = vmatpush1.bf16.msra.mxu0 %v7353
    %7831 = vmatprep.subr.bf16.mxu0 0
    %7832 = vmatpush1.bf16.msra.mxu0 %v7352
    %7833 = vmatprep.subr.bf16.mxu0 0
    %7834 = vmatpush1.bf16.msra.mxu0 %v7351
    %7835 = vmatprep.subr.bf16.mxu0 0
    %7836 = vmatpush2.bf16.msra.mxu0 0
    %7837 = vmatprep.subr.bf16.mxu0 0
    %7838 = vmatpush2.bf16.msra.mxu0 0
    %7839 = vmatprep.subr.bf16.mxu0 0
    %7840 = vmatpush2.bf16.msra.mxu0 0
    %7841 = vmatprep.subr.bf16.mxu0 0
    %7842 = vmatpush2.bf16.msra.mxu0 0
    %7843 = vmatprep.subr.bf16.mxu0 0
    %7844 = vmatpush2.bf16.msra.mxu0 0
    %7845 = vmatprep.subr.bf16.mxu0 0
    %7846 = vmatpush2.bf16.msra.mxu0 0
    %7847 = vmatprep.subr.bf16.mxu0 0
    %7848 = vmatpush2.bf16.msra.mxu0 0
    %7849 = vmatprep.subr.bf16.mxu0 0
    %7850 = vmatpush2.bf16.msra.mxu0 0
    %7851 = vmatprep.mubr.bf16.mxu0 0
    %7852 = vmatmul.mubr.bf16.gmra.mxu0 %v6809
    %v7853 = vpop.f32.mrf.mxu0
    %v7854 = vadd.f32 %v7757, %v7853
    %v7855 = vpop.f32.mrf.mxu0
    %v7856 = vpop.f32.mrf.mxu0
    %v7857 = vadd.f32 %v7760, %v7856
    %v7858 = vpop.f32.mrf.mxu0
    %7859 = vmatprep.mubr.bf16.mxu0 0
    %7860 = vmatmul.mubr.bf16.gmra.mxu0 %v6815
    %v7861 = vpop.f32.mrf.mxu0
    %v7862 = vadd.f32 %v7765, %v7861
    %v7863 = vpop.f32.mrf.mxu0
    %v7864 = vpop.f32.mrf.mxu0
    %v7865 = vadd.f32 %v7768, %v7864
    %v7866 = vpop.f32.mrf.mxu0
    %7867 = vmatprep.mubr.bf16.mxu0 0
    %7868 = vmatmul.mubr.bf16.gmra.mxu0 %v6821
    %v7869 = vpop.f32.mrf.mxu0
    %v7870 = vadd.f32 %v7773, %v7869
    %v7871 = vpop.f32.mrf.mxu0
    %v7872 = vpop.f32.mrf.mxu0
    %v7873 = vadd.f32 %v7776, %v7872
    %v7874 = vpop.f32.mrf.mxu0
    %7875 = vmatprep.mubr.bf16.mxu0 0
    %7876 = vmatmul.mubr.bf16.gmra.mxu0 %v6827
    %v7877 = vpop.f32.mrf.mxu0
    %v7878 = vadd.f32 %v7781, %v7877
    %v7879 = vpop.f32.mrf.mxu0
    %v7880 = vpop.f32.mrf.mxu0
    %v7881 = vadd.f32 %v7784, %v7880
    %v7882 = vpop.f32.mrf.mxu0
    %7883 = vmatprep.mubr.bf16.mxu0 0
    %7884 = vmatmul.mubr.bf16.gmra.mxu0 %v6836
    %v7885 = vpop.f32.mrf.mxu0
    %v7886 = vadd.f32 %v7789, %v7885
    %v7887 = vpop.f32.mrf.mxu0
    %v7888 = vpop.f32.mrf.mxu0
    %v7889 = vadd.f32 %v7792, %v7888
    %v7890 = vpop.f32.mrf.mxu0
    %7891 = vmatprep.mubr.bf16.mxu0 0
    %7892 = vmatmul.mubr.bf16.gmra.mxu0 %v6842
    %v7893 = vpop.f32.mrf.mxu0
    %v7894 = vadd.f32 %v7797, %v7893
    %v7895 = vpop.f32.mrf.mxu0
    %v7896 = vpop.f32.mrf.mxu0
    %v7897 = vadd.f32 %v7800, %v7896
    %v7898 = vpop.f32.mrf.mxu0
    %7899 = vmatprep.mubr.bf16.mxu0 0
    %7900 = vmatmul.mubr.bf16.gmra.mxu0 %v6848
    %v7901 = vpop.f32.mrf.mxu0
    %v7902 = vadd.f32 %v7805, %v7901
    %v7903 = vpop.f32.mrf.mxu0
    %v7904 = vpop.f32.mrf.mxu0
    %v7905 = vadd.f32 %v7808, %v7904
    %v7906 = vpop.f32.mrf.mxu0
    %7907 = vmatprep.mubr.bf16.mxu0 0
    %7908 = vmatmul.mubr.bf16.gmra.mxu0 %v6854
    %v7909 = vpop.f32.mrf.mxu0
    %v7910 = vadd.f32 %v7813, %v7909
    %v7911 = vpop.f32.mrf.mxu0
    %v7912 = vpop.f32.mrf.mxu0
    %v7913 = vadd.f32 %v7816, %v7912
    %v7914 = vpop.f32.mrf.mxu0
    %7915 = vdwg.mxu0
    %v7916 = vld [vmem:[%s5] sm:$0x1]
    %v7918 = vlaneseq
    %v7919 = vshrl.u32 %v7918, 7
    %v7920 = vsub.s32 0, %v7919
    %v7921 = vrot.slane %v7916, %v7920
    %v7923 = vmul.f32 %v7854, %v7921
    %v7924 = vmul.f32 %v7857, %v7921
    %v7925 = vmul.f32 %v7862, %v7921
    %v7926 = vmul.f32 %v7865, %v7921
    %v7927 = vmul.f32 %v7870, %v7921
    %v7928 = vmul.f32 %v7873, %v7921
    %v7929 = vmul.f32 %v7878, %v7921
    %v7930 = vmul.f32 %v7881, %v7921
    %v7931 = vmul.f32 %v7886, %v7921
    %v7932 = vmul.f32 %v7889, %v7921
    %v7933 = vmul.f32 %v7894, %v7921
    %v7934 = vmul.f32 %v7897, %v7921
    %v7935 = vmul.f32 %v7902, %v7921
    %v7936 = vmul.f32 %v7905, %v7921
    %v7937 = vmul.f32 %v7910, %v7921
    %v7938 = vmul.f32 %v7913, %v7921
    %v7939 = vld [vmem:[%s6] sm:$0x1]
    %v7941 = vlaneseq
    %v7942 = vshrl.u32 %v7941, 7
    %v7943 = vsub.s32 0, %v7942
    %v7944 = vrot.slane %v7939, %v7943
    %v7946 = vadd.f32 %v7923, %v7944
    %v7947 = vadd.f32 %v7924, %v7944
    %v7948 = vadd.f32 %v7925, %v7944
    %v7949 = vadd.f32 %v7926, %v7944
    %v7950 = vadd.f32 %v7927, %v7944
    %v7951 = vadd.f32 %v7928, %v7944
    %v7952 = vadd.f32 %v7929, %v7944
    %v7953 = vadd.f32 %v7930, %v7944
    %v7954 = vadd.f32 %v7931, %v7944
    %v7955 = vadd.f32 %v7932, %v7944
    %v7956 = vadd.f32 %v7933, %v7944
    %v7957 = vadd.f32 %v7934, %v7944
    %v7958 = vadd.f32 %v7935, %v7944
    %v7959 = vadd.f32 %v7936, %v7944
    %v7960 = vadd.f32 %v7937, %v7944
    %v7961 = vadd.f32 %v7938, %v7944
    %v7962 = vmax.f32 %v7946, 0.0
    %v7963 = vmax.f32 %v7947, 0.0
    %v7964 = vmax.f32 %v7948, 0.0
    %v7965 = vmax.f32 %v7949, 0.0
    %v7966 = vmax.f32 %v7950, 0.0
    %v7967 = vmax.f32 %v7951, 0.0
    %v7968 = vmax.f32 %v7952, 0.0
    %v7969 = vmax.f32 %v7953, 0.0
    %v7970 = vmax.f32 %v7954, 0.0
    %v7971 = vmax.f32 %v7955, 0.0
    %v7972 = vmax.f32 %v7956, 0.0
    %v7973 = vmax.f32 %v7957, 0.0
    %v7974 = vmax.f32 %v7958, 0.0
    %v7975 = vmax.f32 %v7959, 0.0
    %v7976 = vmax.f32 %v7960, 0.0
    %v7977 = vmax.f32 %v7961, 0.0
    %v7994 = vcombine.high %v7962, %v7962
    %v7996 = vunpack.c.l.s4 1983009808
    %v7997 = vunpack.c.0.s8 %v7996
    %v7998 = vlaneseq
    %v7999 = vshrl.u32 %v7998, 7
    %v8000 = vsub.s32 %v7997, %v7999
    %v8001 = vrot.slane %v7962, %v8000
    %v8003 = vunpack.c.l.s4 1983009808
    %v8004 = vunpack.c.0.s8 %v8003
    %v8005 = vlaneseq
    %v8006 = vshrl.u32 %v8005, 7
    %v8007 = vsub.s32 %v8004, %v8006
    %v8008 = vrot.slane %v7994, %v8007
    %v8009 = vcombine.high %v8001, %v8001
    %v8010 = vcombine.high %v8008, %v8008
    %v8011 = vcombine.high %v7963, %v7963
    %v8013 = vunpack.c.l.s4 1983009808
    %v8014 = vunpack.c.0.s8 %v8013
    %v8015 = vlaneseq
    %v8016 = vshrl.u32 %v8015, 7
    %v8017 = vsub.s32 %v8014, %v8016
    %v8018 = vrot.slane %v7963, %v8017
    %v8020 = vunpack.c.l.s4 1983009808
    %v8021 = vunpack.c.0.s8 %v8020
    %v8022 = vlaneseq
    %v8023 = vshrl.u32 %v8022, 7
    %v8024 = vsub.s32 %v8021, %v8023
    %v8025 = vrot.slane %v8011, %v8024
    %v8026 = vcombine.high %v8018, %v8018
    %v8027 = vcombine.high %v8025, %v8025
    %v8028 = vcombine.high %v7964, %v7964
    %v8030 = vunpack.c.l.s4 1983009808
    %v8031 = vunpack.c.0.s8 %v8030
    %v8032 = vlaneseq
    %v8033 = vshrl.u32 %v8032, 7
    %v8034 = vsub.s32 %v8031, %v8033
    %v8035 = vrot.slane %v7964, %v8034
    %v8037 = vunpack.c.l.s4 1983009808
    %v8038 = vunpack.c.0.s8 %v8037
    %v8039 = vlaneseq
    %v8040 = vshrl.u32 %v8039, 7
    %v8041 = vsub.s32 %v8038, %v8040
    %v8042 = vrot.slane %v8028, %v8041
    %v8043 = vcombine.high %v8035, %v8035
    %v8044 = vcombine.high %v8042, %v8042
    %v8045 = vcombine.high %v7965, %v7965
    %v8047 = vunpack.c.l.s4 1983009808
    %v8048 = vunpack.c.0.s8 %v8047
    %v8049 = vlaneseq
    %v8050 = vshrl.u32 %v8049, 7
    %v8051 = vsub.s32 %v8048, %v8050
    %v8052 = vrot.slane %v7965, %v8051
    %v8054 = vunpack.c.l.s4 1983009808
    %v8055 = vunpack.c.0.s8 %v8054
    %v8056 = vlaneseq
    %v8057 = vshrl.u32 %v8056, 7
    %v8058 = vsub.s32 %v8055, %v8057
    %v8059 = vrot.slane %v8045, %v8058
    %v8060 = vcombine.high %v8052, %v8052
    %v8061 = vcombine.high %v8059, %v8059
    %v8062 = vcombine.high %v7966, %v7966
    %v8064 = vunpack.c.l.s4 1983009808
    %v8065 = vunpack.c.0.s8 %v8064
    %v8066 = vlaneseq
    %v8067 = vshrl.u32 %v8066, 7
    %v8068 = vsub.s32 %v8065, %v8067
    %v8069 = vrot.slane %v7966, %v8068
    %v8071 = vunpack.c.l.s4 1983009808
    %v8072 = vunpack.c.0.s8 %v8071
    %v8073 = vlaneseq
    %v8074 = vshrl.u32 %v8073, 7
    %v8075 = vsub.s32 %v8072, %v8074
    %v8076 = vrot.slane %v8062, %v8075
    %v8077 = vcombine.high %v8069, %v8069
    %v8078 = vcombine.high %v8076, %v8076
    %v8079 = vcombine.high %v7967, %v7967
    %v8081 = vunpack.c.l.s4 1983009808
    %v8082 = vunpack.c.0.s8 %v8081
    %v8083 = vlaneseq
    %v8084 = vshrl.u32 %v8083, 7
    %v8085 = vsub.s32 %v8082, %v8084
    %v8086 = vrot.slane %v7967, %v8085
    %v8088 = vunpack.c.l.s4 1983009808
    %v8089 = vunpack.c.0.s8 %v8088
    %v8090 = vlaneseq
    %v8091 = vshrl.u32 %v8090, 7
    %v8092 = vsub.s32 %v8089, %v8091
    %v8093 = vrot.slane %v8079, %v8092
    %v8094 = vcombine.high %v8086, %v8086
    %v8095 = vcombine.high %v8093, %v8093
    %v8096 = vcombine.high %v7968, %v7968
    %v8098 = vunpack.c.l.s4 1983009808
    %v8099 = vunpack.c.0.s8 %v8098
    %v8100 = vlaneseq
    %v8101 = vshrl.u32 %v8100, 7
    %v8102 = vsub.s32 %v8099, %v8101
    %v8103 = vrot.slane %v7968, %v8102
    %v8105 = vunpack.c.l.s4 1983009808
    %v8106 = vunpack.c.0.s8 %v8105
    %v8107 = vlaneseq
    %v8108 = vshrl.u32 %v8107, 7
    %v8109 = vsub.s32 %v8106, %v8108
    %v8110 = vrot.slane %v8096, %v8109
    %v8111 = vcombine.high %v8103, %v8103
    %v8112 = vcombine.high %v8110, %v8110
    %v8113 = vcombine.high %v7969, %v7969
    %v8115 = vunpack.c.l.s4 1983009808
    %v8116 = vunpack.c.0.s8 %v8115
    %v8117 = vlaneseq
    %v8118 = vshrl.u32 %v8117, 7
    %v8119 = vsub.s32 %v8116, %v8118
    %v8120 = vrot.slane %v7969, %v8119
    %v8122 = vunpack.c.l.s4 1983009808
    %v8123 = vunpack.c.0.s8 %v8122
    %v8124 = vlaneseq
    %v8125 = vshrl.u32 %v8124, 7
    %v8126 = vsub.s32 %v8123, %v8125
    %v8127 = vrot.slane %v8113, %v8126
    %v8128 = vcombine.high %v8120, %v8120
    %v8129 = vcombine.high %v8127, %v8127
    %v8130 = vcombine.high %v7970, %v7970
    %v8132 = vunpack.c.l.s4 1983009808
    %v8133 = vunpack.c.0.s8 %v8132
    %v8134 = vlaneseq
    %v8135 = vshrl.u32 %v8134, 7
    %v8136 = vsub.s32 %v8133, %v8135
    %v8137 = vrot.slane %v7970, %v8136
    %v8139 = vunpack.c.l.s4 1983009808
    %v8140 = vunpack.c.0.s8 %v8139
    %v8141 = vlaneseq
    %v8142 = vshrl.u32 %v8141, 7
    %v8143 = vsub.s32 %v8140, %v8142
    %v8144 = vrot.slane %v8130, %v8143
    %v8145 = vcombine.high %v8137, %v8137
    %v8146 = vcombine.high %v8144, %v8144
    %v8147 = vcombine.high %v7971, %v7971
    %v8149 = vunpack.c.l.s4 1983009808
    %v8150 = vunpack.c.0.s8 %v8149
    %v8151 = vlaneseq
    %v8152 = vshrl.u32 %v8151, 7
    %v8153 = vsub.s32 %v8150, %v8152
    %v8154 = vrot.slane %v7971, %v8153
    %v8156 = vunpack.c.l.s4 1983009808
    %v8157 = vunpack.c.0.s8 %v8156
    %v8158 = vlaneseq
    %v8159 = vshrl.u32 %v8158, 7
    %v8160 = vsub.s32 %v8157, %v8159
    %v8161 = vrot.slane %v8147, %v8160
    %v8162 = vcombine.high %v8154, %v8154
    %v8163 = vcombine.high %v8161, %v8161
    %v8164 = vcombine.high %v7972, %v7972
    %v8166 = vunpack.c.l.s4 1983009808
    %v8167 = vunpack.c.0.s8 %v8166
    %v8168 = vlaneseq
    %v8169 = vshrl.u32 %v8168, 7
    %v8170 = vsub.s32 %v8167, %v8169
    %v8171 = vrot.slane %v7972, %v8170
    %v8173 = vunpack.c.l.s4 1983009808
    %v8174 = vunpack.c.0.s8 %v8173
    %v8175 = vlaneseq
    %v8176 = vshrl.u32 %v8175, 7
    %v8177 = vsub.s32 %v8174, %v8176
    %v8178 = vrot.slane %v8164, %v8177
    %v8179 = vcombine.high %v8171, %v8171
    %v8180 = vcombine.high %v8178, %v8178
    %v8181 = vcombine.high %v7973, %v7973
    %v8183 = vunpack.c.l.s4 1983009808
    %v8184 = vunpack.c.0.s8 %v8183
    %v8185 = vlaneseq
    %v8186 = vshrl.u32 %v8185, 7
    %v8187 = vsub.s32 %v8184, %v8186
    %v8188 = vrot.slane %v7973, %v8187
    %v8190 = vunpack.c.l.s4 1983009808
    %v8191 = vunpack.c.0.s8 %v8190
    %v8192 = vlaneseq
    %v8193 = vshrl.u32 %v8192, 7
    %v8194 = vsub.s32 %v8191, %v8193
    %v8195 = vrot.slane %v8181, %v8194
    %v8196 = vcombine.high %v8188, %v8188
    %v8197 = vcombine.high %v8195, %v8195
    %v8198 = vcombine.high %v7974, %v7974
    %v8200 = vunpack.c.l.s4 1983009808
    %v8201 = vunpack.c.0.s8 %v8200
    %v8202 = vlaneseq
    %v8203 = vshrl.u32 %v8202, 7
    %v8204 = vsub.s32 %v8201, %v8203
    %v8205 = vrot.slane %v7974, %v8204
    %v8207 = vunpack.c.l.s4 1983009808
    %v8208 = vunpack.c.0.s8 %v8207
    %v8209 = vlaneseq
    %v8210 = vshrl.u32 %v8209, 7
    %v8211 = vsub.s32 %v8208, %v8210
    %v8212 = vrot.slane %v8198, %v8211
    %v8213 = vcombine.high %v8205, %v8205
    %v8214 = vcombine.high %v8212, %v8212
    %v8215 = vcombine.high %v7975, %v7975
    %v8217 = vunpack.c.l.s4 1983009808
    %v8218 = vunpack.c.0.s8 %v8217
    %v8219 = vlaneseq
    %v8220 = vshrl.u32 %v8219, 7
    %v8221 = vsub.s32 %v8218, %v8220
    %v8222 = vrot.slane %v7975, %v8221
    %v8224 = vunpack.c.l.s4 1983009808
    %v8225 = vunpack.c.0.s8 %v8224
    %v8226 = vlaneseq
    %v8227 = vshrl.u32 %v8226, 7
    %v8228 = vsub.s32 %v8225, %v8227
    %v8229 = vrot.slane %v8215, %v8228
    %v8230 = vcombine.high %v8222, %v8222
    %v8231 = vcombine.high %v8229, %v8229
    %v8232 = vcombine.high %v7976, %v7976
    %v8234 = vunpack.c.l.s4 1983009808
    %v8235 = vunpack.c.0.s8 %v8234
    %v8236 = vlaneseq
    %v8237 = vshrl.u32 %v8236, 7
    %v8238 = vsub.s32 %v8235, %v8237
    %v8239 = vrot.slane %v7976, %v8238
    %v8241 = vunpack.c.l.s4 1983009808
    %v8242 = vunpack.c.0.s8 %v8241
    %v8243 = vlaneseq
    %v8244 = vshrl.u32 %v8243, 7
    %v8245 = vsub.s32 %v8242, %v8244
    %v8246 = vrot.slane %v8232, %v8245
    %v8247 = vcombine.high %v8239, %v8239
    %v8248 = vcombine.high %v8246, %v8246
    %v8249 = vcombine.high %v7977, %v7977
    %v8251 = vunpack.c.l.s4 1983009808
    %v8252 = vunpack.c.0.s8 %v8251
    %v8253 = vlaneseq
    %v8254 = vshrl.u32 %v8253, 7
    %v8255 = vsub.s32 %v8252, %v8254
    %v8256 = vrot.slane %v7977, %v8255
    %v8258 = vunpack.c.l.s4 1983009808
    %v8259 = vunpack.c.0.s8 %v8258
    %v8260 = vlaneseq
    %v8261 = vshrl.u32 %v8260, 7
    %v8262 = vsub.s32 %v8259, %v8261
    %v8263 = vrot.slane %v8249, %v8262
    %v8264 = vcombine.high %v8256, %v8256
    %v8265 = vcombine.high %v8263, %v8263
    %v8330 = vrot.slane %v8001, 7
    %v8331 = vrot.slane %v8330, 2
    %v8332 = vrot.slane %v8009, 7
    %v8333 = vrot.slane %v8332, 2
    %v8334 = vrot.slane %v8008, 7
    %v8335 = vrot.slane %v8334, 2
    %v8336 = vrot.slane %v8010, 7
    %v8337 = vrot.slane %v8336, 2
    %v8338 = vrot.slane %v8018, 7
    %v8339 = vrot.slane %v8338, 2
    %v8340 = vrot.slane %v8026, 7
    %v8341 = vrot.slane %v8340, 2
    %v8342 = vrot.slane %v8025, 7
    %v8343 = vrot.slane %v8342, 2
    %v8344 = vrot.slane %v8027, 7
    %v8345 = vrot.slane %v8344, 2
    %v8346 = vrot.slane %v8035, 7
    %v8347 = vrot.slane %v8346, 2
    %v8348 = vrot.slane %v8043, 7
    %v8349 = vrot.slane %v8348, 2
    %v8350 = vrot.slane %v8042, 7
    %v8351 = vrot.slane %v8350, 2
    %v8352 = vrot.slane %v8044, 7
    %v8353 = vrot.slane %v8352, 2
    %v8354 = vrot.slane %v8052, 7
    %v8355 = vrot.slane %v8354, 2
    %v8356 = vrot.slane %v8060, 7
    %v8357 = vrot.slane %v8356, 2
    %v8358 = vrot.slane %v8059, 7
    %v8359 = vrot.slane %v8358, 2
    %v8360 = vrot.slane %v8061, 7
    %v8361 = vrot.slane %v8360, 2
    %v8362 = vrot.slane %v8069, 7
    %v8363 = vrot.slane %v8362, 2
    %v8364 = vrot.slane %v8077, 7
    %v8365 = vrot.slane %v8364, 2
    %v8366 = vrot.slane %v8076, 7
    %v8367 = vrot.slane %v8366, 2
    %v8368 = vrot.slane %v8078, 7
    %v8369 = vrot.slane %v8368, 2
    %v8370 = vrot.slane %v8086, 7
    %v8371 = vrot.slane %v8370, 2
    %v8372 = vrot.slane %v8094, 7
    %v8373 = vrot.slane %v8372, 2
    %v8374 = vrot.slane %v8093, 7
    %v8375 = vrot.slane %v8374, 2
    %v8376 = vrot.slane %v8095, 7
    %v8377 = vrot.slane %v8376, 2
    %v8378 = vrot.slane %v8103, 7
    %v8379 = vrot.slane %v8378, 2
    %v8380 = vrot.slane %v8111, 7
    %v8381 = vrot.slane %v8380, 2
    %v8382 = vrot.slane %v8110, 7
    %v8383 = vrot.slane %v8382, 2
    %v8384 = vrot.slane %v8112, 7
    %v8385 = vrot.slane %v8384, 2
    %v8386 = vrot.slane %v8120, 7
    %v8387 = vrot.slane %v8386, 2
    %v8388 = vrot.slane %v8128, 7
    %v8389 = vrot.slane %v8388, 2
    %v8390 = vrot.slane %v8127, 7
    %v8391 = vrot.slane %v8390, 2
    %v8392 = vrot.slane %v8129, 7
    %v8393 = vrot.slane %v8392, 2
    %v8394 = vrot.slane %v8137, 7
    %v8395 = vrot.slane %v8394, 2
    %v8396 = vrot.slane %v8145, 7
    %v8397 = vrot.slane %v8396, 2
    %v8398 = vrot.slane %v8144, 7
    %v8399 = vrot.slane %v8398, 2
    %v8400 = vrot.slane %v8146, 7
    %v8401 = vrot.slane %v8400, 2
    %v8402 = vrot.slane %v8154, 7
    %v8403 = vrot.slane %v8402, 2
    %v8404 = vrot.slane %v8162, 7
    %v8405 = vrot.slane %v8404, 2
    %v8406 = vrot.slane %v8161, 7
    %v8407 = vrot.slane %v8406, 2
    %v8408 = vrot.slane %v8163, 7
    %v8409 = vrot.slane %v8408, 2
    %v8410 = vrot.slane %v8171, 7
    %v8411 = vrot.slane %v8410, 2
    %v8412 = vrot.slane %v8179, 7
    %v8413 = vrot.slane %v8412, 2
    %v8414 = vrot.slane %v8178, 7
    %v8415 = vrot.slane %v8414, 2
    %v8416 = vrot.slane %v8180, 7
    %v8417 = vrot.slane %v8416, 2
    %v8418 = vrot.slane %v8188, 7
    %v8419 = vrot.slane %v8418, 2
    %v8420 = vrot.slane %v8196, 7
    %v8421 = vrot.slane %v8420, 2
    %v8422 = vrot.slane %v8195, 7
    %v8423 = vrot.slane %v8422, 2
    %v8424 = vrot.slane %v8197, 7
    %v8425 = vrot.slane %v8424, 2
    %v8426 = vrot.slane %v8205, 7
    %v8427 = vrot.slane %v8426, 2
    %v8428 = vrot.slane %v8213, 7
    %v8429 = vrot.slane %v8428, 2
    %v8430 = vrot.slane %v8212, 7
    %v8431 = vrot.slane %v8430, 2
    %v8432 = vrot.slane %v8214, 7
    %v8433 = vrot.slane %v8432, 2
    %v8434 = vrot.slane %v8222, 7
    %v8435 = vrot.slane %v8434, 2
    %v8436 = vrot.slane %v8230, 7
    %v8437 = vrot.slane %v8436, 2
    %v8438 = vrot.slane %v8229, 7
    %v8439 = vrot.slane %v8438, 2
    %v8440 = vrot.slane %v8231, 7
    %v8441 = vrot.slane %v8440, 2
    %v8442 = vrot.slane %v8239, 7
    %v8443 = vrot.slane %v8442, 2
    %v8444 = vrot.slane %v8247, 7
    %v8445 = vrot.slane %v8444, 2
    %v8446 = vrot.slane %v8246, 7
    %v8447 = vrot.slane %v8446, 2
    %v8448 = vrot.slane %v8248, 7
    %v8449 = vrot.slane %v8448, 2
    %v8450 = vrot.slane %v8256, 7
    %v8451 = vrot.slane %v8450, 2
    %v8452 = vrot.slane %v8264, 7
    %v8453 = vrot.slane %v8452, 2
    %v8454 = vrot.slane %v8263, 7
    %v8455 = vrot.slane %v8454, 2
    %v8456 = vrot.slane %v8265, 7
    %v8457 = vrot.slane %v8456, 2
    %v8522 = vmax.f32 %v8001, %v8331
    %v8523 = vmax.f32 %v8009, %v8333
    %v8524 = vmax.f32 %v8008, %v8335
    %v8525 = vmax.f32 %v8010, %v8337
    %v8526 = vmax.f32 %v8018, %v8339
    %v8527 = vmax.f32 %v8026, %v8341
    %v8528 = vmax.f32 %v8025, %v8343
    %v8529 = vmax.f32 %v8027, %v8345
    %v8530 = vmax.f32 %v8035, %v8347
    %v8531 = vmax.f32 %v8043, %v8349
    %v8532 = vmax.f32 %v8042, %v8351
    %v8533 = vmax.f32 %v8044, %v8353
    %v8534 = vmax.f32 %v8052, %v8355
    %v8535 = vmax.f32 %v8060, %v8357
    %v8536 = vmax.f32 %v8059, %v8359
    %v8537 = vmax.f32 %v8061, %v8361
    %v8538 = vmax.f32 %v8069, %v8363
    %v8539 = vmax.f32 %v8077, %v8365
    %v8540 = vmax.f32 %v8076, %v8367
    %v8541 = vmax.f32 %v8078, %v8369
    %v8542 = vmax.f32 %v8086, %v8371
    %v8543 = vmax.f32 %v8094, %v8373
    %v8544 = vmax.f32 %v8093, %v8375
    %v8545 = vmax.f32 %v8095, %v8377
    %v8546 = vmax.f32 %v8103, %v8379
    %v8547 = vmax.f32 %v8111, %v8381
    %v8548 = vmax.f32 %v8110, %v8383
    %v8549 = vmax.f32 %v8112, %v8385
    %v8550 = vmax.f32 %v8120, %v8387
    %v8551 = vmax.f32 %v8128, %v8389
    %v8552 = vmax.f32 %v8127, %v8391
    %v8553 = vmax.f32 %v8129, %v8393
    %v8554 = vmax.f32 %v8137, %v8395
    %v8555 = vmax.f32 %v8145, %v8397
    %v8556 = vmax.f32 %v8144, %v8399
    %v8557 = vmax.f32 %v8146, %v8401
    %v8558 = vmax.f32 %v8154, %v8403
    %v8559 = vmax.f32 %v8162, %v8405
    %v8560 = vmax.f32 %v8161, %v8407
    %v8561 = vmax.f32 %v8163, %v8409
    %v8562 = vmax.f32 %v8171, %v8411
    %v8563 = vmax.f32 %v8179, %v8413
    %v8564 = vmax.f32 %v8178, %v8415
    %v8565 = vmax.f32 %v8180, %v8417
    %v8566 = vmax.f32 %v8188, %v8419
    %v8567 = vmax.f32 %v8196, %v8421
    %v8568 = vmax.f32 %v8195, %v8423
    %v8569 = vmax.f32 %v8197, %v8425
    %v8570 = vmax.f32 %v8205, %v8427
    %v8571 = vmax.f32 %v8213, %v8429
    %v8572 = vmax.f32 %v8212, %v8431
    %v8573 = vmax.f32 %v8214, %v8433
    %v8574 = vmax.f32 %v8222, %v8435
    %v8575 = vmax.f32 %v8230, %v8437
    %v8576 = vmax.f32 %v8229, %v8439
    %v8577 = vmax.f32 %v8231, %v8441
    %v8578 = vmax.f32 %v8239, %v8443
    %v8579 = vmax.f32 %v8247, %v8445
    %v8580 = vmax.f32 %v8246, %v8447
    %v8581 = vmax.f32 %v8248, %v8449
    %v8582 = vmax.f32 %v8256, %v8451
    %v8583 = vmax.f32 %v8264, %v8453
    %v8584 = vmax.f32 %v8263, %v8455
    %v8585 = vmax.f32 %v8265, %v8457
    %v8586 = vmax.f32 %v8522, %v8526
    %v8587 = vmax.f32 %v8523, %v8527
    %v8588 = vmax.f32 %v8524, %v8528
    %v8589 = vmax.f32 %v8525, %v8529
    %v8590 = vmax.f32 %v8530, %v8534
    %v8591 = vmax.f32 %v8531, %v8535
    %v8592 = vmax.f32 %v8532, %v8536
    %v8593 = vmax.f32 %v8533, %v8537
    %v8594 = vmax.f32 %v8538, %v8542
    %v8595 = vmax.f32 %v8539, %v8543
    %v8596 = vmax.f32 %v8540, %v8544
    %v8597 = vmax.f32 %v8541, %v8545
    %v8598 = vmax.f32 %v8546, %v8550
    %v8599 = vmax.f32 %v8547, %v8551
    %v8600 = vmax.f32 %v8548, %v8552
    %v8601 = vmax.f32 %v8549, %v8553
    %v8602 = vmax.f32 %v8554, %v8558
    %v8603 = vmax.f32 %v8555, %v8559
    %v8604 = vmax.f32 %v8556, %v8560
    %v8605 = vmax.f32 %v8557, %v8561
    %v8606 = vmax.f32 %v8562, %v8566
    %v8607 = vmax.f32 %v8563, %v8567
    %v8608 = vmax.f32 %v8564, %v8568
    %v8609 = vmax.f32 %v8565, %v8569
    %v8610 = vmax.f32 %v8570, %v8574
    %v8611 = vmax.f32 %v8571, %v8575
    %v8612 = vmax.f32 %v8572, %v8576
    %v8613 = vmax.f32 %v8573, %v8577
    %v8614 = vmax.f32 %v8578, %v8582
    %v8615 = vmax.f32 %v8579, %v8583
    %v8616 = vmax.f32 %v8580, %v8584
    %v8617 = vmax.f32 %v8581, %v8585
    %v8650 = vlaneseq
    %v8651 = vshrl.u32 %v8650, 7
    %v8652 = vsub.s32 0, %v8651
    %v8653 = vrot.slane %v8586, %v8652
    %v8654 = vlaneseq
    %v8655 = vshrl.u32 %v8654, 7
    %v8656 = vsub.s32 0, %v8655
    %v8657 = vrot.slane %v8587, %v8656
    %v8658 = vlaneseq
    %v8659 = vshrl.u32 %v8658, 7
    %v8660 = vsub.s32 0, %v8659
    %v8661 = vrot.slane %v8588, %v8660
    %v8662 = vlaneseq
    %v8663 = vshrl.u32 %v8662, 7
    %v8664 = vsub.s32 0, %v8663
    %v8665 = vrot.slane %v8589, %v8664
    %v8666 = vlaneseq
    %v8667 = vshrl.u32 %v8666, 7
    %v8668 = vsub.s32 0, %v8667
    %v8669 = vrot.slane %v8590, %v8668
    %v8670 = vlaneseq
    %v8671 = vshrl.u32 %v8670, 7
    %v8672 = vsub.s32 0, %v8671
    %v8673 = vrot.slane %v8591, %v8672
    %v8674 = vlaneseq
    %v8675 = vshrl.u32 %v8674, 7
    %v8676 = vsub.s32 0, %v8675
    %v8677 = vrot.slane %v8592, %v8676
    %v8678 = vlaneseq
    %v8679 = vshrl.u32 %v8678, 7
    %v8680 = vsub.s32 0, %v8679
    %v8681 = vrot.slane %v8593, %v8680
    %v8682 = vlaneseq
    %v8683 = vshrl.u32 %v8682, 7
    %v8684 = vsub.s32 0, %v8683
    %v8685 = vrot.slane %v8594, %v8684
    %v8686 = vlaneseq
    %v8687 = vshrl.u32 %v8686, 7
    %v8688 = vsub.s32 0, %v8687
    %v8689 = vrot.slane %v8595, %v8688
    %v8690 = vlaneseq
    %v8691 = vshrl.u32 %v8690, 7
    %v8692 = vsub.s32 0, %v8691
    %v8693 = vrot.slane %v8596, %v8692
    %v8694 = vlaneseq
    %v8695 = vshrl.u32 %v8694, 7
    %v8696 = vsub.s32 0, %v8695
    %v8697 = vrot.slane %v8597, %v8696
    %v8698 = vlaneseq
    %v8699 = vshrl.u32 %v8698, 7
    %v8700 = vsub.s32 0, %v8699
    %v8701 = vrot.slane %v8598, %v8700
    %v8702 = vlaneseq
    %v8703 = vshrl.u32 %v8702, 7
    %v8704 = vsub.s32 0, %v8703
    %v8705 = vrot.slane %v8599, %v8704
    %v8706 = vlaneseq
    %v8707 = vshrl.u32 %v8706, 7
    %v8708 = vsub.s32 0, %v8707
    %v8709 = vrot.slane %v8600, %v8708
    %v8710 = vlaneseq
    %v8711 = vshrl.u32 %v8710, 7
    %v8712 = vsub.s32 0, %v8711
    %v8713 = vrot.slane %v8601, %v8712
    %v8714 = vlaneseq
    %v8715 = vshrl.u32 %v8714, 7
    %v8716 = vsub.s32 0, %v8715
    %v8717 = vrot.slane %v8602, %v8716
    %v8718 = vlaneseq
    %v8719 = vshrl.u32 %v8718, 7
    %v8720 = vsub.s32 0, %v8719
    %v8721 = vrot.slane %v8603, %v8720
    %v8722 = vlaneseq
    %v8723 = vshrl.u32 %v8722, 7
    %v8724 = vsub.s32 0, %v8723
    %v8725 = vrot.slane %v8604, %v8724
    %v8726 = vlaneseq
    %v8727 = vshrl.u32 %v8726, 7
    %v8728 = vsub.s32 0, %v8727
    %v8729 = vrot.slane %v8605, %v8728
    %v8730 = vlaneseq
    %v8731 = vshrl.u32 %v8730, 7
    %v8732 = vsub.s32 0, %v8731
    %v8733 = vrot.slane %v8606, %v8732
    %v8734 = vlaneseq
    %v8735 = vshrl.u32 %v8734, 7
    %v8736 = vsub.s32 0, %v8735
    %v8737 = vrot.slane %v8607, %v8736
    %v8738 = vlaneseq
    %v8739 = vshrl.u32 %v8738, 7
    %v8740 = vsub.s32 0, %v8739
    %v8741 = vrot.slane %v8608, %v8740
    %v8742 = vlaneseq
    %v8743 = vshrl.u32 %v8742, 7
    %v8744 = vsub.s32 0, %v8743
    %v8745 = vrot.slane %v8609, %v8744
    %v8746 = vlaneseq
    %v8747 = vshrl.u32 %v8746, 7
    %v8748 = vsub.s32 0, %v8747
    %v8749 = vrot.slane %v8610, %v8748
    %v8750 = vlaneseq
    %v8751 = vshrl.u32 %v8750, 7
    %v8752 = vsub.s32 0, %v8751
    %v8753 = vrot.slane %v8611, %v8752
    %v8754 = vlaneseq
    %v8755 = vshrl.u32 %v8754, 7
    %v8756 = vsub.s32 0, %v8755
    %v8757 = vrot.slane %v8612, %v8756
    %v8758 = vlaneseq
    %v8759 = vshrl.u32 %v8758, 7
    %v8760 = vsub.s32 0, %v8759
    %v8761 = vrot.slane %v8613, %v8760
    %v8762 = vlaneseq
    %v8763 = vshrl.u32 %v8762, 7
    %v8764 = vsub.s32 0, %v8763
    %v8765 = vrot.slane %v8614, %v8764
    %v8766 = vlaneseq
    %v8767 = vshrl.u32 %v8766, 7
    %v8768 = vsub.s32 0, %v8767
    %v8769 = vrot.slane %v8615, %v8768
    %v8770 = vlaneseq
    %v8771 = vshrl.u32 %v8770, 7
    %v8772 = vsub.s32 0, %v8771
    %v8773 = vrot.slane %v8616, %v8772
    %v8774 = vlaneseq
    %v8775 = vshrl.u32 %v8774, 7
    %v8776 = vsub.s32 0, %v8775
    %v8777 = vrot.slane %v8617, %v8776
    %v8778 = vsel %vm6475, %v8657, %v8653
    %v8779 = vsel %vm6477, %v8661, %v8778
    %v8780 = vsel %vm6479, %v8665, %v8779
    %v8781 = vsel %vm6475, %v8673, %v8669
    %v8782 = vsel %vm6477, %v8677, %v8781
    %v8783 = vsel %vm6479, %v8681, %v8782
    %v8784 = vsel %vm6475, %v8689, %v8685
    %v8785 = vsel %vm6477, %v8693, %v8784
    %v8786 = vsel %vm6479, %v8697, %v8785
    %v8787 = vsel %vm6475, %v8705, %v8701
    %v8788 = vsel %vm6477, %v8709, %v8787
    %v8789 = vsel %vm6479, %v8713, %v8788
    %v8790 = vsel %vm6475, %v8721, %v8717
    %v8791 = vsel %vm6477, %v8725, %v8790
    %v8792 = vsel %vm6479, %v8729, %v8791
    %v8793 = vsel %vm6475, %v8737, %v8733
    %v8794 = vsel %vm6477, %v8741, %v8793
    %v8795 = vsel %vm6479, %v8745, %v8794
    %v8796 = vsel %vm6475, %v8753, %v8749
    %v8797 = vsel %vm6477, %v8757, %v8796
    %v8798 = vsel %vm6479, %v8761, %v8797
    %v8799 = vsel %vm6475, %v8769, %v8765
    %v8800 = vsel %vm6477, %v8773, %v8799
    %v8801 = vsel %vm6479, %v8777, %v8800
    %v8810 = vsel %vm171, 0.0, %v8780
    %v8811 = vsel %vm171, 0.0, %v8783
    %v8812 = vsel %vm171, 0.0, %v8786
    %v8813 = vsel %vm171, 0.0, %v8789
    %v8814 = vsel %vm171, 0.0, %v8792
    %v8815 = vsel %vm171, 0.0, %v8795
    %v8816 = vsel %vm171, 0.0, %v8798
    %v8817 = vsel %vm171, 0.0, %v8801
    %vm8818 = vcmask 1044480
    %v8819 = vsel %vm8818, %v8810, 0.0
    %v8820 = vsel %vm8818, %v8811, 0.0
    %v8821 = vsel %vm8818, %v8812, 0.0
    %v8822 = vsel %vm8818, %v8813, 0.0
    %v8823 = vsel %vm8818, %v8814, 0.0
    %v8824 = vsel %vm8818, %v8815, 0.0
    %v8825 = vsel %vm8818, %v8816, 0.0
    %v8826 = vsel %vm8818, %v8817, 0.0
    %v8833 = vrot.slane %v8819, 1
    %v8834 = vrot.slane %v8820, 1
    %v8835 = vrot.slane %v8821, 1
    %v8836 = vrot.slane %v8823, 1
    %v8837 = vrot.slane %v8824, 1
    %v8838 = vrot.slane %v8825, 1
    %v8839 = vrot.slane %v8819, 2
    %v8840 = vrot.slane %v8820, 2
    %v8841 = vrot.slane %v8821, 2
    %v8842 = vrot.slane %v8823, 2
    %v8843 = vrot.slane %v8824, 2
    %v8844 = vrot.slane %v8825, 2
    %v8847 = vrot.slane %v8822, 1
    %v8848 = vrot.slane %v8826, 1
    %v8849 = vrot.slane %v8822, 2
    %v8850 = vrot.slane %v8826, 2
    %v8851 = vcombine.low 0.0, %v490
    %v8852 = vcombine.low %v704, %v8819
    %v8853 = vcombine.low %v8833, %v8839
    %v8854 = vcombine.low %v8820, %v8834
    %v8855 = vcombine.low %v8819, %v8833
    %v8856 = vcombine.low %v8839, %v8820
    %v8857 = vcombine.low %v8834, %v8840
    %v8858 = vcombine.low %v8821, %v8835
    %v8859 = vcombine.low %v8840, %v8821
    %v8860 = vcombine.low %v8835, %v8841
    %v8861 = vcombine.low %v8822, %v8847
    %v8862 = vcombine.low %v8841, %v8822
    %v8863 = vcombine.low %v8847, %v8849
    %v8864 = vcombine.low %v704, %v8823
    %v8865 = vcombine.low %v8836, %v8842
    %v8866 = vcombine.low %v8824, %v8837
    %v8867 = vcombine.low %v8823, %v8836
    %v8868 = vcombine.low %v8842, %v8824
    %v8869 = vcombine.low %v8837, %v8843
    %v8870 = vcombine.low %v8825, %v8838
    %v8871 = vcombine.low %v8843, %v8825
    %v8872 = vcombine.low %v8838, %v8844
    %v8873 = vcombine.low %v8826, %v8848
    %v8874 = vcombine.low %v8844, %v8826
    %v8875 = vcombine.low %v8848, %v8850
    %v8876 = vcombine.low %v8851, %v8855
    %v8877 = vcombine.high %v8851, %v8855
    %v8878 = vcombine.low %v8852, %v8856
    %v8879 = vcombine.high %v8852, %v8856
    %v8880 = vcombine.low %v8853, %v8857
    %v8881 = vcombine.high %v8853, %v8857
    %v8882 = vcombine.low %v8854, %v8858
    %v8883 = vcombine.high %v8854, %v8858
    %v8884 = vcombine.low %v8840, %v8841
    %v8885 = vcombine.low %v8859, %v8862
    %v8886 = vcombine.high %v8859, %v8862
    %v8887 = vcombine.low %v8860, %v8863
    %v8888 = vcombine.high %v8860, %v8863
    %v8889 = vcombine.low %v8861, %v8851
    %v8890 = vcombine.high %v8861, %v8851
    %v8891 = vcombine.low %v8849, %v704
    %v8892 = vcombine.low %v8851, %v8867
    %v8893 = vcombine.high %v8851, %v8867
    %v8894 = vcombine.low %v8864, %v8868
    %v8895 = vcombine.high %v8864, %v8868
    %v8896 = vcombine.low %v8865, %v8869
    %v8897 = vcombine.high %v8865, %v8869
    %v8898 = vcombine.low %v8866, %v8870
    %v8899 = vcombine.high %v8866, %v8870
    %v8900 = vcombine.low %v8843, %v8844
    %v8901 = vcombine.low %v8871, %v8874
    %v8902 = vcombine.high %v8871, %v8874
    %v8903 = vcombine.low %v8872, %v8875
    %v8904 = vcombine.high %v8872, %v8875
    %v8905 = vcombine.low %v8873, %v8851
    %v8906 = vcombine.high %v8873, %v8851
    %v8907 = vcombine.low %v8850, %v704
    %v8940 = vpack.c.bf16 %v8882, %v8876
    %v8941 = vpack.c.bf16 %v8883, %v8877
    %v8942 = vpack.c.bf16 %v8885, %v8878
    %v8943 = vpack.c.bf16 %v8886, %v8879
    %v8944 = vpack.c.bf16 %v8887, %v8880
    %v8945 = vpack.c.bf16 %v8888, %v8881
    %v8946 = vpack.c.bf16 %v8889, %v8882
    %v8947 = vpack.c.bf16 %v8890, %v8883
    %v8948 = vpack.c.bf16 %v8891, %v8884
    %v8949 = vpack.c.bf16 %v8898, %v8892
    %v8950 = vpack.c.bf16 %v8899, %v8893
    %v8951 = vpack.c.bf16 %v8901, %v8894
    %v8952 = vpack.c.bf16 %v8902, %v8895
    %v8953 = vpack.c.bf16 %v8903, %v8896
    %v8954 = vpack.c.bf16 %v8904, %v8897
    %v8955 = vpack.c.bf16 %v8905, %v8898
    %v8956 = vpack.c.bf16 %v8906, %v8899
    %v8957 = vpack.c.bf16 %v8907, %v8900
    %v8958 = vld [vmem:[%s7] sm:$0xf]
    %v8959 = vld [vmem:[%s7 + $0x4] sm:$0xf]
    %v8960 = vld [vmem:[%s7 + $0x8] sm:$0xf]
    %v8961 = vld [vmem:[%s7 + $0xc] sm:$0xf]
    %v8962 = vld [vmem:[%s7 + $0x10] sm:$0xf]
    %v8963 = vld [vmem:[%s7 + $0x14] sm:$0xf]
    %v8964 = vld [vmem:[%s7 + $0x18] sm:$0xf]
    %v8965 = vld [vmem:[%s7 + $0x1c] sm:$0xf]
    %v8966 = vld [vmem:[%s7 + $0x20] sm:$0xf]
    %v8967 = vld [vmem:[%s7 + $0x24] sm:$0xf]
    %v8968 = vld [vmem:[%s7 + $0x28] sm:$0xf]
    %v8969 = vld [vmem:[%s7 + $0x2c] sm:$0xf]
    %v8970 = vld [vmem:[%s7 + $0x30] sm:$0xf]
    %v8971 = vld [vmem:[%s7 + $0x34] sm:$0xf]
    %v8972 = vld [vmem:[%s7 + $0x38] sm:$0xf]
    %v8973 = vld [vmem:[%s7 + $0x3c] sm:$0xf]
    %v8974 = vld [vmem:[%s7 + $0x40] sm:$0xf]
    %v8975 = vld [vmem:[%s7 + $0x44] sm:$0xf]
    %v8976 = vld [vmem:[%s7 + $0x48] sm:$0xf]
    %v8977 = vld [vmem:[%s7 + $0x4c] sm:$0xf]
    %v8978 = vld [vmem:[%s7 + $0x50] sm:$0xf]
    %v8979 = vld [vmem:[%s7 + $0x54] sm:$0xf]
    %v8980 = vld [vmem:[%s7 + $0x58] sm:$0xf]
    %v8981 = vld [vmem:[%s7 + $0x5c] sm:$0xf]
    %v8982 = vld [vmem:[%s7 + $0x60] sm:$0xf]
    %v8983 = vld [vmem:[%s7 + $0x64] sm:$0xf]
    %v8984 = vld [vmem:[%s7 + $0x68] sm:$0xf]
    %v8985 = vld [vmem:[%s7 + $0x6c] sm:$0xf]
    %v8986 = vld [vmem:[%s7 + $0x70] sm:$0xf]
    %v8987 = vld [vmem:[%s7 + $0x74] sm:$0xf]
    %v8988 = vld [vmem:[%s7 + $0x78] sm:$0xf]
    %v8989 = vld [vmem:[%s7 + $0x7c] sm:$0xf]
    %v8990 = vld [vmem:[%s7 + $0x80] sm:$0xf]
    %v8991 = vld [vmem:[%s7 + $0x84] sm:$0xf]
    %v8992 = vld [vmem:[%s7 + $0x88] sm:$0xf]
    %v8993 = vld [vmem:[%s7 + $0x8c] sm:$0xf]
    %v8994 = vld [vmem:[%s7 + $0x90] sm:$0xf]
    %v8995 = vld [vmem:[%s7 + $0x94] sm:$0xf]
    %v8996 = vld [vmem:[%s7 + $0x98] sm:$0xf]
    %v8997 = vld [vmem:[%s7 + $0x9c] sm:$0xf]
    %v8998 = vld [vmem:[%s7 + $0xa0] sm:$0xf]
    %v8999 = vld [vmem:[%s7 + $0xa4] sm:$0xf]
    %v9000 = vld [vmem:[%s7 + $0xa8] sm:$0xf]
    %v9001 = vld [vmem:[%s7 + $0xac] sm:$0xf]
    %v9002 = vld [vmem:[%s7 + $0xb0] sm:$0xf]
    %v9003 = vld [vmem:[%s7 + $0xb4] sm:$0xf]
    %v9004 = vld [vmem:[%s7 + $0xb8] sm:$0xf]
    %v9005 = vld [vmem:[%s7 + $0xbc] sm:$0xf]
    %v9006 = vld [vmem:[%s7 + $0xc0] sm:$0xf]
    %v9007 = vld [vmem:[%s7 + $0xc4] sm:$0xf]
    %v9008 = vld [vmem:[%s7 + $0xc8] sm:$0xf]
    %v9009 = vld [vmem:[%s7 + $0xcc] sm:$0xf]
    %v9010 = vld [vmem:[%s7 + $0xd0] sm:$0xf]
    %v9011 = vld [vmem:[%s7 + $0xd4] sm:$0xf]
    %v9012 = vld [vmem:[%s7 + $0xd8] sm:$0xf]
    %v9013 = vld [vmem:[%s7 + $0xdc] sm:$0xf]
    %v9014 = vld [vmem:[%s7 + $0xe0] sm:$0xf]
    %v9015 = vld [vmem:[%s7 + $0xe4] sm:$0xf]
    %v9016 = vld [vmem:[%s7 + $0xe8] sm:$0xf]
    %v9017 = vld [vmem:[%s7 + $0xec] sm:$0xf]
    %v9018 = vld [vmem:[%s7 + $0xf0] sm:$0xf]
    %v9019 = vld [vmem:[%s7 + $0xf4] sm:$0xf]
    %v9020 = vld [vmem:[%s7 + $0xf8] sm:$0xf]
    %v9021 = vld [vmem:[%s7 + $0xfc] sm:$0xf]
    %v9022 = vld [vmem:[%s7 + $0x100] sm:$0xf]
    %v9023 = vld [vmem:[%s7 + $0x104] sm:$0xf]
    %v9024 = vld [vmem:[%s7 + $0x108] sm:$0xf]
    %v9025 = vld [vmem:[%s7 + $0x10c] sm:$0xf]
    %v9026 = vld [vmem:[%s7 + $0x110] sm:$0xf]
    %v9027 = vld [vmem:[%s7 + $0x114] sm:$0xf]
    %v9028 = vld [vmem:[%s7 + $0x118] sm:$0xf]
    %v9029 = vld [vmem:[%s7 + $0x11c] sm:$0xf]
    %v9030 = vld [vmem:[%s7 + $0x120] sm:$0xf]
    %v9031 = vld [vmem:[%s7 + $0x124] sm:$0xf]
    %v9032 = vld [vmem:[%s7 + $0x128] sm:$0xf]
    %v9033 = vld [vmem:[%s7 + $0x12c] sm:$0xf]
    %v9034 = vld [vmem:[%s7 + $0x130] sm:$0xf]
    %v9035 = vld [vmem:[%s7 + $0x134] sm:$0xf]
    %v9036 = vld [vmem:[%s7 + $0x138] sm:$0xf]
    %v9037 = vld [vmem:[%s7 + $0x13c] sm:$0xf]
    %v9038 = vld [vmem:[%s7 + $0x140] sm:$0xf]
    %v9039 = vld [vmem:[%s7 + $0x144] sm:$0xf]
    %v9040 = vld [vmem:[%s7 + $0x148] sm:$0xf]
    %v9041 = vld [vmem:[%s7 + $0x14c] sm:$0xf]
    %v9042 = vld [vmem:[%s7 + $0x150] sm:$0xf]
    %v9043 = vld [vmem:[%s7 + $0x154] sm:$0xf]
    %v9044 = vld [vmem:[%s7 + $0x158] sm:$0xf]
    %v9045 = vld [vmem:[%s7 + $0x15c] sm:$0xf]
    %v9046 = vld [vmem:[%s7 + $0x160] sm:$0xf]
    %v9047 = vld [vmem:[%s7 + $0x164] sm:$0xf]
    %v9048 = vld [vmem:[%s7 + $0x168] sm:$0xf]
    %v9049 = vld [vmem:[%s7 + $0x16c] sm:$0xf]
    %v9050 = vld [vmem:[%s7 + $0x170] sm:$0xf]
    %v9051 = vld [vmem:[%s7 + $0x174] sm:$0xf]
    %v9052 = vld [vmem:[%s7 + $0x178] sm:$0xf]
    %v9053 = vld [vmem:[%s7 + $0x17c] sm:$0xf]
    %v9054 = vld [vmem:[%s7 + $0x180] sm:$0xf]
    %v9055 = vld [vmem:[%s7 + $0x184] sm:$0xf]
    %v9056 = vld [vmem:[%s7 + $0x188] sm:$0xf]
    %v9057 = vld [vmem:[%s7 + $0x18c] sm:$0xf]
    %v9058 = vld [vmem:[%s7 + $0x190] sm:$0xf]
    %v9059 = vld [vmem:[%s7 + $0x194] sm:$0xf]
    %v9060 = vld [vmem:[%s7 + $0x198] sm:$0xf]
    %v9061 = vld [vmem:[%s7 + $0x19c] sm:$0xf]
    %v9062 = vld [vmem:[%s7 + $0x1a0] sm:$0xf]
    %v9063 = vld [vmem:[%s7 + $0x1a4] sm:$0xf]
    %v9064 = vld [vmem:[%s7 + $0x1a8] sm:$0xf]
    %v9065 = vld [vmem:[%s7 + $0x1ac] sm:$0xf]
    %v9066 = vld [vmem:[%s7 + $0x1b0] sm:$0xf]
    %v9067 = vld [vmem:[%s7 + $0x1b4] sm:$0xf]
    %v9068 = vld [vmem:[%s7 + $0x1b8] sm:$0xf]
    %v9069 = vld [vmem:[%s7 + $0x1bc] sm:$0xf]
    %v9070 = vld [vmem:[%s7 + $0x1c0] sm:$0xf]
    %v9071 = vld [vmem:[%s7 + $0x1c4] sm:$0xf]
    %v9072 = vld [vmem:[%s7 + $0x1c8] sm:$0xf]
    %v9073 = vld [vmem:[%s7 + $0x1cc] sm:$0xf]
    %v9074 = vld [vmem:[%s7 + $0x1d0] sm:$0xf]
    %v9075 = vld [vmem:[%s7 + $0x1d4] sm:$0xf]
    %v9076 = vld [vmem:[%s7 + $0x1d8] sm:$0xf]
    %v9077 = vld [vmem:[%s7 + $0x1dc] sm:$0xf]
    %v9078 = vld [vmem:[%s7 + $0x1e0] sm:$0xf]
    %v9079 = vld [vmem:[%s7 + $0x1e4] sm:$0xf]
    %v9080 = vld [vmem:[%s7 + $0x1e8] sm:$0xf]
    %v9081 = vld [vmem:[%s7 + $0x1ec] sm:$0xf]
    %v9082 = vld [vmem:[%s7 + $0x1f0] sm:$0xf]
    %v9083 = vld [vmem:[%s7 + $0x1f4] sm:$0xf]
    %v9084 = vld [vmem:[%s7 + $0x1f8] sm:$0xf]
    %v9085 = vld [vmem:[%s7 + $0x1fc] sm:$0xf]
    %v9086 = vld [vmem:[%s7 + $0x200] sm:$0xf]
    %v9087 = vld [vmem:[%s7 + $0x204] sm:$0xf]
    %v9088 = vld [vmem:[%s7 + $0x208] sm:$0xf]
    %v9089 = vld [vmem:[%s7 + $0x20c] sm:$0xf]
    %v9090 = vld [vmem:[%s7 + $0x210] sm:$0xf]
    %v9091 = vld [vmem:[%s7 + $0x214] sm:$0xf]
    %v9092 = vld [vmem:[%s7 + $0x218] sm:$0xf]
    %v9093 = vld [vmem:[%s7 + $0x21c] sm:$0xf]
    %v9094 = vld [vmem:[%s7 + $0x220] sm:$0xf]
    %v9095 = vld [vmem:[%s7 + $0x224] sm:$0xf]
    %v9096 = vld [vmem:[%s7 + $0x228] sm:$0xf]
    %v9097 = vld [vmem:[%s7 + $0x22c] sm:$0xf]
    %v9098 = vld [vmem:[%s7 + $0x230] sm:$0xf]
    %v9099 = vld [vmem:[%s7 + $0x234] sm:$0xf]
    %v9100 = vld [vmem:[%s7 + $0x238] sm:$0xf]
    %v9101 = vld [vmem:[%s7 + $0x23c] sm:$0xf]
    %v9246 = vunpack.c.l.b16 %v8958
    %v9247 = vunpack.c.l.b16 %v8959
    %v9248 = vunpack.c.l.b16 %v8960
    %v9249 = vunpack.c.l.b16 %v8961
    %v9250 = vunpack.c.l.b16 %v8962
    %v9251 = vunpack.c.l.b16 %v8963
    %v9252 = vunpack.c.l.b16 %v8964
    %v9253 = vunpack.c.l.b16 %v8965
    %v9254 = vunpack.c.l.b16 %v8966
    %v9255 = vunpack.c.l.b16 %v8967
    %v9256 = vunpack.c.l.b16 %v8968
    %v9257 = vunpack.c.l.b16 %v8969
    %v9258 = vunpack.c.l.b16 %v8970
    %v9259 = vunpack.c.l.b16 %v8971
    %v9260 = vunpack.c.l.b16 %v8972
    %v9261 = vunpack.c.l.b16 %v8973
    %v9262 = vunpack.c.l.b16 %v8974
    %v9263 = vunpack.c.l.b16 %v8975
    %v9264 = vunpack.c.l.b16 %v8976
    %v9265 = vunpack.c.l.b16 %v8977
    %v9266 = vunpack.c.l.b16 %v8978
    %v9267 = vunpack.c.l.b16 %v8979
    %v9268 = vunpack.c.l.b16 %v8980
    %v9269 = vunpack.c.l.b16 %v8981
    %v9270 = vunpack.c.l.b16 %v8982
    %v9271 = vunpack.c.l.b16 %v8983
    %v9272 = vunpack.c.l.b16 %v8984
    %v9273 = vunpack.c.l.b16 %v8985
    %v9274 = vunpack.c.l.b16 %v8986
    %v9275 = vunpack.c.l.b16 %v8987
    %v9276 = vunpack.c.l.b16 %v8988
    %v9277 = vunpack.c.l.b16 %v8989
    %v9278 = vunpack.c.l.b16 %v8990
    %v9279 = vunpack.c.l.b16 %v8991
    %v9280 = vunpack.c.l.b16 %v8992
    %v9281 = vunpack.c.l.b16 %v8993
    %v9282 = vunpack.c.l.b16 %v8994
    %v9283 = vunpack.c.l.b16 %v8995
    %v9284 = vunpack.c.l.b16 %v8996
    %v9285 = vunpack.c.l.b16 %v8997
    %v9286 = vunpack.c.l.b16 %v8998
    %v9287 = vunpack.c.l.b16 %v8999
    %v9288 = vunpack.c.l.b16 %v9000
    %v9289 = vunpack.c.l.b16 %v9001
    %v9290 = vunpack.c.l.b16 %v9002
    %v9291 = vunpack.c.l.b16 %v9003
    %v9292 = vunpack.c.l.b16 %v9004
    %v9293 = vunpack.c.l.b16 %v9005
    %v9294 = vunpack.c.l.b16 %v9006
    %v9295 = vunpack.c.l.b16 %v9007
    %v9296 = vunpack.c.l.b16 %v9008
    %v9297 = vunpack.c.l.b16 %v9009
    %v9298 = vunpack.c.l.b16 %v9010
    %v9299 = vunpack.c.l.b16 %v9011
    %v9300 = vunpack.c.l.b16 %v9012
    %v9301 = vunpack.c.l.b16 %v9013
    %v9302 = vunpack.c.l.b16 %v9014
    %v9303 = vunpack.c.l.b16 %v9015
    %v9304 = vunpack.c.l.b16 %v9016
    %v9305 = vunpack.c.l.b16 %v9017
    %v9306 = vunpack.c.l.b16 %v9018
    %v9307 = vunpack.c.l.b16 %v9019
    %v9308 = vunpack.c.l.b16 %v9020
    %v9309 = vunpack.c.l.b16 %v9021
    %v9310 = vunpack.c.l.b16 %v9022
    %v9311 = vunpack.c.l.b16 %v9023
    %v9312 = vunpack.c.l.b16 %v9024
    %v9313 = vunpack.c.l.b16 %v9025
    %v9314 = vunpack.c.l.b16 %v9026
    %v9315 = vunpack.c.l.b16 %v9027
    %v9316 = vunpack.c.l.b16 %v9028
    %v9317 = vunpack.c.l.b16 %v9029
    %v9318 = vunpack.c.l.b16 %v9030
    %v9319 = vunpack.c.l.b16 %v9031
    %v9320 = vunpack.c.l.b16 %v9032
    %v9321 = vunpack.c.l.b16 %v9033
    %v9322 = vunpack.c.l.b16 %v9034
    %v9323 = vunpack.c.l.b16 %v9035
    %v9324 = vunpack.c.l.b16 %v9036
    %v9325 = vunpack.c.l.b16 %v9037
    %v9326 = vunpack.c.l.b16 %v9038
    %v9327 = vunpack.c.l.b16 %v9039
    %v9328 = vunpack.c.l.b16 %v9040
    %v9329 = vunpack.c.l.b16 %v9041
    %v9330 = vunpack.c.l.b16 %v9042
    %v9331 = vunpack.c.l.b16 %v9043
    %v9332 = vunpack.c.l.b16 %v9044
    %v9333 = vunpack.c.l.b16 %v9045
    %v9334 = vunpack.c.l.b16 %v9046
    %v9335 = vunpack.c.l.b16 %v9047
    %v9336 = vunpack.c.l.b16 %v9048
    %v9337 = vunpack.c.l.b16 %v9049
    %v9338 = vunpack.c.l.b16 %v9050
    %v9339 = vunpack.c.l.b16 %v9051
    %v9340 = vunpack.c.l.b16 %v9052
    %v9341 = vunpack.c.l.b16 %v9053
    %v9342 = vunpack.c.l.b16 %v9054
    %v9343 = vunpack.c.l.b16 %v9055
    %v9344 = vunpack.c.l.b16 %v9056
    %v9345 = vunpack.c.l.b16 %v9057
    %v9346 = vunpack.c.l.b16 %v9058
    %v9347 = vunpack.c.l.b16 %v9059
    %v9348 = vunpack.c.l.b16 %v9060
    %v9349 = vunpack.c.l.b16 %v9061
    %v9350 = vunpack.c.l.b16 %v9062
    %v9351 = vunpack.c.l.b16 %v9063
    %v9352 = vunpack.c.l.b16 %v9064
    %v9353 = vunpack.c.l.b16 %v9065
    %v9354 = vunpack.c.l.b16 %v9066
    %v9355 = vunpack.c.l.b16 %v9067
    %v9356 = vunpack.c.l.b16 %v9068
    %v9357 = vunpack.c.l.b16 %v9069
    %v9358 = vunpack.c.l.b16 %v9070
    %v9359 = vunpack.c.l.b16 %v9071
    %v9360 = vunpack.c.l.b16 %v9072
    %v9361 = vunpack.c.l.b16 %v9073
    %v9362 = vunpack.c.l.b16 %v9074
    %v9363 = vunpack.c.l.b16 %v9075
    %v9364 = vunpack.c.l.b16 %v9076
    %v9365 = vunpack.c.l.b16 %v9077
    %v9366 = vunpack.c.l.b16 %v9078
    %v9367 = vunpack.c.l.b16 %v9079
    %v9368 = vunpack.c.l.b16 %v9080
    %v9369 = vunpack.c.l.b16 %v9081
    %v9370 = vunpack.c.l.b16 %v9082
    %v9371 = vunpack.c.l.b16 %v9083
    %v9372 = vunpack.c.l.b16 %v9084
    %v9373 = vunpack.c.l.b16 %v9085
    %v9374 = vunpack.c.l.b16 %v9086
    %v9375 = vunpack.c.l.b16 %v9087
    %v9376 = vunpack.c.l.b16 %v9088
    %v9377 = vunpack.c.l.b16 %v9089
    %v9378 = vunpack.c.l.b16 %v9090
    %v9379 = vunpack.c.l.b16 %v9091
    %v9380 = vunpack.c.l.b16 %v9092
    %v9381 = vunpack.c.l.b16 %v9093
    %v9382 = vunpack.c.l.b16 %v9094
    %v9383 = vunpack.c.l.b16 %v9095
    %v9384 = vunpack.c.l.b16 %v9096
    %v9385 = vunpack.c.l.b16 %v9097
    %v9386 = vunpack.c.l.b16 %v9098
    %v9387 = vunpack.c.l.b16 %v9099
    %v9388 = vunpack.c.l.b16 %v9100
    %v9389 = vunpack.c.l.b16 %v9101
    %v9390 = vpack.c.b16 %v9247, %v9246
    %v9391 = vpack.c.b16 %v9249, %v9248
    %v9392 = vpack.c.b16 %v9251, %v9250
    %v9393 = vpack.c.b16 %v9253, %v9252
    %v9394 = vpack.c.b16 %v9255, %v9254
    %v9395 = vpack.c.b16 %v9257, %v9256
    %v9396 = vpack.c.b16 %v9259, %v9258
    %v9397 = vpack.c.b16 %v9261, %v9260
    %v9398 = vpack.c.b16 %v9263, %v9262
    %v9399 = vpack.c.b16 %v9265, %v9264
    %v9400 = vpack.c.b16 %v9267, %v9266
    %v9401 = vpack.c.b16 %v9269, %v9268
    %v9402 = vpack.c.b16 %v9271, %v9270
    %v9403 = vpack.c.b16 %v9273, %v9272
    %v9404 = vpack.c.b16 %v9275, %v9274
    %v9405 = vpack.c.b16 %v9277, %v9276
    %v9406 = vpack.c.b16 %v9279, %v9278
    %v9407 = vpack.c.b16 %v9281, %v9280
    %v9408 = vpack.c.b16 %v9283, %v9282
    %v9409 = vpack.c.b16 %v9285, %v9284
    %v9410 = vpack.c.b16 %v9287, %v9286
    %v9411 = vpack.c.b16 %v9289, %v9288
    %v9412 = vpack.c.b16 %v9291, %v9290
    %v9413 = vpack.c.b16 %v9293, %v9292
    %v9414 = vpack.c.b16 %v9295, %v9294
    %v9415 = vpack.c.b16 %v9297, %v9296
    %v9416 = vpack.c.b16 %v9299, %v9298
    %v9417 = vpack.c.b16 %v9301, %v9300
    %v9418 = vpack.c.b16 %v9303, %v9302
    %v9419 = vpack.c.b16 %v9305, %v9304
    %v9420 = vpack.c.b16 %v9307, %v9306
    %v9421 = vpack.c.b16 %v9309, %v9308
    %v9422 = vpack.c.b16 %v9311, %v9310
    %v9423 = vpack.c.b16 %v9313, %v9312
    %v9424 = vpack.c.b16 %v9315, %v9314
    %v9425 = vpack.c.b16 %v9317, %v9316
    %v9426 = vpack.c.b16 %v9319, %v9318
    %v9427 = vpack.c.b16 %v9321, %v9320
    %v9428 = vpack.c.b16 %v9323, %v9322
    %v9429 = vpack.c.b16 %v9325, %v9324
    %v9430 = vpack.c.b16 %v9327, %v9326
    %v9431 = vpack.c.b16 %v9329, %v9328
    %v9432 = vpack.c.b16 %v9331, %v9330
    %v9433 = vpack.c.b16 %v9333, %v9332
    %v9434 = vpack.c.b16 %v9335, %v9334
    %v9435 = vpack.c.b16 %v9337, %v9336
    %v9436 = vpack.c.b16 %v9339, %v9338
    %v9437 = vpack.c.b16 %v9341, %v9340
    %v9438 = vpack.c.b16 %v9343, %v9342
    %v9439 = vpack.c.b16 %v9345, %v9344
    %v9440 = vpack.c.b16 %v9347, %v9346
    %v9441 = vpack.c.b16 %v9349, %v9348
    %v9442 = vpack.c.b16 %v9351, %v9350
    %v9443 = vpack.c.b16 %v9353, %v9352
    %v9444 = vpack.c.b16 %v9355, %v9354
    %v9445 = vpack.c.b16 %v9357, %v9356
    %v9446 = vpack.c.b16 %v9359, %v9358
    %v9447 = vpack.c.b16 %v9361, %v9360
    %v9448 = vpack.c.b16 %v9363, %v9362
    %v9449 = vpack.c.b16 %v9365, %v9364
    %v9450 = vpack.c.b16 %v9367, %v9366
    %v9451 = vpack.c.b16 %v9369, %v9368
    %v9452 = vpack.c.b16 %v9371, %v9370
    %v9453 = vpack.c.b16 %v9373, %v9372
    %v9454 = vpack.c.b16 %v9375, %v9374
    %v9455 = vpack.c.b16 %v9377, %v9376
    %v9456 = vpack.c.b16 %v9379, %v9378
    %v9457 = vpack.c.b16 %v9381, %v9380
    %v9458 = vpack.c.b16 %v9383, %v9382
    %v9459 = vpack.c.b16 %v9385, %v9384
    %v9460 = vpack.c.b16 %v9387, %v9386
    %v9461 = vpack.c.b16 %v9389, %v9388
    %9534 = vmatprep.subr.bf16.mxu0 0
    %9535 = vmatpush1.bf16.msra.mxu0 %v9397
    %9536 = vmatprep.subr.bf16.mxu0 0
    %9537 = vmatpush1.bf16.msra.mxu0 %v9396
    %9538 = vmatprep.subr.bf16.mxu0 0
    %9539 = vmatpush1.bf16.msra.mxu0 %v9395
    %9540 = vmatprep.subr.bf16.mxu0 0
    %9541 = vmatpush1.bf16.msra.mxu0 %v9394
    %9542 = vmatprep.subr.bf16.mxu0 0
    %9543 = vmatpush1.bf16.msra.mxu0 %v9393
    %9544 = vmatprep.subr.bf16.mxu0 0
    %9545 = vmatpush1.bf16.msra.mxu0 %v9392
    %9546 = vmatprep.subr.bf16.mxu0 0
    %9547 = vmatpush1.bf16.msra.mxu0 %v9391
    %9548 = vmatprep.subr.bf16.mxu0 0
    %9549 = vmatpush1.bf16.msra.mxu0 %v9390
    %9550 = vmatprep.subr.bf16.mxu0 0
    %9551 = vmatpush2.bf16.msra.mxu0 %v9405
    %9552 = vmatprep.subr.bf16.mxu0 0
    %9553 = vmatpush2.bf16.msra.mxu0 %v9404
    %9554 = vmatprep.subr.bf16.mxu0 0
    %9555 = vmatpush2.bf16.msra.mxu0 %v9403
    %9556 = vmatprep.subr.bf16.mxu0 0
    %9557 = vmatpush2.bf16.msra.mxu0 %v9402
    %9558 = vmatprep.subr.bf16.mxu0 0
    %9559 = vmatpush2.bf16.msra.mxu0 %v9401
    %9560 = vmatprep.subr.bf16.mxu0 0
    %9561 = vmatpush2.bf16.msra.mxu0 %v9400
    %9562 = vmatprep.subr.bf16.mxu0 0
    %9563 = vmatpush2.bf16.msra.mxu0 %v9399
    %9564 = vmatprep.subr.bf16.mxu0 0
    %9565 = vmatpush2.bf16.msra.mxu0 %v9398
    %9566 = vmatprep.mubr.bf16.mxu0 %v8941
    %9567 = vmatmul.mubr.bf16.gmra.mxu0 %v8940
    %v9568 = vpop.f32.mrf.mxu0
    %v9569 = vadd.f32 0.0, %v9568
    %v9570 = vpop.f32.mrf.mxu0
    %v9571 = vpop.f32.mrf.mxu0
    %v9572 = vadd.f32 0.0, %v9571
    %v9573 = vpop.f32.mrf.mxu0
    %9574 = vmatprep.mubr.bf16.mxu0 %v8950
    %9575 = vmatmul.mubr.bf16.gmra.mxu0 %v8949
    %v9576 = vpop.f32.mrf.mxu0
    %v9577 = vadd.f32 0.0, %v9576
    %v9578 = vpop.f32.mrf.mxu0
    %v9579 = vpop.f32.mrf.mxu0
    %v9580 = vadd.f32 0.0, %v9579
    %v9581 = vpop.f32.mrf.mxu0
    %9582 = vdwg.mxu0
    %9583 = vmatprep.subr.bf16.mxu0 0
    %9584 = vmatpush1.bf16.msra.mxu0 %v9413
    %9585 = vmatprep.subr.bf16.mxu0 0
    %9586 = vmatpush1.bf16.msra.mxu0 %v9412
    %9587 = vmatprep.subr.bf16.mxu0 0
    %9588 = vmatpush1.bf16.msra.mxu0 %v9411
    %9589 = vmatprep.subr.bf16.mxu0 0
    %9590 = vmatpush1.bf16.msra.mxu0 %v9410
    %9591 = vmatprep.subr.bf16.mxu0 0
    %9592 = vmatpush1.bf16.msra.mxu0 %v9409
    %9593 = vmatprep.subr.bf16.mxu0 0
    %9594 = vmatpush1.bf16.msra.mxu0 %v9408
    %9595 = vmatprep.subr.bf16.mxu0 0
    %9596 = vmatpush1.bf16.msra.mxu0 %v9407
    %9597 = vmatprep.subr.bf16.mxu0 0
    %9598 = vmatpush1.bf16.msra.mxu0 %v9406
    %9599 = vmatprep.subr.bf16.mxu0 0
    %9600 = vmatpush2.bf16.msra.mxu0 %v9421
    %9601 = vmatprep.subr.bf16.mxu0 0
    %9602 = vmatpush2.bf16.msra.mxu0 %v9420
    %9603 = vmatprep.subr.bf16.mxu0 0
    %9604 = vmatpush2.bf16.msra.mxu0 %v9419
    %9605 = vmatprep.subr.bf16.mxu0 0
    %9606 = vmatpush2.bf16.msra.mxu0 %v9418
    %9607 = vmatprep.subr.bf16.mxu0 0
    %9608 = vmatpush2.bf16.msra.mxu0 %v9417
    %9609 = vmatprep.subr.bf16.mxu0 0
    %9610 = vmatpush2.bf16.msra.mxu0 %v9416
    %9611 = vmatprep.subr.bf16.mxu0 0
    %9612 = vmatpush2.bf16.msra.mxu0 %v9415
    %9613 = vmatprep.subr.bf16.mxu0 0
    %9614 = vmatpush2.bf16.msra.mxu0 %v9414
    %9615 = vmatprep.mubr.bf16.mxu0 %v8943
    %9616 = vmatmul.mubr.bf16.gmra.mxu0 %v8942
    %v9617 = vpop.f32.mrf.mxu0
    %v9618 = vadd.f32 %v9569, %v9617
    %v9619 = vpop.f32.mrf.mxu0
    %v9620 = vpop.f32.mrf.mxu0
    %v9621 = vadd.f32 %v9572, %v9620
    %v9622 = vpop.f32.mrf.mxu0
    %9623 = vmatprep.mubr.bf16.mxu0 %v8952
    %9624 = vmatmul.mubr.bf16.gmra.mxu0 %v8951
    %v9625 = vpop.f32.mrf.mxu0
    %v9626 = vadd.f32 %v9577, %v9625
    %v9627 = vpop.f32.mrf.mxu0
    %v9628 = vpop.f32.mrf.mxu0
    %v9629 = vadd.f32 %v9580, %v9628
    %v9630 = vpop.f32.mrf.mxu0
    %9631 = vdwg.mxu0
    %9632 = vmatprep.subr.bf16.mxu0 0
    %9633 = vmatpush1.bf16.msra.mxu0 %v9429
    %9634 = vmatprep.subr.bf16.mxu0 0
    %9635 = vmatpush1.bf16.msra.mxu0 %v9428
    %9636 = vmatprep.subr.bf16.mxu0 0
    %9637 = vmatpush1.bf16.msra.mxu0 %v9427
    %9638 = vmatprep.subr.bf16.mxu0 0
    %9639 = vmatpush1.bf16.msra.mxu0 %v9426
    %9640 = vmatprep.subr.bf16.mxu0 0
    %9641 = vmatpush1.bf16.msra.mxu0 %v9425
    %9642 = vmatprep.subr.bf16.mxu0 0
    %9643 = vmatpush1.bf16.msra.mxu0 %v9424
    %9644 = vmatprep.subr.bf16.mxu0 0
    %9645 = vmatpush1.bf16.msra.mxu0 %v9423
    %9646 = vmatprep.subr.bf16.mxu0 0
    %9647 = vmatpush1.bf16.msra.mxu0 %v9422
    %9648 = vmatprep.subr.bf16.mxu0 0
    %9649 = vmatpush2.bf16.msra.mxu0 %v9437
    %9650 = vmatprep.subr.bf16.mxu0 0
    %9651 = vmatpush2.bf16.msra.mxu0 %v9436
    %9652 = vmatprep.subr.bf16.mxu0 0
    %9653 = vmatpush2.bf16.msra.mxu0 %v9435
    %9654 = vmatprep.subr.bf16.mxu0 0
    %9655 = vmatpush2.bf16.msra.mxu0 %v9434
    %9656 = vmatprep.subr.bf16.mxu0 0
    %9657 = vmatpush2.bf16.msra.mxu0 %v9433
    %9658 = vmatprep.subr.bf16.mxu0 0
    %9659 = vmatpush2.bf16.msra.mxu0 %v9432
    %9660 = vmatprep.subr.bf16.mxu0 0
    %9661 = vmatpush2.bf16.msra.mxu0 %v9431
    %9662 = vmatprep.subr.bf16.mxu0 0
    %9663 = vmatpush2.bf16.msra.mxu0 %v9430
    %9664 = vmatprep.mubr.bf16.mxu0 %v8945
    %9665 = vmatmul.mubr.bf16.gmra.mxu0 %v8944
    %v9666 = vpop.f32.mrf.mxu0
    %v9667 = vadd.f32 %v9618, %v9666
    %v9668 = vpop.f32.mrf.mxu0
    %v9669 = vpop.f32.mrf.mxu0
    %v9670 = vadd.f32 %v9621, %v9669
    %v9671 = vpop.f32.mrf.mxu0
    %9672 = vmatprep.mubr.bf16.mxu0 %v8954
    %9673 = vmatmul.mubr.bf16.gmra.mxu0 %v8953
    %v9674 = vpop.f32.mrf.mxu0
    %v9675 = vadd.f32 %v9626, %v9674
    %v9676 = vpop.f32.mrf.mxu0
    %v9677 = vpop.f32.mrf.mxu0
    %v9678 = vadd.f32 %v9629, %v9677
    %v9679 = vpop.f32.mrf.mxu0
    %9680 = vdwg.mxu0
    %9681 = vmatprep.subr.bf16.mxu0 0
    %9682 = vmatpush1.bf16.msra.mxu0 %v9445
    %9683 = vmatprep.subr.bf16.mxu0 0
    %9684 = vmatpush1.bf16.msra.mxu0 %v9444
    %9685 = vmatprep.subr.bf16.mxu0 0
    %9686 = vmatpush1.bf16.msra.mxu0 %v9443
    %9687 = vmatprep.subr.bf16.mxu0 0
    %9688 = vmatpush1.bf16.msra.mxu0 %v9442
    %9689 = vmatprep.subr.bf16.mxu0 0
    %9690 = vmatpush1.bf16.msra.mxu0 %v9441
    %9691 = vmatprep.subr.bf16.mxu0 0
    %9692 = vmatpush1.bf16.msra.mxu0 %v9440
    %9693 = vmatprep.subr.bf16.mxu0 0
    %9694 = vmatpush1.bf16.msra.mxu0 %v9439
    %9695 = vmatprep.subr.bf16.mxu0 0
    %9696 = vmatpush1.bf16.msra.mxu0 %v9438
    %9697 = vmatprep.subr.bf16.mxu0 0
    %9698 = vmatpush2.bf16.msra.mxu0 %v9453
    %9699 = vmatprep.subr.bf16.mxu0 0
    %9700 = vmatpush2.bf16.msra.mxu0 %v9452
    %9701 = vmatprep.subr.bf16.mxu0 0
    %9702 = vmatpush2.bf16.msra.mxu0 %v9451
    %9703 = vmatprep.subr.bf16.mxu0 0
    %9704 = vmatpush2.bf16.msra.mxu0 %v9450
    %9705 = vmatprep.subr.bf16.mxu0 0
    %9706 = vmatpush2.bf16.msra.mxu0 %v9449
    %9707 = vmatprep.subr.bf16.mxu0 0
    %9708 = vmatpush2.bf16.msra.mxu0 %v9448
    %9709 = vmatprep.subr.bf16.mxu0 0
    %9710 = vmatpush2.bf16.msra.mxu0 %v9447
    %9711 = vmatprep.subr.bf16.mxu0 0
    %9712 = vmatpush2.bf16.msra.mxu0 %v9446
    %9713 = vmatprep.mubr.bf16.mxu0 %v8947
    %9714 = vmatmul.mubr.bf16.gmra.mxu0 %v8946
    %v9715 = vpop.f32.mrf.mxu0
    %v9716 = vadd.f32 %v9667, %v9715
    %v9717 = vpop.f32.mrf.mxu0
    %v9718 = vpop.f32.mrf.mxu0
    %v9719 = vadd.f32 %v9670, %v9718
    %v9720 = vpop.f32.mrf.mxu0
    %9721 = vmatprep.mubr.bf16.mxu0 %v8956
    %9722 = vmatmul.mubr.bf16.gmra.mxu0 %v8955
    %v9723 = vpop.f32.mrf.mxu0
    %v9724 = vadd.f32 %v9675, %v9723
    %v9725 = vpop.f32.mrf.mxu0
    %v9726 = vpop.f32.mrf.mxu0
    %v9727 = vadd.f32 %v9678, %v9726
    %v9728 = vpop.f32.mrf.mxu0
    %9729 = vdwg.mxu0
    %9730 = vmatprep.subr.bf16.mxu0 0
    %9731 = vmatpush1.bf16.msra.mxu0 %v9461
    %9732 = vmatprep.subr.bf16.mxu0 0
    %9733 = vmatpush1.bf16.msra.mxu0 %v9460
    %9734 = vmatprep.subr.bf16.mxu0 0
    %9735 = vmatpush1.bf16.msra.mxu0 %v9459
    %9736 = vmatprep.subr.bf16.mxu0 0
    %9737 = vmatpush1.bf16.msra.mxu0 %v9458
    %9738 = vmatprep.subr.bf16.mxu0 0
    %9739 = vmatpush1.bf16.msra.mxu0 %v9457
    %9740 = vmatprep.subr.bf16.mxu0 0
    %9741 = vmatpush1.bf16.msra.mxu0 %v9456
    %9742 = vmatprep.subr.bf16.mxu0 0
    %9743 = vmatpush1.bf16.msra.mxu0 %v9455
    %9744 = vmatprep.subr.bf16.mxu0 0
    %9745 = vmatpush1.bf16.msra.mxu0 %v9454
    %9746 = vmatprep.subr.bf16.mxu0 0
    %9747 = vmatpush2.bf16.msra.mxu0 0
    %9748 = vmatprep.subr.bf16.mxu0 0
    %9749 = vmatpush2.bf16.msra.mxu0 0
    %9750 = vmatprep.subr.bf16.mxu0 0
    %9751 = vmatpush2.bf16.msra.mxu0 0
    %9752 = vmatprep.subr.bf16.mxu0 0
    %9753 = vmatpush2.bf16.msra.mxu0 0
    %9754 = vmatprep.subr.bf16.mxu0 0
    %9755 = vmatpush2.bf16.msra.mxu0 0
    %9756 = vmatprep.subr.bf16.mxu0 0
    %9757 = vmatpush2.bf16.msra.mxu0 0
    %9758 = vmatprep.subr.bf16.mxu0 0
    %9759 = vmatpush2.bf16.msra.mxu0 0
    %9760 = vmatprep.subr.bf16.mxu0 0
    %9761 = vmatpush2.bf16.msra.mxu0 0
    %9762 = vmatprep.mubr.bf16.mxu0 0
    %9763 = vmatmul.mubr.bf16.gmra.mxu0 %v8948
    %v9764 = vpop.f32.mrf.mxu0
    %v9765 = vadd.f32 %v9716, %v9764
    %v9766 = vpop.f32.mrf.mxu0
    %v9767 = vpop.f32.mrf.mxu0
    %v9768 = vadd.f32 %v9719, %v9767
    %v9769 = vpop.f32.mrf.mxu0
    %9770 = vmatprep.mubr.bf16.mxu0 0
    %9771 = vmatmul.mubr.bf16.gmra.mxu0 %v8957
    %v9772 = vpop.f32.mrf.mxu0
    %v9773 = vadd.f32 %v9724, %v9772
    %v9774 = vpop.f32.mrf.mxu0
    %v9775 = vpop.f32.mrf.mxu0
    %v9776 = vadd.f32 %v9727, %v9775
    %v9777 = vpop.f32.mrf.mxu0
    %9778 = vdwg.mxu0
    %v9779 = vld [vmem:[%s8] sm:$0x1]
    %v9781 = vlaneseq
    %v9782 = vshrl.u32 %v9781, 7
    %v9783 = vsub.s32 0, %v9782
    %v9784 = vrot.slane %v9779, %v9783
    %v9786 = vmul.f32 %v9765, %v9784
    %v9787 = vmul.f32 %v9768, %v9784
    %v9788 = vmul.f32 %v9773, %v9784
    %v9789 = vmul.f32 %v9776, %v9784
    %v9790 = vld [vmem:[%s9] sm:$0x1]
    %v9792 = vlaneseq
    %v9793 = vshrl.u32 %v9792, 7
    %v9794 = vsub.s32 0, %v9793
    %v9795 = vrot.slane %v9790, %v9794
    %v9797 = vadd.f32 %v9786, %v9795
    %v9798 = vadd.f32 %v9787, %v9795
    %v9799 = vadd.f32 %v9788, %v9795
    %v9800 = vadd.f32 %v9789, %v9795
    %v9801 = vmax.f32 %v9797, 0.0
    %v9802 = vmax.f32 %v9798, 0.0
    %v9803 = vmax.f32 %v9799, 0.0
    %v9804 = vmax.f32 %v9800, 0.0
    %v9809 = vcombine.high %v9801, %v9801
    %v9811 = vunpack.c.l.s4 1983009808
    %v9812 = vunpack.c.0.s8 %v9811
    %v9813 = vlaneseq
    %v9814 = vshrl.u32 %v9813, 7
    %v9815 = vsub.s32 %v9812, %v9814
    %v9816 = vrot.slane %v9801, %v9815
    %v9818 = vunpack.c.l.s4 1983009808
    %v9819 = vunpack.c.0.s8 %v9818
    %v9820 = vlaneseq
    %v9821 = vshrl.u32 %v9820, 7
    %v9822 = vsub.s32 %v9819, %v9821
    %v9823 = vrot.slane %v9809, %v9822
    %v9824 = vcombine.high %v9816, %v9816
    %v9825 = vcombine.high %v9823, %v9823
    %v9826 = vcombine.high %v9802, %v9802
    %v9828 = vunpack.c.l.s4 1983009808
    %v9829 = vunpack.c.0.s8 %v9828
    %v9830 = vlaneseq
    %v9831 = vshrl.u32 %v9830, 7
    %v9832 = vsub.s32 %v9829, %v9831
    %v9833 = vrot.slane %v9802, %v9832
    %v9835 = vunpack.c.l.s4 1983009808
    %v9836 = vunpack.c.0.s8 %v9835
    %v9837 = vlaneseq
    %v9838 = vshrl.u32 %v9837, 7
    %v9839 = vsub.s32 %v9836, %v9838
    %v9840 = vrot.slane %v9826, %v9839
    %v9841 = vcombine.high %v9833, %v9833
    %v9842 = vcombine.high %v9840, %v9840
    %v9843 = vcombine.high %v9803, %v9803
    %v9845 = vunpack.c.l.s4 1983009808
    %v9846 = vunpack.c.0.s8 %v9845
    %v9847 = vlaneseq
    %v9848 = vshrl.u32 %v9847, 7
    %v9849 = vsub.s32 %v9846, %v9848
    %v9850 = vrot.slane %v9803, %v9849
    %v9852 = vunpack.c.l.s4 1983009808
    %v9853 = vunpack.c.0.s8 %v9852
    %v9854 = vlaneseq
    %v9855 = vshrl.u32 %v9854, 7
    %v9856 = vsub.s32 %v9853, %v9855
    %v9857 = vrot.slane %v9843, %v9856
    %v9858 = vcombine.high %v9850, %v9850
    %v9859 = vcombine.high %v9857, %v9857
    %v9860 = vcombine.high %v9804, %v9804
    %v9862 = vunpack.c.l.s4 1983009808
    %v9863 = vunpack.c.0.s8 %v9862
    %v9864 = vlaneseq
    %v9865 = vshrl.u32 %v9864, 7
    %v9866 = vsub.s32 %v9863, %v9865
    %v9867 = vrot.slane %v9804, %v9866
    %v9869 = vunpack.c.l.s4 1983009808
    %v9870 = vunpack.c.0.s8 %v9869
    %v9871 = vlaneseq
    %v9872 = vshrl.u32 %v9871, 7
    %v9873 = vsub.s32 %v9870, %v9872
    %v9874 = vrot.slane %v9860, %v9873
    %v9875 = vcombine.high %v9867, %v9867
    %v9876 = vcombine.high %v9874, %v9874
    %v9893 = vrot.slane %v9816, 7
    %v9894 = vrot.slane %v9893, 2
    %v9895 = vrot.slane %v9824, 7
    %v9896 = vrot.slane %v9895, 2
    %v9897 = vrot.slane %v9823, 7
    %v9898 = vrot.slane %v9897, 2
    %v9899 = vrot.slane %v9825, 7
    %v9900 = vrot.slane %v9899, 2
    %v9901 = vrot.slane %v9833, 7
    %v9902 = vrot.slane %v9901, 2
    %v9903 = vrot.slane %v9841, 7
    %v9904 = vrot.slane %v9903, 2
    %v9905 = vrot.slane %v9840, 7
    %v9906 = vrot.slane %v9905, 2
    %v9907 = vrot.slane %v9842, 7
    %v9908 = vrot.slane %v9907, 2
    %v9909 = vrot.slane %v9850, 7
    %v9910 = vrot.slane %v9909, 2
    %v9911 = vrot.slane %v9858, 7
    %v9912 = vrot.slane %v9911, 2
    %v9913 = vrot.slane %v9857, 7
    %v9914 = vrot.slane %v9913, 2
    %v9915 = vrot.slane %v9859, 7
    %v9916 = vrot.slane %v9915, 2
    %v9917 = vrot.slane %v9867, 7
    %v9918 = vrot.slane %v9917, 2
    %v9919 = vrot.slane %v9875, 7
    %v9920 = vrot.slane %v9919, 2
    %v9921 = vrot.slane %v9874, 7
    %v9922 = vrot.slane %v9921, 2
    %v9923 = vrot.slane %v9876, 7
    %v9924 = vrot.slane %v9923, 2
    %v9941 = vmax.f32 %v9816, %v9894
    %v9942 = vmax.f32 %v9824, %v9896
    %v9943 = vmax.f32 %v9823, %v9898
    %v9944 = vmax.f32 %v9825, %v9900
    %v9945 = vmax.f32 %v9833, %v9902
    %v9946 = vmax.f32 %v9841, %v9904
    %v9947 = vmax.f32 %v9840, %v9906
    %v9948 = vmax.f32 %v9842, %v9908
    %v9949 = vmax.f32 %v9850, %v9910
    %v9950 = vmax.f32 %v9858, %v9912
    %v9951 = vmax.f32 %v9857, %v9914
    %v9952 = vmax.f32 %v9859, %v9916
    %v9953 = vmax.f32 %v9867, %v9918
    %v9954 = vmax.f32 %v9875, %v9920
    %v9955 = vmax.f32 %v9874, %v9922
    %v9956 = vmax.f32 %v9876, %v9924
    %v9957 = vmax.f32 %v9941, %v9943
    %v9958 = vmax.f32 %v9942, %v9944
    %v9959 = vmax.f32 %v9945, %v9947
    %v9960 = vmax.f32 %v9946, %v9948
    %v9961 = vmax.f32 %v9949, %v9951
    %v9962 = vmax.f32 %v9950, %v9952
    %v9963 = vmax.f32 %v9953, %v9955
    %v9964 = vmax.f32 %v9954, %v9956
    %v9973 = vlaneseq
    %v9974 = vshrl.u32 %v9973, 7
    %v9975 = vsub.s32 0, %v9974
    %v9976 = vrot.slane %v9957, %v9975
    %v9977 = vlaneseq
    %v9978 = vshrl.u32 %v9977, 7
    %v9979 = vsub.s32 0, %v9978
    %v9980 = vrot.slane %v9958, %v9979
    %v9981 = vlaneseq
    %v9982 = vshrl.u32 %v9981, 7
    %v9983 = vsub.s32 0, %v9982
    %v9984 = vrot.slane %v9959, %v9983
    %v9985 = vlaneseq
    %v9986 = vshrl.u32 %v9985, 7
    %v9987 = vsub.s32 0, %v9986
    %v9988 = vrot.slane %v9960, %v9987
    %v9989 = vlaneseq
    %v9990 = vshrl.u32 %v9989, 7
    %v9991 = vsub.s32 0, %v9990
    %v9992 = vrot.slane %v9961, %v9991
    %v9993 = vlaneseq
    %v9994 = vshrl.u32 %v9993, 7
    %v9995 = vsub.s32 0, %v9994
    %v9996 = vrot.slane %v9962, %v9995
    %v9997 = vlaneseq
    %v9998 = vshrl.u32 %v9997, 7
    %v9999 = vsub.s32 0, %v9998
    %v10000 = vrot.slane %v9963, %v9999
    %v10001 = vlaneseq
    %v10002 = vshrl.u32 %v10001, 7
    %v10003 = vsub.s32 0, %v10002
    %v10004 = vrot.slane %v9964, %v10003
    %vm10005 = vcmask 1041409
    %v10006 = vsel %vm10005, %v9980, %v9976
    %v10007 = vsel %vm6475, %v9984, %v10006
    %v10008 = vsel %vm6477, %v9988, %v10007
    %v10009 = vsel %vm10005, %v9996, %v9992
    %v10010 = vsel %vm6475, %v10000, %v10009
    %v10011 = vsel %vm6477, %v10004, %v10010
    %vm10014 = vcmask 1043456
    %v10015 = vsel %vm10014, %v10008, 0.0
    %v10016 = vrot.slane %v10015, 4
    %v10017 = vadd.f32 %v10015, %v10016
    %v10018 = vrot.slane %v10017, 2
    %v10019 = vadd.f32 %v10017, %v10018
    %v10020 = vrot.slane %v10019, 1
    %v10021 = vadd.f32 %v10019, %v10020
    %v10022 = vsel %vm10014, %v10011, 0.0
    %v10023 = vrot.slane %v10022, 4
    %v10024 = vadd.f32 %v10022, %v10023
    %v10025 = vrot.slane %v10024, 2
    %v10026 = vadd.f32 %v10024, %v10025
    %v10027 = vrot.slane %v10026, 1
    %v10028 = vadd.f32 %v10026, %v10027
    %v10029 = vrcp.pop 4.0
    %v10030 = vmul.f32 %v10021, %v10029
    %v10031 = vmul.f32 %v10028, %v10029
    %v10032 = vpack.c.bf16 %v10030, %v10030
    %v10033 = vpack.c.bf16 %v10031, %v10031
    %v10034 = vld [vmem:[%s10] sm:$0xf]
    %v10035 = vld [vmem:[%s10 + $0x4] sm:$0xf]
    %v10036 = vld [vmem:[%s10 + $0x8] sm:$0xf]
    %v10037 = vld [vmem:[%s10 + $0xc] sm:$0xf]
    %v10038 = vld [vmem:[%s10 + $0x10] sm:$0xf]
    %v10039 = vld [vmem:[%s10 + $0x14] sm:$0xf]
    %v10040 = vld [vmem:[%s10 + $0x18] sm:$0xf]
    %v10041 = vld [vmem:[%s10 + $0x1c] sm:$0xf]
    %v10042 = vld [vmem:[%s10 + $0x20] sm:$0xf]
    %v10043 = vld [vmem:[%s10 + $0x24] sm:$0xf]
    %v10044 = vld [vmem:[%s10 + $0x28] sm:$0xf]
    %v10045 = vld [vmem:[%s10 + $0x2c] sm:$0xf]
    %v10046 = vld [vmem:[%s10 + $0x30] sm:$0xf]
    %v10047 = vld [vmem:[%s10 + $0x34] sm:$0xf]
    %v10048 = vld [vmem:[%s10 + $0x38] sm:$0xf]
    %v10049 = vld [vmem:[%s10 + $0x3c] sm:$0xf]
    %v10050 = vld [vmem:[%s11] sm:$0x1]
    %v10052 = vlaneseq
    %v10053 = vshrl.u32 %v10052, 7
    %v10054 = vsub.s32 0, %v10053
    %v10055 = vrot.slane %v10050, %v10054
    %v10059 = vunpack.c.l.b16 %v10032
    %v10060 = vunpack.c.l.b16 %v10033
    %v10061 = vrot.slane %v10060, 7
    %v10062 = vsel %vm10005, %v10061, %v10059
    %v10063 = vpack.c.b16 %v10062, %v10062
    %v10081 = vunpack.c.l.b16 %v10034
    %v10082 = vunpack.c.l.b16 %v10035
    %v10083 = vunpack.c.l.b16 %v10036
    %v10084 = vunpack.c.l.b16 %v10037
    %v10085 = vunpack.c.l.b16 %v10038
    %v10086 = vunpack.c.l.b16 %v10039
    %v10087 = vunpack.c.l.b16 %v10040
    %v10088 = vunpack.c.l.b16 %v10041
    %v10089 = vunpack.c.l.b16 %v10042
    %v10090 = vunpack.c.l.b16 %v10043
    %v10091 = vunpack.c.l.b16 %v10044
    %v10092 = vunpack.c.l.b16 %v10045
    %v10093 = vunpack.c.l.b16 %v10046
    %v10094 = vunpack.c.l.b16 %v10047
    %v10095 = vunpack.c.l.b16 %v10048
    %v10096 = vunpack.c.l.b16 %v10049
    %v10097 = vpack.c.b16 %v10082, %v10081
    %v10098 = vpack.c.b16 %v10084, %v10083
    %v10099 = vpack.c.b16 %v10086, %v10085
    %v10100 = vpack.c.b16 %v10088, %v10087
    %v10101 = vpack.c.b16 %v10090, %v10089
    %v10102 = vpack.c.b16 %v10092, %v10091
    %v10103 = vpack.c.b16 %v10094, %v10093
    %v10104 = vpack.c.b16 %v10096, %v10095
    %10113 = vmatprep.subr.bf16.mxu0 0
    %10114 = vmatpush1.bf16.msra.mxu0 %v10104
    %10115 = vmatprep.subr.bf16.mxu0 0
    %10116 = vmatpush1.bf16.msra.mxu0 %v10103
    %10117 = vmatprep.subr.bf16.mxu0 0
    %10118 = vmatpush1.bf16.msra.mxu0 %v10102
    %10119 = vmatprep.subr.bf16.mxu0 0
    %10120 = vmatpush1.bf16.msra.mxu0 %v10101
    %10121 = vmatprep.subr.bf16.mxu0 0
    %10122 = vmatpush1.bf16.msra.mxu0 %v10100
    %10123 = vmatprep.subr.bf16.mxu0 0
    %10124 = vmatpush1.bf16.msra.mxu0 %v10099
    %10125 = vmatprep.subr.bf16.mxu0 0
    %10126 = vmatpush1.bf16.msra.mxu0 %v10098
    %10127 = vmatprep.subr.bf16.mxu0 0
    %10128 = vmatpush1.bf16.msra.mxu0 %v10097
    %10129 = vmatprep.subr.bf16.mxu0 0
    %10130 = vmatpush2.bf16.msra.mxu0 0
    %10131 = vmatprep.subr.bf16.mxu0 0
    %10132 = vmatpush2.bf16.msra.mxu0 0
    %10133 = vmatprep.subr.bf16.mxu0 0
    %10134 = vmatpush2.bf16.msra.mxu0 0
    %10135 = vmatprep.subr.bf16.mxu0 0
    %10136 = vmatpush2.bf16.msra.mxu0 0
    %10137 = vmatprep.subr.bf16.mxu0 0
    %10138 = vmatpush2.bf16.msra.mxu0 0
    %10139 = vmatprep.subr.bf16.mxu0 0
    %10140 = vmatpush2.bf16.msra.mxu0 0
    %10141 = vmatprep.subr.bf16.mxu0 0
    %10142 = vmatpush2.bf16.msra.mxu0 0
    %10143 = vmatprep.subr.bf16.mxu0 0
    %10144 = vmatpush2.bf16.msra.mxu0 0
    %10145 = vmatprep.mubr.bf16.mxu0 0
    %10146 = vmatmul.mubr.bf16.gmra.mxu0 %v10063
    %v10147 = vpop.f32.mrf.mxu0
    %v10148 = vadd.f32 %v10055, %v10147
    %v10149 = vpop.f32.mrf.mxu0
    %v10150 = vpop.f32.mrf.mxu0
    %v10151 = vpop.f32.mrf.mxu0
    %10152 = vdwg.mxu0
    %10153 = vst [vmem:[#allocation2] sm:$0x3] %v10148
    // Predicated region
    $region50: #{cnn_forward_pallas.1} parent=1 // pred_check
      _
    $region51: #{cnn_forward_pallas.1} parent=1 // pred_check_branch
      %10155 = sbr.rel (0) target = $region53
    $region52: #{cnn_forward_pallas.1} parent=1 // pred_region
      %s10157 = ssub.s32 32, 32
      %10158 = vsyncadd [#allocation3], %s10157
      %s10160 = sshll.u32 [#allocation2], 4
      %s10161 = int_to_ptr.vmem [resolvable:$true] %s10160
      %10163 = dma.vmem_to_hbm [thread:$0]  %s10161, 32, %s12, [#allocation3]
    $region53: #{cnn_forward_pallas.1} parent=1 // pred_fallthru
      _
    // Predicated region
    $region54: #{cnn_forward_pallas.1} parent=1 // pred_check
      _
    $region55: #{cnn_forward_pallas.1} parent=1 // pred_check_branch
      %10165 = sbr.rel (0) target = $region57
    $region56: #{cnn_forward_pallas.1} parent=1 // pred_region
      %10166 = dma.done [#allocation3], 32
    $region57: #{cnn_forward_pallas.1} parent=1 // pred_fallthru
      _
    %10167 = vsyncpa [#allocation3], 1

</llo_original>
